<compile_context>
chip_gen: v6e
topology: v6e:2x2x1
jax: 0.10.0
libtpu: 0.0.40
codegen_flags: <defaults>
</compile_context>

<pallas_src>
import functools
import math

import jax
import jax.numpy as jnp
from jax import lax
from jax.experimental import pallas as pl
from jax.experimental.pallas import tpu as pltpu


# ----------------------------- helpers ---------------------------------------

def _leaky_relu(x, slope=0.01):
    return jnp.where(x >= 0, x, slope * x)


def _dot(a, b):
    return jnp.dot(a, b, preferred_element_type=jnp.float32)


def _round8(x):
    return ((x + 7) // 8) * 8


def _mpnn_layout(H, He):
    """Static row offsets of one _NaiveMPNN's parameters inside the [R, 3H] slab."""
    r_wea_uv = 0                              # [H, 2H]   edge_attend L1 [W_u | W_v]
    r_wea_e = _round8(r_wea_uv + H)           # [He, H]   edge_attend L1 W_e
    r_gcn = _round8(r_wea_e + He)             # [4H, H]   4 stacked GCN weights
    r_gru = _round8(r_gcn + 4 * H)            # [2H, 3H]  [W_ih ; W_hh], cols r|z|n
    r_rm1 = _round8(r_gru + 2 * H)            # [2H, H]   remap L1 (hv rows | hidden rows)
    r_rm2 = _round8(r_rm1 + 2 * H)            # [H, 2H]   remap L2
    r_bias = _round8(r_rm2 + H)               # [11, 3H]  packed biases / vectors
    total = _round8(r_bias + 11)
    return dict(wea_uv=r_wea_uv, wea_e=r_wea_e, gcn=r_gcn, gru=r_gru,
                rm1=r_rm1, rm2=r_rm2, bias=r_bias, total=total)


def _shared_layout(H):
    r_vp = 0                                  # [H+3, H]  vp_linear weight (rows hv|pos)
    r_bvp = _round8(r_vp + H + 3)             # [1, H]    vp_linear bias
    r_mlp = _round8(r_bvp + 1)                # [2H, 128] head weight (lane-padded)
    total = _round8(r_mlp + 2 * H)
    return dict(vp=r_vp, bvp=r_bvp, mlp=r_mlp, total=total)


# ----------------------------- fused Pallas kernel ----------------------------

def _cvgae_fused_kernel(hv_ref, he_ref, vew1_ref, vew2_ref, pos_ref, eps_ref,
                        mp_ref, sh_ref, out_ref, *, hv_dim, he_dim):
    """Fused eval forward for ONE graph: vp_linear -> post MPNN -> sample -> pred MPNN -> head."""
    H, He = hv_dim, he_dim
    lay = _mpnn_layout(H, He)
    slay = _shared_layout(H)

    hv = hv_ref[...]          # [Nv, H]
    he = he_ref[...]          # [Ne, He]
    vew1 = vew1_ref[...]      # [Nv, Ne]
    vew2 = vew2_ref[...]      # [Nv, Ne]

    nv = hv.shape[0]
    ones_col = jnp.ones((nv, 1), jnp.float32)
    ones_row = jnp.ones((1, nv), jnp.float32)

    def dg(a, b, dims):
        # dot_general with transposed contracting dims (TN/NT forms, MXU-native).
        return lax.dot_general(a, b, (dims, ((), ())),
                               preferred_element_type=jnp.float32)

    def build_adj(hv_in, idx):
        """Edge attention + adjacency + normalization.  idx: 0=post, 1=pred."""
        wea_uv = mp_ref[idx, lay['wea_uv']:lay['wea_uv'] + H, :2 * H]   # [H, 2H]
        wea_e = mp_ref[idx, lay['wea_e']:lay['wea_e'] + He, :H]         # [He, H]
        bsl = mp_ref[idx, lay['bias']:lay['bias'] + 11, :]              # [11, 3H]
        bea1 = bsl[0:1, :H]
        wea2 = bsl[1:2, :H]        # edge_attend L2 weight as a [1, H] row
        bea2 = bsl[2:3, 0:1]       # edge_attend L2 bias (scalar)

        # hv_u / hv_v via TN matmuls (no transposed copies in HBM).
        hv1 = dg(vew1, hv_in, ((0,), (0,)))    # vew1.T @ hv   [Ne, H]
        hv2 = dg(vew2, hv_in, ((0,), (0,)))    # vew2.T @ hv   [Ne, H]
        he_term = _dot(he, wea_e)              # [Ne, H]

        # Column-packed [W_u | W_v]: 2 matmuls instead of 4; the two edge directions
        # (A: u<-vew1,v<-vew2 ; B: swapped) are formed by slicing 2H-wide results.
        g1 = _dot(hv1, wea_uv)                 # [Ne, 2H]
        g2 = _dot(hv2, wea_uv)                 # [Ne, 2H]
        h1_a = _leaky_relu(g1[:, :H] + he_term + g2[:, H:] + bea1)
        h1_b = _leaky_relu(g2[:, :H] + he_term + g1[:, H:] + bea1)

        # edge_attend layer 2: reduction on the MXU, row-oriented outputs [1, Ne].
        ew_a = jax.nn.sigmoid(dg(wea2, h1_a, ((1,), (1,))) + bea2)      # [1, Ne]
        ew_b = jax.nn.sigmoid(dg(wea2, h1_b, ((1,), (1,))) + bea2)      # [1, Ne]

        # adj = vew1 @ diag(ew_a) @ vew2.T + vew2 @ diag(ew_b) @ vew1.T  (NT matmuls)
        adj = (dg(vew1 * ew_a, vew2, ((1,), (1,)))
               + dg(vew2 * ew_b, vew1, ((1,), (1,))))                   # [Nv, Nv]

        # TODO(synk): normalize_adj_rc source not provided; using D_r^-1/2 A D_c^-1/2 (+eps).
        d_r = lax.rsqrt(_dot(adj, ones_col) + 1e-5)     # [Nv, 1]  (row sums via MXU)
        d_c = lax.rsqrt(_dot(ones_row, adj) + 1e-5)     # [1, Nv]  (col sums via MXU)
        return adj * d_r * d_c

    def gru_remap(hv_in, hidden0, adj_n, idx):
        """4 x (GCN -> GRUCell) then the remap MLP.  idx: 0=post, 1=pred."""
        w_gcn = mp_ref[idx, lay['gcn']:lay['gcn'] + 4 * H, :H]      # [4H, H]
        w_gru = mp_ref[idx, lay['gru']:lay['gru'] + 2 * H, :]       # [2H, 3H]
        w_rm1 = mp_ref[idx, lay['rm1']:lay['rm1'] + 2 * H, :H]      # [2H, H]
        w_rm2 = mp_ref[idx, lay['rm2']:lay['rm2'] + H, :2 * H]      # [H, 2H]
        bsl = mp_ref[idx, lay['bias']:lay['bias'] + 11, :]          # [11, 3H]
        b_gcn = bsl[3:7, :H]      # hoisted once: [4, H]
        b_ih = bsl[7:8, :]
        b_hh = bsl[8:9, :]
        br1 = bsl[9:10, :H]
        br2 = bsl[10:11, :2 * H]

        w_ih = w_gru[:H]          # [H, 3H]
        w_hh = w_gru[H:]          # [H, 3H]

        hidden = hidden0
        for layer in range(4):
            wg = w_gcn[layer * H:(layer + 1) * H]
            bg = b_gcn[layer:layer + 1, :]
            # TODO(synk): GCN source not provided; using leaky_relu(adj @ x @ W + b).
            msg = _leaky_relu(_dot(_dot(adj_n, hidden), wg) + bg)
            # torch.nn.GRUCell(message, hidden); gates packed r|z|n.
            gi = _dot(msg, w_ih) + b_ih          # [Nv, 3H]
            gh = _dot(hidden, w_hh) + b_hh       # [Nv, 3H]
            rz = jax.nn.sigmoid(gi[:, :2 * H] + gh[:, :2 * H])   # fused r|z sigmoid
            r = rz[:, :H]
            z = rz[:, H:]
            n = jnp.tanh(gi[:, 2 * H:] + r * gh[:, 2 * H:])
            hidden = (1.0 - z) * n + z * hidden

        # remap MLP: Linear(2H->H)+LeakyReLU+Dropout(eval=id)+Linear(H->2H)
        r1 = _leaky_relu(_dot(hv_in, w_rm1[:H]) + _dot(hidden, w_rm1[H:]) + br1)
        return _dot(r1, w_rm2) + br2             # [Nv, 2H]

    # ---- vp_linear + tanh on [hv | pos] (concat-free via weight row blocks)
    w_vp = sh_ref[slay['vp']:slay['vp'] + H + 3, :H]        # [H+3, H]
    b_vp = sh_ref[slay['bvp']:slay['bvp'] + 1, :H]          # [1, H]
    w_mlp = sh_ref[slay['mlp']:slay['mlp'] + 2 * H, :]      # [2H, 128]
    hvp = jnp.tanh(_dot(hv, w_vp[:H]) + _dot(pos_ref[...], w_vp[H:]) + b_vp)

    # NOTE: prior_mpnn is skipped — its output is unused on the eval / given-pos branch.

    # Both adjacency builds hoisted ahead of the strictly serial GRU chains:
    # pred's adjacency depends only on raw hv/he, so the scheduler gets independent
    # MXU/VPU work to hide the EUP latency of the GRU gates.
    adj_post = build_adj(hvp, 0)
    adj_pred = build_adj(hv, 1)

    # ---- post MPNN (hidden init = hvp) -> reparameterized sample (T = 1)
    post_z = gru_remap(hvp, hvp, adj_post, 0)               # [Nv, 2H]
    post_sample = post_z[:, :H] + jnp.exp(0.5 * post_z[:, H:]) * eps_ref[...]

    # ---- pred MPNN with sample_ftr added to the hidden init
    post_x = gru_remap(hv, hv + post_sample, adj_pred, 1)   # [Nv, 2H]

    # ---- CVGAE.mlp head: Linear(2H -> pos_dim), bias=False, lane-padded to 128
    out_ref[...] = _dot(post_x, w_mlp)


# ----------------------------- wrapper ----------------------------------------

def cvgae_forward(hv, he, vew1, vew2, rdkit_conf, eps_post, params, pos_dim):
    B, Nv, H = hv.shape
    _, Ne, He = he.shape
    P = rdkit_conf.shape[-1]

    mp_slab = params['mpnn_slab']       # [2, R_m, 3H]
    sh_slab = params['shared_slab']     # [R_s, 128]

    def graph_spec(shape):
        return pl.BlockSpec((None,) + shape, lambda b: (b,) + (0,) * len(shape))

    kernel = functools.partial(_cvgae_fused_kernel, hv_dim=H, he_dim=He)
    out_pad = pl.pallas_call(
        kernel,
        out_shape=jax.ShapeDtypeStruct((B, Nv, 128), jnp.float32),
        grid=(B,),
        in_specs=[
            graph_spec((Nv, H)),                       # hv
            graph_spec((Ne, He)),                      # he
            graph_spec((Nv, Ne)),                      # vew1
            graph_spec((Nv, Ne)),                      # vew2
            graph_spec((Nv, P)),                       # rdkit_conf
            graph_spec((Nv, H)),                       # eps
            pl.BlockSpec(mp_slab.shape, lambda b: (0, 0, 0)),   # shared params
            pl.BlockSpec(sh_slab.shape, lambda b: (0, 0)),
        ],
        out_specs=pl.BlockSpec((None, Nv, 128), lambda b: (b, 0, 0)),
        compiler_params=pltpu.CompilerParams(dimension_semantics=("parallel",)),
    )(hv, he, vew1, vew2, rdkit_conf, eps_post, mp_slab, sh_slab)

    # need_momentum=False -> (None, pq_ftr, {})
    return None, out_pad[:, :, :pos_dim], {}


# ----------------------------- parameter init ---------------------------------

def _uniform(key, shape, bound):
    return jax.random.uniform(key, shape, jnp.float32, -bound, bound)


def init_mpnn_slab(key, H, He):
    """One _NaiveMPNN's parameters packed into a single [R, 3H] slab."""
    lay = _mpnn_layout(H, He)
    W3 = 3 * H
    ks = iter(jax.random.split(key, 16))

    b1 = 1.0 / math.sqrt(2 * H + He)           # edge_attend layer 1 (2H+He -> H)
    w_u = _uniform(next(ks), (H, H), b1)
    w_e = _uniform(next(ks), (He, H), b1)
    w_v = _uniform(next(ks), (H, H), b1)
    bea1 = _uniform(next(ks), (H,), b1)
    b2 = 1.0 / math.sqrt(H)                    # edge_attend layer 2 (H -> 1)
    wea2 = _uniform(next(ks), (H,), b2)
    bea2 = _uniform(next(ks), (1,), b2)

    bg = 1.0 / math.sqrt(H)                    # 4 GCN layers
    w_gcn = _uniform(next(ks), (4 * H, H), bg)
    b_gcn = _uniform(next(ks), (4, H), bg)

    bgr = 1.0 / math.sqrt(H)                   # GRUCell (cols packed r|z|n)
    w_gru = _uniform(next(ks), (2 * H, W3), bgr)   # rows: [W_ih ; W_hh]
    b_ih = _uniform(next(ks), (W3,), bgr)
    b_hh = _uniform(next(ks), (W3,), bgr)

    br1b = 1.0 / math.sqrt(2 * H)              # remap layer 1 (2H -> H)
    w_rm1 = _uniform(next(ks), (2 * H, H), br1b)
    br1 = _uniform(next(ks), (H,), br1b)
    br2b = 1.0 / math.sqrt(H)                  # remap layer 2 (H -> 2H)
    w_rm2 = _uniform(next(ks), (H, 2 * H), br2b)
    br2 = _uniform(next(ks), (2 * H,), br2b)

    slab = jnp.zeros((lay['total'], W3), jnp.float32)
    slab = slab.at[lay['wea_uv']:lay['wea_uv'] + H, :2 * H].set(
        jnp.concatenate([w_u, w_v], axis=1))
    slab = slab.at[lay['wea_e']:lay['wea_e'] + He, :H].set(w_e)
    slab = slab.at[lay['gcn']:lay['gcn'] + 4 * H, :H].set(w_gcn)
    slab = slab.at[lay['gru']:lay['gru'] + 2 * H, :].set(w_gru)
    slab = slab.at[lay['rm1']:lay['rm1'] + 2 * H, :H].set(w_rm1)
    slab = slab.at[lay['rm2']:lay['rm2'] + H, :2 * H].set(w_rm2)

    rb = lay['bias']
    slab = slab.at[rb + 0, :H].set(bea1)
    slab = slab.at[rb + 1, :H].set(wea2)
    slab = slab.at[rb + 2, 0].set(bea2[0])
    slab = slab.at[rb + 3:rb + 7, :H].set(b_gcn)
    slab = slab.at[rb + 7, :].set(b_ih)
    slab = slab.at[rb + 8, :].set(b_hh)
    slab = slab.at[rb + 9, :H].set(br1)
    slab = slab.at[rb + 10, :2 * H].set(br2)
    return slab


def init_cvgae_params(key, hv_dim, he_dim, pos_dim):
    k_post, k_pred, k_vp, k_mlp = jax.random.split(key, 4)
    mpnn_slab = jnp.stack([init_mpnn_slab(k_post, hv_dim, he_dim),
                           init_mpnn_slab(k_pred, hv_dim, he_dim)])   # [2, R_m, 3H]

    slay = _shared_layout(hv_dim)
    shared = jnp.zeros((slay['total'], 128), jnp.float32)

    bvp = 1.0 / math.sqrt(hv_dim + 3)
    kv1, kv2 = jax.random.split(k_vp)
    w_vp = _uniform(kv1, (hv_dim + 3, hv_dim), bvp)     # rows: [hv ; pos]
    b_vp = _uniform(kv2, (hv_dim,), bvp)
    bml = 1.0 / math.sqrt(2 * hv_dim)
    w_mlp = _uniform(k_mlp, (2 * hv_dim, pos_dim), bml)

    shared = shared.at[slay['vp']:slay['vp'] + hv_dim + 3, :hv_dim].set(w_vp)
    shared = shared.at[slay['bvp'], :hv_dim].set(b_vp)
    shared = shared.at[slay['mlp']:slay['mlp'] + 2 * hv_dim, :pos_dim].set(w_mlp)

    return {'mpnn_slab': mpnn_slab, 'shared_slab': shared}


# ----------------------------- main --------------------------------------------

if __name__ == "__main__":
    HV_DIM, HE_DIM, POS_DIM = 32, 16, 3
    N_V, N_E, BATCH = 8, 10, 4

    key = jax.random.PRNGKey(0)
    k_in, k_par, k_eps = jax.random.split(key, 3)
    k1, k2, k3, k4, k5 = jax.random.split(k_in, 5)

    hv_ftr = jax.random.normal(k1, (BATCH, N_V, HV_DIM), jnp.float32)
    he_ftr = jax.random.normal(k2, (BATCH, N_E, HE_DIM), jnp.float32)
    src = jax.random.randint(k3, (BATCH, N_E), 0, N_V)
    dst = jax.random.randint(k4, (BATCH, N_E), 0, N_V)
    vew1 = jnp.swapaxes(jax.nn.one_hot(src, N_V, dtype=jnp.float32), 1, 2)  # [B, N_V, N_E]
    vew2 = jnp.swapaxes(jax.nn.one_hot(dst, N_V, dtype=jnp.float32), 1, 2)  # [B, N_V, N_E]
    rdkit_conf = jax.random.normal(k5, (BATCH, N_V, POS_DIM), jnp.float32)
    eps_post = jax.random.normal(k_eps, (BATCH, N_V, HV_DIM), jnp.float32)  # reparam noise

    params = init_cvgae_params(k_par, HV_DIM, HE_DIM, POS_DIM)

    fwd = jax.jit(cvgae_forward, static_argnames=('pos_dim',))
    p_ftr, pq_ftr, return_dict = fwd(hv_ftr, he_ftr, vew1, vew2, rdkit_conf,
                                     eps_post, params, pos_dim=POS_DIM)
    jax.block_until_ready(pq_ftr)

    assert p_ftr is None
    assert pq_ftr.shape == (BATCH, N_V, POS_DIM)
    assert pq_ftr.dtype == jnp.float32
    assert bool(jnp.all(jnp.isfinite(pq_ftr)))
    print("KERNEL_OK")
</pallas_src>

<mosaic_0001>
module attributes {stable_mosaic.version = 11 : i64} {
  func.func @_cvgae_fused_kernel(%arg0: i32, %arg1: memref<1x8x32xf32, #tpu.memory_space<vmem>>, %arg2: memref<1x10x16xf32, #tpu.memory_space<vmem>>, %arg3: memref<1x8x10xf32, #tpu.memory_space<vmem>>, %arg4: memref<1x8x10xf32, #tpu.memory_space<vmem>>, %arg5: memref<1x8x3xf32, #tpu.memory_space<vmem>>, %arg6: memref<1x8x32xf32, #tpu.memory_space<vmem>>, %arg7: memref<2x352x96xf32, #tpu.memory_space<vmem>>, %arg8: memref<112x128xf32, #tpu.memory_space<vmem>>, %arg9: memref<1x8x128xf32, #tpu.memory_space<vmem>>) attributes {dimension_semantics = [#tpu.dimension_semantics<parallel>], iteration_bounds = array<i64: 4>, scalar_prefetch = 0 : i64, scratch_operands = 0 : i64, tpu.core_type = #tpu.core_type<tc>, window_params = [{transform_indices = @transform_0, window_bounds = array<i64: 1, 8, 32>}, {transform_indices = @transform_1, window_bounds = array<i64: 1, 10, 16>}, {transform_indices = @transform_2, window_bounds = array<i64: 1, 8, 10>}, {transform_indices = @transform_3, window_bounds = array<i64: 1, 8, 10>}, {transform_indices = @transform_4, window_bounds = array<i64: 1, 8, 3>}, {transform_indices = @transform_5, window_bounds = array<i64: 1, 8, 32>}, {pipeline_mode = #tpu.pipeline_mode<synchronous>, transform_indices = @transform_6, window_bounds = array<i64: 2, 352, 96>}, {pipeline_mode = #tpu.pipeline_mode<synchronous>, transform_indices = @transform_7, window_bounds = array<i64: 112, 128>}, {transform_indices = @transform_8, window_bounds = array<i64: 1, 8, 128>}]} {
    %c0 = arith.constant 0 : index
    %c0_0 = arith.constant 0 : index
    %c0_1 = arith.constant 0 : index
    %0 = vector.load %arg1[%c0, %c0_0, %c0_1] : memref<1x8x32xf32, #tpu.memory_space<vmem>>, vector<1x8x32xf32>
    %1 = vector.shape_cast %0 : vector<1x8x32xf32> to vector<8x32xf32>
    %c0_2 = arith.constant 0 : index
    %c0_3 = arith.constant 0 : index
    %c0_4 = arith.constant 0 : index
    %2 = vector.load %arg2[%c0_2, %c0_3, %c0_4] : memref<1x10x16xf32, #tpu.memory_space<vmem>>, vector<1x10x16xf32>
    %3 = vector.shape_cast %2 : vector<1x10x16xf32> to vector<10x16xf32>
    %c0_5 = arith.constant 0 : index
    %c0_6 = arith.constant 0 : index
    %c0_7 = arith.constant 0 : index
    %4 = vector.load %arg3[%c0_5, %c0_6, %c0_7] : memref<1x8x10xf32, #tpu.memory_space<vmem>>, vector<1x8x10xf32>
    %5 = vector.shape_cast %4 : vector<1x8x10xf32> to vector<8x10xf32>
    %c0_8 = arith.constant 0 : index
    %c0_9 = arith.constant 0 : index
    %c0_10 = arith.constant 0 : index
    %6 = vector.load %arg4[%c0_8, %c0_9, %c0_10] : memref<1x8x10xf32, #tpu.memory_space<vmem>>, vector<1x8x10xf32>
    %7 = vector.shape_cast %6 : vector<1x8x10xf32> to vector<8x10xf32>
    %cst = arith.constant 1.000000e+00 : f32
    %8 = vector.broadcast %cst : f32 to vector<8x1xf32>
    %cst_11 = arith.constant 1.000000e+00 : f32
    %9 = vector.broadcast %cst_11 : f32 to vector<1x8xf32>
    %c0_12 = arith.constant 0 : index
    %c0_13 = arith.constant 0 : index
    %10 = vector.load %arg8[%c0_12, %c0_13] : memref<112x128xf32, #tpu.memory_space<vmem>>, vector<35x32xf32>
    %c40 = arith.constant 40 : index
    %c0_14 = arith.constant 0 : index
    %11 = vector.load %arg8[%c40, %c0_14] : memref<112x128xf32, #tpu.memory_space<vmem>>, vector<1x32xf32>
    %c48 = arith.constant 48 : index
    %c0_15 = arith.constant 0 : index
    %12 = vector.load %arg8[%c48, %c0_15] : memref<112x128xf32, #tpu.memory_space<vmem>>, vector<64x128xf32>
    %13 = vector.extract_strided_slice %10 {offsets = [0, 0], sizes = [32, 32], strides = [1, 1]} : vector<35x32xf32> to vector<32x32xf32>
    %cst_16 = arith.constant dense<0.000000e+00> : vector<8x32xf32>
    %14 = tpu.matmul %1, %13, %cst_16 {dimension_numbers = #tpu.dot_dimension_numbers<[1], [0], [0], [1], [0, 0, 1, 1], [], []>} : vector<8x32xf32>, vector<32x32xf32>, vector<8x32xf32> -> vector<8x32xf32>
    %c0_17 = arith.constant 0 : index
    %c0_18 = arith.constant 0 : index
    %c0_19 = arith.constant 0 : index
    %15 = vector.load %arg5[%c0_17, %c0_18, %c0_19] : memref<1x8x3xf32, #tpu.memory_space<vmem>>, vector<1x8x3xf32>
    %16 = vector.shape_cast %15 : vector<1x8x3xf32> to vector<8x3xf32>
    %17 = vector.extract_strided_slice %10 {offsets = [32, 0], sizes = [3, 32], strides = [1, 1]} : vector<35x32xf32> to vector<3x32xf32>
    %cst_20 = arith.constant dense<0.000000e+00> : vector<8x32xf32>
    %18 = tpu.matmul %16, %17, %cst_20 {dimension_numbers = #tpu.dot_dimension_numbers<[1], [0], [0], [1], [0, 0, 1, 1], [], []>} : vector<8x3xf32>, vector<3x32xf32>, vector<8x32xf32> -> vector<8x32xf32>
    %19 = arith.addf %14, %18 : vector<8x32xf32>
    %20 = vector.broadcast %11 : vector<1x32xf32> to vector<8x32xf32>
    %21 = arith.addf %19, %20 : vector<8x32xf32>
    %22 = math.tanh %21 : vector<8x32xf32>
    %c0_21 = arith.constant 0 : index
    %c0_22 = arith.constant 0 : index
    %c0_23 = arith.constant 0 : index
    %23 = vector.load %arg7[%c0_21, %c0_22, %c0_23] : memref<2x352x96xf32, #tpu.memory_space<vmem>>, vector<1x32x64xf32>
    %24 = vector.shape_cast %23 : vector<1x32x64xf32> to vector<32x64xf32>
    %c0_24 = arith.constant 0 : index
    %c32 = arith.constant 32 : index
    %c0_25 = arith.constant 0 : index
    %25 = vector.load %arg7[%c0_24, %c32, %c0_25] : memref<2x352x96xf32, #tpu.memory_space<vmem>>, vector<1x16x32xf32>
    %26 = vector.shape_cast %25 : vector<1x16x32xf32> to vector<16x32xf32>
    %c0_26 = arith.constant 0 : index
    %c336 = arith.constant 336 : index
    %c0_27 = arith.constant 0 : index
    %27 = vector.load %arg7[%c0_26, %c336, %c0_27] : memref<2x352x96xf32, #tpu.memory_space<vmem>>, vector<1x11x96xf32>
    %28 = vector.shape_cast %27 : vector<1x11x96xf32> to vector<11x96xf32>
    %29 = vector.extract_strided_slice %28 {offsets = [0, 0], sizes = [1, 32], strides = [1, 1]} : vector<11x96xf32> to vector<1x32xf32>
    %30 = vector.extract_strided_slice %28 {offsets = [1, 0], sizes = [1, 32], strides = [1, 1]} : vector<11x96xf32> to vector<1x32xf32>
    %31 = vector.extract_strided_slice %28 {offsets = [2, 0], sizes = [1, 1], strides = [1, 1]} : vector<11x96xf32> to vector<1x1xf32>
    %cst_28 = arith.constant dense<0.000000e+00> : vector<10x32xf32>
    %32 = tpu.matmul %5, %22, %cst_28 {dimension_numbers = #tpu.dot_dimension_numbers<[0], [0], [1], [1], [0, 1, 1, 1], [], []>} : vector<8x10xf32>, vector<8x32xf32>, vector<10x32xf32> -> vector<10x32xf32>
    %cst_29 = arith.constant dense<0.000000e+00> : vector<10x32xf32>
    %33 = tpu.matmul %7, %22, %cst_29 {dimension_numbers = #tpu.dot_dimension_numbers<[0], [0], [1], [1], [0, 1, 1, 1], [], []>} : vector<8x10xf32>, vector<8x32xf32>, vector<10x32xf32> -> vector<10x32xf32>
    %cst_30 = arith.constant dense<0.000000e+00> : vector<10x32xf32>
    %34 = tpu.matmul %3, %26, %cst_30 {dimension_numbers = #tpu.dot_dimension_numbers<[1], [0], [0], [1], [0, 0, 1, 1], [], []>} : vector<10x16xf32>, vector<16x32xf32>, vector<10x32xf32> -> vector<10x32xf32>
    %cst_31 = arith.constant dense<0.000000e+00> : vector<10x64xf32>
    %35 = tpu.matmul %32, %24, %cst_31 {dimension_numbers = #tpu.dot_dimension_numbers<[1], [0], [0], [1], [0, 0, 1, 1], [], []>} : vector<10x32xf32>, vector<32x64xf32>, vector<10x64xf32> -> vector<10x64xf32>
    %cst_32 = arith.constant dense<0.000000e+00> : vector<10x64xf32>
    %36 = tpu.matmul %33, %24, %cst_32 {dimension_numbers = #tpu.dot_dimension_numbers<[1], [0], [0], [1], [0, 0, 1, 1], [], []>} : vector<10x32xf32>, vector<32x64xf32>, vector<10x64xf32> -> vector<10x64xf32>
    %37 = vector.extract_strided_slice %35 {offsets = [0, 0], sizes = [10, 32], strides = [1, 1]} : vector<10x64xf32> to vector<10x32xf32>
    %38 = arith.addf %37, %34 : vector<10x32xf32>
    %39 = vector.extract_strided_slice %36 {offsets = [0, 32], sizes = [10, 32], strides = [1, 1]} : vector<10x64xf32> to vector<10x32xf32>
    %40 = arith.addf %38, %39 : vector<10x32xf32>
    %41 = vector.broadcast %29 : vector<1x32xf32> to vector<10x32xf32>
    %42 = arith.addf %40, %41 : vector<10x32xf32>
    %cst_33 = arith.constant 0.000000e+00 : f32
    %43 = vector.broadcast %cst_33 : f32 to vector<10x32xf32>
    %44 = arith.cmpf oge, %42, %43 : vector<10x32xf32>
    %cst_34 = arith.constant 0.00999999977 : f32
    %45 = vector.broadcast %cst_34 : f32 to vector<10x32xf32>
    %46 = arith.mulf %45, %42 : vector<10x32xf32>
    %47 = arith.select %44, %42, %46 : vector<10x32xi1>, vector<10x32xf32>
    %48 = vector.extract_strided_slice %36 {offsets = [0, 0], sizes = [10, 32], strides = [1, 1]} : vector<10x64xf32> to vector<10x32xf32>
    %49 = arith.addf %48, %34 : vector<10x32xf32>
    %50 = vector.extract_strided_slice %35 {offsets = [0, 32], sizes = [10, 32], strides = [1, 1]} : vector<10x64xf32> to vector<10x32xf32>
    %51 = arith.addf %49, %50 : vector<10x32xf32>
    %52 = vector.broadcast %29 : vector<1x32xf32> to vector<10x32xf32>
    %53 = arith.addf %51, %52 : vector<10x32xf32>
    %cst_35 = arith.constant 0.000000e+00 : f32
    %54 = vector.broadcast %cst_35 : f32 to vector<10x32xf32>
    %55 = arith.cmpf oge, %53, %54 : vector<10x32xf32>
    %cst_36 = arith.constant 0.00999999977 : f32
    %56 = vector.broadcast %cst_36 : f32 to vector<10x32xf32>
    %57 = arith.mulf %56, %53 : vector<10x32xf32>
    %58 = arith.select %55, %53, %57 : vector<10x32xi1>, vector<10x32xf32>
    %cst_37 = arith.constant dense<0.000000e+00> : vector<1x10xf32>
    %59 = tpu.matmul %30, %47, %cst_37 {dimension_numbers = #tpu.dot_dimension_numbers<[1], [1], [0], [0], [0, 0, 1, 0], [], []>} : vector<1x32xf32>, vector<10x32xf32>, vector<1x10xf32> -> vector<1x10xf32>
    %60 = vector.broadcast %31 : vector<1x1xf32> to vector<1x10xf32>
    %61 = arith.addf %59, %60 : vector<1x10xf32>
    %62 = arith.negf %61 : vector<1x10xf32>
    %63 = math.exp %62 : vector<1x10xf32>
    %cst_38 = arith.constant 1.000000e+00 : f32
    %64 = vector.broadcast %cst_38 : f32 to vector<1x10xf32>
    %65 = arith.addf %64, %63 : vector<1x10xf32>
    %66 = arith.divf %64, %65 : vector<1x10xf32>
    %cst_39 = arith.constant dense<0.000000e+00> : vector<1x10xf32>
    %67 = tpu.matmul %30, %58, %cst_39 {dimension_numbers = #tpu.dot_dimension_numbers<[1], [1], [0], [0], [0, 0, 1, 0], [], []>} : vector<1x32xf32>, vector<10x32xf32>, vector<1x10xf32> -> vector<1x10xf32>
    %68 = vector.broadcast %31 : vector<1x1xf32> to vector<1x10xf32>
    %69 = arith.addf %67, %68 : vector<1x10xf32>
    %70 = arith.negf %69 : vector<1x10xf32>
    %71 = math.exp %70 : vector<1x10xf32>
    %cst_40 = arith.constant 1.000000e+00 : f32
    %72 = vector.broadcast %cst_40 : f32 to vector<1x10xf32>
    %73 = arith.addf %72, %71 : vector<1x10xf32>
    %74 = arith.divf %72, %73 : vector<1x10xf32>
    %75 = vector.broadcast %66 : vector<1x10xf32> to vector<8x10xf32>
    %76 = arith.mulf %5, %75 : vector<8x10xf32>
    %cst_41 = arith.constant dense<0.000000e+00> : vector<8x8xf32>
    %77 = tpu.matmul %76, %7, %cst_41 {dimension_numbers = #tpu.dot_dimension_numbers<[1], [1], [0], [0], [0, 0, 1, 0], [], []>} : vector<8x10xf32>, vector<8x10xf32>, vector<8x8xf32> -> vector<8x8xf32>
    %78 = vector.broadcast %74 : vector<1x10xf32> to vector<8x10xf32>
    %79 = arith.mulf %7, %78 : vector<8x10xf32>
    %cst_42 = arith.constant dense<0.000000e+00> : vector<8x8xf32>
    %80 = tpu.matmul %79, %5, %cst_42 {dimension_numbers = #tpu.dot_dimension_numbers<[1], [1], [0], [0], [0, 0, 1, 0], [], []>} : vector<8x10xf32>, vector<8x10xf32>, vector<8x8xf32> -> vector<8x8xf32>
    %81 = arith.addf %77, %80 : vector<8x8xf32>
    %cst_43 = arith.constant dense<0.000000e+00> : vector<8x1xf32>
    %82 = tpu.matmul %81, %8, %cst_43 {dimension_numbers = #tpu.dot_dimension_numbers<[1], [0], [0], [1], [0, 0, 1, 1], [], []>} : vector<8x8xf32>, vector<8x1xf32>, vector<8x1xf32> -> vector<8x1xf32>
    %cst_44 = arith.constant 9.99999974E-6 : f32
    %83 = vector.broadcast %cst_44 : f32 to vector<8x1xf32>
    %84 = arith.addf %82, %83 : vector<8x1xf32>
    %85 = math.rsqrt %84 : vector<8x1xf32>
    %cst_45 = arith.constant dense<0.000000e+00> : vector<1x8xf32>
    %86 = tpu.matmul %9, %81, %cst_45 {dimension_numbers = #tpu.dot_dimension_numbers<[1], [0], [0], [1], [0, 0, 1, 1], [], []>} : vector<1x8xf32>, vector<8x8xf32>, vector<1x8xf32> -> vector<1x8xf32>
    %cst_46 = arith.constant 9.99999974E-6 : f32
    %87 = vector.broadcast %cst_46 : f32 to vector<1x8xf32>
    %88 = arith.addf %86, %87 : vector<1x8xf32>
    %89 = math.rsqrt %88 : vector<1x8xf32>
    %90 = vector.broadcast %85 : vector<8x1xf32> to vector<8x8xf32>
    %91 = arith.mulf %81, %90 : vector<8x8xf32>
    %92 = vector.broadcast %89 : vector<1x8xf32> to vector<8x8xf32>
    %93 = arith.mulf %91, %92 : vector<8x8xf32>
    %c1 = arith.constant 1 : index
    %c0_47 = arith.constant 0 : index
    %c0_48 = arith.constant 0 : index
    %94 = vector.load %arg7[%c1, %c0_47, %c0_48] : memref<2x352x96xf32, #tpu.memory_space<vmem>>, vector<1x32x64xf32>
    %95 = vector.shape_cast %94 : vector<1x32x64xf32> to vector<32x64xf32>
    %c1_49 = arith.constant 1 : index
    %c32_50 = arith.constant 32 : index
    %c0_51 = arith.constant 0 : index
    %96 = vector.load %arg7[%c1_49, %c32_50, %c0_51] : memref<2x352x96xf32, #tpu.memory_space<vmem>>, vector<1x16x32xf32>
    %97 = vector.shape_cast %96 : vector<1x16x32xf32> to vector<16x32xf32>
    %c1_52 = arith.constant 1 : index
    %c336_53 = arith.constant 336 : index
    %c0_54 = arith.constant 0 : index
    %98 = vector.load %arg7[%c1_52, %c336_53, %c0_54] : memref<2x352x96xf32, #tpu.memory_space<vmem>>, vector<1x11x96xf32>
    %99 = vector.shape_cast %98 : vector<1x11x96xf32> to vector<11x96xf32>
    %100 = vector.extract_strided_slice %99 {offsets = [0, 0], sizes = [1, 32], strides = [1, 1]} : vector<11x96xf32> to vector<1x32xf32>
    %101 = vector.extract_strided_slice %99 {offsets = [1, 0], sizes = [1, 32], strides = [1, 1]} : vector<11x96xf32> to vector<1x32xf32>
    %102 = vector.extract_strided_slice %99 {offsets = [2, 0], sizes = [1, 1], strides = [1, 1]} : vector<11x96xf32> to vector<1x1xf32>
    %cst_55 = arith.constant dense<0.000000e+00> : vector<10x32xf32>
    %103 = tpu.matmul %5, %1, %cst_55 {dimension_numbers = #tpu.dot_dimension_numbers<[0], [0], [1], [1], [0, 1, 1, 1], [], []>} : vector<8x10xf32>, vector<8x32xf32>, vector<10x32xf32> -> vector<10x32xf32>
    %cst_56 = arith.constant dense<0.000000e+00> : vector<10x32xf32>
    %104 = tpu.matmul %7, %1, %cst_56 {dimension_numbers = #tpu.dot_dimension_numbers<[0], [0], [1], [1], [0, 1, 1, 1], [], []>} : vector<8x10xf32>, vector<8x32xf32>, vector<10x32xf32> -> vector<10x32xf32>
    %cst_57 = arith.constant dense<0.000000e+00> : vector<10x32xf32>
    %105 = tpu.matmul %3, %97, %cst_57 {dimension_numbers = #tpu.dot_dimension_numbers<[1], [0], [0], [1], [0, 0, 1, 1], [], []>} : vector<10x16xf32>, vector<16x32xf32>, vector<10x32xf32> -> vector<10x32xf32>
    %cst_58 = arith.constant dense<0.000000e+00> : vector<10x64xf32>
    %106 = tpu.matmul %103, %95, %cst_58 {dimension_numbers = #tpu.dot_dimension_numbers<[1], [0], [0], [1], [0, 0, 1, 1], [], []>} : vector<10x32xf32>, vector<32x64xf32>, vector<10x64xf32> -> vector<10x64xf32>
    %cst_59 = arith.constant dense<0.000000e+00> : vector<10x64xf32>
    %107 = tpu.matmul %104, %95, %cst_59 {dimension_numbers = #tpu.dot_dimension_numbers<[1], [0], [0], [1], [0, 0, 1, 1], [], []>} : vector<10x32xf32>, vector<32x64xf32>, vector<10x64xf32> -> vector<10x64xf32>
    %108 = vector.extract_strided_slice %106 {offsets = [0, 0], sizes = [10, 32], strides = [1, 1]} : vector<10x64xf32> to vector<10x32xf32>
    %109 = arith.addf %108, %105 : vector<10x32xf32>
    %110 = vector.extract_strided_slice %107 {offsets = [0, 32], sizes = [10, 32], strides = [1, 1]} : vector<10x64xf32> to vector<10x32xf32>
    %111 = arith.addf %109, %110 : vector<10x32xf32>
    %112 = vector.broadcast %100 : vector<1x32xf32> to vector<10x32xf32>
    %113 = arith.addf %111, %112 : vector<10x32xf32>
    %cst_60 = arith.constant 0.000000e+00 : f32
    %114 = vector.broadcast %cst_60 : f32 to vector<10x32xf32>
    %115 = arith.cmpf oge, %113, %114 : vector<10x32xf32>
    %cst_61 = arith.constant 0.00999999977 : f32
    %116 = vector.broadcast %cst_61 : f32 to vector<10x32xf32>
    %117 = arith.mulf %116, %113 : vector<10x32xf32>
    %118 = arith.select %115, %113, %117 : vector<10x32xi1>, vector<10x32xf32>
    %119 = vector.extract_strided_slice %107 {offsets = [0, 0], sizes = [10, 32], strides = [1, 1]} : vector<10x64xf32> to vector<10x32xf32>
    %120 = arith.addf %119, %105 : vector<10x32xf32>
    %121 = vector.extract_strided_slice %106 {offsets = [0, 32], sizes = [10, 32], strides = [1, 1]} : vector<10x64xf32> to vector<10x32xf32>
    %122 = arith.addf %120, %121 : vector<10x32xf32>
    %123 = vector.broadcast %100 : vector<1x32xf32> to vector<10x32xf32>
    %124 = arith.addf %122, %123 : vector<10x32xf32>
    %cst_62 = arith.constant 0.000000e+00 : f32
    %125 = vector.broadcast %cst_62 : f32 to vector<10x32xf32>
    %126 = arith.cmpf oge, %124, %125 : vector<10x32xf32>
    %cst_63 = arith.constant 0.00999999977 : f32
    %127 = vector.broadcast %cst_63 : f32 to vector<10x32xf32>
    %128 = arith.mulf %127, %124 : vector<10x32xf32>
    %129 = arith.select %126, %124, %128 : vector<10x32xi1>, vector<10x32xf32>
    %cst_64 = arith.constant dense<0.000000e+00> : vector<1x10xf32>
    %130 = tpu.matmul %101, %118, %cst_64 {dimension_numbers = #tpu.dot_dimension_numbers<[1], [1], [0], [0], [0, 0, 1, 0], [], []>} : vector<1x32xf32>, vector<10x32xf32>, vector<1x10xf32> -> vector<1x10xf32>
    %131 = vector.broadcast %102 : vector<1x1xf32> to vector<1x10xf32>
    %132 = arith.addf %130, %131 : vector<1x10xf32>
    %133 = arith.negf %132 : vector<1x10xf32>
    %134 = math.exp %133 : vector<1x10xf32>
    %cst_65 = arith.constant 1.000000e+00 : f32
    %135 = vector.broadcast %cst_65 : f32 to vector<1x10xf32>
    %136 = arith.addf %135, %134 : vector<1x10xf32>
    %137 = arith.divf %135, %136 : vector<1x10xf32>
    %cst_66 = arith.constant dense<0.000000e+00> : vector<1x10xf32>
    %138 = tpu.matmul %101, %129, %cst_66 {dimension_numbers = #tpu.dot_dimension_numbers<[1], [1], [0], [0], [0, 0, 1, 0], [], []>} : vector<1x32xf32>, vector<10x32xf32>, vector<1x10xf32> -> vector<1x10xf32>
    %139 = vector.broadcast %102 : vector<1x1xf32> to vector<1x10xf32>
    %140 = arith.addf %138, %139 : vector<1x10xf32>
    %141 = arith.negf %140 : vector<1x10xf32>
    %142 = math.exp %141 : vector<1x10xf32>
    %cst_67 = arith.constant 1.000000e+00 : f32
    %143 = vector.broadcast %cst_67 : f32 to vector<1x10xf32>
    %144 = arith.addf %143, %142 : vector<1x10xf32>
    %145 = arith.divf %143, %144 : vector<1x10xf32>
    %146 = vector.broadcast %137 : vector<1x10xf32> to vector<8x10xf32>
    %147 = arith.mulf %5, %146 : vector<8x10xf32>
    %cst_68 = arith.constant dense<0.000000e+00> : vector<8x8xf32>
    %148 = tpu.matmul %147, %7, %cst_68 {dimension_numbers = #tpu.dot_dimension_numbers<[1], [1], [0], [0], [0, 0, 1, 0], [], []>} : vector<8x10xf32>, vector<8x10xf32>, vector<8x8xf32> -> vector<8x8xf32>
    %149 = vector.broadcast %145 : vector<1x10xf32> to vector<8x10xf32>
    %150 = arith.mulf %7, %149 : vector<8x10xf32>
    %cst_69 = arith.constant dense<0.000000e+00> : vector<8x8xf32>
    %151 = tpu.matmul %150, %5, %cst_69 {dimension_numbers = #tpu.dot_dimension_numbers<[1], [1], [0], [0], [0, 0, 1, 0], [], []>} : vector<8x10xf32>, vector<8x10xf32>, vector<8x8xf32> -> vector<8x8xf32>
    %152 = arith.addf %148, %151 : vector<8x8xf32>
    %cst_70 = arith.constant dense<0.000000e+00> : vector<8x1xf32>
    %153 = tpu.matmul %152, %8, %cst_70 {dimension_numbers = #tpu.dot_dimension_numbers<[1], [0], [0], [1], [0, 0, 1, 1], [], []>} : vector<8x8xf32>, vector<8x1xf32>, vector<8x1xf32> -> vector<8x1xf32>
    %cst_71 = arith.constant 9.99999974E-6 : f32
    %154 = vector.broadcast %cst_71 : f32 to vector<8x1xf32>
    %155 = arith.addf %153, %154 : vector<8x1xf32>
    %156 = math.rsqrt %155 : vector<8x1xf32>
    %cst_72 = arith.constant dense<0.000000e+00> : vector<1x8xf32>
    %157 = tpu.matmul %9, %152, %cst_72 {dimension_numbers = #tpu.dot_dimension_numbers<[1], [0], [0], [1], [0, 0, 1, 1], [], []>} : vector<1x8xf32>, vector<8x8xf32>, vector<1x8xf32> -> vector<1x8xf32>
    %cst_73 = arith.constant 9.99999974E-6 : f32
    %158 = vector.broadcast %cst_73 : f32 to vector<1x8xf32>
    %159 = arith.addf %157, %158 : vector<1x8xf32>
    %160 = math.rsqrt %159 : vector<1x8xf32>
    %161 = vector.broadcast %156 : vector<8x1xf32> to vector<8x8xf32>
    %162 = arith.mulf %152, %161 : vector<8x8xf32>
    %163 = vector.broadcast %160 : vector<1x8xf32> to vector<8x8xf32>
    %164 = arith.mulf %162, %163 : vector<8x8xf32>
    %c0_74 = arith.constant 0 : index
    %c48_75 = arith.constant 48 : index
    %c0_76 = arith.constant 0 : index
    %165 = vector.load %arg7[%c0_74, %c48_75, %c0_76] : memref<2x352x96xf32, #tpu.memory_space<vmem>>, vector<1x128x32xf32>
    %166 = vector.shape_cast %165 : vector<1x128x32xf32> to vector<128x32xf32>
    %c0_77 = arith.constant 0 : index
    %c176 = arith.constant 176 : index
    %c0_78 = arith.constant 0 : index
    %167 = vector.load %arg7[%c0_77, %c176, %c0_78] : memref<2x352x96xf32, #tpu.memory_space<vmem>>, vector<1x64x96xf32>
    %168 = vector.shape_cast %167 : vector<1x64x96xf32> to vector<64x96xf32>
    %c0_79 = arith.constant 0 : index
    %c240 = arith.constant 240 : index
    %c0_80 = arith.constant 0 : index
    %169 = vector.load %arg7[%c0_79, %c240, %c0_80] : memref<2x352x96xf32, #tpu.memory_space<vmem>>, vector<1x64x32xf32>
    %170 = vector.shape_cast %169 : vector<1x64x32xf32> to vector<64x32xf32>
    %c0_81 = arith.constant 0 : index
    %c304 = arith.constant 304 : index
    %c0_82 = arith.constant 0 : index
    %171 = vector.load %arg7[%c0_81, %c304, %c0_82] : memref<2x352x96xf32, #tpu.memory_space<vmem>>, vector<1x32x64xf32>
    %172 = vector.shape_cast %171 : vector<1x32x64xf32> to vector<32x64xf32>
    %c0_83 = arith.constant 0 : index
    %c336_84 = arith.constant 336 : index
    %c0_85 = arith.constant 0 : index
    %173 = vector.load %arg7[%c0_83, %c336_84, %c0_85] : memref<2x352x96xf32, #tpu.memory_space<vmem>>, vector<1x11x96xf32>
    %174 = vector.shape_cast %173 : vector<1x11x96xf32> to vector<11x96xf32>
    %175 = vector.extract_strided_slice %174 {offsets = [3, 0], sizes = [4, 32], strides = [1, 1]} : vector<11x96xf32> to vector<4x32xf32>
    %176 = vector.extract_strided_slice %174 {offsets = [7, 0], sizes = [1, 96], strides = [1, 1]} : vector<11x96xf32> to vector<1x96xf32>
    %177 = vector.extract_strided_slice %174 {offsets = [8, 0], sizes = [1, 96], strides = [1, 1]} : vector<11x96xf32> to vector<1x96xf32>
    %178 = vector.extract_strided_slice %174 {offsets = [9, 0], sizes = [1, 32], strides = [1, 1]} : vector<11x96xf32> to vector<1x32xf32>
    %179 = vector.extract_strided_slice %174 {offsets = [10, 0], sizes = [1, 64], strides = [1, 1]} : vector<11x96xf32> to vector<1x64xf32>
    %180 = vector.extract_strided_slice %168 {offsets = [0, 0], sizes = [32, 96], strides = [1, 1]} : vector<64x96xf32> to vector<32x96xf32>
    %181 = vector.extract_strided_slice %168 {offsets = [32, 0], sizes = [32, 96], strides = [1, 1]} : vector<64x96xf32> to vector<32x96xf32>
    %182 = vector.extract_strided_slice %166 {offsets = [0, 0], sizes = [32, 32], strides = [1, 1]} : vector<128x32xf32> to vector<32x32xf32>
    %183 = vector.extract_strided_slice %175 {offsets = [0, 0], sizes = [1, 32], strides = [1, 1]} : vector<4x32xf32> to vector<1x32xf32>
    %cst_86 = arith.constant dense<0.000000e+00> : vector<8x32xf32>
    %184 = tpu.matmul %93, %22, %cst_86 {dimension_numbers = #tpu.dot_dimension_numbers<[1], [0], [0], [1], [0, 0, 1, 1], [], []>} : vector<8x8xf32>, vector<8x32xf32>, vector<8x32xf32> -> vector<8x32xf32>
    %cst_87 = arith.constant dense<0.000000e+00> : vector<8x32xf32>
    %185 = tpu.matmul %184, %182, %cst_87 {dimension_numbers = #tpu.dot_dimension_numbers<[1], [0], [0], [1], [0, 0, 1, 1], [], []>} : vector<8x32xf32>, vector<32x32xf32>, vector<8x32xf32> -> vector<8x32xf32>
    %186 = vector.broadcast %183 : vector<1x32xf32> to vector<8x32xf32>
    %187 = arith.addf %185, %186 : vector<8x32xf32>
    %cst_88 = arith.constant 0.000000e+00 : f32
    %188 = vector.broadcast %cst_88 : f32 to vector<8x32xf32>
    %189 = arith.cmpf oge, %187, %188 : vector<8x32xf32>
    %cst_89 = arith.constant 0.00999999977 : f32
    %190 = vector.broadcast %cst_89 : f32 to vector<8x32xf32>
    %191 = arith.mulf %190, %187 : vector<8x32xf32>
    %192 = arith.select %189, %187, %191 : vector<8x32xi1>, vector<8x32xf32>
    %cst_90 = arith.constant dense<0.000000e+00> : vector<8x96xf32>
    %193 = tpu.matmul %192, %180, %cst_90 {dimension_numbers = #tpu.dot_dimension_numbers<[1], [0], [0], [1], [0, 0, 1, 1], [], []>} : vector<8x32xf32>, vector<32x96xf32>, vector<8x96xf32> -> vector<8x96xf32>
    %194 = vector.broadcast %176 : vector<1x96xf32> to vector<8x96xf32>
    %195 = arith.addf %193, %194 : vector<8x96xf32>
    %cst_91 = arith.constant dense<0.000000e+00> : vector<8x96xf32>
    %196 = tpu.matmul %22, %181, %cst_91 {dimension_numbers = #tpu.dot_dimension_numbers<[1], [0], [0], [1], [0, 0, 1, 1], [], []>} : vector<8x32xf32>, vector<32x96xf32>, vector<8x96xf32> -> vector<8x96xf32>
    %197 = vector.broadcast %177 : vector<1x96xf32> to vector<8x96xf32>
    %198 = arith.addf %196, %197 : vector<8x96xf32>
    %199 = vector.extract_strided_slice %195 {offsets = [0, 0], sizes = [8, 64], strides = [1, 1]} : vector<8x96xf32> to vector<8x64xf32>
    %200 = vector.extract_strided_slice %198 {offsets = [0, 0], sizes = [8, 64], strides = [1, 1]} : vector<8x96xf32> to vector<8x64xf32>
    %201 = arith.addf %199, %200 : vector<8x64xf32>
    %202 = arith.negf %201 : vector<8x64xf32>
    %203 = math.exp %202 : vector<8x64xf32>
    %cst_92 = arith.constant 1.000000e+00 : f32
    %204 = vector.broadcast %cst_92 : f32 to vector<8x64xf32>
    %205 = arith.addf %204, %203 : vector<8x64xf32>
    %206 = arith.divf %204, %205 : vector<8x64xf32>
    %207 = vector.extract_strided_slice %206 {offsets = [0, 0], sizes = [8, 32], strides = [1, 1]} : vector<8x64xf32> to vector<8x32xf32>
    %208 = vector.extract_strided_slice %206 {offsets = [0, 32], sizes = [8, 32], strides = [1, 1]} : vector<8x64xf32> to vector<8x32xf32>
    %209 = vector.extract_strided_slice %195 {offsets = [0, 64], sizes = [8, 32], strides = [1, 1]} : vector<8x96xf32> to vector<8x32xf32>
    %210 = vector.extract_strided_slice %198 {offsets = [0, 64], sizes = [8, 32], strides = [1, 1]} : vector<8x96xf32> to vector<8x32xf32>
    %211 = arith.mulf %207, %210 : vector<8x32xf32>
    %212 = arith.addf %209, %211 : vector<8x32xf32>
    %213 = math.tanh %212 : vector<8x32xf32>
    %cst_93 = arith.constant 1.000000e+00 : f32
    %214 = vector.broadcast %cst_93 : f32 to vector<8x32xf32>
    %215 = arith.subf %214, %208 : vector<8x32xf32>
    %216 = arith.mulf %215, %213 : vector<8x32xf32>
    %217 = arith.mulf %208, %22 : vector<8x32xf32>
    %218 = arith.addf %216, %217 : vector<8x32xf32>
    %219 = vector.extract_strided_slice %166 {offsets = [32, 0], sizes = [32, 32], strides = [1, 1]} : vector<128x32xf32> to vector<32x32xf32>
    %220 = vector.extract_strided_slice %175 {offsets = [1, 0], sizes = [1, 32], strides = [1, 1]} : vector<4x32xf32> to vector<1x32xf32>
    %cst_94 = arith.constant dense<0.000000e+00> : vector<8x32xf32>
    %221 = tpu.matmul %93, %218, %cst_94 {dimension_numbers = #tpu.dot_dimension_numbers<[1], [0], [0], [1], [0, 0, 1, 1], [], []>} : vector<8x8xf32>, vector<8x32xf32>, vector<8x32xf32> -> vector<8x32xf32>
    %cst_95 = arith.constant dense<0.000000e+00> : vector<8x32xf32>
    %222 = tpu.matmul %221, %219, %cst_95 {dimension_numbers = #tpu.dot_dimension_numbers<[1], [0], [0], [1], [0, 0, 1, 1], [], []>} : vector<8x32xf32>, vector<32x32xf32>, vector<8x32xf32> -> vector<8x32xf32>
    %223 = vector.broadcast %220 : vector<1x32xf32> to vector<8x32xf32>
    %224 = arith.addf %222, %223 : vector<8x32xf32>
    %cst_96 = arith.constant 0.000000e+00 : f32
    %225 = vector.broadcast %cst_96 : f32 to vector<8x32xf32>
    %226 = arith.cmpf oge, %224, %225 : vector<8x32xf32>
    %cst_97 = arith.constant 0.00999999977 : f32
    %227 = vector.broadcast %cst_97 : f32 to vector<8x32xf32>
    %228 = arith.mulf %227, %224 : vector<8x32xf32>
    %229 = arith.select %226, %224, %228 : vector<8x32xi1>, vector<8x32xf32>
    %cst_98 = arith.constant dense<0.000000e+00> : vector<8x96xf32>
    %230 = tpu.matmul %229, %180, %cst_98 {dimension_numbers = #tpu.dot_dimension_numbers<[1], [0], [0], [1], [0, 0, 1, 1], [], []>} : vector<8x32xf32>, vector<32x96xf32>, vector<8x96xf32> -> vector<8x96xf32>
    %231 = vector.broadcast %176 : vector<1x96xf32> to vector<8x96xf32>
    %232 = arith.addf %230, %231 : vector<8x96xf32>
    %cst_99 = arith.constant dense<0.000000e+00> : vector<8x96xf32>
    %233 = tpu.matmul %218, %181, %cst_99 {dimension_numbers = #tpu.dot_dimension_numbers<[1], [0], [0], [1], [0, 0, 1, 1], [], []>} : vector<8x32xf32>, vector<32x96xf32>, vector<8x96xf32> -> vector<8x96xf32>
    %234 = vector.broadcast %177 : vector<1x96xf32> to vector<8x96xf32>
    %235 = arith.addf %233, %234 : vector<8x96xf32>
    %236 = vector.extract_strided_slice %232 {offsets = [0, 0], sizes = [8, 64], strides = [1, 1]} : vector<8x96xf32> to vector<8x64xf32>
    %237 = vector.extract_strided_slice %235 {offsets = [0, 0], sizes = [8, 64], strides = [1, 1]} : vector<8x96xf32> to vector<8x64xf32>
    %238 = arith.addf %236, %237 : vector<8x64xf32>
    %239 = arith.negf %238 : vector<8x64xf32>
    %240 = math.exp %239 : vector<8x64xf32>
    %cst_100 = arith.constant 1.000000e+00 : f32
    %241 = vector.broadcast %cst_100 : f32 to vector<8x64xf32>
    %242 = arith.addf %241, %240 : vector<8x64xf32>
    %243 = arith.divf %241, %242 : vector<8x64xf32>
    %244 = vector.extract_strided_slice %243 {offsets = [0, 0], sizes = [8, 32], strides = [1, 1]} : vector<8x64xf32> to vector<8x32xf32>
    %245 = vector.extract_strided_slice %243 {offsets = [0, 32], sizes = [8, 32], strides = [1, 1]} : vector<8x64xf32> to vector<8x32xf32>
    %246 = vector.extract_strided_slice %232 {offsets = [0, 64], sizes = [8, 32], strides = [1, 1]} : vector<8x96xf32> to vector<8x32xf32>
    %247 = vector.extract_strided_slice %235 {offsets = [0, 64], sizes = [8, 32], strides = [1, 1]} : vector<8x96xf32> to vector<8x32xf32>
    %248 = arith.mulf %244, %247 : vector<8x32xf32>
    %249 = arith.addf %246, %248 : vector<8x32xf32>
    %250 = math.tanh %249 : vector<8x32xf32>
    %cst_101 = arith.constant 1.000000e+00 : f32
    %251 = vector.broadcast %cst_101 : f32 to vector<8x32xf32>
    %252 = arith.subf %251, %245 : vector<8x32xf32>
    %253 = arith.mulf %252, %250 : vector<8x32xf32>
    %254 = arith.mulf %245, %218 : vector<8x32xf32>
    %255 = arith.addf %253, %254 : vector<8x32xf32>
    %256 = vector.extract_strided_slice %166 {offsets = [64, 0], sizes = [32, 32], strides = [1, 1]} : vector<128x32xf32> to vector<32x32xf32>
    %257 = vector.extract_strided_slice %175 {offsets = [2, 0], sizes = [1, 32], strides = [1, 1]} : vector<4x32xf32> to vector<1x32xf32>
    %cst_102 = arith.constant dense<0.000000e+00> : vector<8x32xf32>
    %258 = tpu.matmul %93, %255, %cst_102 {dimension_numbers = #tpu.dot_dimension_numbers<[1], [0], [0], [1], [0, 0, 1, 1], [], []>} : vector<8x8xf32>, vector<8x32xf32>, vector<8x32xf32> -> vector<8x32xf32>
    %cst_103 = arith.constant dense<0.000000e+00> : vector<8x32xf32>
    %259 = tpu.matmul %258, %256, %cst_103 {dimension_numbers = #tpu.dot_dimension_numbers<[1], [0], [0], [1], [0, 0, 1, 1], [], []>} : vector<8x32xf32>, vector<32x32xf32>, vector<8x32xf32> -> vector<8x32xf32>
    %260 = vector.broadcast %257 : vector<1x32xf32> to vector<8x32xf32>
    %261 = arith.addf %259, %260 : vector<8x32xf32>
    %cst_104 = arith.constant 0.000000e+00 : f32
    %262 = vector.broadcast %cst_104 : f32 to vector<8x32xf32>
    %263 = arith.cmpf oge, %261, %262 : vector<8x32xf32>
    %cst_105 = arith.constant 0.00999999977 : f32
    %264 = vector.broadcast %cst_105 : f32 to vector<8x32xf32>
    %265 = arith.mulf %264, %261 : vector<8x32xf32>
    %266 = arith.select %263, %261, %265 : vector<8x32xi1>, vector<8x32xf32>
    %cst_106 = arith.constant dense<0.000000e+00> : vector<8x96xf32>
    %267 = tpu.matmul %266, %180, %cst_106 {dimension_numbers = #tpu.dot_dimension_numbers<[1], [0], [0], [1], [0, 0, 1, 1], [], []>} : vector<8x32xf32>, vector<32x96xf32>, vector<8x96xf32> -> vector<8x96xf32>
    %268 = vector.broadcast %176 : vector<1x96xf32> to vector<8x96xf32>
    %269 = arith.addf %267, %268 : vector<8x96xf32>
    %cst_107 = arith.constant dense<0.000000e+00> : vector<8x96xf32>
    %270 = tpu.matmul %255, %181, %cst_107 {dimension_numbers = #tpu.dot_dimension_numbers<[1], [0], [0], [1], [0, 0, 1, 1], [], []>} : vector<8x32xf32>, vector<32x96xf32>, vector<8x96xf32> -> vector<8x96xf32>
    %271 = vector.broadcast %177 : vector<1x96xf32> to vector<8x96xf32>
    %272 = arith.addf %270, %271 : vector<8x96xf32>
    %273 = vector.extract_strided_slice %269 {offsets = [0, 0], sizes = [8, 64], strides = [1, 1]} : vector<8x96xf32> to vector<8x64xf32>
    %274 = vector.extract_strided_slice %272 {offsets = [0, 0], sizes = [8, 64], strides = [1, 1]} : vector<8x96xf32> to vector<8x64xf32>
    %275 = arith.addf %273, %274 : vector<8x64xf32>
    %276 = arith.negf %275 : vector<8x64xf32>
    %277 = math.exp %276 : vector<8x64xf32>
    %cst_108 = arith.constant 1.000000e+00 : f32
    %278 = vector.broadcast %cst_108 : f32 to vector<8x64xf32>
    %279 = arith.addf %278, %277 : vector<8x64xf32>
    %280 = arith.divf %278, %279 : vector<8x64xf32>
    %281 = vector.extract_strided_slice %280 {offsets = [0, 0], sizes = [8, 32], strides = [1, 1]} : vector<8x64xf32> to vector<8x32xf32>
    %282 = vector.extract_strided_slice %280 {offsets = [0, 32], sizes = [8, 32], strides = [1, 1]} : vector<8x64xf32> to vector<8x32xf32>
    %283 = vector.extract_strided_slice %269 {offsets = [0, 64], sizes = [8, 32], strides = [1, 1]} : vector<8x96xf32> to vector<8x32xf32>
    %284 = vector.extract_strided_slice %272 {offsets = [0, 64], sizes = [8, 32], strides = [1, 1]} : vector<8x96xf32> to vector<8x32xf32>
    %285 = arith.mulf %281, %284 : vector<8x32xf32>
    %286 = arith.addf %283, %285 : vector<8x32xf32>
    %287 = math.tanh %286 : vector<8x32xf32>
    %cst_109 = arith.constant 1.000000e+00 : f32
    %288 = vector.broadcast %cst_109 : f32 to vector<8x32xf32>
    %289 = arith.subf %288, %282 : vector<8x32xf32>
    %290 = arith.mulf %289, %287 : vector<8x32xf32>
    %291 = arith.mulf %282, %255 : vector<8x32xf32>
    %292 = arith.addf %290, %291 : vector<8x32xf32>
    %293 = vector.extract_strided_slice %166 {offsets = [96, 0], sizes = [32, 32], strides = [1, 1]} : vector<128x32xf32> to vector<32x32xf32>
    %294 = vector.extract_strided_slice %175 {offsets = [3, 0], sizes = [1, 32], strides = [1, 1]} : vector<4x32xf32> to vector<1x32xf32>
    %cst_110 = arith.constant dense<0.000000e+00> : vector<8x32xf32>
    %295 = tpu.matmul %93, %292, %cst_110 {dimension_numbers = #tpu.dot_dimension_numbers<[1], [0], [0], [1], [0, 0, 1, 1], [], []>} : vector<8x8xf32>, vector<8x32xf32>, vector<8x32xf32> -> vector<8x32xf32>
    %cst_111 = arith.constant dense<0.000000e+00> : vector<8x32xf32>
    %296 = tpu.matmul %295, %293, %cst_111 {dimension_numbers = #tpu.dot_dimension_numbers<[1], [0], [0], [1], [0, 0, 1, 1], [], []>} : vector<8x32xf32>, vector<32x32xf32>, vector<8x32xf32> -> vector<8x32xf32>
    %297 = vector.broadcast %294 : vector<1x32xf32> to vector<8x32xf32>
    %298 = arith.addf %296, %297 : vector<8x32xf32>
    %cst_112 = arith.constant 0.000000e+00 : f32
    %299 = vector.broadcast %cst_112 : f32 to vector<8x32xf32>
    %300 = arith.cmpf oge, %298, %299 : vector<8x32xf32>
    %cst_113 = arith.constant 0.00999999977 : f32
    %301 = vector.broadcast %cst_113 : f32 to vector<8x32xf32>
    %302 = arith.mulf %301, %298 : vector<8x32xf32>
    %303 = arith.select %300, %298, %302 : vector<8x32xi1>, vector<8x32xf32>
    %cst_114 = arith.constant dense<0.000000e+00> : vector<8x96xf32>
    %304 = tpu.matmul %303, %180, %cst_114 {dimension_numbers = #tpu.dot_dimension_numbers<[1], [0], [0], [1], [0, 0, 1, 1], [], []>} : vector<8x32xf32>, vector<32x96xf32>, vector<8x96xf32> -> vector<8x96xf32>
    %305 = vector.broadcast %176 : vector<1x96xf32> to vector<8x96xf32>
    %306 = arith.addf %304, %305 : vector<8x96xf32>
    %cst_115 = arith.constant dense<0.000000e+00> : vector<8x96xf32>
    %307 = tpu.matmul %292, %181, %cst_115 {dimension_numbers = #tpu.dot_dimension_numbers<[1], [0], [0], [1], [0, 0, 1, 1], [], []>} : vector<8x32xf32>, vector<32x96xf32>, vector<8x96xf32> -> vector<8x96xf32>
    %308 = vector.broadcast %177 : vector<1x96xf32> to vector<8x96xf32>
    %309 = arith.addf %307, %308 : vector<8x96xf32>
    %310 = vector.extract_strided_slice %306 {offsets = [0, 0], sizes = [8, 64], strides = [1, 1]} : vector<8x96xf32> to vector<8x64xf32>
    %311 = vector.extract_strided_slice %309 {offsets = [0, 0], sizes = [8, 64], strides = [1, 1]} : vector<8x96xf32> to vector<8x64xf32>
    %312 = arith.addf %310, %311 : vector<8x64xf32>
    %313 = arith.negf %312 : vector<8x64xf32>
    %314 = math.exp %313 : vector<8x64xf32>
    %cst_116 = arith.constant 1.000000e+00 : f32
    %315 = vector.broadcast %cst_116 : f32 to vector<8x64xf32>
    %316 = arith.addf %315, %314 : vector<8x64xf32>
    %317 = arith.divf %315, %316 : vector<8x64xf32>
    %318 = vector.extract_strided_slice %317 {offsets = [0, 0], sizes = [8, 32], strides = [1, 1]} : vector<8x64xf32> to vector<8x32xf32>
    %319 = vector.extract_strided_slice %317 {offsets = [0, 32], sizes = [8, 32], strides = [1, 1]} : vector<8x64xf32> to vector<8x32xf32>
    %320 = vector.extract_strided_slice %306 {offsets = [0, 64], sizes = [8, 32], strides = [1, 1]} : vector<8x96xf32> to vector<8x32xf32>
    %321 = vector.extract_strided_slice %309 {offsets = [0, 64], sizes = [8, 32], strides = [1, 1]} : vector<8x96xf32> to vector<8x32xf32>
    %322 = arith.mulf %318, %321 : vector<8x32xf32>
    %323 = arith.addf %320, %322 : vector<8x32xf32>
    %324 = math.tanh %323 : vector<8x32xf32>
    %cst_117 = arith.constant 1.000000e+00 : f32
    %325 = vector.broadcast %cst_117 : f32 to vector<8x32xf32>
    %326 = arith.subf %325, %319 : vector<8x32xf32>
    %327 = arith.mulf %326, %324 : vector<8x32xf32>
    %328 = arith.mulf %319, %292 : vector<8x32xf32>
    %329 = arith.addf %327, %328 : vector<8x32xf32>
    %330 = vector.extract_strided_slice %170 {offsets = [0, 0], sizes = [32, 32], strides = [1, 1]} : vector<64x32xf32> to vector<32x32xf32>
    %cst_118 = arith.constant dense<0.000000e+00> : vector<8x32xf32>
    %331 = tpu.matmul %22, %330, %cst_118 {dimension_numbers = #tpu.dot_dimension_numbers<[1], [0], [0], [1], [0, 0, 1, 1], [], []>} : vector<8x32xf32>, vector<32x32xf32>, vector<8x32xf32> -> vector<8x32xf32>
    %332 = vector.extract_strided_slice %170 {offsets = [32, 0], sizes = [32, 32], strides = [1, 1]} : vector<64x32xf32> to vector<32x32xf32>
    %cst_119 = arith.constant dense<0.000000e+00> : vector<8x32xf32>
    %333 = tpu.matmul %329, %332, %cst_119 {dimension_numbers = #tpu.dot_dimension_numbers<[1], [0], [0], [1], [0, 0, 1, 1], [], []>} : vector<8x32xf32>, vector<32x32xf32>, vector<8x32xf32> -> vector<8x32xf32>
    %334 = arith.addf %331, %333 : vector<8x32xf32>
    %335 = vector.broadcast %178 : vector<1x32xf32> to vector<8x32xf32>
    %336 = arith.addf %334, %335 : vector<8x32xf32>
    %cst_120 = arith.constant 0.000000e+00 : f32
    %337 = vector.broadcast %cst_120 : f32 to vector<8x32xf32>
    %338 = arith.cmpf oge, %336, %337 : vector<8x32xf32>
    %cst_121 = arith.constant 0.00999999977 : f32
    %339 = vector.broadcast %cst_121 : f32 to vector<8x32xf32>
    %340 = arith.mulf %339, %336 : vector<8x32xf32>
    %341 = arith.select %338, %336, %340 : vector<8x32xi1>, vector<8x32xf32>
    %cst_122 = arith.constant dense<0.000000e+00> : vector<8x64xf32>
    %342 = tpu.matmul %341, %172, %cst_122 {dimension_numbers = #tpu.dot_dimension_numbers<[1], [0], [0], [1], [0, 0, 1, 1], [], []>} : vector<8x32xf32>, vector<32x64xf32>, vector<8x64xf32> -> vector<8x64xf32>
    %343 = vector.broadcast %179 : vector<1x64xf32> to vector<8x64xf32>
    %344 = arith.addf %342, %343 : vector<8x64xf32>
    %345 = vector.extract_strided_slice %344 {offsets = [0, 0], sizes = [8, 32], strides = [1, 1]} : vector<8x64xf32> to vector<8x32xf32>
    %346 = vector.extract_strided_slice %344 {offsets = [0, 32], sizes = [8, 32], strides = [1, 1]} : vector<8x64xf32> to vector<8x32xf32>
    %cst_123 = arith.constant 5.000000e-01 : f32
    %347 = vector.broadcast %cst_123 : f32 to vector<8x32xf32>
    %348 = arith.mulf %347, %346 : vector<8x32xf32>
    %349 = math.exp %348 : vector<8x32xf32>
    %c0_124 = arith.constant 0 : index
    %c0_125 = arith.constant 0 : index
    %c0_126 = arith.constant 0 : index
    %350 = vector.load %arg6[%c0_124, %c0_125, %c0_126] : memref<1x8x32xf32, #tpu.memory_space<vmem>>, vector<1x8x32xf32>
    %351 = vector.shape_cast %350 : vector<1x8x32xf32> to vector<8x32xf32>
    %352 = arith.mulf %349, %351 : vector<8x32xf32>
    %353 = arith.addf %345, %352 : vector<8x32xf32>
    %354 = arith.addf %1, %353 : vector<8x32xf32>
    %c1_127 = arith.constant 1 : index
    %c48_128 = arith.constant 48 : index
    %c0_129 = arith.constant 0 : index
    %355 = vector.load %arg7[%c1_127, %c48_128, %c0_129] : memref<2x352x96xf32, #tpu.memory_space<vmem>>, vector<1x128x32xf32>
    %356 = vector.shape_cast %355 : vector<1x128x32xf32> to vector<128x32xf32>
    %c1_130 = arith.constant 1 : index
    %c176_131 = arith.constant 176 : index
    %c0_132 = arith.constant 0 : index
    %357 = vector.load %arg7[%c1_130, %c176_131, %c0_132] : memref<2x352x96xf32, #tpu.memory_space<vmem>>, vector<1x64x96xf32>
    %358 = vector.shape_cast %357 : vector<1x64x96xf32> to vector<64x96xf32>
    %c1_133 = arith.constant 1 : index
    %c240_134 = arith.constant 240 : index
    %c0_135 = arith.constant 0 : index
    %359 = vector.load %arg7[%c1_133, %c240_134, %c0_135] : memref<2x352x96xf32, #tpu.memory_space<vmem>>, vector<1x64x32xf32>
    %360 = vector.shape_cast %359 : vector<1x64x32xf32> to vector<64x32xf32>
    %c1_136 = arith.constant 1 : index
    %c304_137 = arith.constant 304 : index
    %c0_138 = arith.constant 0 : index
    %361 = vector.load %arg7[%c1_136, %c304_137, %c0_138] : memref<2x352x96xf32, #tpu.memory_space<vmem>>, vector<1x32x64xf32>
    %362 = vector.shape_cast %361 : vector<1x32x64xf32> to vector<32x64xf32>
    %c1_139 = arith.constant 1 : index
    %c336_140 = arith.constant 336 : index
    %c0_141 = arith.constant 0 : index
    %363 = vector.load %arg7[%c1_139, %c336_140, %c0_141] : memref<2x352x96xf32, #tpu.memory_space<vmem>>, vector<1x11x96xf32>
    %364 = vector.shape_cast %363 : vector<1x11x96xf32> to vector<11x96xf32>
    %365 = vector.extract_strided_slice %364 {offsets = [3, 0], sizes = [4, 32], strides = [1, 1]} : vector<11x96xf32> to vector<4x32xf32>
    %366 = vector.extract_strided_slice %364 {offsets = [7, 0], sizes = [1, 96], strides = [1, 1]} : vector<11x96xf32> to vector<1x96xf32>
    %367 = vector.extract_strided_slice %364 {offsets = [8, 0], sizes = [1, 96], strides = [1, 1]} : vector<11x96xf32> to vector<1x96xf32>
    %368 = vector.extract_strided_slice %364 {offsets = [9, 0], sizes = [1, 32], strides = [1, 1]} : vector<11x96xf32> to vector<1x32xf32>
    %369 = vector.extract_strided_slice %364 {offsets = [10, 0], sizes = [1, 64], strides = [1, 1]} : vector<11x96xf32> to vector<1x64xf32>
    %370 = vector.extract_strided_slice %358 {offsets = [0, 0], sizes = [32, 96], strides = [1, 1]} : vector<64x96xf32> to vector<32x96xf32>
    %371 = vector.extract_strided_slice %358 {offsets = [32, 0], sizes = [32, 96], strides = [1, 1]} : vector<64x96xf32> to vector<32x96xf32>
    %372 = vector.extract_strided_slice %356 {offsets = [0, 0], sizes = [32, 32], strides = [1, 1]} : vector<128x32xf32> to vector<32x32xf32>
    %373 = vector.extract_strided_slice %365 {offsets = [0, 0], sizes = [1, 32], strides = [1, 1]} : vector<4x32xf32> to vector<1x32xf32>
    %cst_142 = arith.constant dense<0.000000e+00> : vector<8x32xf32>
    %374 = tpu.matmul %164, %354, %cst_142 {dimension_numbers = #tpu.dot_dimension_numbers<[1], [0], [0], [1], [0, 0, 1, 1], [], []>} : vector<8x8xf32>, vector<8x32xf32>, vector<8x32xf32> -> vector<8x32xf32>
    %cst_143 = arith.constant dense<0.000000e+00> : vector<8x32xf32>
    %375 = tpu.matmul %374, %372, %cst_143 {dimension_numbers = #tpu.dot_dimension_numbers<[1], [0], [0], [1], [0, 0, 1, 1], [], []>} : vector<8x32xf32>, vector<32x32xf32>, vector<8x32xf32> -> vector<8x32xf32>
    %376 = vector.broadcast %373 : vector<1x32xf32> to vector<8x32xf32>
    %377 = arith.addf %375, %376 : vector<8x32xf32>
    %cst_144 = arith.constant 0.000000e+00 : f32
    %378 = vector.broadcast %cst_144 : f32 to vector<8x32xf32>
    %379 = arith.cmpf oge, %377, %378 : vector<8x32xf32>
    %cst_145 = arith.constant 0.00999999977 : f32
    %380 = vector.broadcast %cst_145 : f32 to vector<8x32xf32>
    %381 = arith.mulf %380, %377 : vector<8x32xf32>
    %382 = arith.select %379, %377, %381 : vector<8x32xi1>, vector<8x32xf32>
    %cst_146 = arith.constant dense<0.000000e+00> : vector<8x96xf32>
    %383 = tpu.matmul %382, %370, %cst_146 {dimension_numbers = #tpu.dot_dimension_numbers<[1], [0], [0], [1], [0, 0, 1, 1], [], []>} : vector<8x32xf32>, vector<32x96xf32>, vector<8x96xf32> -> vector<8x96xf32>
    %384 = vector.broadcast %366 : vector<1x96xf32> to vector<8x96xf32>
    %385 = arith.addf %383, %384 : vector<8x96xf32>
    %cst_147 = arith.constant dense<0.000000e+00> : vector<8x96xf32>
    %386 = tpu.matmul %354, %371, %cst_147 {dimension_numbers = #tpu.dot_dimension_numbers<[1], [0], [0], [1], [0, 0, 1, 1], [], []>} : vector<8x32xf32>, vector<32x96xf32>, vector<8x96xf32> -> vector<8x96xf32>
    %387 = vector.broadcast %367 : vector<1x96xf32> to vector<8x96xf32>
    %388 = arith.addf %386, %387 : vector<8x96xf32>
    %389 = vector.extract_strided_slice %385 {offsets = [0, 0], sizes = [8, 64], strides = [1, 1]} : vector<8x96xf32> to vector<8x64xf32>
    %390 = vector.extract_strided_slice %388 {offsets = [0, 0], sizes = [8, 64], strides = [1, 1]} : vector<8x96xf32> to vector<8x64xf32>
    %391 = arith.addf %389, %390 : vector<8x64xf32>
    %392 = arith.negf %391 : vector<8x64xf32>
    %393 = math.exp %392 : vector<8x64xf32>
    %cst_148 = arith.constant 1.000000e+00 : f32
    %394 = vector.broadcast %cst_148 : f32 to vector<8x64xf32>
    %395 = arith.addf %394, %393 : vector<8x64xf32>
    %396 = arith.divf %394, %395 : vector<8x64xf32>
    %397 = vector.extract_strided_slice %396 {offsets = [0, 0], sizes = [8, 32], strides = [1, 1]} : vector<8x64xf32> to vector<8x32xf32>
    %398 = vector.extract_strided_slice %396 {offsets = [0, 32], sizes = [8, 32], strides = [1, 1]} : vector<8x64xf32> to vector<8x32xf32>
    %399 = vector.extract_strided_slice %385 {offsets = [0, 64], sizes = [8, 32], strides = [1, 1]} : vector<8x96xf32> to vector<8x32xf32>
    %400 = vector.extract_strided_slice %388 {offsets = [0, 64], sizes = [8, 32], strides = [1, 1]} : vector<8x96xf32> to vector<8x32xf32>
    %401 = arith.mulf %397, %400 : vector<8x32xf32>
    %402 = arith.addf %399, %401 : vector<8x32xf32>
    %403 = math.tanh %402 : vector<8x32xf32>
    %cst_149 = arith.constant 1.000000e+00 : f32
    %404 = vector.broadcast %cst_149 : f32 to vector<8x32xf32>
    %405 = arith.subf %404, %398 : vector<8x32xf32>
    %406 = arith.mulf %405, %403 : vector<8x32xf32>
    %407 = arith.mulf %398, %354 : vector<8x32xf32>
    %408 = arith.addf %406, %407 : vector<8x32xf32>
    %409 = vector.extract_strided_slice %356 {offsets = [32, 0], sizes = [32, 32], strides = [1, 1]} : vector<128x32xf32> to vector<32x32xf32>
    %410 = vector.extract_strided_slice %365 {offsets = [1, 0], sizes = [1, 32], strides = [1, 1]} : vector<4x32xf32> to vector<1x32xf32>
    %cst_150 = arith.constant dense<0.000000e+00> : vector<8x32xf32>
    %411 = tpu.matmul %164, %408, %cst_150 {dimension_numbers = #tpu.dot_dimension_numbers<[1], [0], [0], [1], [0, 0, 1, 1], [], []>} : vector<8x8xf32>, vector<8x32xf32>, vector<8x32xf32> -> vector<8x32xf32>
    %cst_151 = arith.constant dense<0.000000e+00> : vector<8x32xf32>
    %412 = tpu.matmul %411, %409, %cst_151 {dimension_numbers = #tpu.dot_dimension_numbers<[1], [0], [0], [1], [0, 0, 1, 1], [], []>} : vector<8x32xf32>, vector<32x32xf32>, vector<8x32xf32> -> vector<8x32xf32>
    %413 = vector.broadcast %410 : vector<1x32xf32> to vector<8x32xf32>
    %414 = arith.addf %412, %413 : vector<8x32xf32>
    %cst_152 = arith.constant 0.000000e+00 : f32
    %415 = vector.broadcast %cst_152 : f32 to vector<8x32xf32>
    %416 = arith.cmpf oge, %414, %415 : vector<8x32xf32>
    %cst_153 = arith.constant 0.00999999977 : f32
    %417 = vector.broadcast %cst_153 : f32 to vector<8x32xf32>
    %418 = arith.mulf %417, %414 : vector<8x32xf32>
    %419 = arith.select %416, %414, %418 : vector<8x32xi1>, vector<8x32xf32>
    %cst_154 = arith.constant dense<0.000000e+00> : vector<8x96xf32>
    %420 = tpu.matmul %419, %370, %cst_154 {dimension_numbers = #tpu.dot_dimension_numbers<[1], [0], [0], [1], [0, 0, 1, 1], [], []>} : vector<8x32xf32>, vector<32x96xf32>, vector<8x96xf32> -> vector<8x96xf32>
    %421 = vector.broadcast %366 : vector<1x96xf32> to vector<8x96xf32>
    %422 = arith.addf %420, %421 : vector<8x96xf32>
    %cst_155 = arith.constant dense<0.000000e+00> : vector<8x96xf32>
    %423 = tpu.matmul %408, %371, %cst_155 {dimension_numbers = #tpu.dot_dimension_numbers<[1], [0], [0], [1], [0, 0, 1, 1], [], []>} : vector<8x32xf32>, vector<32x96xf32>, vector<8x96xf32> -> vector<8x96xf32>
    %424 = vector.broadcast %367 : vector<1x96xf32> to vector<8x96xf32>
    %425 = arith.addf %423, %424 : vector<8x96xf32>
    %426 = vector.extract_strided_slice %422 {offsets = [0, 0], sizes = [8, 64], strides = [1, 1]} : vector<8x96xf32> to vector<8x64xf32>
    %427 = vector.extract_strided_slice %425 {offsets = [0, 0], sizes = [8, 64], strides = [1, 1]} : vector<8x96xf32> to vector<8x64xf32>
    %428 = arith.addf %426, %427 : vector<8x64xf32>
    %429 = arith.negf %428 : vector<8x64xf32>
    %430 = math.exp %429 : vector<8x64xf32>
    %cst_156 = arith.constant 1.000000e+00 : f32
    %431 = vector.broadcast %cst_156 : f32 to vector<8x64xf32>
    %432 = arith.addf %431, %430 : vector<8x64xf32>
    %433 = arith.divf %431, %432 : vector<8x64xf32>
    %434 = vector.extract_strided_slice %433 {offsets = [0, 0], sizes = [8, 32], strides = [1, 1]} : vector<8x64xf32> to vector<8x32xf32>
    %435 = vector.extract_strided_slice %433 {offsets = [0, 32], sizes = [8, 32], strides = [1, 1]} : vector<8x64xf32> to vector<8x32xf32>
    %436 = vector.extract_strided_slice %422 {offsets = [0, 64], sizes = [8, 32], strides = [1, 1]} : vector<8x96xf32> to vector<8x32xf32>
    %437 = vector.extract_strided_slice %425 {offsets = [0, 64], sizes = [8, 32], strides = [1, 1]} : vector<8x96xf32> to vector<8x32xf32>
    %438 = arith.mulf %434, %437 : vector<8x32xf32>
    %439 = arith.addf %436, %438 : vector<8x32xf32>
    %440 = math.tanh %439 : vector<8x32xf32>
    %cst_157 = arith.constant 1.000000e+00 : f32
    %441 = vector.broadcast %cst_157 : f32 to vector<8x32xf32>
    %442 = arith.subf %441, %435 : vector<8x32xf32>
    %443 = arith.mulf %442, %440 : vector<8x32xf32>
    %444 = arith.mulf %435, %408 : vector<8x32xf32>
    %445 = arith.addf %443, %444 : vector<8x32xf32>
    %446 = vector.extract_strided_slice %356 {offsets = [64, 0], sizes = [32, 32], strides = [1, 1]} : vector<128x32xf32> to vector<32x32xf32>
    %447 = vector.extract_strided_slice %365 {offsets = [2, 0], sizes = [1, 32], strides = [1, 1]} : vector<4x32xf32> to vector<1x32xf32>
    %cst_158 = arith.constant dense<0.000000e+00> : vector<8x32xf32>
    %448 = tpu.matmul %164, %445, %cst_158 {dimension_numbers = #tpu.dot_dimension_numbers<[1], [0], [0], [1], [0, 0, 1, 1], [], []>} : vector<8x8xf32>, vector<8x32xf32>, vector<8x32xf32> -> vector<8x32xf32>
    %cst_159 = arith.constant dense<0.000000e+00> : vector<8x32xf32>
    %449 = tpu.matmul %448, %446, %cst_159 {dimension_numbers = #tpu.dot_dimension_numbers<[1], [0], [0], [1], [0, 0, 1, 1], [], []>} : vector<8x32xf32>, vector<32x32xf32>, vector<8x32xf32> -> vector<8x32xf32>
    %450 = vector.broadcast %447 : vector<1x32xf32> to vector<8x32xf32>
    %451 = arith.addf %449, %450 : vector<8x32xf32>
    %cst_160 = arith.constant 0.000000e+00 : f32
    %452 = vector.broadcast %cst_160 : f32 to vector<8x32xf32>
    %453 = arith.cmpf oge, %451, %452 : vector<8x32xf32>
    %cst_161 = arith.constant 0.00999999977 : f32
    %454 = vector.broadcast %cst_161 : f32 to vector<8x32xf32>
    %455 = arith.mulf %454, %451 : vector<8x32xf32>
    %456 = arith.select %453, %451, %455 : vector<8x32xi1>, vector<8x32xf32>
    %cst_162 = arith.constant dense<0.000000e+00> : vector<8x96xf32>
    %457 = tpu.matmul %456, %370, %cst_162 {dimension_numbers = #tpu.dot_dimension_numbers<[1], [0], [0], [1], [0, 0, 1, 1], [], []>} : vector<8x32xf32>, vector<32x96xf32>, vector<8x96xf32> -> vector<8x96xf32>
    %458 = vector.broadcast %366 : vector<1x96xf32> to vector<8x96xf32>
    %459 = arith.addf %457, %458 : vector<8x96xf32>
    %cst_163 = arith.constant dense<0.000000e+00> : vector<8x96xf32>
    %460 = tpu.matmul %445, %371, %cst_163 {dimension_numbers = #tpu.dot_dimension_numbers<[1], [0], [0], [1], [0, 0, 1, 1], [], []>} : vector<8x32xf32>, vector<32x96xf32>, vector<8x96xf32> -> vector<8x96xf32>
    %461 = vector.broadcast %367 : vector<1x96xf32> to vector<8x96xf32>
    %462 = arith.addf %460, %461 : vector<8x96xf32>
    %463 = vector.extract_strided_slice %459 {offsets = [0, 0], sizes = [8, 64], strides = [1, 1]} : vector<8x96xf32> to vector<8x64xf32>
    %464 = vector.extract_strided_slice %462 {offsets = [0, 0], sizes = [8, 64], strides = [1, 1]} : vector<8x96xf32> to vector<8x64xf32>
    %465 = arith.addf %463, %464 : vector<8x64xf32>
    %466 = arith.negf %465 : vector<8x64xf32>
    %467 = math.exp %466 : vector<8x64xf32>
    %cst_164 = arith.constant 1.000000e+00 : f32
    %468 = vector.broadcast %cst_164 : f32 to vector<8x64xf32>
    %469 = arith.addf %468, %467 : vector<8x64xf32>
    %470 = arith.divf %468, %469 : vector<8x64xf32>
    %471 = vector.extract_strided_slice %470 {offsets = [0, 0], sizes = [8, 32], strides = [1, 1]} : vector<8x64xf32> to vector<8x32xf32>
    %472 = vector.extract_strided_slice %470 {offsets = [0, 32], sizes = [8, 32], strides = [1, 1]} : vector<8x64xf32> to vector<8x32xf32>
    %473 = vector.extract_strided_slice %459 {offsets = [0, 64], sizes = [8, 32], strides = [1, 1]} : vector<8x96xf32> to vector<8x32xf32>
    %474 = vector.extract_strided_slice %462 {offsets = [0, 64], sizes = [8, 32], strides = [1, 1]} : vector<8x96xf32> to vector<8x32xf32>
    %475 = arith.mulf %471, %474 : vector<8x32xf32>
    %476 = arith.addf %473, %475 : vector<8x32xf32>
    %477 = math.tanh %476 : vector<8x32xf32>
    %cst_165 = arith.constant 1.000000e+00 : f32
    %478 = vector.broadcast %cst_165 : f32 to vector<8x32xf32>
    %479 = arith.subf %478, %472 : vector<8x32xf32>
    %480 = arith.mulf %479, %477 : vector<8x32xf32>
    %481 = arith.mulf %472, %445 : vector<8x32xf32>
    %482 = arith.addf %480, %481 : vector<8x32xf32>
    %483 = vector.extract_strided_slice %356 {offsets = [96, 0], sizes = [32, 32], strides = [1, 1]} : vector<128x32xf32> to vector<32x32xf32>
    %484 = vector.extract_strided_slice %365 {offsets = [3, 0], sizes = [1, 32], strides = [1, 1]} : vector<4x32xf32> to vector<1x32xf32>
    %cst_166 = arith.constant dense<0.000000e+00> : vector<8x32xf32>
    %485 = tpu.matmul %164, %482, %cst_166 {dimension_numbers = #tpu.dot_dimension_numbers<[1], [0], [0], [1], [0, 0, 1, 1], [], []>} : vector<8x8xf32>, vector<8x32xf32>, vector<8x32xf32> -> vector<8x32xf32>
    %cst_167 = arith.constant dense<0.000000e+00> : vector<8x32xf32>
    %486 = tpu.matmul %485, %483, %cst_167 {dimension_numbers = #tpu.dot_dimension_numbers<[1], [0], [0], [1], [0, 0, 1, 1], [], []>} : vector<8x32xf32>, vector<32x32xf32>, vector<8x32xf32> -> vector<8x32xf32>
    %487 = vector.broadcast %484 : vector<1x32xf32> to vector<8x32xf32>
    %488 = arith.addf %486, %487 : vector<8x32xf32>
    %cst_168 = arith.constant 0.000000e+00 : f32
    %489 = vector.broadcast %cst_168 : f32 to vector<8x32xf32>
    %490 = arith.cmpf oge, %488, %489 : vector<8x32xf32>
    %cst_169 = arith.constant 0.00999999977 : f32
    %491 = vector.broadcast %cst_169 : f32 to vector<8x32xf32>
    %492 = arith.mulf %491, %488 : vector<8x32xf32>
    %493 = arith.select %490, %488, %492 : vector<8x32xi1>, vector<8x32xf32>
    %cst_170 = arith.constant dense<0.000000e+00> : vector<8x96xf32>
    %494 = tpu.matmul %493, %370, %cst_170 {dimension_numbers = #tpu.dot_dimension_numbers<[1], [0], [0], [1], [0, 0, 1, 1], [], []>} : vector<8x32xf32>, vector<32x96xf32>, vector<8x96xf32> -> vector<8x96xf32>
    %495 = vector.broadcast %366 : vector<1x96xf32> to vector<8x96xf32>
    %496 = arith.addf %494, %495 : vector<8x96xf32>
    %cst_171 = arith.constant dense<0.000000e+00> : vector<8x96xf32>
    %497 = tpu.matmul %482, %371, %cst_171 {dimension_numbers = #tpu.dot_dimension_numbers<[1], [0], [0], [1], [0, 0, 1, 1], [], []>} : vector<8x32xf32>, vector<32x96xf32>, vector<8x96xf32> -> vector<8x96xf32>
    %498 = vector.broadcast %367 : vector<1x96xf32> to vector<8x96xf32>
    %499 = arith.addf %497, %498 : vector<8x96xf32>
    %500 = vector.extract_strided_slice %496 {offsets = [0, 0], sizes = [8, 64], strides = [1, 1]} : vector<8x96xf32> to vector<8x64xf32>
    %501 = vector.extract_strided_slice %499 {offsets = [0, 0], sizes = [8, 64], strides = [1, 1]} : vector<8x96xf32> to vector<8x64xf32>
    %502 = arith.addf %500, %501 : vector<8x64xf32>
    %503 = arith.negf %502 : vector<8x64xf32>
    %504 = math.exp %503 : vector<8x64xf32>
    %cst_172 = arith.constant 1.000000e+00 : f32
    %505 = vector.broadcast %cst_172 : f32 to vector<8x64xf32>
    %506 = arith.addf %505, %504 : vector<8x64xf32>
    %507 = arith.divf %505, %506 : vector<8x64xf32>
    %508 = vector.extract_strided_slice %507 {offsets = [0, 0], sizes = [8, 32], strides = [1, 1]} : vector<8x64xf32> to vector<8x32xf32>
    %509 = vector.extract_strided_slice %507 {offsets = [0, 32], sizes = [8, 32], strides = [1, 1]} : vector<8x64xf32> to vector<8x32xf32>
    %510 = vector.extract_strided_slice %496 {offsets = [0, 64], sizes = [8, 32], strides = [1, 1]} : vector<8x96xf32> to vector<8x32xf32>
    %511 = vector.extract_strided_slice %499 {offsets = [0, 64], sizes = [8, 32], strides = [1, 1]} : vector<8x96xf32> to vector<8x32xf32>
    %512 = arith.mulf %508, %511 : vector<8x32xf32>
    %513 = arith.addf %510, %512 : vector<8x32xf32>
    %514 = math.tanh %513 : vector<8x32xf32>
    %cst_173 = arith.constant 1.000000e+00 : f32
    %515 = vector.broadcast %cst_173 : f32 to vector<8x32xf32>
    %516 = arith.subf %515, %509 : vector<8x32xf32>
    %517 = arith.mulf %516, %514 : vector<8x32xf32>
    %518 = arith.mulf %509, %482 : vector<8x32xf32>
    %519 = arith.addf %517, %518 : vector<8x32xf32>
    %520 = vector.extract_strided_slice %360 {offsets = [0, 0], sizes = [32, 32], strides = [1, 1]} : vector<64x32xf32> to vector<32x32xf32>
    %cst_174 = arith.constant dense<0.000000e+00> : vector<8x32xf32>
    %521 = tpu.matmul %1, %520, %cst_174 {dimension_numbers = #tpu.dot_dimension_numbers<[1], [0], [0], [1], [0, 0, 1, 1], [], []>} : vector<8x32xf32>, vector<32x32xf32>, vector<8x32xf32> -> vector<8x32xf32>
    %522 = vector.extract_strided_slice %360 {offsets = [32, 0], sizes = [32, 32], strides = [1, 1]} : vector<64x32xf32> to vector<32x32xf32>
    %cst_175 = arith.constant dense<0.000000e+00> : vector<8x32xf32>
    %523 = tpu.matmul %519, %522, %cst_175 {dimension_numbers = #tpu.dot_dimension_numbers<[1], [0], [0], [1], [0, 0, 1, 1], [], []>} : vector<8x32xf32>, vector<32x32xf32>, vector<8x32xf32> -> vector<8x32xf32>
    %524 = arith.addf %521, %523 : vector<8x32xf32>
    %525 = vector.broadcast %368 : vector<1x32xf32> to vector<8x32xf32>
    %526 = arith.addf %524, %525 : vector<8x32xf32>
    %cst_176 = arith.constant 0.000000e+00 : f32
    %527 = vector.broadcast %cst_176 : f32 to vector<8x32xf32>
    %528 = arith.cmpf oge, %526, %527 : vector<8x32xf32>
    %cst_177 = arith.constant 0.00999999977 : f32
    %529 = vector.broadcast %cst_177 : f32 to vector<8x32xf32>
    %530 = arith.mulf %529, %526 : vector<8x32xf32>
    %531 = arith.select %528, %526, %530 : vector<8x32xi1>, vector<8x32xf32>
    %cst_178 = arith.constant dense<0.000000e+00> : vector<8x64xf32>
    %532 = tpu.matmul %531, %362, %cst_178 {dimension_numbers = #tpu.dot_dimension_numbers<[1], [0], [0], [1], [0, 0, 1, 1], [], []>} : vector<8x32xf32>, vector<32x64xf32>, vector<8x64xf32> -> vector<8x64xf32>
    %533 = vector.broadcast %369 : vector<1x64xf32> to vector<8x64xf32>
    %534 = arith.addf %532, %533 : vector<8x64xf32>
    %cst_179 = arith.constant dense<0.000000e+00> : vector<8x128xf32>
    %535 = tpu.matmul %534, %12, %cst_179 {dimension_numbers = #tpu.dot_dimension_numbers<[1], [0], [0], [1], [0, 0, 1, 1], [], []>} : vector<8x64xf32>, vector<64x128xf32>, vector<8x128xf32> -> vector<8x128xf32>
    %c0_180 = arith.constant 0 : index
    %c0_181 = arith.constant 0 : index
    %c0_182 = arith.constant 0 : index
    %536 = vector.load %arg9[%c0_180, %c0_181, %c0_182] : memref<1x8x128xf32, #tpu.memory_space<vmem>>, vector<1x8x128xf32>
    %537 = vector.shape_cast %536 : vector<1x8x128xf32> to vector<8x128xf32>
    %538 = vector.shape_cast %535 : vector<8x128xf32> to vector<1x8x128xf32>
    tpu.vector_store %arg9[%c0_180, %c0_181, %c0_182], %538 {strides = array<i32>} : memref<1x8x128xf32, #tpu.memory_space<vmem>>, vector<1x8x128xf32>,
    return
  }
  func.func @transform_0(%arg0: i32) -> (i32, i32, i32) {
    %c0_i32 = arith.constant 0 : i32
    %c0_i32_0 = arith.constant 0 : i32
    %c0_i32_1 = arith.constant 0 : i32
    return %arg0, %c0_i32, %c0_i32_0 : i32, i32, i32
  }
  func.func @transform_1(%arg0: i32) -> (i32, i32, i32) {
    %c0_i32 = arith.constant 0 : i32
    %c0_i32_0 = arith.constant 0 : i32
    %c0_i32_1 = arith.constant 0 : i32
    return %arg0, %c0_i32, %c0_i32_0 : i32, i32, i32
  }
  func.func @transform_2(%arg0: i32) -> (i32, i32, i32) {
    %c0_i32 = arith.constant 0 : i32
    %c0_i32_0 = arith.constant 0 : i32
    %c0_i32_1 = arith.constant 0 : i32
    return %arg0, %c0_i32, %c0_i32_0 : i32, i32, i32
  }
  func.func @transform_3(%arg0: i32) -> (i32, i32, i32) {
    %c0_i32 = arith.constant 0 : i32
    %c0_i32_0 = arith.constant 0 : i32
    %c0_i32_1 = arith.constant 0 : i32
    return %arg0, %c0_i32, %c0_i32_0 : i32, i32, i32
  }
  func.func @transform_4(%arg0: i32) -> (i32, i32, i32) {
    %c0_i32 = arith.constant 0 : i32
    %c0_i32_0 = arith.constant 0 : i32
    %c0_i32_1 = arith.constant 0 : i32
    return %arg0, %c0_i32, %c0_i32_0 : i32, i32, i32
  }
  func.func @transform_5(%arg0: i32) -> (i32, i32, i32) {
    %c0_i32 = arith.constant 0 : i32
    %c0_i32_0 = arith.constant 0 : i32
    %c0_i32_1 = arith.constant 0 : i32
    return %arg0, %c0_i32, %c0_i32_0 : i32, i32, i32
  }
  func.func @transform_6(%arg0: i32) -> (i32, i32, i32) {
    %c0_i32 = arith.constant 0 : i32
    %c0_i32_0 = arith.constant 0 : i32
    %c0_i32_1 = arith.constant 0 : i32
    %c0_i32_2 = arith.constant 0 : i32
    return %c0_i32, %c0_i32_0, %c0_i32_1 : i32, i32, i32
  }
  func.func @transform_7(%arg0: i32) -> (i32, i32) {
    %c0_i32 = arith.constant 0 : i32
    %c0_i32_0 = arith.constant 0 : i32
    %c0_i32_1 = arith.constant 0 : i32
    return %c0_i32, %c0_i32_0 : i32, i32
  }
  func.func @transform_8(%arg0: i32) -> (i32, i32, i32) {
    %c0_i32 = arith.constant 0 : i32
    %c0_i32_0 = arith.constant 0 : i32
    %c0_i32_1 = arith.constant 0 : i32
    return %arg0, %c0_i32, %c0_i32_0 : i32, i32, i32
  }
}

</mosaic_0001>

<llo_original>
// kernel: cvgae_forward.1
$region0: #{cvgae_forward.1}
  #allocation0 [shape = 'u32[]', space=smem, size = 0x4, offset = 0x4, fixed_abs, tag = 'smem constant byte address 0x4 - core index']
  #allocation1 [shape = 'u32[144,128]{1,0:T(1,128)}', space=vmem, size = 0x12000, scoped, tag = 'internal scratch']
  %s0 = inlined_call_operand.vmem [shape: f32[4,8,32], index: 0, kind: input, shape index: {}]
  %s1 = inlined_call_operand.vmem [shape: f32[4,10,16], index: 1, kind: input, shape index: {}]
  %s2 = inlined_call_operand.vmem [shape: f32[4,8,10], index: 2, kind: input, shape index: {}]
  %s3 = inlined_call_operand.vmem [shape: f32[4,8,10], index: 3, kind: input, shape index: {}]
  %s4 = inlined_call_operand.vmem [shape: f32[4,8,3], index: 4, kind: input, shape index: {}]
  %s5 = inlined_call_operand.vmem [shape: f32[4,8,32], index: 5, kind: input, shape index: {}]
  %s6 = inlined_call_operand.vmem [shape: f32[2,352,96], index: 6, kind: input, shape index: {}]
  %s7 = inlined_call_operand.vmem [shape: f32[112,128], index: 7, kind: input, shape index: {}]
  %s8 = inlined_call_operand.vmem [shape: f32[4,8,128], index: 8, kind: output, shape index: {}]
  %s9 = sld [smem:[#allocation0]]
  $region65: #{cvgae_forward.1} parent=0
    _
  %s11 = ssub.s32 1, %s9
  %s12 = scalar_select 0, %s11, %s9
  loop: start=0, step=1, limit=6
  $region2: #{cvgae_forward.1} parent=0 // loop_pre_header
    _
  $region3: #{cvgae_forward.1} parent=0 // loop_header
    %s14 = sphi 0, %s18
    %p15 = scmp.ge.s32.totalorder %s14, 6
    %s24 = sphi 0, %s26
    %s27 = sphi 0, %s24
    %s28 = sphi 0, %s27
    %s44 = sphi 0, %s28
    %s50 = sphi 0, %s52
    %s53 = sphi 0, %s50
    %s54 = sphi 0, %s53
    %s70 = sphi 0, %s54
    %s76 = sphi 0, %s78
    %s79 = sphi 0, %s76
    %s80 = sphi 0, %s79
    %s96 = sphi 0, %s80
    %s102 = sphi 0, %s104
    %s105 = sphi 0, %s102
    %s106 = sphi 0, %s105
    %s122 = sphi 0, %s106
    %s128 = sphi 0, %s130
    %s131 = sphi 0, %s128
    %s132 = sphi 0, %s131
    %s148 = sphi 0, %s132
    %s154 = sphi 0, %s156
    %s157 = sphi 0, %s154
    %s158 = sphi 0, %s157
    %s174 = sphi 0, %s158
    %s178 = sphi 0, %s178
    %s180 = sphi 0, %s178
    %s181 = sphi 0, %s180
    %s195 = sphi 0, %s181
    %s199 = sphi 0, %s199
    %s201 = sphi 0, %s199
    %s202 = sphi 0, %s201
    %s216 = sphi 0, %s202
    %s222 = sphi 0, %s224
    %s225 = sphi 0, %s222
    %s226 = sphi 0, %s225
    %s242 = sphi 0, %s226
  $region4: #{cvgae_forward.1} parent=0 // loop_header_branch
    %17 = sbr.rel (%p15) target = $region8
  $region5: #{cvgae_forward.1} parent=0 // loop_body
    %s19 = ssub.s32 %s14, 1
    %s20 = ssub.s32 %s14, 2
    %s21 = sadd.s32 %s14, 1
    %s22 = ssub.s32 %s14, %s21
    %p23 = scmp.eq.s32.totalorder %s22, 0
    %s25 = sadd.s32 %s24, 1
    %s26 = scalar_select %p23, %s24, %s25
    %p29 = pneg %p23
    %p30 = scmp.eq.s32.totalorder %s14, 3
    %p31 = por %p29, %p30
    %p32 = scmp.ne.s32.totalorder %s24, %s27
    %p33 = scmp.eq.s32.totalorder %s14, 0
    %p34 = por %p32, %p33
    %p35 = scmp.ne.s32.totalorder %s24, %s27
    %p36 = scmp.eq.s32.totalorder %s19, 3
    %p37 = por %p35, %p36
    %p38 = scmp.ne.s32.totalorder %s27, %s28
    %p39 = scmp.eq.s32.totalorder %s19, 0
    %p40 = por %p38, %p39
    %p41 = scmp.ne.s32.totalorder %s27, %s28
    %p42 = scmp.eq.s32.totalorder %s20, 3
    %p43 = por %p41, %p42
    %p45 = scmp.ne.s32.totalorder %s28, %s44
    %p46 = scmp.eq.s32.totalorder %s20, 0
    %p47 = por %p45, %p46
    %s48 = ssub.s32 %s14, %s21
    %p49 = scmp.eq.s32.totalorder %s48, 0
    %s51 = sadd.s32 %s50, 1
    %s52 = scalar_select %p49, %s50, %s51
    %p55 = pneg %p49
    %p56 = scmp.eq.s32.totalorder %s14, 3
    %p57 = por %p55, %p56
    %p58 = scmp.ne.s32.totalorder %s50, %s53
    %p59 = scmp.eq.s32.totalorder %s14, 0
    %p60 = por %p58, %p59
    %p61 = scmp.ne.s32.totalorder %s50, %s53
    %p62 = scmp.eq.s32.totalorder %s19, 3
    %p63 = por %p61, %p62
    %p64 = scmp.ne.s32.totalorder %s53, %s54
    %p65 = scmp.eq.s32.totalorder %s19, 0
    %p66 = por %p64, %p65
    %p67 = scmp.ne.s32.totalorder %s53, %s54
    %p68 = scmp.eq.s32.totalorder %s20, 3
    %p69 = por %p67, %p68
    %p71 = scmp.ne.s32.totalorder %s54, %s70
    %p72 = scmp.eq.s32.totalorder %s20, 0
    %p73 = por %p71, %p72
    %s74 = ssub.s32 %s14, %s21
    %p75 = scmp.eq.s32.totalorder %s74, 0
    %s77 = sadd.s32 %s76, 1
    %s78 = scalar_select %p75, %s76, %s77
    %p81 = pneg %p75
    %p82 = scmp.eq.s32.totalorder %s14, 3
    %p83 = por %p81, %p82
    %p84 = scmp.ne.s32.totalorder %s76, %s79
    %p85 = scmp.eq.s32.totalorder %s14, 0
    %p86 = por %p84, %p85
    %p87 = scmp.ne.s32.totalorder %s76, %s79
    %p88 = scmp.eq.s32.totalorder %s19, 3
    %p89 = por %p87, %p88
    %p90 = scmp.ne.s32.totalorder %s79, %s80
    %p91 = scmp.eq.s32.totalorder %s19, 0
    %p92 = por %p90, %p91
    %p93 = scmp.ne.s32.totalorder %s79, %s80
    %p94 = scmp.eq.s32.totalorder %s20, 3
    %p95 = por %p93, %p94
    %p97 = scmp.ne.s32.totalorder %s80, %s96
    %p98 = scmp.eq.s32.totalorder %s20, 0
    %p99 = por %p97, %p98
    %s100 = ssub.s32 %s14, %s21
    %p101 = scmp.eq.s32.totalorder %s100, 0
    %s103 = sadd.s32 %s102, 1
    %s104 = scalar_select %p101, %s102, %s103
    %p107 = pneg %p101
    %p108 = scmp.eq.s32.totalorder %s14, 3
    %p109 = por %p107, %p108
    %p110 = scmp.ne.s32.totalorder %s102, %s105
    %p111 = scmp.eq.s32.totalorder %s14, 0
    %p112 = por %p110, %p111
    %p113 = scmp.ne.s32.totalorder %s102, %s105
    %p114 = scmp.eq.s32.totalorder %s19, 3
    %p115 = por %p113, %p114
    %p116 = scmp.ne.s32.totalorder %s105, %s106
    %p117 = scmp.eq.s32.totalorder %s19, 0
    %p118 = por %p116, %p117
    %p119 = scmp.ne.s32.totalorder %s105, %s106
    %p120 = scmp.eq.s32.totalorder %s20, 3
    %p121 = por %p119, %p120
    %p123 = scmp.ne.s32.totalorder %s106, %s122
    %p124 = scmp.eq.s32.totalorder %s20, 0
    %p125 = por %p123, %p124
    %s126 = ssub.s32 %s14, %s21
    %p127 = scmp.eq.s32.totalorder %s126, 0
    %s129 = sadd.s32 %s128, 1
    %s130 = scalar_select %p127, %s128, %s129
    %p133 = pneg %p127
    %p134 = scmp.eq.s32.totalorder %s14, 3
    %p135 = por %p133, %p134
    %p136 = scmp.ne.s32.totalorder %s128, %s131
    %p137 = scmp.eq.s32.totalorder %s14, 0
    %p138 = por %p136, %p137
    %p139 = scmp.ne.s32.totalorder %s128, %s131
    %p140 = scmp.eq.s32.totalorder %s19, 3
    %p141 = por %p139, %p140
    %p142 = scmp.ne.s32.totalorder %s131, %s132
    %p143 = scmp.eq.s32.totalorder %s19, 0
    %p144 = por %p142, %p143
    %p145 = scmp.ne.s32.totalorder %s131, %s132
    %p146 = scmp.eq.s32.totalorder %s20, 3
    %p147 = por %p145, %p146
    %p149 = scmp.ne.s32.totalorder %s132, %s148
    %p150 = scmp.eq.s32.totalorder %s20, 0
    %p151 = por %p149, %p150
    %s152 = ssub.s32 %s14, %s21
    %p153 = scmp.eq.s32.totalorder %s152, 0
    %s155 = sadd.s32 %s154, 1
    %s156 = scalar_select %p153, %s154, %s155
    %p159 = pneg %p153
    %p160 = scmp.eq.s32.totalorder %s14, 3
    %p161 = por %p159, %p160
    %p162 = scmp.ne.s32.totalorder %s154, %s157
    %p163 = scmp.eq.s32.totalorder %s14, 0
    %p164 = por %p162, %p163
    %p165 = scmp.ne.s32.totalorder %s154, %s157
    %p166 = scmp.eq.s32.totalorder %s19, 3
    %p167 = por %p165, %p166
    %p168 = scmp.ne.s32.totalorder %s157, %s158
    %p169 = scmp.eq.s32.totalorder %s19, 0
    %p170 = por %p168, %p169
    %p171 = scmp.ne.s32.totalorder %s157, %s158
    %p172 = scmp.eq.s32.totalorder %s20, 3
    %p173 = por %p171, %p172
    %p175 = scmp.ne.s32.totalorder %s158, %s174
    %p176 = scmp.eq.s32.totalorder %s20, 0
    %p177 = por %p175, %p176
    %s179 = sadd.s32 %s178, 1
    %p182 = scmp.eq.s32.totalorder %s14, 3
    %p183 = scmp.ne.s32.totalorder %s178, %s180
    %p184 = scmp.eq.s32.totalorder %s14, 0
    %p185 = por %p183, %p184
    %p186 = scmp.ne.s32.totalorder %s178, %s180
    %p187 = scmp.eq.s32.totalorder %s19, 3
    %p188 = por %p186, %p187
    %p189 = scmp.ne.s32.totalorder %s180, %s181
    %p190 = scmp.eq.s32.totalorder %s19, 0
    %p191 = por %p189, %p190
    %p192 = scmp.ne.s32.totalorder %s180, %s181
    %p193 = scmp.eq.s32.totalorder %s20, 3
    %p194 = por %p192, %p193
    %p196 = scmp.ne.s32.totalorder %s181, %s195
    %p197 = scmp.eq.s32.totalorder %s20, 0
    %p198 = por %p196, %p197
    %s200 = sadd.s32 %s199, 1
    %p203 = scmp.eq.s32.totalorder %s14, 3
    %p204 = scmp.ne.s32.totalorder %s199, %s201
    %p205 = scmp.eq.s32.totalorder %s14, 0
    %p206 = por %p204, %p205
    %p207 = scmp.ne.s32.totalorder %s199, %s201
    %p208 = scmp.eq.s32.totalorder %s19, 3
    %p209 = por %p207, %p208
    %p210 = scmp.ne.s32.totalorder %s201, %s202
    %p211 = scmp.eq.s32.totalorder %s19, 0
    %p212 = por %p210, %p211
    %p213 = scmp.ne.s32.totalorder %s201, %s202
    %p214 = scmp.eq.s32.totalorder %s20, 3
    %p215 = por %p213, %p214
    %p217 = scmp.ne.s32.totalorder %s202, %s216
    %p218 = scmp.eq.s32.totalorder %s20, 0
    %p219 = por %p217, %p218
    %s220 = ssub.s32 %s14, %s21
    %p221 = scmp.eq.s32.totalorder %s220, 0
    %s223 = sadd.s32 %s222, 1
    %s224 = scalar_select %p221, %s222, %s223
    %p227 = pneg %p221
    %p228 = scmp.eq.s32.totalorder %s14, 3
    %p229 = por %p227, %p228
    %p230 = scmp.ne.s32.totalorder %s222, %s225
    %p231 = scmp.eq.s32.totalorder %s14, 0
    %p232 = por %p230, %p231
    %p233 = scmp.ne.s32.totalorder %s222, %s225
    %p234 = scmp.eq.s32.totalorder %s19, 3
    %p235 = por %p233, %p234
    %p236 = scmp.ne.s32.totalorder %s225, %s226
    %p237 = scmp.eq.s32.totalorder %s19, 0
    %p238 = por %p236, %p237
    %p239 = scmp.ne.s32.totalorder %s225, %s226
    %p240 = scmp.eq.s32.totalorder %s20, 3
    %p241 = por %p239, %p240
    %p243 = scmp.ne.s32.totalorder %s226, %s242
    %p244 = scmp.eq.s32.totalorder %s20, 0
    %p245 = por %p243, %p244
    %p246 = scmp.le.s32.totalorder 1, %s14
    %p247 = scmp.lt.s32.totalorder %s14, 5
    %p248 = pnand %p246, %p247
    %p249 = pneg %p248
    // Predicated region
    $region9: #{cvgae_forward.1} parent=5 // pred_check
      _
    $region10: #{cvgae_forward.1} parent=5 // pred_check_branch
      %251 = sbr.rel (%p248) target = $region12
    $region11: #{cvgae_forward.1} parent=5 // pred_region
      %s252 = ssub.s32 %s14, 1
      // Predicated region
      $region13: #{cvgae_forward.1} parent=11 // pred_check
        %p253 = pneg %p191
      $region14: #{cvgae_forward.1} parent=11 // pred_check_branch
        %255 = sbr.rel (%p253) target = $region16
      $region15: #{cvgae_forward.1} parent=11 // pred_region
        _
      $region16: #{cvgae_forward.1} parent=11 // pred_fallthru
        _
      // Predicated region
      $region17: #{cvgae_forward.1} parent=11 // pred_check
        %p256 = pneg %p212
      $region18: #{cvgae_forward.1} parent=11 // pred_check_branch
        %258 = sbr.rel (%p256) target = $region20
      $region19: #{cvgae_forward.1} parent=11 // pred_region
        _
      $region20: #{cvgae_forward.1} parent=11 // pred_fallthru
        _
    $region12: #{cvgae_forward.1} parent=5 // pred_fallthru
      _
    %p259 = scmp.lt.s32.totalorder %s14, 4
    // Predicated region
    $region21: #{cvgae_forward.1} parent=5 // pred_check
      %p260 = pneg %p259
    $region22: #{cvgae_forward.1} parent=5 // pred_check_branch
      %262 = sbr.rel (%p260) target = $region24
    $region23: #{cvgae_forward.1} parent=5 // pred_region
      // Predicated region
      $region25: #{cvgae_forward.1} parent=23 // pred_check
        %p263 = pneg %p34
      $region26: #{cvgae_forward.1} parent=23 // pred_check_branch
        %265 = sbr.rel (%p263) target = $region28
      $region27: #{cvgae_forward.1} parent=23 // pred_region
        %p266 = scmp.lt.s32.totalorder %s14, 3
        %s267 = scalar_select %p266, %s14, 3
        %s268 = smul.addr %s267, 8
        %s269 = scalar_lea.vmem %s0, %s268
      $region28: #{cvgae_forward.1} parent=23 // pred_fallthru
        _
      // Predicated region
      $region29: #{cvgae_forward.1} parent=23 // pred_check
        %p270 = pneg %p60
      $region30: #{cvgae_forward.1} parent=23 // pred_check_branch
        %272 = sbr.rel (%p270) target = $region32
      $region31: #{cvgae_forward.1} parent=23 // pred_region
        %p273 = scmp.lt.s32.totalorder %s14, 3
        %s274 = scalar_select %p273, %s14, 3
        %s275 = smul.addr %s274, 2
        %s276 = smul.addr %s275, 8
        %s277 = scalar_lea.vmem %s1, %s276
      $region32: #{cvgae_forward.1} parent=23 // pred_fallthru
        _
      // Predicated region
      $region33: #{cvgae_forward.1} parent=23 // pred_check
        %p278 = pneg %p86
      $region34: #{cvgae_forward.1} parent=23 // pred_check_branch
        %280 = sbr.rel (%p278) target = $region36
      $region35: #{cvgae_forward.1} parent=23 // pred_region
        %p281 = scmp.lt.s32.totalorder %s14, 3
        %s282 = scalar_select %p281, %s14, 3
        %s283 = smul.addr %s282, 8
        %s284 = scalar_lea.vmem %s2, %s283
      $region36: #{cvgae_forward.1} parent=23 // pred_fallthru
        _
      // Predicated region
      $region37: #{cvgae_forward.1} parent=23 // pred_check
        %p285 = pneg %p112
      $region38: #{cvgae_forward.1} parent=23 // pred_check_branch
        %287 = sbr.rel (%p285) target = $region40
      $region39: #{cvgae_forward.1} parent=23 // pred_region
        %p288 = scmp.lt.s32.totalorder %s14, 3
        %s289 = scalar_select %p288, %s14, 3
        %s290 = smul.addr %s289, 8
        %s291 = scalar_lea.vmem %s3, %s290
      $region40: #{cvgae_forward.1} parent=23 // pred_fallthru
        _
      // Predicated region
      $region41: #{cvgae_forward.1} parent=23 // pred_check
        %p292 = pneg %p138
      $region42: #{cvgae_forward.1} parent=23 // pred_check_branch
        %294 = sbr.rel (%p292) target = $region44
      $region43: #{cvgae_forward.1} parent=23 // pred_region
        %p295 = scmp.lt.s32.totalorder %s14, 3
        %s296 = scalar_select %p295, %s14, 3
        %s297 = smul.addr %s296, 8
        %s298 = scalar_lea.vmem %s4, %s297
      $region44: #{cvgae_forward.1} parent=23 // pred_fallthru
        _
      // Predicated region
      $region45: #{cvgae_forward.1} parent=23 // pred_check
        %p299 = pneg %p164
      $region46: #{cvgae_forward.1} parent=23 // pred_check_branch
        %301 = sbr.rel (%p299) target = $region48
      $region47: #{cvgae_forward.1} parent=23 // pred_region
        %p302 = scmp.lt.s32.totalorder %s14, 3
        %s303 = scalar_select %p302, %s14, 3
        %s304 = smul.addr %s303, 8
        %s305 = scalar_lea.vmem %s5, %s304
      $region48: #{cvgae_forward.1} parent=23 // pred_fallthru
        _
    $region24: #{cvgae_forward.1} parent=5 // pred_fallthru
      _
    %p306 = scmp.le.s32.totalorder 1, %s14
    %p307 = scmp.lt.s32.totalorder %s14, 5
    %p308 = pnand %p306, %p307
    %p309 = pneg %p308
    // Predicated region
    $region49: #{cvgae_forward.1} parent=5 // pred_check
      _
    $region50: #{cvgae_forward.1} parent=5 // pred_check_branch
      %311 = sbr.rel (%p308) target = $region52
    $region51: #{cvgae_forward.1} parent=5 // pred_region
      %s312 = ssub.s32 %s14, 1
      %p313 = scmp.lt.s32.totalorder %s19, 3
      %s314 = scalar_select %p313, %s19, 3
      %s315 = smul.addr %s314, 8
      %s316 = scalar_lea.vmem %s0, %s315
      %p317 = pneg %p40
      %p318 = pneg %p37
      %p319 = scmp.lt.s32.totalorder %s19, 3
      %s320 = scalar_select %p319, %s19, 3
      %s321 = smul.addr %s320, 2
      %s322 = smul.addr %s321, 8
      %s323 = scalar_lea.vmem %s1, %s322
      %p324 = pneg %p66
      %p325 = pneg %p63
      %p326 = scmp.lt.s32.totalorder %s19, 3
      %s327 = scalar_select %p326, %s19, 3
      %s328 = smul.addr %s327, 8
      %s329 = scalar_lea.vmem %s2, %s328
      %p330 = pneg %p92
      %p331 = pneg %p89
      %p332 = scmp.lt.s32.totalorder %s19, 3
      %s333 = scalar_select %p332, %s19, 3
      %s334 = smul.addr %s333, 8
      %s335 = scalar_lea.vmem %s3, %s334
      %p336 = pneg %p118
      %p337 = pneg %p115
      %p338 = scmp.lt.s32.totalorder %s19, 3
      %s339 = scalar_select %p338, %s19, 3
      %s340 = smul.addr %s339, 8
      %s341 = scalar_lea.vmem %s4, %s340
      %p342 = pneg %p144
      %p343 = pneg %p141
      %p344 = scmp.lt.s32.totalorder %s19, 3
      %s345 = scalar_select %p344, %s19, 3
      %s346 = smul.addr %s345, 8
      %s347 = scalar_lea.vmem %s5, %s346
      %p348 = pneg %p170
      %p349 = pneg %p167
      %p350 = pneg %p191
      %p351 = pneg %p188
      %p352 = pneg %p212
      %p353 = pneg %p209
      %p354 = pneg %p238
      %p355 = pneg %p235
      %p356 = scmp.lt.s32.totalorder %s19, 3
      %s357 = scalar_select %p356, %s19, 3
      %s358 = smul.addr %s357, 8
      %s359 = scalar_lea.vmem %s8, %s358
      %p360 = scmp.lt.s32.totalorder %s19, 3
      %s361 = scalar_select %p360, %s19, 3
      %s362 = smul.addr %s361, 8
      %s363 = scalar_lea.vmem %s0, %s362
      %p364 = scmp.lt.s32.totalorder %s19, 3
      %s365 = scalar_select %p364, %s19, 3
      %s366 = smul.addr %s365, 2
      %s367 = smul.addr %s366, 8
      %s368 = scalar_lea.vmem %s1, %s367
      %p369 = scmp.lt.s32.totalorder %s19, 3
      %s370 = scalar_select %p369, %s19, 3
      %s371 = smul.addr %s370, 8
      %s372 = scalar_lea.vmem %s2, %s371
      %p373 = scmp.lt.s32.totalorder %s19, 3
      %s374 = scalar_select %p373, %s19, 3
      %s375 = smul.addr %s374, 8
      %s376 = scalar_lea.vmem %s3, %s375
      %p377 = scmp.lt.s32.totalorder %s19, 3
      %s378 = scalar_select %p377, %s19, 3
      %s379 = smul.addr %s378, 8
      %s380 = scalar_lea.vmem %s4, %s379
      %p381 = scmp.lt.s32.totalorder %s19, 3
      %s382 = scalar_select %p381, %s19, 3
      %s383 = smul.addr %s382, 8
      %s384 = scalar_lea.vmem %s5, %s383
      %p385 = scmp.lt.s32.totalorder %s19, 3
      %s386 = scalar_select %p385, %s19, 3
      %s387 = smul.addr %s386, 8
      %s388 = scalar_lea.vmem %s8, %s387
      %v389 = vld [vmem:[%s363] sm:$0xff]
      %v390 = vld [vmem:[%s368] sm:$0xff]
      %v391 = vld [vmem:[%s368 + $0x8] sm:$0x3]
      %v392 = vld [vmem:[%s372] sm:$0xff]
      %v393 = vld [vmem:[%s376] sm:$0xff]
      %v394 = vld [vmem:[%s7] sm:$0xff]
      %v395 = vld [vmem:[%s7 + $0x8] sm:$0xff]
      %v396 = vld [vmem:[%s7 + $0x10] sm:$0xff]
      %v397 = vld [vmem:[%s7 + $0x18] sm:$0xff]
      %v398 = vld [vmem:[%s7 + $0x20] sm:$0x7]
      %v399 = vld [vmem:[%s7 + $0x28] sm:$0x1]
      %v400 = vld [vmem:[%s7 + $0x30] sm:$0xff]
      %v401 = vld [vmem:[%s7 + $0x38] sm:$0xff]
      %v402 = vld [vmem:[%s7 + $0x40] sm:$0xff]
      %v403 = vld [vmem:[%s7 + $0x48] sm:$0xff]
      %v404 = vld [vmem:[%s7 + $0x50] sm:$0xff]
      %v405 = vld [vmem:[%s7 + $0x58] sm:$0xff]
      %v406 = vld [vmem:[%s7 + $0x60] sm:$0xff]
      %v407 = vld [vmem:[%s7 + $0x68] sm:$0xff]
      %v408 = vld [vmem:[%s380] sm:$0xff]
      %vm409 = vcmask 23552
      %v411 = vsel %vm409, %v408, 0
      %vm413 = vcmask 1042432
      %v415 = vsel %vm413, %v398, 0
      %417 = vmatprep.subr.mxu0 0.0
      %418 = vmatpush1.msra.mxu0 0.0
      %419 = vmatprep.subr.mxu0 0.0
      %420 = vmatpush1.msra.mxu0 0.0
      %421 = vmatprep.subr.mxu0 0.0
      %422 = vmatpush1.msra.mxu0 0.0
      %423 = vmatprep.subr.mxu0 0.0
      %424 = vmatpush1.msra.mxu0 0.0
      %425 = vmatprep.subr.mxu0 0.0
      %426 = vmatpush1.msra.mxu0 0.0
      %427 = vmatprep.subr.mxu0 0.0
      %428 = vmatpush1.msra.mxu0 0.0
      %429 = vmatprep.subr.mxu0 0.0
      %430 = vmatpush1.msra.mxu0 0.0
      %431 = vmatprep.subr.mxu0 0.0
      %432 = vmatpush1.msra.mxu0 0.0
      %433 = vmatprep.subr.mxu0 0.0
      %434 = vmatpush1.msra.mxu0 0.0
      %435 = vmatprep.subr.mxu0 0.0
      %436 = vmatpush1.msra.mxu0 0.0
      %437 = vmatprep.subr.mxu0 0.0
      %438 = vmatpush1.msra.mxu0 0.0
      %439 = vmatprep.subr.mxu0 0.0
      %440 = vmatpush1.msra.mxu0 0.0
      %441 = vmatprep.subr.mxu0 0.0
      %442 = vmatpush1.msra.mxu0 0.0
      %443 = vmatprep.subr.mxu0 0.0
      %444 = vmatpush1.msra.mxu0 0.0
      %445 = vmatprep.subr.mxu0 0.0
      %446 = vmatpush1.msra.mxu0 0.0
      %447 = vmatprep.subr.mxu0 0.0
      %448 = vmatpush1.msra.mxu0 %v415
      %449 = vmatprep.subr.mxu0 0.0
      %450 = vmatpush2.msra.mxu0 0.0
      %451 = vmatprep.subr.mxu0 0.0
      %452 = vmatpush2.msra.mxu0 0.0
      %453 = vmatprep.subr.mxu0 0.0
      %454 = vmatpush2.msra.mxu0 0.0
      %455 = vmatprep.subr.mxu0 0.0
      %456 = vmatpush2.msra.mxu0 0.0
      %457 = vmatprep.subr.mxu0 0.0
      %458 = vmatpush2.msra.mxu0 0.0
      %459 = vmatprep.subr.mxu0 0.0
      %460 = vmatpush2.msra.mxu0 0.0
      %461 = vmatprep.subr.mxu0 0.0
      %462 = vmatpush2.msra.mxu0 0.0
      %463 = vmatprep.subr.mxu0 0.0
      %464 = vmatpush2.msra.mxu0 0.0
      %465 = vmatprep.subr.mxu0 0.0
      %466 = vmatpush2.msra.mxu0 0.0
      %467 = vmatprep.subr.mxu0 0.0
      %468 = vmatpush2.msra.mxu0 0.0
      %469 = vmatprep.subr.mxu0 0.0
      %470 = vmatpush2.msra.mxu0 0.0
      %471 = vmatprep.subr.mxu0 0.0
      %472 = vmatpush2.msra.mxu0 0.0
      %473 = vmatprep.subr.mxu0 0.0
      %474 = vmatpush2.msra.mxu0 0.0
      %475 = vmatprep.subr.mxu0 0.0
      %476 = vmatpush2.msra.mxu0 0.0
      %477 = vmatprep.subr.mxu0 0.0
      %478 = vmatpush2.msra.mxu0 0.0
      %479 = vmatprep.subr.mxu0 0.0
      %480 = vmatpush2.msra.mxu0 0.0
      %481 = vmatprep.mubr.f32.mxu0 0.0
      %482 = vmatmul.mubr.f32.gmra.mxu0 %v411
      %v483 = vpop.f32.mrf.mxu0
      %v484 = vadd.f32 0.0, %v483
      %v485 = vpop.f32.mrf.mxu0
      %486 = vdwg.mxu0
      %vm487 = vcmask 261120
      %v489 = vsel %vm487, %v389, 0
      %491 = vmatprep.subr.mxu0 0.0
      %492 = vmatpush1.msra.mxu0 0.0
      %493 = vmatprep.subr.mxu0 0.0
      %494 = vmatpush1.msra.mxu0 0.0
      %495 = vmatprep.subr.mxu0 0.0
      %496 = vmatpush1.msra.mxu0 0.0
      %497 = vmatprep.subr.mxu0 0.0
      %498 = vmatpush1.msra.mxu0 0.0
      %499 = vmatprep.subr.mxu0 0.0
      %500 = vmatpush1.msra.mxu0 0.0
      %501 = vmatprep.subr.mxu0 0.0
      %502 = vmatpush1.msra.mxu0 0.0
      %503 = vmatprep.subr.mxu0 0.0
      %504 = vmatpush1.msra.mxu0 0.0
      %505 = vmatprep.subr.mxu0 0.0
      %506 = vmatpush1.msra.mxu0 0.0
      %507 = vmatprep.subr.mxu0 0.0
      %508 = vmatpush1.msra.mxu0 0.0
      %509 = vmatprep.subr.mxu0 0.0
      %510 = vmatpush1.msra.mxu0 0.0
      %511 = vmatprep.subr.mxu0 0.0
      %512 = vmatpush1.msra.mxu0 0.0
      %513 = vmatprep.subr.mxu0 0.0
      %514 = vmatpush1.msra.mxu0 0.0
      %515 = vmatprep.subr.mxu0 0.0
      %516 = vmatpush1.msra.mxu0 %v397
      %517 = vmatprep.subr.mxu0 0.0
      %518 = vmatpush1.msra.mxu0 %v396
      %519 = vmatprep.subr.mxu0 0.0
      %520 = vmatpush1.msra.mxu0 %v395
      %521 = vmatprep.subr.mxu0 0.0
      %522 = vmatpush1.msra.mxu0 %v394
      %523 = vmatprep.subr.mxu0 0.0
      %524 = vmatpush2.msra.mxu0 0.0
      %525 = vmatprep.subr.mxu0 0.0
      %526 = vmatpush2.msra.mxu0 0.0
      %527 = vmatprep.subr.mxu0 0.0
      %528 = vmatpush2.msra.mxu0 0.0
      %529 = vmatprep.subr.mxu0 0.0
      %530 = vmatpush2.msra.mxu0 0.0
      %531 = vmatprep.subr.mxu0 0.0
      %532 = vmatpush2.msra.mxu0 0.0
      %533 = vmatprep.subr.mxu0 0.0
      %534 = vmatpush2.msra.mxu0 0.0
      %535 = vmatprep.subr.mxu0 0.0
      %536 = vmatpush2.msra.mxu0 0.0
      %537 = vmatprep.subr.mxu0 0.0
      %538 = vmatpush2.msra.mxu0 0.0
      %539 = vmatprep.subr.mxu0 0.0
      %540 = vmatpush2.msra.mxu0 0.0
      %541 = vmatprep.subr.mxu0 0.0
      %542 = vmatpush2.msra.mxu0 0.0
      %543 = vmatprep.subr.mxu0 0.0
      %544 = vmatpush2.msra.mxu0 0.0
      %545 = vmatprep.subr.mxu0 0.0
      %546 = vmatpush2.msra.mxu0 0.0
      %547 = vmatprep.subr.mxu0 0.0
      %548 = vmatpush2.msra.mxu0 0.0
      %549 = vmatprep.subr.mxu0 0.0
      %550 = vmatpush2.msra.mxu0 0.0
      %551 = vmatprep.subr.mxu0 0.0
      %552 = vmatpush2.msra.mxu0 0.0
      %553 = vmatprep.subr.mxu0 0.0
      %554 = vmatpush2.msra.mxu0 0.0
      %555 = vmatprep.mubr.f32.mxu0 0.0
      %556 = vmatmul.mubr.f32.gmra.mxu0 %v489
      %v557 = vpop.f32.mrf.mxu0
      %v558 = vadd.f32 %v484, %v557
      %v559 = vpop.f32.mrf.mxu0
      %560 = vdwg.mxu0
      %v561 = vlaneseq
      %v562 = vshrl.u32 %v561, 7
      %v563 = vsub.s32 0, %v562
      %v564 = vrot.slane %v399, %v563
      %v565 = vadd.f32 %v558, %v564
      %v566 = vtanh.pop %v565
      %v567 = vld [vmem:[%s6] sm:$0xff]
      %v568 = vld [vmem:[%s6 + $0x8] sm:$0xff]
      %v569 = vld [vmem:[%s6 + $0x10] sm:$0xff]
      %v570 = vld [vmem:[%s6 + $0x18] sm:$0xff]
      %v571 = vld [vmem:[%s6 + $0x20] sm:$0xff]
      %v572 = vld [vmem:[%s6 + $0x28] sm:$0xff]
      %v573 = vld [vmem:[%s6 + $0x150] sm:$0xff]
      %v574 = vld [vmem:[%s6 + $0x158] sm:$0x7]
      %575 = vxpose.xlu0.b32.start [1/16] %v392, 128
      %576 = vxpose.xlu0.b32.cont [2/16] 0.0, 128
      %577 = vxpose.xlu0.b32.cont [3/16] 0.0, 128
      %578 = vxpose.xlu0.b32.cont [4/16] 0.0, 128
      %579 = vxpose.xlu0.b32.cont [5/16] 0.0, 128
      %580 = vxpose.xlu0.b32.cont [6/16] 0.0, 128
      %581 = vxpose.xlu0.b32.cont [7/16] 0.0, 128
      %582 = vxpose.xlu0.b32.cont [8/16] 0.0, 128
      %583 = vxpose.xlu0.b32.cont [9/16] 0.0, 128
      %584 = vxpose.xlu0.b32.cont [10/16] 0.0, 128
      %585 = vxpose.xlu0.b32.cont [11/16] 0.0, 128
      %586 = vxpose.xlu0.b32.cont [12/16] 0.0, 128
      %587 = vxpose.xlu0.b32.cont [13/16] 0.0, 128
      %588 = vxpose.xlu0.b32.cont [14/16] 0.0, 128
      %589 = vxpose.xlu0.b32.cont [15/16] 0.0, 128
      %590 = vxpose.xlu0.b32.end [16/16] 0.0, 128
      %v591 = vpop.trf.xlu0
      %v592 = vpop.trf.xlu0
      %v593 = vpop.trf.xlu0
      %v594 = vpop.trf.xlu0
      %v595 = vpop.trf.xlu0
      %v596 = vpop.trf.xlu0
      %v597 = vpop.trf.xlu0
      %v598 = vpop.trf.xlu0
      %v599 = vpop.trf.xlu0
      %v600 = vpop.trf.xlu0
      %v601 = vpop.trf.xlu0
      %v602 = vpop.trf.xlu0
      %v603 = vpop.trf.xlu0
      %v604 = vpop.trf.xlu0
      %v605 = vpop.trf.xlu0
      %v606 = vpop.trf.xlu0
      %vm607 = vcmask 64512
      %v609 = vsel %vm607, %v591, 0
      %v612 = vsel %vm607, %v592, 0
      %614 = vmatprep.subr.mxu0 0.0
      %615 = vmatpush1.msra.mxu0 0.0
      %616 = vmatprep.subr.mxu0 0.0
      %617 = vmatpush1.msra.mxu0 0.0
      %618 = vmatprep.subr.mxu0 0.0
      %619 = vmatpush1.msra.mxu0 0.0
      %620 = vmatprep.subr.mxu0 0.0
      %621 = vmatpush1.msra.mxu0 0.0
      %622 = vmatprep.subr.mxu0 0.0
      %623 = vmatpush1.msra.mxu0 0.0
      %624 = vmatprep.subr.mxu0 0.0
      %625 = vmatpush1.msra.mxu0 0.0
      %626 = vmatprep.subr.mxu0 0.0
      %627 = vmatpush1.msra.mxu0 0.0
      %628 = vmatprep.subr.mxu0 0.0
      %629 = vmatpush1.msra.mxu0 0.0
      %630 = vmatprep.subr.mxu0 0.0
      %631 = vmatpush1.msra.mxu0 0.0
      %632 = vmatprep.subr.mxu0 0.0
      %633 = vmatpush1.msra.mxu0 0.0
      %634 = vmatprep.subr.mxu0 0.0
      %635 = vmatpush1.msra.mxu0 0.0
      %636 = vmatprep.subr.mxu0 0.0
      %637 = vmatpush1.msra.mxu0 0.0
      %638 = vmatprep.subr.mxu0 0.0
      %639 = vmatpush1.msra.mxu0 0.0
      %640 = vmatprep.subr.mxu0 0.0
      %641 = vmatpush1.msra.mxu0 0.0
      %642 = vmatprep.subr.mxu0 0.0
      %643 = vmatpush1.msra.mxu0 0.0
      %644 = vmatprep.subr.mxu0 0.0
      %645 = vmatpush1.msra.mxu0 %v566
      %646 = vmatprep.subr.mxu0 0.0
      %647 = vmatpush2.msra.mxu0 0.0
      %648 = vmatprep.subr.mxu0 0.0
      %649 = vmatpush2.msra.mxu0 0.0
      %650 = vmatprep.subr.mxu0 0.0
      %651 = vmatpush2.msra.mxu0 0.0
      %652 = vmatprep.subr.mxu0 0.0
      %653 = vmatpush2.msra.mxu0 0.0
      %654 = vmatprep.subr.mxu0 0.0
      %655 = vmatpush2.msra.mxu0 0.0
      %656 = vmatprep.subr.mxu0 0.0
      %657 = vmatpush2.msra.mxu0 0.0
      %658 = vmatprep.subr.mxu0 0.0
      %659 = vmatpush2.msra.mxu0 0.0
      %660 = vmatprep.subr.mxu0 0.0
      %661 = vmatpush2.msra.mxu0 0.0
      %662 = vmatprep.subr.mxu0 0.0
      %663 = vmatpush2.msra.mxu0 0.0
      %664 = vmatprep.subr.mxu0 0.0
      %665 = vmatpush2.msra.mxu0 0.0
      %666 = vmatprep.subr.mxu0 0.0
      %667 = vmatpush2.msra.mxu0 0.0
      %668 = vmatprep.subr.mxu0 0.0
      %669 = vmatpush2.msra.mxu0 0.0
      %670 = vmatprep.subr.mxu0 0.0
      %671 = vmatpush2.msra.mxu0 0.0
      %672 = vmatprep.subr.mxu0 0.0
      %673 = vmatpush2.msra.mxu0 0.0
      %674 = vmatprep.subr.mxu0 0.0
      %675 = vmatpush2.msra.mxu0 0.0
      %676 = vmatprep.subr.mxu0 0.0
      %677 = vmatpush2.msra.mxu0 0.0
      %678 = vmatprep.mubr.f32.mxu0 0.0
      %679 = vmatmul.mubr.f32.gmra.mxu0 %v609
      %v680 = vpop.f32.mrf.mxu0
      %v681 = vadd.f32 0.0, %v680
      %v682 = vpop.f32.mrf.mxu0
      %683 = vmatprep.mubr.f32.mxu0 0.0
      %684 = vmatmul.mubr.f32.gmra.mxu0 %v612
      %v685 = vpop.f32.mrf.mxu0
      %v686 = vadd.f32 0.0, %v685
      %v687 = vpop.f32.mrf.mxu0
      %688 = vdwg.mxu0
      %689 = vxpose.xlu0.b32.start [1/16] %v393, 128
      %690 = vxpose.xlu0.b32.cont [2/16] 0.0, 128
      %691 = vxpose.xlu0.b32.cont [3/16] 0.0, 128
      %692 = vxpose.xlu0.b32.cont [4/16] 0.0, 128
      %693 = vxpose.xlu0.b32.cont [5/16] 0.0, 128
      %694 = vxpose.xlu0.b32.cont [6/16] 0.0, 128
      %695 = vxpose.xlu0.b32.cont [7/16] 0.0, 128
      %696 = vxpose.xlu0.b32.cont [8/16] 0.0, 128
      %697 = vxpose.xlu0.b32.cont [9/16] 0.0, 128
      %698 = vxpose.xlu0.b32.cont [10/16] 0.0, 128
      %699 = vxpose.xlu0.b32.cont [11/16] 0.0, 128
      %700 = vxpose.xlu0.b32.cont [12/16] 0.0, 128
      %701 = vxpose.xlu0.b32.cont [13/16] 0.0, 128
      %702 = vxpose.xlu0.b32.cont [14/16] 0.0, 128
      %703 = vxpose.xlu0.b32.cont [15/16] 0.0, 128
      %704 = vxpose.xlu0.b32.end [16/16] 0.0, 128
      %v705 = vpop.trf.xlu0
      %v706 = vpop.trf.xlu0
      %v707 = vpop.trf.xlu0
      %v708 = vpop.trf.xlu0
      %v709 = vpop.trf.xlu0
      %v710 = vpop.trf.xlu0
      %v711 = vpop.trf.xlu0
      %v712 = vpop.trf.xlu0
      %v713 = vpop.trf.xlu0
      %v714 = vpop.trf.xlu0
      %v715 = vpop.trf.xlu0
      %v716 = vpop.trf.xlu0
      %v717 = vpop.trf.xlu0
      %v718 = vpop.trf.xlu0
      %v719 = vpop.trf.xlu0
      %v720 = vpop.trf.xlu0
      %v722 = vsel %vm607, %v705, 0
      %v725 = vsel %vm607, %v706, 0
      %727 = vmatprep.subr.mxu0 0.0
      %728 = vmatpush1.msra.mxu0 0.0
      %729 = vmatprep.subr.mxu0 0.0
      %730 = vmatpush1.msra.mxu0 0.0
      %731 = vmatprep.subr.mxu0 0.0
      %732 = vmatpush1.msra.mxu0 0.0
      %733 = vmatprep.subr.mxu0 0.0
      %734 = vmatpush1.msra.mxu0 0.0
      %735 = vmatprep.subr.mxu0 0.0
      %736 = vmatpush1.msra.mxu0 0.0
      %737 = vmatprep.subr.mxu0 0.0
      %738 = vmatpush1.msra.mxu0 0.0
      %739 = vmatprep.subr.mxu0 0.0
      %740 = vmatpush1.msra.mxu0 0.0
      %741 = vmatprep.subr.mxu0 0.0
      %742 = vmatpush1.msra.mxu0 0.0
      %743 = vmatprep.subr.mxu0 0.0
      %744 = vmatpush1.msra.mxu0 0.0
      %745 = vmatprep.subr.mxu0 0.0
      %746 = vmatpush1.msra.mxu0 0.0
      %747 = vmatprep.subr.mxu0 0.0
      %748 = vmatpush1.msra.mxu0 0.0
      %749 = vmatprep.subr.mxu0 0.0
      %750 = vmatpush1.msra.mxu0 0.0
      %751 = vmatprep.subr.mxu0 0.0
      %752 = vmatpush1.msra.mxu0 0.0
      %753 = vmatprep.subr.mxu0 0.0
      %754 = vmatpush1.msra.mxu0 0.0
      %755 = vmatprep.subr.mxu0 0.0
      %756 = vmatpush1.msra.mxu0 0.0
      %757 = vmatprep.subr.mxu0 0.0
      %758 = vmatpush1.msra.mxu0 %v566
      %759 = vmatprep.subr.mxu0 0.0
      %760 = vmatpush2.msra.mxu0 0.0
      %761 = vmatprep.subr.mxu0 0.0
      %762 = vmatpush2.msra.mxu0 0.0
      %763 = vmatprep.subr.mxu0 0.0
      %764 = vmatpush2.msra.mxu0 0.0
      %765 = vmatprep.subr.mxu0 0.0
      %766 = vmatpush2.msra.mxu0 0.0
      %767 = vmatprep.subr.mxu0 0.0
      %768 = vmatpush2.msra.mxu0 0.0
      %769 = vmatprep.subr.mxu0 0.0
      %770 = vmatpush2.msra.mxu0 0.0
      %771 = vmatprep.subr.mxu0 0.0
      %772 = vmatpush2.msra.mxu0 0.0
      %773 = vmatprep.subr.mxu0 0.0
      %774 = vmatpush2.msra.mxu0 0.0
      %775 = vmatprep.subr.mxu0 0.0
      %776 = vmatpush2.msra.mxu0 0.0
      %777 = vmatprep.subr.mxu0 0.0
      %778 = vmatpush2.msra.mxu0 0.0
      %779 = vmatprep.subr.mxu0 0.0
      %780 = vmatpush2.msra.mxu0 0.0
      %781 = vmatprep.subr.mxu0 0.0
      %782 = vmatpush2.msra.mxu0 0.0
      %783 = vmatprep.subr.mxu0 0.0
      %784 = vmatpush2.msra.mxu0 0.0
      %785 = vmatprep.subr.mxu0 0.0
      %786 = vmatpush2.msra.mxu0 0.0
      %787 = vmatprep.subr.mxu0 0.0
      %788 = vmatpush2.msra.mxu0 0.0
      %789 = vmatprep.subr.mxu0 0.0
      %790 = vmatpush2.msra.mxu0 0.0
      %791 = vmatprep.mubr.f32.mxu0 0.0
      %792 = vmatmul.mubr.f32.gmra.mxu0 %v722
      %v793 = vpop.f32.mrf.mxu0
      %v794 = vadd.f32 0.0, %v793
      %v795 = vpop.f32.mrf.mxu0
      %796 = vmatprep.mubr.f32.mxu0 0.0
      %797 = vmatmul.mubr.f32.gmra.mxu0 %v725
      %v798 = vpop.f32.mrf.mxu0
      %v799 = vadd.f32 0.0, %v798
      %v800 = vpop.f32.mrf.mxu0
      %801 = vdwg.mxu0
      %vm802 = vcmask 130048
      %v804 = vsel %vm802, %v390, 0
      %v807 = vsel %vm802, %v391, 0
      %809 = vmatprep.subr.mxu0 0.0
      %810 = vmatpush1.msra.mxu0 0.0
      %811 = vmatprep.subr.mxu0 0.0
      %812 = vmatpush1.msra.mxu0 0.0
      %813 = vmatprep.subr.mxu0 0.0
      %814 = vmatpush1.msra.mxu0 0.0
      %815 = vmatprep.subr.mxu0 0.0
      %816 = vmatpush1.msra.mxu0 0.0
      %817 = vmatprep.subr.mxu0 0.0
      %818 = vmatpush1.msra.mxu0 0.0
      %819 = vmatprep.subr.mxu0 0.0
      %820 = vmatpush1.msra.mxu0 0.0
      %821 = vmatprep.subr.mxu0 0.0
      %822 = vmatpush1.msra.mxu0 0.0
      %823 = vmatprep.subr.mxu0 0.0
      %824 = vmatpush1.msra.mxu0 0.0
      %825 = vmatprep.subr.mxu0 0.0
      %826 = vmatpush1.msra.mxu0 0.0
      %827 = vmatprep.subr.mxu0 0.0
      %828 = vmatpush1.msra.mxu0 0.0
      %829 = vmatprep.subr.mxu0 0.0
      %830 = vmatpush1.msra.mxu0 0.0
      %831 = vmatprep.subr.mxu0 0.0
      %832 = vmatpush1.msra.mxu0 0.0
      %833 = vmatprep.subr.mxu0 0.0
      %834 = vmatpush1.msra.mxu0 0.0
      %835 = vmatprep.subr.mxu0 0.0
      %836 = vmatpush1.msra.mxu0 0.0
      %837 = vmatprep.subr.mxu0 0.0
      %838 = vmatpush1.msra.mxu0 %v572
      %839 = vmatprep.subr.mxu0 0.0
      %840 = vmatpush1.msra.mxu0 %v571
      %841 = vmatprep.subr.mxu0 0.0
      %842 = vmatpush2.msra.mxu0 0.0
      %843 = vmatprep.subr.mxu0 0.0
      %844 = vmatpush2.msra.mxu0 0.0
      %845 = vmatprep.subr.mxu0 0.0
      %846 = vmatpush2.msra.mxu0 0.0
      %847 = vmatprep.subr.mxu0 0.0
      %848 = vmatpush2.msra.mxu0 0.0
      %849 = vmatprep.subr.mxu0 0.0
      %850 = vmatpush2.msra.mxu0 0.0
      %851 = vmatprep.subr.mxu0 0.0
      %852 = vmatpush2.msra.mxu0 0.0
      %853 = vmatprep.subr.mxu0 0.0
      %854 = vmatpush2.msra.mxu0 0.0
      %855 = vmatprep.subr.mxu0 0.0
      %856 = vmatpush2.msra.mxu0 0.0
      %857 = vmatprep.subr.mxu0 0.0
      %858 = vmatpush2.msra.mxu0 0.0
      %859 = vmatprep.subr.mxu0 0.0
      %860 = vmatpush2.msra.mxu0 0.0
      %861 = vmatprep.subr.mxu0 0.0
      %862 = vmatpush2.msra.mxu0 0.0
      %863 = vmatprep.subr.mxu0 0.0
      %864 = vmatpush2.msra.mxu0 0.0
      %865 = vmatprep.subr.mxu0 0.0
      %866 = vmatpush2.msra.mxu0 0.0
      %867 = vmatprep.subr.mxu0 0.0
      %868 = vmatpush2.msra.mxu0 0.0
      %869 = vmatprep.subr.mxu0 0.0
      %870 = vmatpush2.msra.mxu0 0.0
      %871 = vmatprep.subr.mxu0 0.0
      %872 = vmatpush2.msra.mxu0 0.0
      %873 = vmatprep.mubr.f32.mxu0 0.0
      %874 = vmatmul.mubr.f32.gmra.mxu0 %v804
      %v875 = vpop.f32.mrf.mxu0
      %v876 = vadd.f32 0.0, %v875
      %v877 = vpop.f32.mrf.mxu0
      %878 = vmatprep.mubr.f32.mxu0 0.0
      %879 = vmatmul.mubr.f32.gmra.mxu0 %v807
      %v880 = vpop.f32.mrf.mxu0
      %v881 = vadd.f32 0.0, %v880
      %v882 = vpop.f32.mrf.mxu0
      %883 = vdwg.mxu0
      %v885 = vsel %vm487, %v681, 0
      %v888 = vsel %vm487, %v686, 0
      %890 = vmatprep.subr.mxu0 0.0
      %891 = vmatpush1.msra.mxu0 0.0
      %892 = vmatprep.subr.mxu0 0.0
      %893 = vmatpush1.msra.mxu0 0.0
      %894 = vmatprep.subr.mxu0 0.0
      %895 = vmatpush1.msra.mxu0 0.0
      %896 = vmatprep.subr.mxu0 0.0
      %897 = vmatpush1.msra.mxu0 0.0
      %898 = vmatprep.subr.mxu0 0.0
      %899 = vmatpush1.msra.mxu0 0.0
      %900 = vmatprep.subr.mxu0 0.0
      %901 = vmatpush1.msra.mxu0 0.0
      %902 = vmatprep.subr.mxu0 0.0
      %903 = vmatpush1.msra.mxu0 0.0
      %904 = vmatprep.subr.mxu0 0.0
      %905 = vmatpush1.msra.mxu0 0.0
      %906 = vmatprep.subr.mxu0 0.0
      %907 = vmatpush1.msra.mxu0 0.0
      %908 = vmatprep.subr.mxu0 0.0
      %909 = vmatpush1.msra.mxu0 0.0
      %910 = vmatprep.subr.mxu0 0.0
      %911 = vmatpush1.msra.mxu0 0.0
      %912 = vmatprep.subr.mxu0 0.0
      %913 = vmatpush1.msra.mxu0 0.0
      %914 = vmatprep.subr.mxu0 0.0
      %915 = vmatpush1.msra.mxu0 %v570
      %916 = vmatprep.subr.mxu0 0.0
      %917 = vmatpush1.msra.mxu0 %v569
      %918 = vmatprep.subr.mxu0 0.0
      %919 = vmatpush1.msra.mxu0 %v568
      %920 = vmatprep.subr.mxu0 0.0
      %921 = vmatpush1.msra.mxu0 %v567
      %922 = vmatprep.subr.mxu0 0.0
      %923 = vmatpush2.msra.mxu0 0.0
      %924 = vmatprep.subr.mxu0 0.0
      %925 = vmatpush2.msra.mxu0 0.0
      %926 = vmatprep.subr.mxu0 0.0
      %927 = vmatpush2.msra.mxu0 0.0
      %928 = vmatprep.subr.mxu0 0.0
      %929 = vmatpush2.msra.mxu0 0.0
      %930 = vmatprep.subr.mxu0 0.0
      %931 = vmatpush2.msra.mxu0 0.0
      %932 = vmatprep.subr.mxu0 0.0
      %933 = vmatpush2.msra.mxu0 0.0
      %934 = vmatprep.subr.mxu0 0.0
      %935 = vmatpush2.msra.mxu0 0.0
      %936 = vmatprep.subr.mxu0 0.0
      %937 = vmatpush2.msra.mxu0 0.0
      %938 = vmatprep.subr.mxu0 0.0
      %939 = vmatpush2.msra.mxu0 0.0
      %940 = vmatprep.subr.mxu0 0.0
      %941 = vmatpush2.msra.mxu0 0.0
      %942 = vmatprep.subr.mxu0 0.0
      %943 = vmatpush2.msra.mxu0 0.0
      %944 = vmatprep.subr.mxu0 0.0
      %945 = vmatpush2.msra.mxu0 0.0
      %946 = vmatprep.subr.mxu0 0.0
      %947 = vmatpush2.msra.mxu0 0.0
      %948 = vmatprep.subr.mxu0 0.0
      %949 = vmatpush2.msra.mxu0 0.0
      %950 = vmatprep.subr.mxu0 0.0
      %951 = vmatpush2.msra.mxu0 0.0
      %952 = vmatprep.subr.mxu0 0.0
      %953 = vmatpush2.msra.mxu0 0.0
      %954 = vmatprep.mubr.f32.mxu0 0.0
      %955 = vmatmul.mubr.f32.gmra.mxu0 %v885
      %v956 = vpop.f32.mrf.mxu0
      %v957 = vadd.f32 0.0, %v956
      %v958 = vpop.f32.mrf.mxu0
      %959 = vmatprep.mubr.f32.mxu0 0.0
      %960 = vmatmul.mubr.f32.gmra.mxu0 %v888
      %v961 = vpop.f32.mrf.mxu0
      %v962 = vadd.f32 0.0, %v961
      %v963 = vpop.f32.mrf.mxu0
      %964 = vdwg.mxu0
      %v966 = vsel %vm487, %v794, 0
      %v969 = vsel %vm487, %v799, 0
      %971 = vmatprep.subr.mxu0 0.0
      %972 = vmatpush1.msra.mxu0 0.0
      %973 = vmatprep.subr.mxu0 0.0
      %974 = vmatpush1.msra.mxu0 0.0
      %975 = vmatprep.subr.mxu0 0.0
      %976 = vmatpush1.msra.mxu0 0.0
      %977 = vmatprep.subr.mxu0 0.0
      %978 = vmatpush1.msra.mxu0 0.0
      %979 = vmatprep.subr.mxu0 0.0
      %980 = vmatpush1.msra.mxu0 0.0
      %981 = vmatprep.subr.mxu0 0.0
      %982 = vmatpush1.msra.mxu0 0.0
      %983 = vmatprep.subr.mxu0 0.0
      %984 = vmatpush1.msra.mxu0 0.0
      %985 = vmatprep.subr.mxu0 0.0
      %986 = vmatpush1.msra.mxu0 0.0
      %987 = vmatprep.subr.mxu0 0.0
      %988 = vmatpush1.msra.mxu0 0.0
      %989 = vmatprep.subr.mxu0 0.0
      %990 = vmatpush1.msra.mxu0 0.0
      %991 = vmatprep.subr.mxu0 0.0
      %992 = vmatpush1.msra.mxu0 0.0
      %993 = vmatprep.subr.mxu0 0.0
      %994 = vmatpush1.msra.mxu0 0.0
      %995 = vmatprep.subr.mxu0 0.0
      %996 = vmatpush1.msra.mxu0 %v570
      %997 = vmatprep.subr.mxu0 0.0
      %998 = vmatpush1.msra.mxu0 %v569
      %999 = vmatprep.subr.mxu0 0.0
      %1000 = vmatpush1.msra.mxu0 %v568
      %1001 = vmatprep.subr.mxu0 0.0
      %1002 = vmatpush1.msra.mxu0 %v567
      %1003 = vmatprep.subr.mxu0 0.0
      %1004 = vmatpush2.msra.mxu0 0.0
      %1005 = vmatprep.subr.mxu0 0.0
      %1006 = vmatpush2.msra.mxu0 0.0
      %1007 = vmatprep.subr.mxu0 0.0
      %1008 = vmatpush2.msra.mxu0 0.0
      %1009 = vmatprep.subr.mxu0 0.0
      %1010 = vmatpush2.msra.mxu0 0.0
      %1011 = vmatprep.subr.mxu0 0.0
      %1012 = vmatpush2.msra.mxu0 0.0
      %1013 = vmatprep.subr.mxu0 0.0
      %1014 = vmatpush2.msra.mxu0 0.0
      %1015 = vmatprep.subr.mxu0 0.0
      %1016 = vmatpush2.msra.mxu0 0.0
      %1017 = vmatprep.subr.mxu0 0.0
      %1018 = vmatpush2.msra.mxu0 0.0
      %1019 = vmatprep.subr.mxu0 0.0
      %1020 = vmatpush2.msra.mxu0 0.0
      %1021 = vmatprep.subr.mxu0 0.0
      %1022 = vmatpush2.msra.mxu0 0.0
      %1023 = vmatprep.subr.mxu0 0.0
      %1024 = vmatpush2.msra.mxu0 0.0
      %1025 = vmatprep.subr.mxu0 0.0
      %1026 = vmatpush2.msra.mxu0 0.0
      %1027 = vmatprep.subr.mxu0 0.0
      %1028 = vmatpush2.msra.mxu0 0.0
      %1029 = vmatprep.subr.mxu0 0.0
      %1030 = vmatpush2.msra.mxu0 0.0
      %1031 = vmatprep.subr.mxu0 0.0
      %1032 = vmatpush2.msra.mxu0 0.0
      %1033 = vmatprep.subr.mxu0 0.0
      %1034 = vmatpush2.msra.mxu0 0.0
      %1035 = vmatprep.mubr.f32.mxu0 0.0
      %1036 = vmatmul.mubr.f32.gmra.mxu0 %v966
      %v1037 = vpop.f32.mrf.mxu0
      %v1038 = vadd.f32 0.0, %v1037
      %v1039 = vpop.f32.mrf.mxu0
      %1040 = vmatprep.mubr.f32.mxu0 0.0
      %1041 = vmatmul.mubr.f32.gmra.mxu0 %v969
      %v1042 = vpop.f32.mrf.mxu0
      %v1043 = vadd.f32 0.0, %v1042
      %v1044 = vpop.f32.mrf.mxu0
      %1045 = vdwg.mxu0
      %v1046 = vadd.f32 %v957, %v876
      %v1047 = vadd.f32 %v962, %v881
      %1050 = vrot.lane.b32.xlu0 %v1038, 96
      %v1051 = vpop.permute.xlu0 %1050
      %1052 = vrot.lane.b32.xlu0 %v1043, 96
      %v1053 = vpop.permute.xlu0 %1052
      %v1056 = vadd.f32 %v1046, %v1051
      %v1057 = vadd.f32 %v1047, %v1053
      %v1058 = vlaneseq
      %v1059 = vshrl.u32 %v1058, 7
      %v1060 = vsub.s32 0, %v1059
      %v1061 = vrot.slane %v573, %v1060
      %v1062 = vadd.f32 %v1056, %v1061
      %v1063 = vadd.f32 %v1057, %v1061
      %vm1064 = vcmp.ge.f32.partialorder %v1062, 0.0
      %vm1065 = vcmp.ge.f32.partialorder %v1063, 0.0
      %v1066 = vmul.f32 %v1062, 0.01
      %v1067 = vmul.f32 %v1063, 0.01
      %v1068 = vsel %vm1064, %v1062, %v1066
      %v1069 = vsel %vm1065, %v1063, %v1067
      %v1070 = vadd.f32 %v1038, %v876
      %v1071 = vadd.f32 %v1043, %v881
      %1074 = vrot.lane.b32.xlu0 %v957, 96
      %v1075 = vpop.permute.xlu0 %1074
      %1076 = vrot.lane.b32.xlu0 %v962, 96
      %v1077 = vpop.permute.xlu0 %1076
      %v1080 = vadd.f32 %v1070, %v1075
      %v1081 = vadd.f32 %v1071, %v1077
      %v1082 = vadd.f32 %v1080, %v1061
      %v1083 = vadd.f32 %v1081, %v1061
      %vm1084 = vcmp.ge.f32.partialorder %v1082, 0.0
      %vm1085 = vcmp.ge.f32.partialorder %v1083, 0.0
      %v1086 = vmul.f32 %v1082, 0.01
      %v1087 = vmul.f32 %v1083, 0.01
      %v1088 = vsel %vm1084, %v1082, %v1086
      %v1089 = vsel %vm1085, %v1083, %v1087
      %1091 = vset.pattern.permute.xlu0 0
      %1092 = vperm.xlu0 %1091, %v573
      %v1093 = vpop.permute.xlu0 %1092
      %v1094 = vrot.slane %v573, 1
      %v1095 = vrot.slane %v1093, 2
      %v1097 = vsel %vm487, %v1094, 0
      %v1100 = vsel %vm487, %v1068, 0
      %v1103 = vsel %vm487, %v1069, 0
      %1105 = vmatprep.subr.mxu0 0.0
      %1106 = vmatpush1.xpose.msra.mxu0 0.0
      %1107 = vmatprep.subr.mxu0 0.0
      %1108 = vmatpush1.xpose.msra.mxu0 0.0
      %1109 = vmatprep.subr.mxu0 0.0
      %1110 = vmatpush1.xpose.msra.mxu0 0.0
      %1111 = vmatprep.subr.mxu0 0.0
      %1112 = vmatpush1.xpose.msra.mxu0 0.0
      %1113 = vmatprep.subr.mxu0 0.0
      %1114 = vmatpush1.xpose.msra.mxu0 0.0
      %1115 = vmatprep.subr.mxu0 0.0
      %1116 = vmatpush1.xpose.msra.mxu0 0.0
      %1117 = vmatprep.subr.mxu0 0.0
      %1118 = vmatpush1.xpose.msra.mxu0 0.0
      %1119 = vmatprep.subr.mxu0 0.0
      %1120 = vmatpush1.xpose.msra.mxu0 0.0
      %1121 = vmatprep.subr.mxu0 0.0
      %1122 = vmatpush1.xpose.msra.mxu0 0.0
      %1123 = vmatprep.subr.mxu0 0.0
      %1124 = vmatpush1.xpose.msra.mxu0 0.0
      %1125 = vmatprep.subr.mxu0 0.0
      %1126 = vmatpush1.xpose.msra.mxu0 0.0
      %1127 = vmatprep.subr.mxu0 0.0
      %1128 = vmatpush1.xpose.msra.mxu0 0.0
      %1129 = vmatprep.subr.mxu0 0.0
      %1130 = vmatpush1.xpose.msra.mxu0 0.0
      %1131 = vmatprep.subr.mxu0 0.0
      %1132 = vmatpush1.xpose.msra.mxu0 0.0
      %1133 = vmatprep.subr.mxu0 0.0
      %1134 = vmatpush1.xpose.msra.mxu0 %v1103
      %1135 = vmatprep.subr.mxu0 0.0
      %1136 = vmatpush1.xpose.msra.mxu0 %v1100
      %1137 = vmatprep.subr.mxu0 0.0
      %1138 = vmatpush2.xpose.msra.mxu0 0.0
      %1139 = vmatprep.subr.mxu0 0.0
      %1140 = vmatpush2.xpose.msra.mxu0 0.0
      %1141 = vmatprep.subr.mxu0 0.0
      %1142 = vmatpush2.xpose.msra.mxu0 0.0
      %1143 = vmatprep.subr.mxu0 0.0
      %1144 = vmatpush2.xpose.msra.mxu0 0.0
      %1145 = vmatprep.subr.mxu0 0.0
      %1146 = vmatpush2.xpose.msra.mxu0 0.0
      %1147 = vmatprep.subr.mxu0 0.0
      %1148 = vmatpush2.xpose.msra.mxu0 0.0
      %1149 = vmatprep.subr.mxu0 0.0
      %1150 = vmatpush2.xpose.msra.mxu0 0.0
      %1151 = vmatprep.subr.mxu0 0.0
      %1152 = vmatpush2.xpose.msra.mxu0 0.0
      %1153 = vmatprep.subr.mxu0 0.0
      %1154 = vmatpush2.xpose.msra.mxu0 0.0
      %1155 = vmatprep.subr.mxu0 0.0
      %1156 = vmatpush2.xpose.msra.mxu0 0.0
      %1157 = vmatprep.subr.mxu0 0.0
      %1158 = vmatpush2.xpose.msra.mxu0 0.0
      %1159 = vmatprep.subr.mxu0 0.0
      %1160 = vmatpush2.xpose.msra.mxu0 0.0
      %1161 = vmatprep.subr.mxu0 0.0
      %1162 = vmatpush2.xpose.msra.mxu0 0.0
      %1163 = vmatprep.subr.mxu0 0.0
      %1164 = vmatpush2.xpose.msra.mxu0 0.0
      %1165 = vmatprep.subr.mxu0 0.0
      %1166 = vmatpush2.xpose.msra.mxu0 0.0
      %1167 = vmatprep.subr.mxu0 0.0
      %1168 = vmatpush2.xpose.msra.mxu0 0.0
      %1169 = vmatprep.mubr.f32.mxu0 0.0
      %1170 = vmatmul.mubr.f32.gmra.mxu0 %v1097
      %v1171 = vpop.f32.mrf.mxu0
      %v1172 = vadd.f32 %v1095, %v1171
      %v1173 = vpop.f32.mrf.mxu0
      %1174 = vdwg.mxu0
      %v1175 = vxor.u32 %v1172, 2147483648
      %v1176 = vmul.f32 %v1175, 1.442695
      %v1177 = vpow.pop %v1176
      %v1178 = vadd.f32 %v1177, 1.0
      %v1179 = vrcp.pop %v1178
      %v1180 = vmul.f32 1.0, %v1179
      %v1182 = vsel %vm487, %v1088, 0
      %v1185 = vsel %vm487, %v1089, 0
      %1187 = vmatprep.subr.mxu0 0.0
      %1188 = vmatpush1.xpose.msra.mxu0 0.0
      %1189 = vmatprep.subr.mxu0 0.0
      %1190 = vmatpush1.xpose.msra.mxu0 0.0
      %1191 = vmatprep.subr.mxu0 0.0
      %1192 = vmatpush1.xpose.msra.mxu0 0.0
      %1193 = vmatprep.subr.mxu0 0.0
      %1194 = vmatpush1.xpose.msra.mxu0 0.0
      %1195 = vmatprep.subr.mxu0 0.0
      %1196 = vmatpush1.xpose.msra.mxu0 0.0
      %1197 = vmatprep.subr.mxu0 0.0
      %1198 = vmatpush1.xpose.msra.mxu0 0.0
      %1199 = vmatprep.subr.mxu0 0.0
      %1200 = vmatpush1.xpose.msra.mxu0 0.0
      %1201 = vmatprep.subr.mxu0 0.0
      %1202 = vmatpush1.xpose.msra.mxu0 0.0
      %1203 = vmatprep.subr.mxu0 0.0
      %1204 = vmatpush1.xpose.msra.mxu0 0.0
      %1205 = vmatprep.subr.mxu0 0.0
      %1206 = vmatpush1.xpose.msra.mxu0 0.0
      %1207 = vmatprep.subr.mxu0 0.0
      %1208 = vmatpush1.xpose.msra.mxu0 0.0
      %1209 = vmatprep.subr.mxu0 0.0
      %1210 = vmatpush1.xpose.msra.mxu0 0.0
      %1211 = vmatprep.subr.mxu0 0.0
      %1212 = vmatpush1.xpose.msra.mxu0 0.0
      %1213 = vmatprep.subr.mxu0 0.0
      %1214 = vmatpush1.xpose.msra.mxu0 0.0
      %1215 = vmatprep.subr.mxu0 0.0
      %1216 = vmatpush1.xpose.msra.mxu0 %v1185
      %1217 = vmatprep.subr.mxu0 0.0
      %1218 = vmatpush1.xpose.msra.mxu0 %v1182
      %1219 = vmatprep.subr.mxu0 0.0
      %1220 = vmatpush2.xpose.msra.mxu0 0.0
      %1221 = vmatprep.subr.mxu0 0.0
      %1222 = vmatpush2.xpose.msra.mxu0 0.0
      %1223 = vmatprep.subr.mxu0 0.0
      %1224 = vmatpush2.xpose.msra.mxu0 0.0
      %1225 = vmatprep.subr.mxu0 0.0
      %1226 = vmatpush2.xpose.msra.mxu0 0.0
      %1227 = vmatprep.subr.mxu0 0.0
      %1228 = vmatpush2.xpose.msra.mxu0 0.0
      %1229 = vmatprep.subr.mxu0 0.0
      %1230 = vmatpush2.xpose.msra.mxu0 0.0
      %1231 = vmatprep.subr.mxu0 0.0
      %1232 = vmatpush2.xpose.msra.mxu0 0.0
      %1233 = vmatprep.subr.mxu0 0.0
      %1234 = vmatpush2.xpose.msra.mxu0 0.0
      %1235 = vmatprep.subr.mxu0 0.0
      %1236 = vmatpush2.xpose.msra.mxu0 0.0
      %1237 = vmatprep.subr.mxu0 0.0
      %1238 = vmatpush2.xpose.msra.mxu0 0.0
      %1239 = vmatprep.subr.mxu0 0.0
      %1240 = vmatpush2.xpose.msra.mxu0 0.0
      %1241 = vmatprep.subr.mxu0 0.0
      %1242 = vmatpush2.xpose.msra.mxu0 0.0
      %1243 = vmatprep.subr.mxu0 0.0
      %1244 = vmatpush2.xpose.msra.mxu0 0.0
      %1245 = vmatprep.subr.mxu0 0.0
      %1246 = vmatpush2.xpose.msra.mxu0 0.0
      %1247 = vmatprep.subr.mxu0 0.0
      %1248 = vmatpush2.xpose.msra.mxu0 0.0
      %1249 = vmatprep.subr.mxu0 0.0
      %1250 = vmatpush2.xpose.msra.mxu0 0.0
      %1251 = vmatprep.mubr.f32.mxu0 0.0
      %1252 = vmatmul.mubr.f32.gmra.mxu0 %v1097
      %v1253 = vpop.f32.mrf.mxu0
      %v1254 = vadd.f32 %v1095, %v1253
      %v1255 = vpop.f32.mrf.mxu0
      %1256 = vdwg.mxu0
      %v1257 = vxor.u32 %v1254, 2147483648
      %v1258 = vmul.f32 %v1257, 1.442695
      %v1259 = vpow.pop %v1258
      %v1260 = vadd.f32 %v1259, 1.0
      %v1261 = vrcp.pop %v1260
      %v1262 = vmul.f32 1.0, %v1261
      %v1263 = vlaneseq
      %v1264 = vshrl.u32 %v1263, 7
      %v1265 = vsub.s32 0, %v1264
      %v1266 = vrot.slane %v1180, %v1265
      %v1267 = vmul.f32 %v392, %v1266
      %v1268 = vlaneseq
      %v1269 = vshrl.u32 %v1268, 7
      %v1270 = vsub.s32 0, %v1269
      %v1271 = vrot.slane %v1262, %v1270
      %v1272 = vmul.f32 %v393, %v1271
      %vm1273 = vcmask 80896
      %v1275 = vsel %vm1273, %v1272, 0
      %v1278 = vsel %vm1273, %v392, 0
      %1280 = vmatprep.subr.mxu0 0.0
      %1281 = vmatpush1.xpose.msra.mxu0 0.0
      %1282 = vmatprep.subr.mxu0 0.0
      %1283 = vmatpush1.xpose.msra.mxu0 0.0
      %1284 = vmatprep.subr.mxu0 0.0
      %1285 = vmatpush1.xpose.msra.mxu0 0.0
      %1286 = vmatprep.subr.mxu0 0.0
      %1287 = vmatpush1.xpose.msra.mxu0 0.0
      %1288 = vmatprep.subr.mxu0 0.0
      %1289 = vmatpush1.xpose.msra.mxu0 0.0
      %1290 = vmatprep.subr.mxu0 0.0
      %1291 = vmatpush1.xpose.msra.mxu0 0.0
      %1292 = vmatprep.subr.mxu0 0.0
      %1293 = vmatpush1.xpose.msra.mxu0 0.0
      %1294 = vmatprep.subr.mxu0 0.0
      %1295 = vmatpush1.xpose.msra.mxu0 0.0
      %1296 = vmatprep.subr.mxu0 0.0
      %1297 = vmatpush1.xpose.msra.mxu0 0.0
      %1298 = vmatprep.subr.mxu0 0.0
      %1299 = vmatpush1.xpose.msra.mxu0 0.0
      %1300 = vmatprep.subr.mxu0 0.0
      %1301 = vmatpush1.xpose.msra.mxu0 0.0
      %1302 = vmatprep.subr.mxu0 0.0
      %1303 = vmatpush1.xpose.msra.mxu0 0.0
      %1304 = vmatprep.subr.mxu0 0.0
      %1305 = vmatpush1.xpose.msra.mxu0 0.0
      %1306 = vmatprep.subr.mxu0 0.0
      %1307 = vmatpush1.xpose.msra.mxu0 0.0
      %1308 = vmatprep.subr.mxu0 0.0
      %1309 = vmatpush1.xpose.msra.mxu0 0.0
      %1310 = vmatprep.subr.mxu0 0.0
      %1311 = vmatpush1.xpose.msra.mxu0 %v1278
      %1312 = vmatprep.subr.mxu0 0.0
      %1313 = vmatpush2.xpose.msra.mxu0 0.0
      %1314 = vmatprep.subr.mxu0 0.0
      %1315 = vmatpush2.xpose.msra.mxu0 0.0
      %1316 = vmatprep.subr.mxu0 0.0
      %1317 = vmatpush2.xpose.msra.mxu0 0.0
      %1318 = vmatprep.subr.mxu0 0.0
      %1319 = vmatpush2.xpose.msra.mxu0 0.0
      %1320 = vmatprep.subr.mxu0 0.0
      %1321 = vmatpush2.xpose.msra.mxu0 0.0
      %1322 = vmatprep.subr.mxu0 0.0
      %1323 = vmatpush2.xpose.msra.mxu0 0.0
      %1324 = vmatprep.subr.mxu0 0.0
      %1325 = vmatpush2.xpose.msra.mxu0 0.0
      %1326 = vmatprep.subr.mxu0 0.0
      %1327 = vmatpush2.xpose.msra.mxu0 0.0
      %1328 = vmatprep.subr.mxu0 0.0
      %1329 = vmatpush2.xpose.msra.mxu0 0.0
      %1330 = vmatprep.subr.mxu0 0.0
      %1331 = vmatpush2.xpose.msra.mxu0 0.0
      %1332 = vmatprep.subr.mxu0 0.0
      %1333 = vmatpush2.xpose.msra.mxu0 0.0
      %1334 = vmatprep.subr.mxu0 0.0
      %1335 = vmatpush2.xpose.msra.mxu0 0.0
      %1336 = vmatprep.subr.mxu0 0.0
      %1337 = vmatpush2.xpose.msra.mxu0 0.0
      %1338 = vmatprep.subr.mxu0 0.0
      %1339 = vmatpush2.xpose.msra.mxu0 0.0
      %1340 = vmatprep.subr.mxu0 0.0
      %1341 = vmatpush2.xpose.msra.mxu0 0.0
      %1342 = vmatprep.subr.mxu0 0.0
      %1343 = vmatpush2.xpose.msra.mxu0 0.0
      %1344 = vmatprep.mubr.f32.mxu0 0.0
      %1345 = vmatmul.mubr.f32.gmra.mxu0 %v1275
      %v1346 = vpop.f32.mrf.mxu0
      %v1347 = vadd.f32 0.0, %v1346
      %v1348 = vpop.f32.mrf.mxu0
      %1349 = vdwg.mxu0
      %v1351 = vsel %vm1273, %v1267, 0
      %v1354 = vsel %vm1273, %v393, 0
      %1356 = vmatprep.subr.mxu0 0.0
      %1357 = vmatpush1.xpose.msra.mxu0 0.0
      %1358 = vmatprep.subr.mxu0 0.0
      %1359 = vmatpush1.xpose.msra.mxu0 0.0
      %1360 = vmatprep.subr.mxu0 0.0
      %1361 = vmatpush1.xpose.msra.mxu0 0.0
      %1362 = vmatprep.subr.mxu0 0.0
      %1363 = vmatpush1.xpose.msra.mxu0 0.0
      %1364 = vmatprep.subr.mxu0 0.0
      %1365 = vmatpush1.xpose.msra.mxu0 0.0
      %1366 = vmatprep.subr.mxu0 0.0
      %1367 = vmatpush1.xpose.msra.mxu0 0.0
      %1368 = vmatprep.subr.mxu0 0.0
      %1369 = vmatpush1.xpose.msra.mxu0 0.0
      %1370 = vmatprep.subr.mxu0 0.0
      %1371 = vmatpush1.xpose.msra.mxu0 0.0
      %1372 = vmatprep.subr.mxu0 0.0
      %1373 = vmatpush1.xpose.msra.mxu0 0.0
      %1374 = vmatprep.subr.mxu0 0.0
      %1375 = vmatpush1.xpose.msra.mxu0 0.0
      %1376 = vmatprep.subr.mxu0 0.0
      %1377 = vmatpush1.xpose.msra.mxu0 0.0
      %1378 = vmatprep.subr.mxu0 0.0
      %1379 = vmatpush1.xpose.msra.mxu0 0.0
      %1380 = vmatprep.subr.mxu0 0.0
      %1381 = vmatpush1.xpose.msra.mxu0 0.0
      %1382 = vmatprep.subr.mxu0 0.0
      %1383 = vmatpush1.xpose.msra.mxu0 0.0
      %1384 = vmatprep.subr.mxu0 0.0
      %1385 = vmatpush1.xpose.msra.mxu0 0.0
      %1386 = vmatprep.subr.mxu0 0.0
      %1387 = vmatpush1.xpose.msra.mxu0 %v1354
      %1388 = vmatprep.subr.mxu0 0.0
      %1389 = vmatpush2.xpose.msra.mxu0 0.0
      %1390 = vmatprep.subr.mxu0 0.0
      %1391 = vmatpush2.xpose.msra.mxu0 0.0
      %1392 = vmatprep.subr.mxu0 0.0
      %1393 = vmatpush2.xpose.msra.mxu0 0.0
      %1394 = vmatprep.subr.mxu0 0.0
      %1395 = vmatpush2.xpose.msra.mxu0 0.0
      %1396 = vmatprep.subr.mxu0 0.0
      %1397 = vmatpush2.xpose.msra.mxu0 0.0
      %1398 = vmatprep.subr.mxu0 0.0
      %1399 = vmatpush2.xpose.msra.mxu0 0.0
      %1400 = vmatprep.subr.mxu0 0.0
      %1401 = vmatpush2.xpose.msra.mxu0 0.0
      %1402 = vmatprep.subr.mxu0 0.0
      %1403 = vmatpush2.xpose.msra.mxu0 0.0
      %1404 = vmatprep.subr.mxu0 0.0
      %1405 = vmatpush2.xpose.msra.mxu0 0.0
      %1406 = vmatprep.subr.mxu0 0.0
      %1407 = vmatpush2.xpose.msra.mxu0 0.0
      %1408 = vmatprep.subr.mxu0 0.0
      %1409 = vmatpush2.xpose.msra.mxu0 0.0
      %1410 = vmatprep.subr.mxu0 0.0
      %1411 = vmatpush2.xpose.msra.mxu0 0.0
      %1412 = vmatprep.subr.mxu0 0.0
      %1413 = vmatpush2.xpose.msra.mxu0 0.0
      %1414 = vmatprep.subr.mxu0 0.0
      %1415 = vmatpush2.xpose.msra.mxu0 0.0
      %1416 = vmatprep.subr.mxu0 0.0
      %1417 = vmatpush2.xpose.msra.mxu0 0.0
      %1418 = vmatprep.subr.mxu0 0.0
      %1419 = vmatpush2.xpose.msra.mxu0 0.0
      %1420 = vmatprep.mubr.f32.mxu0 0.0
      %1421 = vmatmul.mubr.f32.gmra.mxu0 %v1351
      %v1422 = vpop.f32.mrf.mxu0
      %v1423 = vadd.f32 %v1347, %v1422
      %v1424 = vpop.f32.mrf.mxu0
      %1425 = vdwg.mxu0
      %v1427 = vsel %vm607, %v1423, 0
      %1429 = vmatprep.subr.mxu0 0.0
      %1430 = vmatpush1.msra.mxu0 0.0
      %1431 = vmatprep.subr.mxu0 0.0
      %1432 = vmatpush1.msra.mxu0 0.0
      %1433 = vmatprep.subr.mxu0 0.0
      %1434 = vmatpush1.msra.mxu0 0.0
      %1435 = vmatprep.subr.mxu0 0.0
      %1436 = vmatpush1.msra.mxu0 0.0
      %1437 = vmatprep.subr.mxu0 0.0
      %1438 = vmatpush1.msra.mxu0 0.0
      %1439 = vmatprep.subr.mxu0 0.0
      %1440 = vmatpush1.msra.mxu0 0.0
      %1441 = vmatprep.subr.mxu0 0.0
      %1442 = vmatpush1.msra.mxu0 0.0
      %1443 = vmatprep.subr.mxu0 0.0
      %1444 = vmatpush1.msra.mxu0 0.0
      %1445 = vmatprep.subr.mxu0 0.0
      %1446 = vmatpush1.msra.mxu0 0.0
      %1447 = vmatprep.subr.mxu0 0.0
      %1448 = vmatpush1.msra.mxu0 0.0
      %1449 = vmatprep.subr.mxu0 0.0
      %1450 = vmatpush1.msra.mxu0 0.0
      %1451 = vmatprep.subr.mxu0 0.0
      %1452 = vmatpush1.msra.mxu0 0.0
      %1453 = vmatprep.subr.mxu0 0.0
      %1454 = vmatpush1.msra.mxu0 0.0
      %1455 = vmatprep.subr.mxu0 0.0
      %1456 = vmatpush1.msra.mxu0 0.0
      %1457 = vmatprep.subr.mxu0 0.0
      %1458 = vmatpush1.msra.mxu0 0.0
      %1459 = vmatprep.subr.mxu0 0.0
      %1460 = vmatpush1.msra.mxu0 1.0
      %1461 = vmatprep.subr.mxu0 0.0
      %1462 = vmatpush2.msra.mxu0 0.0
      %1463 = vmatprep.subr.mxu0 0.0
      %1464 = vmatpush2.msra.mxu0 0.0
      %1465 = vmatprep.subr.mxu0 0.0
      %1466 = vmatpush2.msra.mxu0 0.0
      %1467 = vmatprep.subr.mxu0 0.0
      %1468 = vmatpush2.msra.mxu0 0.0
      %1469 = vmatprep.subr.mxu0 0.0
      %1470 = vmatpush2.msra.mxu0 0.0
      %1471 = vmatprep.subr.mxu0 0.0
      %1472 = vmatpush2.msra.mxu0 0.0
      %1473 = vmatprep.subr.mxu0 0.0
      %1474 = vmatpush2.msra.mxu0 0.0
      %1475 = vmatprep.subr.mxu0 0.0
      %1476 = vmatpush2.msra.mxu0 0.0
      %1477 = vmatprep.subr.mxu0 0.0
      %1478 = vmatpush2.msra.mxu0 0.0
      %1479 = vmatprep.subr.mxu0 0.0
      %1480 = vmatpush2.msra.mxu0 0.0
      %1481 = vmatprep.subr.mxu0 0.0
      %1482 = vmatpush2.msra.mxu0 0.0
      %1483 = vmatprep.subr.mxu0 0.0
      %1484 = vmatpush2.msra.mxu0 0.0
      %1485 = vmatprep.subr.mxu0 0.0
      %1486 = vmatpush2.msra.mxu0 0.0
      %1487 = vmatprep.subr.mxu0 0.0
      %1488 = vmatpush2.msra.mxu0 0.0
      %1489 = vmatprep.subr.mxu0 0.0
      %1490 = vmatpush2.msra.mxu0 0.0
      %1491 = vmatprep.subr.mxu0 0.0
      %1492 = vmatpush2.msra.mxu0 0.0
      %1493 = vmatprep.mubr.f32.mxu0 0.0
      %1494 = vmatmul.mubr.f32.gmra.mxu0 %v1427
      %v1495 = vpop.f32.mrf.mxu0
      %v1496 = vadd.f32 1e-05, %v1495
      %v1497 = vpop.f32.mrf.mxu0
      %1498 = vdwg.mxu0
      %v1499 = vrsqrt.pop %v1496
      %v1501 = vsel %vm607, 1.0, 0
      %1503 = vmatprep.subr.mxu0 0.0
      %1504 = vmatpush1.msra.mxu0 0.0
      %1505 = vmatprep.subr.mxu0 0.0
      %1506 = vmatpush1.msra.mxu0 0.0
      %1507 = vmatprep.subr.mxu0 0.0
      %1508 = vmatpush1.msra.mxu0 0.0
      %1509 = vmatprep.subr.mxu0 0.0
      %1510 = vmatpush1.msra.mxu0 0.0
      %1511 = vmatprep.subr.mxu0 0.0
      %1512 = vmatpush1.msra.mxu0 0.0
      %1513 = vmatprep.subr.mxu0 0.0
      %1514 = vmatpush1.msra.mxu0 0.0
      %1515 = vmatprep.subr.mxu0 0.0
      %1516 = vmatpush1.msra.mxu0 0.0
      %1517 = vmatprep.subr.mxu0 0.0
      %1518 = vmatpush1.msra.mxu0 0.0
      %1519 = vmatprep.subr.mxu0 0.0
      %1520 = vmatpush1.msra.mxu0 0.0
      %1521 = vmatprep.subr.mxu0 0.0
      %1522 = vmatpush1.msra.mxu0 0.0
      %1523 = vmatprep.subr.mxu0 0.0
      %1524 = vmatpush1.msra.mxu0 0.0
      %1525 = vmatprep.subr.mxu0 0.0
      %1526 = vmatpush1.msra.mxu0 0.0
      %1527 = vmatprep.subr.mxu0 0.0
      %1528 = vmatpush1.msra.mxu0 0.0
      %1529 = vmatprep.subr.mxu0 0.0
      %1530 = vmatpush1.msra.mxu0 0.0
      %1531 = vmatprep.subr.mxu0 0.0
      %1532 = vmatpush1.msra.mxu0 0.0
      %1533 = vmatprep.subr.mxu0 0.0
      %1534 = vmatpush1.msra.mxu0 %v1423
      %1535 = vmatprep.subr.mxu0 0.0
      %1536 = vmatpush2.msra.mxu0 0.0
      %1537 = vmatprep.subr.mxu0 0.0
      %1538 = vmatpush2.msra.mxu0 0.0
      %1539 = vmatprep.subr.mxu0 0.0
      %1540 = vmatpush2.msra.mxu0 0.0
      %1541 = vmatprep.subr.mxu0 0.0
      %1542 = vmatpush2.msra.mxu0 0.0
      %1543 = vmatprep.subr.mxu0 0.0
      %1544 = vmatpush2.msra.mxu0 0.0
      %1545 = vmatprep.subr.mxu0 0.0
      %1546 = vmatpush2.msra.mxu0 0.0
      %1547 = vmatprep.subr.mxu0 0.0
      %1548 = vmatpush2.msra.mxu0 0.0
      %1549 = vmatprep.subr.mxu0 0.0
      %1550 = vmatpush2.msra.mxu0 0.0
      %1551 = vmatprep.subr.mxu0 0.0
      %1552 = vmatpush2.msra.mxu0 0.0
      %1553 = vmatprep.subr.mxu0 0.0
      %1554 = vmatpush2.msra.mxu0 0.0
      %1555 = vmatprep.subr.mxu0 0.0
      %1556 = vmatpush2.msra.mxu0 0.0
      %1557 = vmatprep.subr.mxu0 0.0
      %1558 = vmatpush2.msra.mxu0 0.0
      %1559 = vmatprep.subr.mxu0 0.0
      %1560 = vmatpush2.msra.mxu0 0.0
      %1561 = vmatprep.subr.mxu0 0.0
      %1562 = vmatpush2.msra.mxu0 0.0
      %1563 = vmatprep.subr.mxu0 0.0
      %1564 = vmatpush2.msra.mxu0 0.0
      %1565 = vmatprep.subr.mxu0 0.0
      %1566 = vmatpush2.msra.mxu0 0.0
      %1567 = vmatprep.mubr.f32.mxu0 0.0
      %1568 = vmatmul.mubr.f32.gmra.mxu0 %v1501
      %v1569 = vpop.f32.mrf.mxu0
      %v1570 = vadd.f32 1e-05, %v1569
      %v1571 = vpop.f32.mrf.mxu0
      %1572 = vdwg.mxu0
      %v1573 = vrsqrt.pop %v1570
      %1575 = vset.pattern.permute.xlu0 0
      %1576 = vperm.xlu0 %1575, %v1499
      %v1577 = vpop.permute.xlu0 %1576
      %v1579 = vmul.f32 %v1423, %v1577
      %v1580 = vlaneseq
      %v1581 = vshrl.u32 %v1580, 7
      %v1582 = vsub.s32 0, %v1581
      %v1583 = vrot.slane %v1573, %v1582
      %v1584 = vmul.f32 %v1579, %v1583
      %s1585 = scalar_lea.vmem %s6, 352
      %v1586 = vld [vmem:[%s1585] sm:$0xff]
      %v1587 = vld [vmem:[%s1585 + $0x8] sm:$0xff]
      %v1588 = vld [vmem:[%s1585 + $0x10] sm:$0xff]
      %v1589 = vld [vmem:[%s1585 + $0x18] sm:$0xff]
      %v1590 = vld [vmem:[%s1585 + $0x20] sm:$0xff]
      %v1591 = vld [vmem:[%s1585 + $0x28] sm:$0xff]
      %v1592 = vld [vmem:[%s1585 + $0x150] sm:$0xff]
      %v1593 = vld [vmem:[%s1585 + $0x158] sm:$0x7]
      %1594 = vmatprep.subr.mxu0 0.0
      %1595 = vmatpush1.msra.mxu0 0.0
      %1596 = vmatprep.subr.mxu0 0.0
      %1597 = vmatpush1.msra.mxu0 0.0
      %1598 = vmatprep.subr.mxu0 0.0
      %1599 = vmatpush1.msra.mxu0 0.0
      %1600 = vmatprep.subr.mxu0 0.0
      %1601 = vmatpush1.msra.mxu0 0.0
      %1602 = vmatprep.subr.mxu0 0.0
      %1603 = vmatpush1.msra.mxu0 0.0
      %1604 = vmatprep.subr.mxu0 0.0
      %1605 = vmatpush1.msra.mxu0 0.0
      %1606 = vmatprep.subr.mxu0 0.0
      %1607 = vmatpush1.msra.mxu0 0.0
      %1608 = vmatprep.subr.mxu0 0.0
      %1609 = vmatpush1.msra.mxu0 0.0
      %1610 = vmatprep.subr.mxu0 0.0
      %1611 = vmatpush1.msra.mxu0 0.0
      %1612 = vmatprep.subr.mxu0 0.0
      %1613 = vmatpush1.msra.mxu0 0.0
      %1614 = vmatprep.subr.mxu0 0.0
      %1615 = vmatpush1.msra.mxu0 0.0
      %1616 = vmatprep.subr.mxu0 0.0
      %1617 = vmatpush1.msra.mxu0 0.0
      %1618 = vmatprep.subr.mxu0 0.0
      %1619 = vmatpush1.msra.mxu0 0.0
      %1620 = vmatprep.subr.mxu0 0.0
      %1621 = vmatpush1.msra.mxu0 0.0
      %1622 = vmatprep.subr.mxu0 0.0
      %1623 = vmatpush1.msra.mxu0 0.0
      %1624 = vmatprep.subr.mxu0 0.0
      %1625 = vmatpush1.msra.mxu0 %v389
      %1626 = vmatprep.subr.mxu0 0.0
      %1627 = vmatpush2.msra.mxu0 0.0
      %1628 = vmatprep.subr.mxu0 0.0
      %1629 = vmatpush2.msra.mxu0 0.0
      %1630 = vmatprep.subr.mxu0 0.0
      %1631 = vmatpush2.msra.mxu0 0.0
      %1632 = vmatprep.subr.mxu0 0.0
      %1633 = vmatpush2.msra.mxu0 0.0
      %1634 = vmatprep.subr.mxu0 0.0
      %1635 = vmatpush2.msra.mxu0 0.0
      %1636 = vmatprep.subr.mxu0 0.0
      %1637 = vmatpush2.msra.mxu0 0.0
      %1638 = vmatprep.subr.mxu0 0.0
      %1639 = vmatpush2.msra.mxu0 0.0
      %1640 = vmatprep.subr.mxu0 0.0
      %1641 = vmatpush2.msra.mxu0 0.0
      %1642 = vmatprep.subr.mxu0 0.0
      %1643 = vmatpush2.msra.mxu0 0.0
      %1644 = vmatprep.subr.mxu0 0.0
      %1645 = vmatpush2.msra.mxu0 0.0
      %1646 = vmatprep.subr.mxu0 0.0
      %1647 = vmatpush2.msra.mxu0 0.0
      %1648 = vmatprep.subr.mxu0 0.0
      %1649 = vmatpush2.msra.mxu0 0.0
      %1650 = vmatprep.subr.mxu0 0.0
      %1651 = vmatpush2.msra.mxu0 0.0
      %1652 = vmatprep.subr.mxu0 0.0
      %1653 = vmatpush2.msra.mxu0 0.0
      %1654 = vmatprep.subr.mxu0 0.0
      %1655 = vmatpush2.msra.mxu0 0.0
      %1656 = vmatprep.subr.mxu0 0.0
      %1657 = vmatpush2.msra.mxu0 0.0
      %1658 = vmatprep.mubr.f32.mxu0 0.0
      %1659 = vmatmul.mubr.f32.gmra.mxu0 %v609
      %v1660 = vpop.f32.mrf.mxu0
      %v1661 = vadd.f32 0.0, %v1660
      %v1662 = vpop.f32.mrf.mxu0
      %1663 = vmatprep.mubr.f32.mxu0 0.0
      %1664 = vmatmul.mubr.f32.gmra.mxu0 %v612
      %v1665 = vpop.f32.mrf.mxu0
      %v1666 = vadd.f32 0.0, %v1665
      %v1667 = vpop.f32.mrf.mxu0
      %1668 = vdwg.mxu0
      %1669 = vmatprep.subr.mxu0 0.0
      %1670 = vmatpush1.msra.mxu0 0.0
      %1671 = vmatprep.subr.mxu0 0.0
      %1672 = vmatpush1.msra.mxu0 0.0
      %1673 = vmatprep.subr.mxu0 0.0
      %1674 = vmatpush1.msra.mxu0 0.0
      %1675 = vmatprep.subr.mxu0 0.0
      %1676 = vmatpush1.msra.mxu0 0.0
      %1677 = vmatprep.subr.mxu0 0.0
      %1678 = vmatpush1.msra.mxu0 0.0
      %1679 = vmatprep.subr.mxu0 0.0
      %1680 = vmatpush1.msra.mxu0 0.0
      %1681 = vmatprep.subr.mxu0 0.0
      %1682 = vmatpush1.msra.mxu0 0.0
      %1683 = vmatprep.subr.mxu0 0.0
      %1684 = vmatpush1.msra.mxu0 0.0
      %1685 = vmatprep.subr.mxu0 0.0
      %1686 = vmatpush1.msra.mxu0 0.0
      %1687 = vmatprep.subr.mxu0 0.0
      %1688 = vmatpush1.msra.mxu0 0.0
      %1689 = vmatprep.subr.mxu0 0.0
      %1690 = vmatpush1.msra.mxu0 0.0
      %1691 = vmatprep.subr.mxu0 0.0
      %1692 = vmatpush1.msra.mxu0 0.0
      %1693 = vmatprep.subr.mxu0 0.0
      %1694 = vmatpush1.msra.mxu0 0.0
      %1695 = vmatprep.subr.mxu0 0.0
      %1696 = vmatpush1.msra.mxu0 0.0
      %1697 = vmatprep.subr.mxu0 0.0
      %1698 = vmatpush1.msra.mxu0 0.0
      %1699 = vmatprep.subr.mxu0 0.0
      %1700 = vmatpush1.msra.mxu0 %v389
      %1701 = vmatprep.subr.mxu0 0.0
      %1702 = vmatpush2.msra.mxu0 0.0
      %1703 = vmatprep.subr.mxu0 0.0
      %1704 = vmatpush2.msra.mxu0 0.0
      %1705 = vmatprep.subr.mxu0 0.0
      %1706 = vmatpush2.msra.mxu0 0.0
      %1707 = vmatprep.subr.mxu0 0.0
      %1708 = vmatpush2.msra.mxu0 0.0
      %1709 = vmatprep.subr.mxu0 0.0
      %1710 = vmatpush2.msra.mxu0 0.0
      %1711 = vmatprep.subr.mxu0 0.0
      %1712 = vmatpush2.msra.mxu0 0.0
      %1713 = vmatprep.subr.mxu0 0.0
      %1714 = vmatpush2.msra.mxu0 0.0
      %1715 = vmatprep.subr.mxu0 0.0
      %1716 = vmatpush2.msra.mxu0 0.0
      %1717 = vmatprep.subr.mxu0 0.0
      %1718 = vmatpush2.msra.mxu0 0.0
      %1719 = vmatprep.subr.mxu0 0.0
      %1720 = vmatpush2.msra.mxu0 0.0
      %1721 = vmatprep.subr.mxu0 0.0
      %1722 = vmatpush2.msra.mxu0 0.0
      %1723 = vmatprep.subr.mxu0 0.0
      %1724 = vmatpush2.msra.mxu0 0.0
      %1725 = vmatprep.subr.mxu0 0.0
      %1726 = vmatpush2.msra.mxu0 0.0
      %1727 = vmatprep.subr.mxu0 0.0
      %1728 = vmatpush2.msra.mxu0 0.0
      %1729 = vmatprep.subr.mxu0 0.0
      %1730 = vmatpush2.msra.mxu0 0.0
      %1731 = vmatprep.subr.mxu0 0.0
      %1732 = vmatpush2.msra.mxu0 0.0
      %1733 = vmatprep.mubr.f32.mxu0 0.0
      %1734 = vmatmul.mubr.f32.gmra.mxu0 %v722
      %v1735 = vpop.f32.mrf.mxu0
      %v1736 = vadd.f32 0.0, %v1735
      %v1737 = vpop.f32.mrf.mxu0
      %1738 = vmatprep.mubr.f32.mxu0 0.0
      %1739 = vmatmul.mubr.f32.gmra.mxu0 %v725
      %v1740 = vpop.f32.mrf.mxu0
      %v1741 = vadd.f32 0.0, %v1740
      %v1742 = vpop.f32.mrf.mxu0
      %1743 = vdwg.mxu0
      %1744 = vmatprep.subr.mxu0 0.0
      %1745 = vmatpush1.msra.mxu0 0.0
      %1746 = vmatprep.subr.mxu0 0.0
      %1747 = vmatpush1.msra.mxu0 0.0
      %1748 = vmatprep.subr.mxu0 0.0
      %1749 = vmatpush1.msra.mxu0 0.0
      %1750 = vmatprep.subr.mxu0 0.0
      %1751 = vmatpush1.msra.mxu0 0.0
      %1752 = vmatprep.subr.mxu0 0.0
      %1753 = vmatpush1.msra.mxu0 0.0
      %1754 = vmatprep.subr.mxu0 0.0
      %1755 = vmatpush1.msra.mxu0 0.0
      %1756 = vmatprep.subr.mxu0 0.0
      %1757 = vmatpush1.msra.mxu0 0.0
      %1758 = vmatprep.subr.mxu0 0.0
      %1759 = vmatpush1.msra.mxu0 0.0
      %1760 = vmatprep.subr.mxu0 0.0
      %1761 = vmatpush1.msra.mxu0 0.0
      %1762 = vmatprep.subr.mxu0 0.0
      %1763 = vmatpush1.msra.mxu0 0.0
      %1764 = vmatprep.subr.mxu0 0.0
      %1765 = vmatpush1.msra.mxu0 0.0
      %1766 = vmatprep.subr.mxu0 0.0
      %1767 = vmatpush1.msra.mxu0 0.0
      %1768 = vmatprep.subr.mxu0 0.0
      %1769 = vmatpush1.msra.mxu0 0.0
      %1770 = vmatprep.subr.mxu0 0.0
      %1771 = vmatpush1.msra.mxu0 0.0
      %1772 = vmatprep.subr.mxu0 0.0
      %1773 = vmatpush1.msra.mxu0 %v1591
      %1774 = vmatprep.subr.mxu0 0.0
      %1775 = vmatpush1.msra.mxu0 %v1590
      %1776 = vmatprep.subr.mxu0 0.0
      %1777 = vmatpush2.msra.mxu0 0.0
      %1778 = vmatprep.subr.mxu0 0.0
      %1779 = vmatpush2.msra.mxu0 0.0
      %1780 = vmatprep.subr.mxu0 0.0
      %1781 = vmatpush2.msra.mxu0 0.0
      %1782 = vmatprep.subr.mxu0 0.0
      %1783 = vmatpush2.msra.mxu0 0.0
      %1784 = vmatprep.subr.mxu0 0.0
      %1785 = vmatpush2.msra.mxu0 0.0
      %1786 = vmatprep.subr.mxu0 0.0
      %1787 = vmatpush2.msra.mxu0 0.0
      %1788 = vmatprep.subr.mxu0 0.0
      %1789 = vmatpush2.msra.mxu0 0.0
      %1790 = vmatprep.subr.mxu0 0.0
      %1791 = vmatpush2.msra.mxu0 0.0
      %1792 = vmatprep.subr.mxu0 0.0
      %1793 = vmatpush2.msra.mxu0 0.0
      %1794 = vmatprep.subr.mxu0 0.0
      %1795 = vmatpush2.msra.mxu0 0.0
      %1796 = vmatprep.subr.mxu0 0.0
      %1797 = vmatpush2.msra.mxu0 0.0
      %1798 = vmatprep.subr.mxu0 0.0
      %1799 = vmatpush2.msra.mxu0 0.0
      %1800 = vmatprep.subr.mxu0 0.0
      %1801 = vmatpush2.msra.mxu0 0.0
      %1802 = vmatprep.subr.mxu0 0.0
      %1803 = vmatpush2.msra.mxu0 0.0
      %1804 = vmatprep.subr.mxu0 0.0
      %1805 = vmatpush2.msra.mxu0 0.0
      %1806 = vmatprep.subr.mxu0 0.0
      %1807 = vmatpush2.msra.mxu0 0.0
      %1808 = vmatprep.mubr.f32.mxu0 0.0
      %1809 = vmatmul.mubr.f32.gmra.mxu0 %v804
      %v1810 = vpop.f32.mrf.mxu0
      %v1811 = vadd.f32 0.0, %v1810
      %v1812 = vpop.f32.mrf.mxu0
      %1813 = vmatprep.mubr.f32.mxu0 0.0
      %1814 = vmatmul.mubr.f32.gmra.mxu0 %v807
      %v1815 = vpop.f32.mrf.mxu0
      %v1816 = vadd.f32 0.0, %v1815
      %v1817 = vpop.f32.mrf.mxu0
      %1818 = vdwg.mxu0
      %v1820 = vsel %vm487, %v1661, 0
      %v1823 = vsel %vm487, %v1666, 0
      %1825 = vmatprep.subr.mxu0 0.0
      %1826 = vmatpush1.msra.mxu0 0.0
      %1827 = vmatprep.subr.mxu0 0.0
      %1828 = vmatpush1.msra.mxu0 0.0
      %1829 = vmatprep.subr.mxu0 0.0
      %1830 = vmatpush1.msra.mxu0 0.0
      %1831 = vmatprep.subr.mxu0 0.0
      %1832 = vmatpush1.msra.mxu0 0.0
      %1833 = vmatprep.subr.mxu0 0.0
      %1834 = vmatpush1.msra.mxu0 0.0
      %1835 = vmatprep.subr.mxu0 0.0
      %1836 = vmatpush1.msra.mxu0 0.0
      %1837 = vmatprep.subr.mxu0 0.0
      %1838 = vmatpush1.msra.mxu0 0.0
      %1839 = vmatprep.subr.mxu0 0.0
      %1840 = vmatpush1.msra.mxu0 0.0
      %1841 = vmatprep.subr.mxu0 0.0
      %1842 = vmatpush1.msra.mxu0 0.0
      %1843 = vmatprep.subr.mxu0 0.0
      %1844 = vmatpush1.msra.mxu0 0.0
      %1845 = vmatprep.subr.mxu0 0.0
      %1846 = vmatpush1.msra.mxu0 0.0
      %1847 = vmatprep.subr.mxu0 0.0
      %1848 = vmatpush1.msra.mxu0 0.0
      %1849 = vmatprep.subr.mxu0 0.0
      %1850 = vmatpush1.msra.mxu0 %v1589
      %1851 = vmatprep.subr.mxu0 0.0
      %1852 = vmatpush1.msra.mxu0 %v1588
      %1853 = vmatprep.subr.mxu0 0.0
      %1854 = vmatpush1.msra.mxu0 %v1587
      %1855 = vmatprep.subr.mxu0 0.0
      %1856 = vmatpush1.msra.mxu0 %v1586
      %1857 = vmatprep.subr.mxu0 0.0
      %1858 = vmatpush2.msra.mxu0 0.0
      %1859 = vmatprep.subr.mxu0 0.0
      %1860 = vmatpush2.msra.mxu0 0.0
      %1861 = vmatprep.subr.mxu0 0.0
      %1862 = vmatpush2.msra.mxu0 0.0
      %1863 = vmatprep.subr.mxu0 0.0
      %1864 = vmatpush2.msra.mxu0 0.0
      %1865 = vmatprep.subr.mxu0 0.0
      %1866 = vmatpush2.msra.mxu0 0.0
      %1867 = vmatprep.subr.mxu0 0.0
      %1868 = vmatpush2.msra.mxu0 0.0
      %1869 = vmatprep.subr.mxu0 0.0
      %1870 = vmatpush2.msra.mxu0 0.0
      %1871 = vmatprep.subr.mxu0 0.0
      %1872 = vmatpush2.msra.mxu0 0.0
      %1873 = vmatprep.subr.mxu0 0.0
      %1874 = vmatpush2.msra.mxu0 0.0
      %1875 = vmatprep.subr.mxu0 0.0
      %1876 = vmatpush2.msra.mxu0 0.0
      %1877 = vmatprep.subr.mxu0 0.0
      %1878 = vmatpush2.msra.mxu0 0.0
      %1879 = vmatprep.subr.mxu0 0.0
      %1880 = vmatpush2.msra.mxu0 0.0
      %1881 = vmatprep.subr.mxu0 0.0
      %1882 = vmatpush2.msra.mxu0 0.0
      %1883 = vmatprep.subr.mxu0 0.0
      %1884 = vmatpush2.msra.mxu0 0.0
      %1885 = vmatprep.subr.mxu0 0.0
      %1886 = vmatpush2.msra.mxu0 0.0
      %1887 = vmatprep.subr.mxu0 0.0
      %1888 = vmatpush2.msra.mxu0 0.0
      %1889 = vmatprep.mubr.f32.mxu0 0.0
      %1890 = vmatmul.mubr.f32.gmra.mxu0 %v1820
      %v1891 = vpop.f32.mrf.mxu0
      %v1892 = vadd.f32 0.0, %v1891
      %v1893 = vpop.f32.mrf.mxu0
      %1894 = vmatprep.mubr.f32.mxu0 0.0
      %1895 = vmatmul.mubr.f32.gmra.mxu0 %v1823
      %v1896 = vpop.f32.mrf.mxu0
      %v1897 = vadd.f32 0.0, %v1896
      %v1898 = vpop.f32.mrf.mxu0
      %1899 = vdwg.mxu0
      %v1901 = vsel %vm487, %v1736, 0
      %v1904 = vsel %vm487, %v1741, 0
      %1906 = vmatprep.subr.mxu0 0.0
      %1907 = vmatpush1.msra.mxu0 0.0
      %1908 = vmatprep.subr.mxu0 0.0
      %1909 = vmatpush1.msra.mxu0 0.0
      %1910 = vmatprep.subr.mxu0 0.0
      %1911 = vmatpush1.msra.mxu0 0.0
      %1912 = vmatprep.subr.mxu0 0.0
      %1913 = vmatpush1.msra.mxu0 0.0
      %1914 = vmatprep.subr.mxu0 0.0
      %1915 = vmatpush1.msra.mxu0 0.0
      %1916 = vmatprep.subr.mxu0 0.0
      %1917 = vmatpush1.msra.mxu0 0.0
      %1918 = vmatprep.subr.mxu0 0.0
      %1919 = vmatpush1.msra.mxu0 0.0
      %1920 = vmatprep.subr.mxu0 0.0
      %1921 = vmatpush1.msra.mxu0 0.0
      %1922 = vmatprep.subr.mxu0 0.0
      %1923 = vmatpush1.msra.mxu0 0.0
      %1924 = vmatprep.subr.mxu0 0.0
      %1925 = vmatpush1.msra.mxu0 0.0
      %1926 = vmatprep.subr.mxu0 0.0
      %1927 = vmatpush1.msra.mxu0 0.0
      %1928 = vmatprep.subr.mxu0 0.0
      %1929 = vmatpush1.msra.mxu0 0.0
      %1930 = vmatprep.subr.mxu0 0.0
      %1931 = vmatpush1.msra.mxu0 %v1589
      %1932 = vmatprep.subr.mxu0 0.0
      %1933 = vmatpush1.msra.mxu0 %v1588
      %1934 = vmatprep.subr.mxu0 0.0
      %1935 = vmatpush1.msra.mxu0 %v1587
      %1936 = vmatprep.subr.mxu0 0.0
      %1937 = vmatpush1.msra.mxu0 %v1586
      %1938 = vmatprep.subr.mxu0 0.0
      %1939 = vmatpush2.msra.mxu0 0.0
      %1940 = vmatprep.subr.mxu0 0.0
      %1941 = vmatpush2.msra.mxu0 0.0
      %1942 = vmatprep.subr.mxu0 0.0
      %1943 = vmatpush2.msra.mxu0 0.0
      %1944 = vmatprep.subr.mxu0 0.0
      %1945 = vmatpush2.msra.mxu0 0.0
      %1946 = vmatprep.subr.mxu0 0.0
      %1947 = vmatpush2.msra.mxu0 0.0
      %1948 = vmatprep.subr.mxu0 0.0
      %1949 = vmatpush2.msra.mxu0 0.0
      %1950 = vmatprep.subr.mxu0 0.0
      %1951 = vmatpush2.msra.mxu0 0.0
      %1952 = vmatprep.subr.mxu0 0.0
      %1953 = vmatpush2.msra.mxu0 0.0
      %1954 = vmatprep.subr.mxu0 0.0
      %1955 = vmatpush2.msra.mxu0 0.0
      %1956 = vmatprep.subr.mxu0 0.0
      %1957 = vmatpush2.msra.mxu0 0.0
      %1958 = vmatprep.subr.mxu0 0.0
      %1959 = vmatpush2.msra.mxu0 0.0
      %1960 = vmatprep.subr.mxu0 0.0
      %1961 = vmatpush2.msra.mxu0 0.0
      %1962 = vmatprep.subr.mxu0 0.0
      %1963 = vmatpush2.msra.mxu0 0.0
      %1964 = vmatprep.subr.mxu0 0.0
      %1965 = vmatpush2.msra.mxu0 0.0
      %1966 = vmatprep.subr.mxu0 0.0
      %1967 = vmatpush2.msra.mxu0 0.0
      %1968 = vmatprep.subr.mxu0 0.0
      %1969 = vmatpush2.msra.mxu0 0.0
      %1970 = vmatprep.mubr.f32.mxu0 0.0
      %1971 = vmatmul.mubr.f32.gmra.mxu0 %v1901
      %v1972 = vpop.f32.mrf.mxu0
      %v1973 = vadd.f32 0.0, %v1972
      %v1974 = vpop.f32.mrf.mxu0
      %1975 = vmatprep.mubr.f32.mxu0 0.0
      %1976 = vmatmul.mubr.f32.gmra.mxu0 %v1904
      %v1977 = vpop.f32.mrf.mxu0
      %v1978 = vadd.f32 0.0, %v1977
      %v1979 = vpop.f32.mrf.mxu0
      %1980 = vdwg.mxu0
      %v1981 = vadd.f32 %v1892, %v1811
      %v1982 = vadd.f32 %v1897, %v1816
      %1985 = vrot.lane.b32.xlu0 %v1973, 96
      %v1986 = vpop.permute.xlu0 %1985
      %1987 = vrot.lane.b32.xlu0 %v1978, 96
      %v1988 = vpop.permute.xlu0 %1987
      %v1991 = vadd.f32 %v1981, %v1986
      %v1992 = vadd.f32 %v1982, %v1988
      %v1993 = vlaneseq
      %v1994 = vshrl.u32 %v1993, 7
      %v1995 = vsub.s32 0, %v1994
      %v1996 = vrot.slane %v1592, %v1995
      %v1997 = vadd.f32 %v1991, %v1996
      %v1998 = vadd.f32 %v1992, %v1996
      %vm1999 = vcmp.ge.f32.partialorder %v1997, 0.0
      %vm2000 = vcmp.ge.f32.partialorder %v1998, 0.0
      %v2001 = vmul.f32 %v1997, 0.01
      %v2002 = vmul.f32 %v1998, 0.01
      %v2003 = vsel %vm1999, %v1997, %v2001
      %v2004 = vsel %vm2000, %v1998, %v2002
      %v2005 = vadd.f32 %v1973, %v1811
      %v2006 = vadd.f32 %v1978, %v1816
      %2009 = vrot.lane.b32.xlu0 %v1892, 96
      %v2010 = vpop.permute.xlu0 %2009
      %2011 = vrot.lane.b32.xlu0 %v1897, 96
      %v2012 = vpop.permute.xlu0 %2011
      %v2015 = vadd.f32 %v2005, %v2010
      %v2016 = vadd.f32 %v2006, %v2012
      %v2017 = vadd.f32 %v2015, %v1996
      %v2018 = vadd.f32 %v2016, %v1996
      %vm2019 = vcmp.ge.f32.partialorder %v2017, 0.0
      %vm2020 = vcmp.ge.f32.partialorder %v2018, 0.0
      %v2021 = vmul.f32 %v2017, 0.01
      %v2022 = vmul.f32 %v2018, 0.01
      %v2023 = vsel %vm2019, %v2017, %v2021
      %v2024 = vsel %vm2020, %v2018, %v2022
      %2026 = vset.pattern.permute.xlu0 0
      %2027 = vperm.xlu0 %2026, %v1592
      %v2028 = vpop.permute.xlu0 %2027
      %v2029 = vrot.slane %v1592, 1
      %v2030 = vrot.slane %v2028, 2
      %v2032 = vsel %vm487, %v2029, 0
      %v2035 = vsel %vm487, %v2003, 0
      %v2038 = vsel %vm487, %v2004, 0
      %2040 = vmatprep.subr.mxu0 0.0
      %2041 = vmatpush1.xpose.msra.mxu0 0.0
      %2042 = vmatprep.subr.mxu0 0.0
      %2043 = vmatpush1.xpose.msra.mxu0 0.0
      %2044 = vmatprep.subr.mxu0 0.0
      %2045 = vmatpush1.xpose.msra.mxu0 0.0
      %2046 = vmatprep.subr.mxu0 0.0
      %2047 = vmatpush1.xpose.msra.mxu0 0.0
      %2048 = vmatprep.subr.mxu0 0.0
      %2049 = vmatpush1.xpose.msra.mxu0 0.0
      %2050 = vmatprep.subr.mxu0 0.0
      %2051 = vmatpush1.xpose.msra.mxu0 0.0
      %2052 = vmatprep.subr.mxu0 0.0
      %2053 = vmatpush1.xpose.msra.mxu0 0.0
      %2054 = vmatprep.subr.mxu0 0.0
      %2055 = vmatpush1.xpose.msra.mxu0 0.0
      %2056 = vmatprep.subr.mxu0 0.0
      %2057 = vmatpush1.xpose.msra.mxu0 0.0
      %2058 = vmatprep.subr.mxu0 0.0
      %2059 = vmatpush1.xpose.msra.mxu0 0.0
      %2060 = vmatprep.subr.mxu0 0.0
      %2061 = vmatpush1.xpose.msra.mxu0 0.0
      %2062 = vmatprep.subr.mxu0 0.0
      %2063 = vmatpush1.xpose.msra.mxu0 0.0
      %2064 = vmatprep.subr.mxu0 0.0
      %2065 = vmatpush1.xpose.msra.mxu0 0.0
      %2066 = vmatprep.subr.mxu0 0.0
      %2067 = vmatpush1.xpose.msra.mxu0 0.0
      %2068 = vmatprep.subr.mxu0 0.0
      %2069 = vmatpush1.xpose.msra.mxu0 %v2038
      %2070 = vmatprep.subr.mxu0 0.0
      %2071 = vmatpush1.xpose.msra.mxu0 %v2035
      %2072 = vmatprep.subr.mxu0 0.0
      %2073 = vmatpush2.xpose.msra.mxu0 0.0
      %2074 = vmatprep.subr.mxu0 0.0
      %2075 = vmatpush2.xpose.msra.mxu0 0.0
      %2076 = vmatprep.subr.mxu0 0.0
      %2077 = vmatpush2.xpose.msra.mxu0 0.0
      %2078 = vmatprep.subr.mxu0 0.0
      %2079 = vmatpush2.xpose.msra.mxu0 0.0
      %2080 = vmatprep.subr.mxu0 0.0
      %2081 = vmatpush2.xpose.msra.mxu0 0.0
      %2082 = vmatprep.subr.mxu0 0.0
      %2083 = vmatpush2.xpose.msra.mxu0 0.0
      %2084 = vmatprep.subr.mxu0 0.0
      %2085 = vmatpush2.xpose.msra.mxu0 0.0
      %2086 = vmatprep.subr.mxu0 0.0
      %2087 = vmatpush2.xpose.msra.mxu0 0.0
      %2088 = vmatprep.subr.mxu0 0.0
      %2089 = vmatpush2.xpose.msra.mxu0 0.0
      %2090 = vmatprep.subr.mxu0 0.0
      %2091 = vmatpush2.xpose.msra.mxu0 0.0
      %2092 = vmatprep.subr.mxu0 0.0
      %2093 = vmatpush2.xpose.msra.mxu0 0.0
      %2094 = vmatprep.subr.mxu0 0.0
      %2095 = vmatpush2.xpose.msra.mxu0 0.0
      %2096 = vmatprep.subr.mxu0 0.0
      %2097 = vmatpush2.xpose.msra.mxu0 0.0
      %2098 = vmatprep.subr.mxu0 0.0
      %2099 = vmatpush2.xpose.msra.mxu0 0.0
      %2100 = vmatprep.subr.mxu0 0.0
      %2101 = vmatpush2.xpose.msra.mxu0 0.0
      %2102 = vmatprep.subr.mxu0 0.0
      %2103 = vmatpush2.xpose.msra.mxu0 0.0
      %2104 = vmatprep.mubr.f32.mxu0 0.0
      %2105 = vmatmul.mubr.f32.gmra.mxu0 %v2032
      %v2106 = vpop.f32.mrf.mxu0
      %v2107 = vadd.f32 %v2030, %v2106
      %v2108 = vpop.f32.mrf.mxu0
      %2109 = vdwg.mxu0
      %v2110 = vxor.u32 %v2107, 2147483648
      %v2111 = vmul.f32 %v2110, 1.442695
      %v2112 = vpow.pop %v2111
      %v2113 = vadd.f32 %v2112, 1.0
      %v2114 = vrcp.pop %v2113
      %v2115 = vmul.f32 1.0, %v2114
      %v2117 = vsel %vm487, %v2023, 0
      %v2120 = vsel %vm487, %v2024, 0
      %2122 = vmatprep.subr.mxu0 0.0
      %2123 = vmatpush1.xpose.msra.mxu0 0.0
      %2124 = vmatprep.subr.mxu0 0.0
      %2125 = vmatpush1.xpose.msra.mxu0 0.0
      %2126 = vmatprep.subr.mxu0 0.0
      %2127 = vmatpush1.xpose.msra.mxu0 0.0
      %2128 = vmatprep.subr.mxu0 0.0
      %2129 = vmatpush1.xpose.msra.mxu0 0.0
      %2130 = vmatprep.subr.mxu0 0.0
      %2131 = vmatpush1.xpose.msra.mxu0 0.0
      %2132 = vmatprep.subr.mxu0 0.0
      %2133 = vmatpush1.xpose.msra.mxu0 0.0
      %2134 = vmatprep.subr.mxu0 0.0
      %2135 = vmatpush1.xpose.msra.mxu0 0.0
      %2136 = vmatprep.subr.mxu0 0.0
      %2137 = vmatpush1.xpose.msra.mxu0 0.0
      %2138 = vmatprep.subr.mxu0 0.0
      %2139 = vmatpush1.xpose.msra.mxu0 0.0
      %2140 = vmatprep.subr.mxu0 0.0
      %2141 = vmatpush1.xpose.msra.mxu0 0.0
      %2142 = vmatprep.subr.mxu0 0.0
      %2143 = vmatpush1.xpose.msra.mxu0 0.0
      %2144 = vmatprep.subr.mxu0 0.0
      %2145 = vmatpush1.xpose.msra.mxu0 0.0
      %2146 = vmatprep.subr.mxu0 0.0
      %2147 = vmatpush1.xpose.msra.mxu0 0.0
      %2148 = vmatprep.subr.mxu0 0.0
      %2149 = vmatpush1.xpose.msra.mxu0 0.0
      %2150 = vmatprep.subr.mxu0 0.0
      %2151 = vmatpush1.xpose.msra.mxu0 %v2120
      %2152 = vmatprep.subr.mxu0 0.0
      %2153 = vmatpush1.xpose.msra.mxu0 %v2117
      %2154 = vmatprep.subr.mxu0 0.0
      %2155 = vmatpush2.xpose.msra.mxu0 0.0
      %2156 = vmatprep.subr.mxu0 0.0
      %2157 = vmatpush2.xpose.msra.mxu0 0.0
      %2158 = vmatprep.subr.mxu0 0.0
      %2159 = vmatpush2.xpose.msra.mxu0 0.0
      %2160 = vmatprep.subr.mxu0 0.0
      %2161 = vmatpush2.xpose.msra.mxu0 0.0
      %2162 = vmatprep.subr.mxu0 0.0
      %2163 = vmatpush2.xpose.msra.mxu0 0.0
      %2164 = vmatprep.subr.mxu0 0.0
      %2165 = vmatpush2.xpose.msra.mxu0 0.0
      %2166 = vmatprep.subr.mxu0 0.0
      %2167 = vmatpush2.xpose.msra.mxu0 0.0
      %2168 = vmatprep.subr.mxu0 0.0
      %2169 = vmatpush2.xpose.msra.mxu0 0.0
      %2170 = vmatprep.subr.mxu0 0.0
      %2171 = vmatpush2.xpose.msra.mxu0 0.0
      %2172 = vmatprep.subr.mxu0 0.0
      %2173 = vmatpush2.xpose.msra.mxu0 0.0
      %2174 = vmatprep.subr.mxu0 0.0
      %2175 = vmatpush2.xpose.msra.mxu0 0.0
      %2176 = vmatprep.subr.mxu0 0.0
      %2177 = vmatpush2.xpose.msra.mxu0 0.0
      %2178 = vmatprep.subr.mxu0 0.0
      %2179 = vmatpush2.xpose.msra.mxu0 0.0
      %2180 = vmatprep.subr.mxu0 0.0
      %2181 = vmatpush2.xpose.msra.mxu0 0.0
      %2182 = vmatprep.subr.mxu0 0.0
      %2183 = vmatpush2.xpose.msra.mxu0 0.0
      %2184 = vmatprep.subr.mxu0 0.0
      %2185 = vmatpush2.xpose.msra.mxu0 0.0
      %2186 = vmatprep.mubr.f32.mxu0 0.0
      %2187 = vmatmul.mubr.f32.gmra.mxu0 %v2032
      %v2188 = vpop.f32.mrf.mxu0
      %v2189 = vadd.f32 %v2030, %v2188
      %v2190 = vpop.f32.mrf.mxu0
      %2191 = vdwg.mxu0
      %v2192 = vxor.u32 %v2189, 2147483648
      %v2193 = vmul.f32 %v2192, 1.442695
      %v2194 = vpow.pop %v2193
      %v2195 = vadd.f32 %v2194, 1.0
      %v2196 = vrcp.pop %v2195
      %v2197 = vmul.f32 1.0, %v2196
      %v2198 = vlaneseq
      %v2199 = vshrl.u32 %v2198, 7
      %v2200 = vsub.s32 0, %v2199
      %v2201 = vrot.slane %v2115, %v2200
      %v2202 = vmul.f32 %v392, %v2201
      %v2203 = vlaneseq
      %v2204 = vshrl.u32 %v2203, 7
      %v2205 = vsub.s32 0, %v2204
      %v2206 = vrot.slane %v2197, %v2205
      %v2207 = vmul.f32 %v393, %v2206
      %v2209 = vsel %vm1273, %v2207, 0
      %2211 = vmatprep.subr.mxu0 0.0
      %2212 = vmatpush1.xpose.msra.mxu0 0.0
      %2213 = vmatprep.subr.mxu0 0.0
      %2214 = vmatpush1.xpose.msra.mxu0 0.0
      %2215 = vmatprep.subr.mxu0 0.0
      %2216 = vmatpush1.xpose.msra.mxu0 0.0
      %2217 = vmatprep.subr.mxu0 0.0
      %2218 = vmatpush1.xpose.msra.mxu0 0.0
      %2219 = vmatprep.subr.mxu0 0.0
      %2220 = vmatpush1.xpose.msra.mxu0 0.0
      %2221 = vmatprep.subr.mxu0 0.0
      %2222 = vmatpush1.xpose.msra.mxu0 0.0
      %2223 = vmatprep.subr.mxu0 0.0
      %2224 = vmatpush1.xpose.msra.mxu0 0.0
      %2225 = vmatprep.subr.mxu0 0.0
      %2226 = vmatpush1.xpose.msra.mxu0 0.0
      %2227 = vmatprep.subr.mxu0 0.0
      %2228 = vmatpush1.xpose.msra.mxu0 0.0
      %2229 = vmatprep.subr.mxu0 0.0
      %2230 = vmatpush1.xpose.msra.mxu0 0.0
      %2231 = vmatprep.subr.mxu0 0.0
      %2232 = vmatpush1.xpose.msra.mxu0 0.0
      %2233 = vmatprep.subr.mxu0 0.0
      %2234 = vmatpush1.xpose.msra.mxu0 0.0
      %2235 = vmatprep.subr.mxu0 0.0
      %2236 = vmatpush1.xpose.msra.mxu0 0.0
      %2237 = vmatprep.subr.mxu0 0.0
      %2238 = vmatpush1.xpose.msra.mxu0 0.0
      %2239 = vmatprep.subr.mxu0 0.0
      %2240 = vmatpush1.xpose.msra.mxu0 0.0
      %2241 = vmatprep.subr.mxu0 0.0
      %2242 = vmatpush1.xpose.msra.mxu0 %v1278
      %2243 = vmatprep.subr.mxu0 0.0
      %2244 = vmatpush2.xpose.msra.mxu0 0.0
      %2245 = vmatprep.subr.mxu0 0.0
      %2246 = vmatpush2.xpose.msra.mxu0 0.0
      %2247 = vmatprep.subr.mxu0 0.0
      %2248 = vmatpush2.xpose.msra.mxu0 0.0
      %2249 = vmatprep.subr.mxu0 0.0
      %2250 = vmatpush2.xpose.msra.mxu0 0.0
      %2251 = vmatprep.subr.mxu0 0.0
      %2252 = vmatpush2.xpose.msra.mxu0 0.0
      %2253 = vmatprep.subr.mxu0 0.0
      %2254 = vmatpush2.xpose.msra.mxu0 0.0
      %2255 = vmatprep.subr.mxu0 0.0
      %2256 = vmatpush2.xpose.msra.mxu0 0.0
      %2257 = vmatprep.subr.mxu0 0.0
      %2258 = vmatpush2.xpose.msra.mxu0 0.0
      %2259 = vmatprep.subr.mxu0 0.0
      %2260 = vmatpush2.xpose.msra.mxu0 0.0
      %2261 = vmatprep.subr.mxu0 0.0
      %2262 = vmatpush2.xpose.msra.mxu0 0.0
      %2263 = vmatprep.subr.mxu0 0.0
      %2264 = vmatpush2.xpose.msra.mxu0 0.0
      %2265 = vmatprep.subr.mxu0 0.0
      %2266 = vmatpush2.xpose.msra.mxu0 0.0
      %2267 = vmatprep.subr.mxu0 0.0
      %2268 = vmatpush2.xpose.msra.mxu0 0.0
      %2269 = vmatprep.subr.mxu0 0.0
      %2270 = vmatpush2.xpose.msra.mxu0 0.0
      %2271 = vmatprep.subr.mxu0 0.0
      %2272 = vmatpush2.xpose.msra.mxu0 0.0
      %2273 = vmatprep.subr.mxu0 0.0
      %2274 = vmatpush2.xpose.msra.mxu0 0.0
      %2275 = vmatprep.mubr.f32.mxu0 0.0
      %2276 = vmatmul.mubr.f32.gmra.mxu0 %v2209
      %v2277 = vpop.f32.mrf.mxu0
      %v2278 = vadd.f32 0.0, %v2277
      %v2279 = vpop.f32.mrf.mxu0
      %2280 = vdwg.mxu0
      %v2282 = vsel %vm1273, %v2202, 0
      %2284 = vmatprep.subr.mxu0 0.0
      %2285 = vmatpush1.xpose.msra.mxu0 0.0
      %2286 = vmatprep.subr.mxu0 0.0
      %2287 = vmatpush1.xpose.msra.mxu0 0.0
      %2288 = vmatprep.subr.mxu0 0.0
      %2289 = vmatpush1.xpose.msra.mxu0 0.0
      %2290 = vmatprep.subr.mxu0 0.0
      %2291 = vmatpush1.xpose.msra.mxu0 0.0
      %2292 = vmatprep.subr.mxu0 0.0
      %2293 = vmatpush1.xpose.msra.mxu0 0.0
      %2294 = vmatprep.subr.mxu0 0.0
      %2295 = vmatpush1.xpose.msra.mxu0 0.0
      %2296 = vmatprep.subr.mxu0 0.0
      %2297 = vmatpush1.xpose.msra.mxu0 0.0
      %2298 = vmatprep.subr.mxu0 0.0
      %2299 = vmatpush1.xpose.msra.mxu0 0.0
      %2300 = vmatprep.subr.mxu0 0.0
      %2301 = vmatpush1.xpose.msra.mxu0 0.0
      %2302 = vmatprep.subr.mxu0 0.0
      %2303 = vmatpush1.xpose.msra.mxu0 0.0
      %2304 = vmatprep.subr.mxu0 0.0
      %2305 = vmatpush1.xpose.msra.mxu0 0.0
      %2306 = vmatprep.subr.mxu0 0.0
      %2307 = vmatpush1.xpose.msra.mxu0 0.0
      %2308 = vmatprep.subr.mxu0 0.0
      %2309 = vmatpush1.xpose.msra.mxu0 0.0
      %2310 = vmatprep.subr.mxu0 0.0
      %2311 = vmatpush1.xpose.msra.mxu0 0.0
      %2312 = vmatprep.subr.mxu0 0.0
      %2313 = vmatpush1.xpose.msra.mxu0 0.0
      %2314 = vmatprep.subr.mxu0 0.0
      %2315 = vmatpush1.xpose.msra.mxu0 %v1354
      %2316 = vmatprep.subr.mxu0 0.0
      %2317 = vmatpush2.xpose.msra.mxu0 0.0
      %2318 = vmatprep.subr.mxu0 0.0
      %2319 = vmatpush2.xpose.msra.mxu0 0.0
      %2320 = vmatprep.subr.mxu0 0.0
      %2321 = vmatpush2.xpose.msra.mxu0 0.0
      %2322 = vmatprep.subr.mxu0 0.0
      %2323 = vmatpush2.xpose.msra.mxu0 0.0
      %2324 = vmatprep.subr.mxu0 0.0
      %2325 = vmatpush2.xpose.msra.mxu0 0.0
      %2326 = vmatprep.subr.mxu0 0.0
      %2327 = vmatpush2.xpose.msra.mxu0 0.0
      %2328 = vmatprep.subr.mxu0 0.0
      %2329 = vmatpush2.xpose.msra.mxu0 0.0
      %2330 = vmatprep.subr.mxu0 0.0
      %2331 = vmatpush2.xpose.msra.mxu0 0.0
      %2332 = vmatprep.subr.mxu0 0.0
      %2333 = vmatpush2.xpose.msra.mxu0 0.0
      %2334 = vmatprep.subr.mxu0 0.0
      %2335 = vmatpush2.xpose.msra.mxu0 0.0
      %2336 = vmatprep.subr.mxu0 0.0
      %2337 = vmatpush2.xpose.msra.mxu0 0.0
      %2338 = vmatprep.subr.mxu0 0.0
      %2339 = vmatpush2.xpose.msra.mxu0 0.0
      %2340 = vmatprep.subr.mxu0 0.0
      %2341 = vmatpush2.xpose.msra.mxu0 0.0
      %2342 = vmatprep.subr.mxu0 0.0
      %2343 = vmatpush2.xpose.msra.mxu0 0.0
      %2344 = vmatprep.subr.mxu0 0.0
      %2345 = vmatpush2.xpose.msra.mxu0 0.0
      %2346 = vmatprep.subr.mxu0 0.0
      %2347 = vmatpush2.xpose.msra.mxu0 0.0
      %2348 = vmatprep.mubr.f32.mxu0 0.0
      %2349 = vmatmul.mubr.f32.gmra.mxu0 %v2282
      %v2350 = vpop.f32.mrf.mxu0
      %v2351 = vadd.f32 %v2278, %v2350
      %v2352 = vpop.f32.mrf.mxu0
      %2353 = vdwg.mxu0
      %v2355 = vsel %vm607, %v2351, 0
      %2357 = vmatprep.subr.mxu0 0.0
      %2358 = vmatpush1.msra.mxu0 0.0
      %2359 = vmatprep.subr.mxu0 0.0
      %2360 = vmatpush1.msra.mxu0 0.0
      %2361 = vmatprep.subr.mxu0 0.0
      %2362 = vmatpush1.msra.mxu0 0.0
      %2363 = vmatprep.subr.mxu0 0.0
      %2364 = vmatpush1.msra.mxu0 0.0
      %2365 = vmatprep.subr.mxu0 0.0
      %2366 = vmatpush1.msra.mxu0 0.0
      %2367 = vmatprep.subr.mxu0 0.0
      %2368 = vmatpush1.msra.mxu0 0.0
      %2369 = vmatprep.subr.mxu0 0.0
      %2370 = vmatpush1.msra.mxu0 0.0
      %2371 = vmatprep.subr.mxu0 0.0
      %2372 = vmatpush1.msra.mxu0 0.0
      %2373 = vmatprep.subr.mxu0 0.0
      %2374 = vmatpush1.msra.mxu0 0.0
      %2375 = vmatprep.subr.mxu0 0.0
      %2376 = vmatpush1.msra.mxu0 0.0
      %2377 = vmatprep.subr.mxu0 0.0
      %2378 = vmatpush1.msra.mxu0 0.0
      %2379 = vmatprep.subr.mxu0 0.0
      %2380 = vmatpush1.msra.mxu0 0.0
      %2381 = vmatprep.subr.mxu0 0.0
      %2382 = vmatpush1.msra.mxu0 0.0
      %2383 = vmatprep.subr.mxu0 0.0
      %2384 = vmatpush1.msra.mxu0 0.0
      %2385 = vmatprep.subr.mxu0 0.0
      %2386 = vmatpush1.msra.mxu0 0.0
      %2387 = vmatprep.subr.mxu0 0.0
      %2388 = vmatpush1.msra.mxu0 1.0
      %2389 = vmatprep.subr.mxu0 0.0
      %2390 = vmatpush2.msra.mxu0 0.0
      %2391 = vmatprep.subr.mxu0 0.0
      %2392 = vmatpush2.msra.mxu0 0.0
      %2393 = vmatprep.subr.mxu0 0.0
      %2394 = vmatpush2.msra.mxu0 0.0
      %2395 = vmatprep.subr.mxu0 0.0
      %2396 = vmatpush2.msra.mxu0 0.0
      %2397 = vmatprep.subr.mxu0 0.0
      %2398 = vmatpush2.msra.mxu0 0.0
      %2399 = vmatprep.subr.mxu0 0.0
      %2400 = vmatpush2.msra.mxu0 0.0
      %2401 = vmatprep.subr.mxu0 0.0
      %2402 = vmatpush2.msra.mxu0 0.0
      %2403 = vmatprep.subr.mxu0 0.0
      %2404 = vmatpush2.msra.mxu0 0.0
      %2405 = vmatprep.subr.mxu0 0.0
      %2406 = vmatpush2.msra.mxu0 0.0
      %2407 = vmatprep.subr.mxu0 0.0
      %2408 = vmatpush2.msra.mxu0 0.0
      %2409 = vmatprep.subr.mxu0 0.0
      %2410 = vmatpush2.msra.mxu0 0.0
      %2411 = vmatprep.subr.mxu0 0.0
      %2412 = vmatpush2.msra.mxu0 0.0
      %2413 = vmatprep.subr.mxu0 0.0
      %2414 = vmatpush2.msra.mxu0 0.0
      %2415 = vmatprep.subr.mxu0 0.0
      %2416 = vmatpush2.msra.mxu0 0.0
      %2417 = vmatprep.subr.mxu0 0.0
      %2418 = vmatpush2.msra.mxu0 0.0
      %2419 = vmatprep.subr.mxu0 0.0
      %2420 = vmatpush2.msra.mxu0 0.0
      %2421 = vmatprep.mubr.f32.mxu0 0.0
      %2422 = vmatmul.mubr.f32.gmra.mxu0 %v2355
      %v2423 = vpop.f32.mrf.mxu0
      %v2424 = vadd.f32 1e-05, %v2423
      %v2425 = vpop.f32.mrf.mxu0
      %2426 = vdwg.mxu0
      %v2427 = vrsqrt.pop %v2424
      %2428 = vmatprep.subr.mxu0 0.0
      %2429 = vmatpush1.msra.mxu0 0.0
      %2430 = vmatprep.subr.mxu0 0.0
      %2431 = vmatpush1.msra.mxu0 0.0
      %2432 = vmatprep.subr.mxu0 0.0
      %2433 = vmatpush1.msra.mxu0 0.0
      %2434 = vmatprep.subr.mxu0 0.0
      %2435 = vmatpush1.msra.mxu0 0.0
      %2436 = vmatprep.subr.mxu0 0.0
      %2437 = vmatpush1.msra.mxu0 0.0
      %2438 = vmatprep.subr.mxu0 0.0
      %2439 = vmatpush1.msra.mxu0 0.0
      %2440 = vmatprep.subr.mxu0 0.0
      %2441 = vmatpush1.msra.mxu0 0.0
      %2442 = vmatprep.subr.mxu0 0.0
      %2443 = vmatpush1.msra.mxu0 0.0
      %2444 = vmatprep.subr.mxu0 0.0
      %2445 = vmatpush1.msra.mxu0 0.0
      %2446 = vmatprep.subr.mxu0 0.0
      %2447 = vmatpush1.msra.mxu0 0.0
      %2448 = vmatprep.subr.mxu0 0.0
      %2449 = vmatpush1.msra.mxu0 0.0
      %2450 = vmatprep.subr.mxu0 0.0
      %2451 = vmatpush1.msra.mxu0 0.0
      %2452 = vmatprep.subr.mxu0 0.0
      %2453 = vmatpush1.msra.mxu0 0.0
      %2454 = vmatprep.subr.mxu0 0.0
      %2455 = vmatpush1.msra.mxu0 0.0
      %2456 = vmatprep.subr.mxu0 0.0
      %2457 = vmatpush1.msra.mxu0 0.0
      %2458 = vmatprep.subr.mxu0 0.0
      %2459 = vmatpush1.msra.mxu0 %v2351
      %2460 = vmatprep.subr.mxu0 0.0
      %2461 = vmatpush2.msra.mxu0 0.0
      %2462 = vmatprep.subr.mxu0 0.0
      %2463 = vmatpush2.msra.mxu0 0.0
      %2464 = vmatprep.subr.mxu0 0.0
      %2465 = vmatpush2.msra.mxu0 0.0
      %2466 = vmatprep.subr.mxu0 0.0
      %2467 = vmatpush2.msra.mxu0 0.0
      %2468 = vmatprep.subr.mxu0 0.0
      %2469 = vmatpush2.msra.mxu0 0.0
      %2470 = vmatprep.subr.mxu0 0.0
      %2471 = vmatpush2.msra.mxu0 0.0
      %2472 = vmatprep.subr.mxu0 0.0
      %2473 = vmatpush2.msra.mxu0 0.0
      %2474 = vmatprep.subr.mxu0 0.0
      %2475 = vmatpush2.msra.mxu0 0.0
      %2476 = vmatprep.subr.mxu0 0.0
      %2477 = vmatpush2.msra.mxu0 0.0
      %2478 = vmatprep.subr.mxu0 0.0
      %2479 = vmatpush2.msra.mxu0 0.0
      %2480 = vmatprep.subr.mxu0 0.0
      %2481 = vmatpush2.msra.mxu0 0.0
      %2482 = vmatprep.subr.mxu0 0.0
      %2483 = vmatpush2.msra.mxu0 0.0
      %2484 = vmatprep.subr.mxu0 0.0
      %2485 = vmatpush2.msra.mxu0 0.0
      %2486 = vmatprep.subr.mxu0 0.0
      %2487 = vmatpush2.msra.mxu0 0.0
      %2488 = vmatprep.subr.mxu0 0.0
      %2489 = vmatpush2.msra.mxu0 0.0
      %2490 = vmatprep.subr.mxu0 0.0
      %2491 = vmatpush2.msra.mxu0 0.0
      %2492 = vmatprep.mubr.f32.mxu0 0.0
      %2493 = vmatmul.mubr.f32.gmra.mxu0 %v1501
      %v2494 = vpop.f32.mrf.mxu0
      %v2495 = vadd.f32 1e-05, %v2494
      %v2496 = vpop.f32.mrf.mxu0
      %2497 = vdwg.mxu0
      %v2498 = vrsqrt.pop %v2495
      %2500 = vset.pattern.permute.xlu0 0
      %2501 = vperm.xlu0 %2500, %v2427
      %v2502 = vpop.permute.xlu0 %2501
      %v2504 = vmul.f32 %v2351, %v2502
      %v2505 = vlaneseq
      %v2506 = vshrl.u32 %v2505, 7
      %v2507 = vsub.s32 0, %v2506
      %v2508 = vrot.slane %v2498, %v2507
      %v2509 = vmul.f32 %v2504, %v2508
      %v2510 = vld [vmem:[%s6 + $0x30] sm:$0xff]
      %v2511 = vld [vmem:[%s6 + $0x38] sm:$0xff]
      %v2512 = vld [vmem:[%s6 + $0x40] sm:$0xff]
      %v2513 = vld [vmem:[%s6 + $0x48] sm:$0xff]
      %v2514 = vld [vmem:[%s6 + $0x50] sm:$0xff]
      %v2515 = vld [vmem:[%s6 + $0x58] sm:$0xff]
      %v2516 = vld [vmem:[%s6 + $0x60] sm:$0xff]
      %v2517 = vld [vmem:[%s6 + $0x68] sm:$0xff]
      %v2518 = vld [vmem:[%s6 + $0x70] sm:$0xff]
      %v2519 = vld [vmem:[%s6 + $0x78] sm:$0xff]
      %v2520 = vld [vmem:[%s6 + $0x80] sm:$0xff]
      %v2521 = vld [vmem:[%s6 + $0x88] sm:$0xff]
      %v2522 = vld [vmem:[%s6 + $0x90] sm:$0xff]
      %v2523 = vld [vmem:[%s6 + $0x98] sm:$0xff]
      %v2524 = vld [vmem:[%s6 + $0xa0] sm:$0xff]
      %v2525 = vld [vmem:[%s6 + $0xa8] sm:$0xff]
      %v2526 = vld [vmem:[%s6 + $0xb0] sm:$0xff]
      %v2527 = vld [vmem:[%s6 + $0xb8] sm:$0xff]
      %v2528 = vld [vmem:[%s6 + $0xc0] sm:$0xff]
      %v2529 = vld [vmem:[%s6 + $0xc8] sm:$0xff]
      %v2530 = vld [vmem:[%s6 + $0xd0] sm:$0xff]
      %v2531 = vld [vmem:[%s6 + $0xd8] sm:$0xff]
      %v2532 = vld [vmem:[%s6 + $0xe0] sm:$0xff]
      %v2533 = vld [vmem:[%s6 + $0xe8] sm:$0xff]
      %v2534 = vld [vmem:[%s6 + $0xf0] sm:$0xff]
      %v2535 = vld [vmem:[%s6 + $0xf8] sm:$0xff]
      %v2536 = vld [vmem:[%s6 + $0x100] sm:$0xff]
      %v2537 = vld [vmem:[%s6 + $0x108] sm:$0xff]
      %v2538 = vld [vmem:[%s6 + $0x110] sm:$0xff]
      %v2539 = vld [vmem:[%s6 + $0x118] sm:$0xff]
      %v2540 = vld [vmem:[%s6 + $0x120] sm:$0xff]
      %v2541 = vld [vmem:[%s6 + $0x128] sm:$0xff]
      %v2542 = vld [vmem:[%s6 + $0x130] sm:$0xff]
      %v2543 = vld [vmem:[%s6 + $0x138] sm:$0xff]
      %v2544 = vld [vmem:[%s6 + $0x140] sm:$0xff]
      %v2545 = vld [vmem:[%s6 + $0x148] sm:$0xff]
      %v2547 = vsel %vm607, %v1584, 0
      %2549 = vmatprep.subr.mxu0 0.0
      %2550 = vmatpush1.msra.mxu0 0.0
      %2551 = vmatprep.subr.mxu0 0.0
      %2552 = vmatpush1.msra.mxu0 0.0
      %2553 = vmatprep.subr.mxu0 0.0
      %2554 = vmatpush1.msra.mxu0 0.0
      %2555 = vmatprep.subr.mxu0 0.0
      %2556 = vmatpush1.msra.mxu0 0.0
      %2557 = vmatprep.subr.mxu0 0.0
      %2558 = vmatpush1.msra.mxu0 0.0
      %2559 = vmatprep.subr.mxu0 0.0
      %2560 = vmatpush1.msra.mxu0 0.0
      %2561 = vmatprep.subr.mxu0 0.0
      %2562 = vmatpush1.msra.mxu0 0.0
      %2563 = vmatprep.subr.mxu0 0.0
      %2564 = vmatpush1.msra.mxu0 0.0
      %2565 = vmatprep.subr.mxu0 0.0
      %2566 = vmatpush1.msra.mxu0 0.0
      %2567 = vmatprep.subr.mxu0 0.0
      %2568 = vmatpush1.msra.mxu0 0.0
      %2569 = vmatprep.subr.mxu0 0.0
      %2570 = vmatpush1.msra.mxu0 0.0
      %2571 = vmatprep.subr.mxu0 0.0
      %2572 = vmatpush1.msra.mxu0 0.0
      %2573 = vmatprep.subr.mxu0 0.0
      %2574 = vmatpush1.msra.mxu0 0.0
      %2575 = vmatprep.subr.mxu0 0.0
      %2576 = vmatpush1.msra.mxu0 0.0
      %2577 = vmatprep.subr.mxu0 0.0
      %2578 = vmatpush1.msra.mxu0 0.0
      %2579 = vmatprep.subr.mxu0 0.0
      %2580 = vmatpush1.msra.mxu0 %v566
      %2581 = vmatprep.subr.mxu0 0.0
      %2582 = vmatpush2.msra.mxu0 0.0
      %2583 = vmatprep.subr.mxu0 0.0
      %2584 = vmatpush2.msra.mxu0 0.0
      %2585 = vmatprep.subr.mxu0 0.0
      %2586 = vmatpush2.msra.mxu0 0.0
      %2587 = vmatprep.subr.mxu0 0.0
      %2588 = vmatpush2.msra.mxu0 0.0
      %2589 = vmatprep.subr.mxu0 0.0
      %2590 = vmatpush2.msra.mxu0 0.0
      %2591 = vmatprep.subr.mxu0 0.0
      %2592 = vmatpush2.msra.mxu0 0.0
      %2593 = vmatprep.subr.mxu0 0.0
      %2594 = vmatpush2.msra.mxu0 0.0
      %2595 = vmatprep.subr.mxu0 0.0
      %2596 = vmatpush2.msra.mxu0 0.0
      %2597 = vmatprep.subr.mxu0 0.0
      %2598 = vmatpush2.msra.mxu0 0.0
      %2599 = vmatprep.subr.mxu0 0.0
      %2600 = vmatpush2.msra.mxu0 0.0
      %2601 = vmatprep.subr.mxu0 0.0
      %2602 = vmatpush2.msra.mxu0 0.0
      %2603 = vmatprep.subr.mxu0 0.0
      %2604 = vmatpush2.msra.mxu0 0.0
      %2605 = vmatprep.subr.mxu0 0.0
      %2606 = vmatpush2.msra.mxu0 0.0
      %2607 = vmatprep.subr.mxu0 0.0
      %2608 = vmatpush2.msra.mxu0 0.0
      %2609 = vmatprep.subr.mxu0 0.0
      %2610 = vmatpush2.msra.mxu0 0.0
      %2611 = vmatprep.subr.mxu0 0.0
      %2612 = vmatpush2.msra.mxu0 0.0
      %2613 = vmatprep.mubr.f32.mxu0 0.0
      %2614 = vmatmul.mubr.f32.gmra.mxu0 %v2547
      %v2615 = vpop.f32.mrf.mxu0
      %v2616 = vadd.f32 0.0, %v2615
      %v2617 = vpop.f32.mrf.mxu0
      %2618 = vdwg.mxu0
      %v2619 = vlaneseq
      %v2620 = vshrl.u32 %v2619, 7
      %v2621 = vsub.s32 3, %v2620
      %v2622 = vrot.slane %v573, %v2621
      %v2624 = vsel %vm487, %v2616, 0
      %2626 = vmatprep.subr.mxu0 0.0
      %2627 = vmatpush1.msra.mxu0 0.0
      %2628 = vmatprep.subr.mxu0 0.0
      %2629 = vmatpush1.msra.mxu0 0.0
      %2630 = vmatprep.subr.mxu0 0.0
      %2631 = vmatpush1.msra.mxu0 0.0
      %2632 = vmatprep.subr.mxu0 0.0
      %2633 = vmatpush1.msra.mxu0 0.0
      %2634 = vmatprep.subr.mxu0 0.0
      %2635 = vmatpush1.msra.mxu0 0.0
      %2636 = vmatprep.subr.mxu0 0.0
      %2637 = vmatpush1.msra.mxu0 0.0
      %2638 = vmatprep.subr.mxu0 0.0
      %2639 = vmatpush1.msra.mxu0 0.0
      %2640 = vmatprep.subr.mxu0 0.0
      %2641 = vmatpush1.msra.mxu0 0.0
      %2642 = vmatprep.subr.mxu0 0.0
      %2643 = vmatpush1.msra.mxu0 0.0
      %2644 = vmatprep.subr.mxu0 0.0
      %2645 = vmatpush1.msra.mxu0 0.0
      %2646 = vmatprep.subr.mxu0 0.0
      %2647 = vmatpush1.msra.mxu0 0.0
      %2648 = vmatprep.subr.mxu0 0.0
      %2649 = vmatpush1.msra.mxu0 0.0
      %2650 = vmatprep.subr.mxu0 0.0
      %2651 = vmatpush1.msra.mxu0 %v2513
      %2652 = vmatprep.subr.mxu0 0.0
      %2653 = vmatpush1.msra.mxu0 %v2512
      %2654 = vmatprep.subr.mxu0 0.0
      %2655 = vmatpush1.msra.mxu0 %v2511
      %2656 = vmatprep.subr.mxu0 0.0
      %2657 = vmatpush1.msra.mxu0 %v2510
      %2658 = vmatprep.subr.mxu0 0.0
      %2659 = vmatpush2.msra.mxu0 0.0
      %2660 = vmatprep.subr.mxu0 0.0
      %2661 = vmatpush2.msra.mxu0 0.0
      %2662 = vmatprep.subr.mxu0 0.0
      %2663 = vmatpush2.msra.mxu0 0.0
      %2664 = vmatprep.subr.mxu0 0.0
      %2665 = vmatpush2.msra.mxu0 0.0
      %2666 = vmatprep.subr.mxu0 0.0
      %2667 = vmatpush2.msra.mxu0 0.0
      %2668 = vmatprep.subr.mxu0 0.0
      %2669 = vmatpush2.msra.mxu0 0.0
      %2670 = vmatprep.subr.mxu0 0.0
      %2671 = vmatpush2.msra.mxu0 0.0
      %2672 = vmatprep.subr.mxu0 0.0
      %2673 = vmatpush2.msra.mxu0 0.0
      %2674 = vmatprep.subr.mxu0 0.0
      %2675 = vmatpush2.msra.mxu0 0.0
      %2676 = vmatprep.subr.mxu0 0.0
      %2677 = vmatpush2.msra.mxu0 0.0
      %2678 = vmatprep.subr.mxu0 0.0
      %2679 = vmatpush2.msra.mxu0 0.0
      %2680 = vmatprep.subr.mxu0 0.0
      %2681 = vmatpush2.msra.mxu0 0.0
      %2682 = vmatprep.subr.mxu0 0.0
      %2683 = vmatpush2.msra.mxu0 0.0
      %2684 = vmatprep.subr.mxu0 0.0
      %2685 = vmatpush2.msra.mxu0 0.0
      %2686 = vmatprep.subr.mxu0 0.0
      %2687 = vmatpush2.msra.mxu0 0.0
      %2688 = vmatprep.subr.mxu0 0.0
      %2689 = vmatpush2.msra.mxu0 0.0
      %2690 = vmatprep.mubr.f32.mxu0 0.0
      %2691 = vmatmul.mubr.f32.gmra.mxu0 %v2624
      %v2692 = vpop.f32.mrf.mxu0
      %v2693 = vadd.f32 %v2622, %v2692
      %v2694 = vpop.f32.mrf.mxu0
      %2695 = vdwg.mxu0
      %vm2696 = vcmp.ge.f32.partialorder %v2693, 0.0
      %v2697 = vmul.f32 %v2693, 0.01
      %v2698 = vsel %vm2696, %v2693, %v2697
      %v2699 = vlaneseq
      %v2700 = vshrl.u32 %v2699, 7
      %v2701 = vsub.s32 7, %v2700
      %v2702 = vrot.slane %v573, %v2701
      %v2704 = vsel %vm487, %v2698, 0
      %2706 = vmatprep.subr.mxu0 0.0
      %2707 = vmatpush1.msra.mxu0 0.0
      %2708 = vmatprep.subr.mxu0 0.0
      %2709 = vmatpush1.msra.mxu0 0.0
      %2710 = vmatprep.subr.mxu0 0.0
      %2711 = vmatpush1.msra.mxu0 0.0
      %2712 = vmatprep.subr.mxu0 0.0
      %2713 = vmatpush1.msra.mxu0 0.0
      %2714 = vmatprep.subr.mxu0 0.0
      %2715 = vmatpush1.msra.mxu0 0.0
      %2716 = vmatprep.subr.mxu0 0.0
      %2717 = vmatpush1.msra.mxu0 0.0
      %2718 = vmatprep.subr.mxu0 0.0
      %2719 = vmatpush1.msra.mxu0 0.0
      %2720 = vmatprep.subr.mxu0 0.0
      %2721 = vmatpush1.msra.mxu0 0.0
      %2722 = vmatprep.subr.mxu0 0.0
      %2723 = vmatpush1.msra.mxu0 0.0
      %2724 = vmatprep.subr.mxu0 0.0
      %2725 = vmatpush1.msra.mxu0 0.0
      %2726 = vmatprep.subr.mxu0 0.0
      %2727 = vmatpush1.msra.mxu0 0.0
      %2728 = vmatprep.subr.mxu0 0.0
      %2729 = vmatpush1.msra.mxu0 0.0
      %2730 = vmatprep.subr.mxu0 0.0
      %2731 = vmatpush1.msra.mxu0 %v2529
      %2732 = vmatprep.subr.mxu0 0.0
      %2733 = vmatpush1.msra.mxu0 %v2528
      %2734 = vmatprep.subr.mxu0 0.0
      %2735 = vmatpush1.msra.mxu0 %v2527
      %2736 = vmatprep.subr.mxu0 0.0
      %2737 = vmatpush1.msra.mxu0 %v2526
      %2738 = vmatprep.subr.mxu0 0.0
      %2739 = vmatpush2.msra.mxu0 0.0
      %2740 = vmatprep.subr.mxu0 0.0
      %2741 = vmatpush2.msra.mxu0 0.0
      %2742 = vmatprep.subr.mxu0 0.0
      %2743 = vmatpush2.msra.mxu0 0.0
      %2744 = vmatprep.subr.mxu0 0.0
      %2745 = vmatpush2.msra.mxu0 0.0
      %2746 = vmatprep.subr.mxu0 0.0
      %2747 = vmatpush2.msra.mxu0 0.0
      %2748 = vmatprep.subr.mxu0 0.0
      %2749 = vmatpush2.msra.mxu0 0.0
      %2750 = vmatprep.subr.mxu0 0.0
      %2751 = vmatpush2.msra.mxu0 0.0
      %2752 = vmatprep.subr.mxu0 0.0
      %2753 = vmatpush2.msra.mxu0 0.0
      %2754 = vmatprep.subr.mxu0 0.0
      %2755 = vmatpush2.msra.mxu0 0.0
      %2756 = vmatprep.subr.mxu0 0.0
      %2757 = vmatpush2.msra.mxu0 0.0
      %2758 = vmatprep.subr.mxu0 0.0
      %2759 = vmatpush2.msra.mxu0 0.0
      %2760 = vmatprep.subr.mxu0 0.0
      %2761 = vmatpush2.msra.mxu0 0.0
      %2762 = vmatprep.subr.mxu0 0.0
      %2763 = vmatpush2.msra.mxu0 0.0
      %2764 = vmatprep.subr.mxu0 0.0
      %2765 = vmatpush2.msra.mxu0 0.0
      %2766 = vmatprep.subr.mxu0 0.0
      %2767 = vmatpush2.msra.mxu0 0.0
      %2768 = vmatprep.subr.mxu0 0.0
      %2769 = vmatpush2.msra.mxu0 0.0
      %2770 = vmatprep.mubr.f32.mxu0 0.0
      %2771 = vmatmul.mubr.f32.gmra.mxu0 %v2704
      %v2772 = vpop.f32.mrf.mxu0
      %v2773 = vadd.f32 %v2702, %v2772
      %v2774 = vpop.f32.mrf.mxu0
      %2775 = vdwg.mxu0
      %v2776 = vlaneseq
      %v2777 = vshrl.u32 %v2776, 7
      %v2778 = vsub.s32 0, %v2777
      %v2779 = vrot.slane %v574, %v2778
      %v2781 = vsel %vm487, %v566, 0
      %2783 = vmatprep.subr.mxu0 0.0
      %2784 = vmatpush1.msra.mxu0 0.0
      %2785 = vmatprep.subr.mxu0 0.0
      %2786 = vmatpush1.msra.mxu0 0.0
      %2787 = vmatprep.subr.mxu0 0.0
      %2788 = vmatpush1.msra.mxu0 0.0
      %2789 = vmatprep.subr.mxu0 0.0
      %2790 = vmatpush1.msra.mxu0 0.0
      %2791 = vmatprep.subr.mxu0 0.0
      %2792 = vmatpush1.msra.mxu0 0.0
      %2793 = vmatprep.subr.mxu0 0.0
      %2794 = vmatpush1.msra.mxu0 0.0
      %2795 = vmatprep.subr.mxu0 0.0
      %2796 = vmatpush1.msra.mxu0 0.0
      %2797 = vmatprep.subr.mxu0 0.0
      %2798 = vmatpush1.msra.mxu0 0.0
      %2799 = vmatprep.subr.mxu0 0.0
      %2800 = vmatpush1.msra.mxu0 0.0
      %2801 = vmatprep.subr.mxu0 0.0
      %2802 = vmatpush1.msra.mxu0 0.0
      %2803 = vmatprep.subr.mxu0 0.0
      %2804 = vmatpush1.msra.mxu0 0.0
      %2805 = vmatprep.subr.mxu0 0.0
      %2806 = vmatpush1.msra.mxu0 0.0
      %2807 = vmatprep.subr.mxu0 0.0
      %2808 = vmatpush1.msra.mxu0 %v2533
      %2809 = vmatprep.subr.mxu0 0.0
      %2810 = vmatpush1.msra.mxu0 %v2532
      %2811 = vmatprep.subr.mxu0 0.0
      %2812 = vmatpush1.msra.mxu0 %v2531
      %2813 = vmatprep.subr.mxu0 0.0
      %2814 = vmatpush1.msra.mxu0 %v2530
      %2815 = vmatprep.subr.mxu0 0.0
      %2816 = vmatpush2.msra.mxu0 0.0
      %2817 = vmatprep.subr.mxu0 0.0
      %2818 = vmatpush2.msra.mxu0 0.0
      %2819 = vmatprep.subr.mxu0 0.0
      %2820 = vmatpush2.msra.mxu0 0.0
      %2821 = vmatprep.subr.mxu0 0.0
      %2822 = vmatpush2.msra.mxu0 0.0
      %2823 = vmatprep.subr.mxu0 0.0
      %2824 = vmatpush2.msra.mxu0 0.0
      %2825 = vmatprep.subr.mxu0 0.0
      %2826 = vmatpush2.msra.mxu0 0.0
      %2827 = vmatprep.subr.mxu0 0.0
      %2828 = vmatpush2.msra.mxu0 0.0
      %2829 = vmatprep.subr.mxu0 0.0
      %2830 = vmatpush2.msra.mxu0 0.0
      %2831 = vmatprep.subr.mxu0 0.0
      %2832 = vmatpush2.msra.mxu0 0.0
      %2833 = vmatprep.subr.mxu0 0.0
      %2834 = vmatpush2.msra.mxu0 0.0
      %2835 = vmatprep.subr.mxu0 0.0
      %2836 = vmatpush2.msra.mxu0 0.0
      %2837 = vmatprep.subr.mxu0 0.0
      %2838 = vmatpush2.msra.mxu0 0.0
      %2839 = vmatprep.subr.mxu0 0.0
      %2840 = vmatpush2.msra.mxu0 0.0
      %2841 = vmatprep.subr.mxu0 0.0
      %2842 = vmatpush2.msra.mxu0 0.0
      %2843 = vmatprep.subr.mxu0 0.0
      %2844 = vmatpush2.msra.mxu0 0.0
      %2845 = vmatprep.subr.mxu0 0.0
      %2846 = vmatpush2.msra.mxu0 0.0
      %2847 = vmatprep.mubr.f32.mxu0 0.0
      %2848 = vmatmul.mubr.f32.gmra.mxu0 %v2781
      %v2849 = vpop.f32.mrf.mxu0
      %v2850 = vadd.f32 %v2779, %v2849
      %v2851 = vpop.f32.mrf.mxu0
      %2852 = vdwg.mxu0
      %v2853 = vadd.f32 %v2773, %v2850
      %v2854 = vxor.u32 %v2853, 2147483648
      %v2855 = vmul.f32 %v2854, 1.442695
      %v2856 = vpow.pop %v2855
      %v2857 = vadd.f32 %v2856, 1.0
      %v2858 = vrcp.pop %v2857
      %v2859 = vmul.f32 1.0, %v2858
      %2861 = vrot.lane.b32.xlu0 %v2850, 64
      %v2862 = vpop.permute.xlu0 %2861
      %v2864 = vmul.f32 %v2859, %v2862
      %2866 = vrot.lane.b32.xlu0 %v2864, 64
      %v2867 = vpop.permute.xlu0 %2866
      %v2869 = vadd.f32 %v2773, %v2867
      %v2870 = vtanh.pop %v2869
      %v2871 = vsub.f32 1.0, %v2859
      %2873 = vrot.lane.b32.xlu0 %v2870, 96
      %v2874 = vpop.permute.xlu0 %2873
      %v2876 = vmul.f32 %v2871, %v2874
      %2877 = vrot.lane.b32.xlu0 %v566, 32
      %v2878 = vpop.permute.xlu0 %2877
      %v2880 = vmul.f32 %v2859, %v2878
      %v2881 = vadd.f32 %v2876, %v2880
      %2883 = vrot.lane.b32.xlu0 %v2881, 96
      %v2884 = vpop.permute.xlu0 %2883
      %2886 = vmatprep.subr.mxu0 0.0
      %2887 = vmatpush1.msra.mxu0 0.0
      %2888 = vmatprep.subr.mxu0 0.0
      %2889 = vmatpush1.msra.mxu0 0.0
      %2890 = vmatprep.subr.mxu0 0.0
      %2891 = vmatpush1.msra.mxu0 0.0
      %2892 = vmatprep.subr.mxu0 0.0
      %2893 = vmatpush1.msra.mxu0 0.0
      %2894 = vmatprep.subr.mxu0 0.0
      %2895 = vmatpush1.msra.mxu0 0.0
      %2896 = vmatprep.subr.mxu0 0.0
      %2897 = vmatpush1.msra.mxu0 0.0
      %2898 = vmatprep.subr.mxu0 0.0
      %2899 = vmatpush1.msra.mxu0 0.0
      %2900 = vmatprep.subr.mxu0 0.0
      %2901 = vmatpush1.msra.mxu0 0.0
      %2902 = vmatprep.subr.mxu0 0.0
      %2903 = vmatpush1.msra.mxu0 0.0
      %2904 = vmatprep.subr.mxu0 0.0
      %2905 = vmatpush1.msra.mxu0 0.0
      %2906 = vmatprep.subr.mxu0 0.0
      %2907 = vmatpush1.msra.mxu0 0.0
      %2908 = vmatprep.subr.mxu0 0.0
      %2909 = vmatpush1.msra.mxu0 0.0
      %2910 = vmatprep.subr.mxu0 0.0
      %2911 = vmatpush1.msra.mxu0 0.0
      %2912 = vmatprep.subr.mxu0 0.0
      %2913 = vmatpush1.msra.mxu0 0.0
      %2914 = vmatprep.subr.mxu0 0.0
      %2915 = vmatpush1.msra.mxu0 0.0
      %2916 = vmatprep.subr.mxu0 0.0
      %2917 = vmatpush1.msra.mxu0 %v2884
      %2918 = vmatprep.subr.mxu0 0.0
      %2919 = vmatpush2.msra.mxu0 0.0
      %2920 = vmatprep.subr.mxu0 0.0
      %2921 = vmatpush2.msra.mxu0 0.0
      %2922 = vmatprep.subr.mxu0 0.0
      %2923 = vmatpush2.msra.mxu0 0.0
      %2924 = vmatprep.subr.mxu0 0.0
      %2925 = vmatpush2.msra.mxu0 0.0
      %2926 = vmatprep.subr.mxu0 0.0
      %2927 = vmatpush2.msra.mxu0 0.0
      %2928 = vmatprep.subr.mxu0 0.0
      %2929 = vmatpush2.msra.mxu0 0.0
      %2930 = vmatprep.subr.mxu0 0.0
      %2931 = vmatpush2.msra.mxu0 0.0
      %2932 = vmatprep.subr.mxu0 0.0
      %2933 = vmatpush2.msra.mxu0 0.0
      %2934 = vmatprep.subr.mxu0 0.0
      %2935 = vmatpush2.msra.mxu0 0.0
      %2936 = vmatprep.subr.mxu0 0.0
      %2937 = vmatpush2.msra.mxu0 0.0
      %2938 = vmatprep.subr.mxu0 0.0
      %2939 = vmatpush2.msra.mxu0 0.0
      %2940 = vmatprep.subr.mxu0 0.0
      %2941 = vmatpush2.msra.mxu0 0.0
      %2942 = vmatprep.subr.mxu0 0.0
      %2943 = vmatpush2.msra.mxu0 0.0
      %2944 = vmatprep.subr.mxu0 0.0
      %2945 = vmatpush2.msra.mxu0 0.0
      %2946 = vmatprep.subr.mxu0 0.0
      %2947 = vmatpush2.msra.mxu0 0.0
      %2948 = vmatprep.subr.mxu0 0.0
      %2949 = vmatpush2.msra.mxu0 0.0
      %2950 = vmatprep.mubr.f32.mxu0 0.0
      %2951 = vmatmul.mubr.f32.gmra.mxu0 %v2547
      %v2952 = vpop.f32.mrf.mxu0
      %v2953 = vadd.f32 0.0, %v2952
      %v2954 = vpop.f32.mrf.mxu0
      %2955 = vdwg.mxu0
      %v2956 = vlaneseq
      %v2957 = vshrl.u32 %v2956, 7
      %v2958 = vsub.s32 4, %v2957
      %v2959 = vrot.slane %v573, %v2958
      %v2961 = vsel %vm487, %v2953, 0
      %2963 = vmatprep.subr.mxu0 0.0
      %2964 = vmatpush1.msra.mxu0 0.0
      %2965 = vmatprep.subr.mxu0 0.0
      %2966 = vmatpush1.msra.mxu0 0.0
      %2967 = vmatprep.subr.mxu0 0.0
      %2968 = vmatpush1.msra.mxu0 0.0
      %2969 = vmatprep.subr.mxu0 0.0
      %2970 = vmatpush1.msra.mxu0 0.0
      %2971 = vmatprep.subr.mxu0 0.0
      %2972 = vmatpush1.msra.mxu0 0.0
      %2973 = vmatprep.subr.mxu0 0.0
      %2974 = vmatpush1.msra.mxu0 0.0
      %2975 = vmatprep.subr.mxu0 0.0
      %2976 = vmatpush1.msra.mxu0 0.0
      %2977 = vmatprep.subr.mxu0 0.0
      %2978 = vmatpush1.msra.mxu0 0.0
      %2979 = vmatprep.subr.mxu0 0.0
      %2980 = vmatpush1.msra.mxu0 0.0
      %2981 = vmatprep.subr.mxu0 0.0
      %2982 = vmatpush1.msra.mxu0 0.0
      %2983 = vmatprep.subr.mxu0 0.0
      %2984 = vmatpush1.msra.mxu0 0.0
      %2985 = vmatprep.subr.mxu0 0.0
      %2986 = vmatpush1.msra.mxu0 0.0
      %2987 = vmatprep.subr.mxu0 0.0
      %2988 = vmatpush1.msra.mxu0 %v2517
      %2989 = vmatprep.subr.mxu0 0.0
      %2990 = vmatpush1.msra.mxu0 %v2516
      %2991 = vmatprep.subr.mxu0 0.0
      %2992 = vmatpush1.msra.mxu0 %v2515
      %2993 = vmatprep.subr.mxu0 0.0
      %2994 = vmatpush1.msra.mxu0 %v2514
      %2995 = vmatprep.subr.mxu0 0.0
      %2996 = vmatpush2.msra.mxu0 0.0
      %2997 = vmatprep.subr.mxu0 0.0
      %2998 = vmatpush2.msra.mxu0 0.0
      %2999 = vmatprep.subr.mxu0 0.0
      %3000 = vmatpush2.msra.mxu0 0.0
      %3001 = vmatprep.subr.mxu0 0.0
      %3002 = vmatpush2.msra.mxu0 0.0
      %3003 = vmatprep.subr.mxu0 0.0
      %3004 = vmatpush2.msra.mxu0 0.0
      %3005 = vmatprep.subr.mxu0 0.0
      %3006 = vmatpush2.msra.mxu0 0.0
      %3007 = vmatprep.subr.mxu0 0.0
      %3008 = vmatpush2.msra.mxu0 0.0
      %3009 = vmatprep.subr.mxu0 0.0
      %3010 = vmatpush2.msra.mxu0 0.0
      %3011 = vmatprep.subr.mxu0 0.0
      %3012 = vmatpush2.msra.mxu0 0.0
      %3013 = vmatprep.subr.mxu0 0.0
      %3014 = vmatpush2.msra.mxu0 0.0
      %3015 = vmatprep.subr.mxu0 0.0
      %3016 = vmatpush2.msra.mxu0 0.0
      %3017 = vmatprep.subr.mxu0 0.0
      %3018 = vmatpush2.msra.mxu0 0.0
      %3019 = vmatprep.subr.mxu0 0.0
      %3020 = vmatpush2.msra.mxu0 0.0
      %3021 = vmatprep.subr.mxu0 0.0
      %3022 = vmatpush2.msra.mxu0 0.0
      %3023 = vmatprep.subr.mxu0 0.0
      %3024 = vmatpush2.msra.mxu0 0.0
      %3025 = vmatprep.subr.mxu0 0.0
      %3026 = vmatpush2.msra.mxu0 0.0
      %3027 = vmatprep.mubr.f32.mxu0 0.0
      %3028 = vmatmul.mubr.f32.gmra.mxu0 %v2961
      %v3029 = vpop.f32.mrf.mxu0
      %v3030 = vadd.f32 %v2959, %v3029
      %v3031 = vpop.f32.mrf.mxu0
      %3032 = vdwg.mxu0
      %vm3033 = vcmp.ge.f32.partialorder %v3030, 0.0
      %v3034 = vmul.f32 %v3030, 0.01
      %v3035 = vsel %vm3033, %v3030, %v3034
      %v3037 = vsel %vm487, %v3035, 0
      %3039 = vmatprep.subr.mxu0 0.0
      %3040 = vmatpush1.msra.mxu0 0.0
      %3041 = vmatprep.subr.mxu0 0.0
      %3042 = vmatpush1.msra.mxu0 0.0
      %3043 = vmatprep.subr.mxu0 0.0
      %3044 = vmatpush1.msra.mxu0 0.0
      %3045 = vmatprep.subr.mxu0 0.0
      %3046 = vmatpush1.msra.mxu0 0.0
      %3047 = vmatprep.subr.mxu0 0.0
      %3048 = vmatpush1.msra.mxu0 0.0
      %3049 = vmatprep.subr.mxu0 0.0
      %3050 = vmatpush1.msra.mxu0 0.0
      %3051 = vmatprep.subr.mxu0 0.0
      %3052 = vmatpush1.msra.mxu0 0.0
      %3053 = vmatprep.subr.mxu0 0.0
      %3054 = vmatpush1.msra.mxu0 0.0
      %3055 = vmatprep.subr.mxu0 0.0
      %3056 = vmatpush1.msra.mxu0 0.0
      %3057 = vmatprep.subr.mxu0 0.0
      %3058 = vmatpush1.msra.mxu0 0.0
      %3059 = vmatprep.subr.mxu0 0.0
      %3060 = vmatpush1.msra.mxu0 0.0
      %3061 = vmatprep.subr.mxu0 0.0
      %3062 = vmatpush1.msra.mxu0 0.0
      %3063 = vmatprep.subr.mxu0 0.0
      %3064 = vmatpush1.msra.mxu0 %v2529
      %3065 = vmatprep.subr.mxu0 0.0
      %3066 = vmatpush1.msra.mxu0 %v2528
      %3067 = vmatprep.subr.mxu0 0.0
      %3068 = vmatpush1.msra.mxu0 %v2527
      %3069 = vmatprep.subr.mxu0 0.0
      %3070 = vmatpush1.msra.mxu0 %v2526
      %3071 = vmatprep.subr.mxu0 0.0
      %3072 = vmatpush2.msra.mxu0 0.0
      %3073 = vmatprep.subr.mxu0 0.0
      %3074 = vmatpush2.msra.mxu0 0.0
      %3075 = vmatprep.subr.mxu0 0.0
      %3076 = vmatpush2.msra.mxu0 0.0
      %3077 = vmatprep.subr.mxu0 0.0
      %3078 = vmatpush2.msra.mxu0 0.0
      %3079 = vmatprep.subr.mxu0 0.0
      %3080 = vmatpush2.msra.mxu0 0.0
      %3081 = vmatprep.subr.mxu0 0.0
      %3082 = vmatpush2.msra.mxu0 0.0
      %3083 = vmatprep.subr.mxu0 0.0
      %3084 = vmatpush2.msra.mxu0 0.0
      %3085 = vmatprep.subr.mxu0 0.0
      %3086 = vmatpush2.msra.mxu0 0.0
      %3087 = vmatprep.subr.mxu0 0.0
      %3088 = vmatpush2.msra.mxu0 0.0
      %3089 = vmatprep.subr.mxu0 0.0
      %3090 = vmatpush2.msra.mxu0 0.0
      %3091 = vmatprep.subr.mxu0 0.0
      %3092 = vmatpush2.msra.mxu0 0.0
      %3093 = vmatprep.subr.mxu0 0.0
      %3094 = vmatpush2.msra.mxu0 0.0
      %3095 = vmatprep.subr.mxu0 0.0
      %3096 = vmatpush2.msra.mxu0 0.0
      %3097 = vmatprep.subr.mxu0 0.0
      %3098 = vmatpush2.msra.mxu0 0.0
      %3099 = vmatprep.subr.mxu0 0.0
      %3100 = vmatpush2.msra.mxu0 0.0
      %3101 = vmatprep.subr.mxu0 0.0
      %3102 = vmatpush2.msra.mxu0 0.0
      %3103 = vmatprep.mubr.f32.mxu0 0.0
      %3104 = vmatmul.mubr.f32.gmra.mxu0 %v3037
      %v3105 = vpop.f32.mrf.mxu0
      %v3106 = vadd.f32 %v2702, %v3105
      %v3107 = vpop.f32.mrf.mxu0
      %3108 = vdwg.mxu0
      %v3109 = vsel %vm487, %v2884, 0
      %3111 = vmatprep.subr.mxu0 0.0
      %3112 = vmatpush1.msra.mxu0 0.0
      %3113 = vmatprep.subr.mxu0 0.0
      %3114 = vmatpush1.msra.mxu0 0.0
      %3115 = vmatprep.subr.mxu0 0.0
      %3116 = vmatpush1.msra.mxu0 0.0
      %3117 = vmatprep.subr.mxu0 0.0
      %3118 = vmatpush1.msra.mxu0 0.0
      %3119 = vmatprep.subr.mxu0 0.0
      %3120 = vmatpush1.msra.mxu0 0.0
      %3121 = vmatprep.subr.mxu0 0.0
      %3122 = vmatpush1.msra.mxu0 0.0
      %3123 = vmatprep.subr.mxu0 0.0
      %3124 = vmatpush1.msra.mxu0 0.0
      %3125 = vmatprep.subr.mxu0 0.0
      %3126 = vmatpush1.msra.mxu0 0.0
      %3127 = vmatprep.subr.mxu0 0.0
      %3128 = vmatpush1.msra.mxu0 0.0
      %3129 = vmatprep.subr.mxu0 0.0
      %3130 = vmatpush1.msra.mxu0 0.0
      %3131 = vmatprep.subr.mxu0 0.0
      %3132 = vmatpush1.msra.mxu0 0.0
      %3133 = vmatprep.subr.mxu0 0.0
      %3134 = vmatpush1.msra.mxu0 0.0
      %3135 = vmatprep.subr.mxu0 0.0
      %3136 = vmatpush1.msra.mxu0 %v2533
      %3137 = vmatprep.subr.mxu0 0.0
      %3138 = vmatpush1.msra.mxu0 %v2532
      %3139 = vmatprep.subr.mxu0 0.0
      %3140 = vmatpush1.msra.mxu0 %v2531
      %3141 = vmatprep.subr.mxu0 0.0
      %3142 = vmatpush1.msra.mxu0 %v2530
      %3143 = vmatprep.subr.mxu0 0.0
      %3144 = vmatpush2.msra.mxu0 0.0
      %3145 = vmatprep.subr.mxu0 0.0
      %3146 = vmatpush2.msra.mxu0 0.0
      %3147 = vmatprep.subr.mxu0 0.0
      %3148 = vmatpush2.msra.mxu0 0.0
      %3149 = vmatprep.subr.mxu0 0.0
      %3150 = vmatpush2.msra.mxu0 0.0
      %3151 = vmatprep.subr.mxu0 0.0
      %3152 = vmatpush2.msra.mxu0 0.0
      %3153 = vmatprep.subr.mxu0 0.0
      %3154 = vmatpush2.msra.mxu0 0.0
      %3155 = vmatprep.subr.mxu0 0.0
      %3156 = vmatpush2.msra.mxu0 0.0
      %3157 = vmatprep.subr.mxu0 0.0
      %3158 = vmatpush2.msra.mxu0 0.0
      %3159 = vmatprep.subr.mxu0 0.0
      %3160 = vmatpush2.msra.mxu0 0.0
      %3161 = vmatprep.subr.mxu0 0.0
      %3162 = vmatpush2.msra.mxu0 0.0
      %3163 = vmatprep.subr.mxu0 0.0
      %3164 = vmatpush2.msra.mxu0 0.0
      %3165 = vmatprep.subr.mxu0 0.0
      %3166 = vmatpush2.msra.mxu0 0.0
      %3167 = vmatprep.subr.mxu0 0.0
      %3168 = vmatpush2.msra.mxu0 0.0
      %3169 = vmatprep.subr.mxu0 0.0
      %3170 = vmatpush2.msra.mxu0 0.0
      %3171 = vmatprep.subr.mxu0 0.0
      %3172 = vmatpush2.msra.mxu0 0.0
      %3173 = vmatprep.subr.mxu0 0.0
      %3174 = vmatpush2.msra.mxu0 0.0
      %3175 = vmatprep.mubr.f32.mxu0 0.0
      %3176 = vmatmul.mubr.f32.gmra.mxu0 %v3109
      %v3177 = vpop.f32.mrf.mxu0
      %v3178 = vadd.f32 %v2779, %v3177
      %v3179 = vpop.f32.mrf.mxu0
      %3180 = vdwg.mxu0
      %v3181 = vadd.f32 %v3106, %v3178
      %v3182 = vxor.u32 %v3181, 2147483648
      %v3183 = vmul.f32 %v3182, 1.442695
      %v3184 = vpow.pop %v3183
      %v3185 = vadd.f32 %v3184, 1.0
      %v3186 = vrcp.pop %v3185
      %v3187 = vmul.f32 1.0, %v3186
      %3189 = vrot.lane.b32.xlu0 %v3178, 64
      %v3190 = vpop.permute.xlu0 %3189
      %v3192 = vmul.f32 %v3187, %v3190
      %3194 = vrot.lane.b32.xlu0 %v3192, 64
      %v3195 = vpop.permute.xlu0 %3194
      %v3197 = vadd.f32 %v3106, %v3195
      %v3198 = vtanh.pop %v3197
      %v3199 = vsub.f32 1.0, %v3187
      %3201 = vrot.lane.b32.xlu0 %v3198, 96
      %v3202 = vpop.permute.xlu0 %3201
      %v3204 = vmul.f32 %v3199, %v3202
      %v3205 = vmul.f32 %v3187, %v2881
      %v3206 = vadd.f32 %v3204, %v3205
      %3208 = vrot.lane.b32.xlu0 %v3206, 96
      %v3209 = vpop.permute.xlu0 %3208
      %3211 = vmatprep.subr.mxu0 0.0
      %3212 = vmatpush1.msra.mxu0 0.0
      %3213 = vmatprep.subr.mxu0 0.0
      %3214 = vmatpush1.msra.mxu0 0.0
      %3215 = vmatprep.subr.mxu0 0.0
      %3216 = vmatpush1.msra.mxu0 0.0
      %3217 = vmatprep.subr.mxu0 0.0
      %3218 = vmatpush1.msra.mxu0 0.0
      %3219 = vmatprep.subr.mxu0 0.0
      %3220 = vmatpush1.msra.mxu0 0.0
      %3221 = vmatprep.subr.mxu0 0.0
      %3222 = vmatpush1.msra.mxu0 0.0
      %3223 = vmatprep.subr.mxu0 0.0
      %3224 = vmatpush1.msra.mxu0 0.0
      %3225 = vmatprep.subr.mxu0 0.0
      %3226 = vmatpush1.msra.mxu0 0.0
      %3227 = vmatprep.subr.mxu0 0.0
      %3228 = vmatpush1.msra.mxu0 0.0
      %3229 = vmatprep.subr.mxu0 0.0
      %3230 = vmatpush1.msra.mxu0 0.0
      %3231 = vmatprep.subr.mxu0 0.0
      %3232 = vmatpush1.msra.mxu0 0.0
      %3233 = vmatprep.subr.mxu0 0.0
      %3234 = vmatpush1.msra.mxu0 0.0
      %3235 = vmatprep.subr.mxu0 0.0
      %3236 = vmatpush1.msra.mxu0 0.0
      %3237 = vmatprep.subr.mxu0 0.0
      %3238 = vmatpush1.msra.mxu0 0.0
      %3239 = vmatprep.subr.mxu0 0.0
      %3240 = vmatpush1.msra.mxu0 0.0
      %3241 = vmatprep.subr.mxu0 0.0
      %3242 = vmatpush1.msra.mxu0 %v3209
      %3243 = vmatprep.subr.mxu0 0.0
      %3244 = vmatpush2.msra.mxu0 0.0
      %3245 = vmatprep.subr.mxu0 0.0
      %3246 = vmatpush2.msra.mxu0 0.0
      %3247 = vmatprep.subr.mxu0 0.0
      %3248 = vmatpush2.msra.mxu0 0.0
      %3249 = vmatprep.subr.mxu0 0.0
      %3250 = vmatpush2.msra.mxu0 0.0
      %3251 = vmatprep.subr.mxu0 0.0
      %3252 = vmatpush2.msra.mxu0 0.0
      %3253 = vmatprep.subr.mxu0 0.0
      %3254 = vmatpush2.msra.mxu0 0.0
      %3255 = vmatprep.subr.mxu0 0.0
      %3256 = vmatpush2.msra.mxu0 0.0
      %3257 = vmatprep.subr.mxu0 0.0
      %3258 = vmatpush2.msra.mxu0 0.0
      %3259 = vmatprep.subr.mxu0 0.0
      %3260 = vmatpush2.msra.mxu0 0.0
      %3261 = vmatprep.subr.mxu0 0.0
      %3262 = vmatpush2.msra.mxu0 0.0
      %3263 = vmatprep.subr.mxu0 0.0
      %3264 = vmatpush2.msra.mxu0 0.0
      %3265 = vmatprep.subr.mxu0 0.0
      %3266 = vmatpush2.msra.mxu0 0.0
      %3267 = vmatprep.subr.mxu0 0.0
      %3268 = vmatpush2.msra.mxu0 0.0
      %3269 = vmatprep.subr.mxu0 0.0
      %3270 = vmatpush2.msra.mxu0 0.0
      %3271 = vmatprep.subr.mxu0 0.0
      %3272 = vmatpush2.msra.mxu0 0.0
      %3273 = vmatprep.subr.mxu0 0.0
      %3274 = vmatpush2.msra.mxu0 0.0
      %3275 = vmatprep.mubr.f32.mxu0 0.0
      %3276 = vmatmul.mubr.f32.gmra.mxu0 %v2547
      %v3277 = vpop.f32.mrf.mxu0
      %v3278 = vadd.f32 0.0, %v3277
      %v3279 = vpop.f32.mrf.mxu0
      %3280 = vdwg.mxu0
      %v3281 = vlaneseq
      %v3282 = vshrl.u32 %v3281, 7
      %v3283 = vsub.s32 5, %v3282
      %v3284 = vrot.slane %v573, %v3283
      %v3286 = vsel %vm487, %v3278, 0
      %3288 = vmatprep.subr.mxu0 0.0
      %3289 = vmatpush1.msra.mxu0 0.0
      %3290 = vmatprep.subr.mxu0 0.0
      %3291 = vmatpush1.msra.mxu0 0.0
      %3292 = vmatprep.subr.mxu0 0.0
      %3293 = vmatpush1.msra.mxu0 0.0
      %3294 = vmatprep.subr.mxu0 0.0
      %3295 = vmatpush1.msra.mxu0 0.0
      %3296 = vmatprep.subr.mxu0 0.0
      %3297 = vmatpush1.msra.mxu0 0.0
      %3298 = vmatprep.subr.mxu0 0.0
      %3299 = vmatpush1.msra.mxu0 0.0
      %3300 = vmatprep.subr.mxu0 0.0
      %3301 = vmatpush1.msra.mxu0 0.0
      %3302 = vmatprep.subr.mxu0 0.0
      %3303 = vmatpush1.msra.mxu0 0.0
      %3304 = vmatprep.subr.mxu0 0.0
      %3305 = vmatpush1.msra.mxu0 0.0
      %3306 = vmatprep.subr.mxu0 0.0
      %3307 = vmatpush1.msra.mxu0 0.0
      %3308 = vmatprep.subr.mxu0 0.0
      %3309 = vmatpush1.msra.mxu0 0.0
      %3310 = vmatprep.subr.mxu0 0.0
      %3311 = vmatpush1.msra.mxu0 0.0
      %3312 = vmatprep.subr.mxu0 0.0
      %3313 = vmatpush1.msra.mxu0 %v2521
      %3314 = vmatprep.subr.mxu0 0.0
      %3315 = vmatpush1.msra.mxu0 %v2520
      %3316 = vmatprep.subr.mxu0 0.0
      %3317 = vmatpush1.msra.mxu0 %v2519
      %3318 = vmatprep.subr.mxu0 0.0
      %3319 = vmatpush1.msra.mxu0 %v2518
      %3320 = vmatprep.subr.mxu0 0.0
      %3321 = vmatpush2.msra.mxu0 0.0
      %3322 = vmatprep.subr.mxu0 0.0
      %3323 = vmatpush2.msra.mxu0 0.0
      %3324 = vmatprep.subr.mxu0 0.0
      %3325 = vmatpush2.msra.mxu0 0.0
      %3326 = vmatprep.subr.mxu0 0.0
      %3327 = vmatpush2.msra.mxu0 0.0
      %3328 = vmatprep.subr.mxu0 0.0
      %3329 = vmatpush2.msra.mxu0 0.0
      %3330 = vmatprep.subr.mxu0 0.0
      %3331 = vmatpush2.msra.mxu0 0.0
      %3332 = vmatprep.subr.mxu0 0.0
      %3333 = vmatpush2.msra.mxu0 0.0
      %3334 = vmatprep.subr.mxu0 0.0
      %3335 = vmatpush2.msra.mxu0 0.0
      %3336 = vmatprep.subr.mxu0 0.0
      %3337 = vmatpush2.msra.mxu0 0.0
      %3338 = vmatprep.subr.mxu0 0.0
      %3339 = vmatpush2.msra.mxu0 0.0
      %3340 = vmatprep.subr.mxu0 0.0
      %3341 = vmatpush2.msra.mxu0 0.0
      %3342 = vmatprep.subr.mxu0 0.0
      %3343 = vmatpush2.msra.mxu0 0.0
      %3344 = vmatprep.subr.mxu0 0.0
      %3345 = vmatpush2.msra.mxu0 0.0
      %3346 = vmatprep.subr.mxu0 0.0
      %3347 = vmatpush2.msra.mxu0 0.0
      %3348 = vmatprep.subr.mxu0 0.0
      %3349 = vmatpush2.msra.mxu0 0.0
      %3350 = vmatprep.subr.mxu0 0.0
      %3351 = vmatpush2.msra.mxu0 0.0
      %3352 = vmatprep.mubr.f32.mxu0 0.0
      %3353 = vmatmul.mubr.f32.gmra.mxu0 %v3286
      %v3354 = vpop.f32.mrf.mxu0
      %v3355 = vadd.f32 %v3284, %v3354
      %v3356 = vpop.f32.mrf.mxu0
      %3357 = vdwg.mxu0
      %vm3358 = vcmp.ge.f32.partialorder %v3355, 0.0
      %v3359 = vmul.f32 %v3355, 0.01
      %v3360 = vsel %vm3358, %v3355, %v3359
      %v3362 = vsel %vm487, %v3360, 0
      %3364 = vmatprep.subr.mxu0 0.0
      %3365 = vmatpush1.msra.mxu0 0.0
      %3366 = vmatprep.subr.mxu0 0.0
      %3367 = vmatpush1.msra.mxu0 0.0
      %3368 = vmatprep.subr.mxu0 0.0
      %3369 = vmatpush1.msra.mxu0 0.0
      %3370 = vmatprep.subr.mxu0 0.0
      %3371 = vmatpush1.msra.mxu0 0.0
      %3372 = vmatprep.subr.mxu0 0.0
      %3373 = vmatpush1.msra.mxu0 0.0
      %3374 = vmatprep.subr.mxu0 0.0
      %3375 = vmatpush1.msra.mxu0 0.0
      %3376 = vmatprep.subr.mxu0 0.0
      %3377 = vmatpush1.msra.mxu0 0.0
      %3378 = vmatprep.subr.mxu0 0.0
      %3379 = vmatpush1.msra.mxu0 0.0
      %3380 = vmatprep.subr.mxu0 0.0
      %3381 = vmatpush1.msra.mxu0 0.0
      %3382 = vmatprep.subr.mxu0 0.0
      %3383 = vmatpush1.msra.mxu0 0.0
      %3384 = vmatprep.subr.mxu0 0.0
      %3385 = vmatpush1.msra.mxu0 0.0
      %3386 = vmatprep.subr.mxu0 0.0
      %3387 = vmatpush1.msra.mxu0 0.0
      %3388 = vmatprep.subr.mxu0 0.0
      %3389 = vmatpush1.msra.mxu0 %v2529
      %3390 = vmatprep.subr.mxu0 0.0
      %3391 = vmatpush1.msra.mxu0 %v2528
      %3392 = vmatprep.subr.mxu0 0.0
      %3393 = vmatpush1.msra.mxu0 %v2527
      %3394 = vmatprep.subr.mxu0 0.0
      %3395 = vmatpush1.msra.mxu0 %v2526
      %3396 = vmatprep.subr.mxu0 0.0
      %3397 = vmatpush2.msra.mxu0 0.0
      %3398 = vmatprep.subr.mxu0 0.0
      %3399 = vmatpush2.msra.mxu0 0.0
      %3400 = vmatprep.subr.mxu0 0.0
      %3401 = vmatpush2.msra.mxu0 0.0
      %3402 = vmatprep.subr.mxu0 0.0
      %3403 = vmatpush2.msra.mxu0 0.0
      %3404 = vmatprep.subr.mxu0 0.0
      %3405 = vmatpush2.msra.mxu0 0.0
      %3406 = vmatprep.subr.mxu0 0.0
      %3407 = vmatpush2.msra.mxu0 0.0
      %3408 = vmatprep.subr.mxu0 0.0
      %3409 = vmatpush2.msra.mxu0 0.0
      %3410 = vmatprep.subr.mxu0 0.0
      %3411 = vmatpush2.msra.mxu0 0.0
      %3412 = vmatprep.subr.mxu0 0.0
      %3413 = vmatpush2.msra.mxu0 0.0
      %3414 = vmatprep.subr.mxu0 0.0
      %3415 = vmatpush2.msra.mxu0 0.0
      %3416 = vmatprep.subr.mxu0 0.0
      %3417 = vmatpush2.msra.mxu0 0.0
      %3418 = vmatprep.subr.mxu0 0.0
      %3419 = vmatpush2.msra.mxu0 0.0
      %3420 = vmatprep.subr.mxu0 0.0
      %3421 = vmatpush2.msra.mxu0 0.0
      %3422 = vmatprep.subr.mxu0 0.0
      %3423 = vmatpush2.msra.mxu0 0.0
      %3424 = vmatprep.subr.mxu0 0.0
      %3425 = vmatpush2.msra.mxu0 0.0
      %3426 = vmatprep.subr.mxu0 0.0
      %3427 = vmatpush2.msra.mxu0 0.0
      %3428 = vmatprep.mubr.f32.mxu0 0.0
      %3429 = vmatmul.mubr.f32.gmra.mxu0 %v3362
      %v3430 = vpop.f32.mrf.mxu0
      %v3431 = vadd.f32 %v2702, %v3430
      %v3432 = vpop.f32.mrf.mxu0
      %3433 = vdwg.mxu0
      %v3434 = vsel %vm487, %v3209, 0
      %3436 = vmatprep.subr.mxu0 0.0
      %3437 = vmatpush1.msra.mxu0 0.0
      %3438 = vmatprep.subr.mxu0 0.0
      %3439 = vmatpush1.msra.mxu0 0.0
      %3440 = vmatprep.subr.mxu0 0.0
      %3441 = vmatpush1.msra.mxu0 0.0
      %3442 = vmatprep.subr.mxu0 0.0
      %3443 = vmatpush1.msra.mxu0 0.0
      %3444 = vmatprep.subr.mxu0 0.0
      %3445 = vmatpush1.msra.mxu0 0.0
      %3446 = vmatprep.subr.mxu0 0.0
      %3447 = vmatpush1.msra.mxu0 0.0
      %3448 = vmatprep.subr.mxu0 0.0
      %3449 = vmatpush1.msra.mxu0 0.0
      %3450 = vmatprep.subr.mxu0 0.0
      %3451 = vmatpush1.msra.mxu0 0.0
      %3452 = vmatprep.subr.mxu0 0.0
      %3453 = vmatpush1.msra.mxu0 0.0
      %3454 = vmatprep.subr.mxu0 0.0
      %3455 = vmatpush1.msra.mxu0 0.0
      %3456 = vmatprep.subr.mxu0 0.0
      %3457 = vmatpush1.msra.mxu0 0.0
      %3458 = vmatprep.subr.mxu0 0.0
      %3459 = vmatpush1.msra.mxu0 0.0
      %3460 = vmatprep.subr.mxu0 0.0
      %3461 = vmatpush1.msra.mxu0 %v2533
      %3462 = vmatprep.subr.mxu0 0.0
      %3463 = vmatpush1.msra.mxu0 %v2532
      %3464 = vmatprep.subr.mxu0 0.0
      %3465 = vmatpush1.msra.mxu0 %v2531
      %3466 = vmatprep.subr.mxu0 0.0
      %3467 = vmatpush1.msra.mxu0 %v2530
      %3468 = vmatprep.subr.mxu0 0.0
      %3469 = vmatpush2.msra.mxu0 0.0
      %3470 = vmatprep.subr.mxu0 0.0
      %3471 = vmatpush2.msra.mxu0 0.0
      %3472 = vmatprep.subr.mxu0 0.0
      %3473 = vmatpush2.msra.mxu0 0.0
      %3474 = vmatprep.subr.mxu0 0.0
      %3475 = vmatpush2.msra.mxu0 0.0
      %3476 = vmatprep.subr.mxu0 0.0
      %3477 = vmatpush2.msra.mxu0 0.0
      %3478 = vmatprep.subr.mxu0 0.0
      %3479 = vmatpush2.msra.mxu0 0.0
      %3480 = vmatprep.subr.mxu0 0.0
      %3481 = vmatpush2.msra.mxu0 0.0
      %3482 = vmatprep.subr.mxu0 0.0
      %3483 = vmatpush2.msra.mxu0 0.0
      %3484 = vmatprep.subr.mxu0 0.0
      %3485 = vmatpush2.msra.mxu0 0.0
      %3486 = vmatprep.subr.mxu0 0.0
      %3487 = vmatpush2.msra.mxu0 0.0
      %3488 = vmatprep.subr.mxu0 0.0
      %3489 = vmatpush2.msra.mxu0 0.0
      %3490 = vmatprep.subr.mxu0 0.0
      %3491 = vmatpush2.msra.mxu0 0.0
      %3492 = vmatprep.subr.mxu0 0.0
      %3493 = vmatpush2.msra.mxu0 0.0
      %3494 = vmatprep.subr.mxu0 0.0
      %3495 = vmatpush2.msra.mxu0 0.0
      %3496 = vmatprep.subr.mxu0 0.0
      %3497 = vmatpush2.msra.mxu0 0.0
      %3498 = vmatprep.subr.mxu0 0.0
      %3499 = vmatpush2.msra.mxu0 0.0
      %3500 = vmatprep.mubr.f32.mxu0 0.0
      %3501 = vmatmul.mubr.f32.gmra.mxu0 %v3434
      %v3502 = vpop.f32.mrf.mxu0
      %v3503 = vadd.f32 %v2779, %v3502
      %v3504 = vpop.f32.mrf.mxu0
      %3505 = vdwg.mxu0
      %v3506 = vadd.f32 %v3431, %v3503
      %v3507 = vxor.u32 %v3506, 2147483648
      %v3508 = vmul.f32 %v3507, 1.442695
      %v3509 = vpow.pop %v3508
      %v3510 = vadd.f32 %v3509, 1.0
      %v3511 = vrcp.pop %v3510
      %v3512 = vmul.f32 1.0, %v3511
      %3514 = vrot.lane.b32.xlu0 %v3503, 64
      %v3515 = vpop.permute.xlu0 %3514
      %v3517 = vmul.f32 %v3512, %v3515
      %3519 = vrot.lane.b32.xlu0 %v3517, 64
      %v3520 = vpop.permute.xlu0 %3519
      %v3522 = vadd.f32 %v3431, %v3520
      %v3523 = vtanh.pop %v3522
      %v3524 = vsub.f32 1.0, %v3512
      %3526 = vrot.lane.b32.xlu0 %v3523, 96
      %v3527 = vpop.permute.xlu0 %3526
      %v3529 = vmul.f32 %v3524, %v3527
      %v3530 = vmul.f32 %v3512, %v3206
      %v3531 = vadd.f32 %v3529, %v3530
      %3533 = vrot.lane.b32.xlu0 %v3531, 96
      %v3534 = vpop.permute.xlu0 %3533
      %3536 = vmatprep.subr.mxu0 0.0
      %3537 = vmatpush1.msra.mxu0 0.0
      %3538 = vmatprep.subr.mxu0 0.0
      %3539 = vmatpush1.msra.mxu0 0.0
      %3540 = vmatprep.subr.mxu0 0.0
      %3541 = vmatpush1.msra.mxu0 0.0
      %3542 = vmatprep.subr.mxu0 0.0
      %3543 = vmatpush1.msra.mxu0 0.0
      %3544 = vmatprep.subr.mxu0 0.0
      %3545 = vmatpush1.msra.mxu0 0.0
      %3546 = vmatprep.subr.mxu0 0.0
      %3547 = vmatpush1.msra.mxu0 0.0
      %3548 = vmatprep.subr.mxu0 0.0
      %3549 = vmatpush1.msra.mxu0 0.0
      %3550 = vmatprep.subr.mxu0 0.0
      %3551 = vmatpush1.msra.mxu0 0.0
      %3552 = vmatprep.subr.mxu0 0.0
      %3553 = vmatpush1.msra.mxu0 0.0
      %3554 = vmatprep.subr.mxu0 0.0
      %3555 = vmatpush1.msra.mxu0 0.0
      %3556 = vmatprep.subr.mxu0 0.0
      %3557 = vmatpush1.msra.mxu0 0.0
      %3558 = vmatprep.subr.mxu0 0.0
      %3559 = vmatpush1.msra.mxu0 0.0
      %3560 = vmatprep.subr.mxu0 0.0
      %3561 = vmatpush1.msra.mxu0 0.0
      %3562 = vmatprep.subr.mxu0 0.0
      %3563 = vmatpush1.msra.mxu0 0.0
      %3564 = vmatprep.subr.mxu0 0.0
      %3565 = vmatpush1.msra.mxu0 0.0
      %3566 = vmatprep.subr.mxu0 0.0
      %3567 = vmatpush1.msra.mxu0 %v3534
      %3568 = vmatprep.subr.mxu0 0.0
      %3569 = vmatpush2.msra.mxu0 0.0
      %3570 = vmatprep.subr.mxu0 0.0
      %3571 = vmatpush2.msra.mxu0 0.0
      %3572 = vmatprep.subr.mxu0 0.0
      %3573 = vmatpush2.msra.mxu0 0.0
      %3574 = vmatprep.subr.mxu0 0.0
      %3575 = vmatpush2.msra.mxu0 0.0
      %3576 = vmatprep.subr.mxu0 0.0
      %3577 = vmatpush2.msra.mxu0 0.0
      %3578 = vmatprep.subr.mxu0 0.0
      %3579 = vmatpush2.msra.mxu0 0.0
      %3580 = vmatprep.subr.mxu0 0.0
      %3581 = vmatpush2.msra.mxu0 0.0
      %3582 = vmatprep.subr.mxu0 0.0
      %3583 = vmatpush2.msra.mxu0 0.0
      %3584 = vmatprep.subr.mxu0 0.0
      %3585 = vmatpush2.msra.mxu0 0.0
      %3586 = vmatprep.subr.mxu0 0.0
      %3587 = vmatpush2.msra.mxu0 0.0
      %3588 = vmatprep.subr.mxu0 0.0
      %3589 = vmatpush2.msra.mxu0 0.0
      %3590 = vmatprep.subr.mxu0 0.0
      %3591 = vmatpush2.msra.mxu0 0.0
      %3592 = vmatprep.subr.mxu0 0.0
      %3593 = vmatpush2.msra.mxu0 0.0
      %3594 = vmatprep.subr.mxu0 0.0
      %3595 = vmatpush2.msra.mxu0 0.0
      %3596 = vmatprep.subr.mxu0 0.0
      %3597 = vmatpush2.msra.mxu0 0.0
      %3598 = vmatprep.subr.mxu0 0.0
      %3599 = vmatpush2.msra.mxu0 0.0
      %3600 = vmatprep.mubr.f32.mxu0 0.0
      %3601 = vmatmul.mubr.f32.gmra.mxu0 %v2547
      %v3602 = vpop.f32.mrf.mxu0
      %v3603 = vadd.f32 0.0, %v3602
      %v3604 = vpop.f32.mrf.mxu0
      %3605 = vdwg.mxu0
      %v3606 = vlaneseq
      %v3607 = vshrl.u32 %v3606, 7
      %v3608 = vsub.s32 6, %v3607
      %v3609 = vrot.slane %v573, %v3608
      %v3611 = vsel %vm487, %v3603, 0
      %3613 = vmatprep.subr.mxu0 0.0
      %3614 = vmatpush1.msra.mxu0 0.0
      %3615 = vmatprep.subr.mxu0 0.0
      %3616 = vmatpush1.msra.mxu0 0.0
      %3617 = vmatprep.subr.mxu0 0.0
      %3618 = vmatpush1.msra.mxu0 0.0
      %3619 = vmatprep.subr.mxu0 0.0
      %3620 = vmatpush1.msra.mxu0 0.0
      %3621 = vmatprep.subr.mxu0 0.0
      %3622 = vmatpush1.msra.mxu0 0.0
      %3623 = vmatprep.subr.mxu0 0.0
      %3624 = vmatpush1.msra.mxu0 0.0
      %3625 = vmatprep.subr.mxu0 0.0
      %3626 = vmatpush1.msra.mxu0 0.0
      %3627 = vmatprep.subr.mxu0 0.0
      %3628 = vmatpush1.msra.mxu0 0.0
      %3629 = vmatprep.subr.mxu0 0.0
      %3630 = vmatpush1.msra.mxu0 0.0
      %3631 = vmatprep.subr.mxu0 0.0
      %3632 = vmatpush1.msra.mxu0 0.0
      %3633 = vmatprep.subr.mxu0 0.0
      %3634 = vmatpush1.msra.mxu0 0.0
      %3635 = vmatprep.subr.mxu0 0.0
      %3636 = vmatpush1.msra.mxu0 0.0
      %3637 = vmatprep.subr.mxu0 0.0
      %3638 = vmatpush1.msra.mxu0 %v2525
      %3639 = vmatprep.subr.mxu0 0.0
      %3640 = vmatpush1.msra.mxu0 %v2524
      %3641 = vmatprep.subr.mxu0 0.0
      %3642 = vmatpush1.msra.mxu0 %v2523
      %3643 = vmatprep.subr.mxu0 0.0
      %3644 = vmatpush1.msra.mxu0 %v2522
      %3645 = vmatprep.subr.mxu0 0.0
      %3646 = vmatpush2.msra.mxu0 0.0
      %3647 = vmatprep.subr.mxu0 0.0
      %3648 = vmatpush2.msra.mxu0 0.0
      %3649 = vmatprep.subr.mxu0 0.0
      %3650 = vmatpush2.msra.mxu0 0.0
      %3651 = vmatprep.subr.mxu0 0.0
      %3652 = vmatpush2.msra.mxu0 0.0
      %3653 = vmatprep.subr.mxu0 0.0
      %3654 = vmatpush2.msra.mxu0 0.0
      %3655 = vmatprep.subr.mxu0 0.0
      %3656 = vmatpush2.msra.mxu0 0.0
      %3657 = vmatprep.subr.mxu0 0.0
      %3658 = vmatpush2.msra.mxu0 0.0
      %3659 = vmatprep.subr.mxu0 0.0
      %3660 = vmatpush2.msra.mxu0 0.0
      %3661 = vmatprep.subr.mxu0 0.0
      %3662 = vmatpush2.msra.mxu0 0.0
      %3663 = vmatprep.subr.mxu0 0.0
      %3664 = vmatpush2.msra.mxu0 0.0
      %3665 = vmatprep.subr.mxu0 0.0
      %3666 = vmatpush2.msra.mxu0 0.0
      %3667 = vmatprep.subr.mxu0 0.0
      %3668 = vmatpush2.msra.mxu0 0.0
      %3669 = vmatprep.subr.mxu0 0.0
      %3670 = vmatpush2.msra.mxu0 0.0
      %3671 = vmatprep.subr.mxu0 0.0
      %3672 = vmatpush2.msra.mxu0 0.0
      %3673 = vmatprep.subr.mxu0 0.0
      %3674 = vmatpush2.msra.mxu0 0.0
      %3675 = vmatprep.subr.mxu0 0.0
      %3676 = vmatpush2.msra.mxu0 0.0
      %3677 = vmatprep.mubr.f32.mxu0 0.0
      %3678 = vmatmul.mubr.f32.gmra.mxu0 %v3611
      %v3679 = vpop.f32.mrf.mxu0
      %v3680 = vadd.f32 %v3609, %v3679
      %v3681 = vpop.f32.mrf.mxu0
      %3682 = vdwg.mxu0
      %vm3683 = vcmp.ge.f32.partialorder %v3680, 0.0
      %v3684 = vmul.f32 %v3680, 0.01
      %v3685 = vsel %vm3683, %v3680, %v3684
      %v3687 = vsel %vm487, %v3685, 0
      %3689 = vmatprep.subr.mxu0 0.0
      %3690 = vmatpush1.msra.mxu0 0.0
      %3691 = vmatprep.subr.mxu0 0.0
      %3692 = vmatpush1.msra.mxu0 0.0
      %3693 = vmatprep.subr.mxu0 0.0
      %3694 = vmatpush1.msra.mxu0 0.0
      %3695 = vmatprep.subr.mxu0 0.0
      %3696 = vmatpush1.msra.mxu0 0.0
      %3697 = vmatprep.subr.mxu0 0.0
      %3698 = vmatpush1.msra.mxu0 0.0
      %3699 = vmatprep.subr.mxu0 0.0
      %3700 = vmatpush1.msra.mxu0 0.0
      %3701 = vmatprep.subr.mxu0 0.0
      %3702 = vmatpush1.msra.mxu0 0.0
      %3703 = vmatprep.subr.mxu0 0.0
      %3704 = vmatpush1.msra.mxu0 0.0
      %3705 = vmatprep.subr.mxu0 0.0
      %3706 = vmatpush1.msra.mxu0 0.0
      %3707 = vmatprep.subr.mxu0 0.0
      %3708 = vmatpush1.msra.mxu0 0.0
      %3709 = vmatprep.subr.mxu0 0.0
      %3710 = vmatpush1.msra.mxu0 0.0
      %3711 = vmatprep.subr.mxu0 0.0
      %3712 = vmatpush1.msra.mxu0 0.0
      %3713 = vmatprep.subr.mxu0 0.0
      %3714 = vmatpush1.msra.mxu0 %v2529
      %3715 = vmatprep.subr.mxu0 0.0
      %3716 = vmatpush1.msra.mxu0 %v2528
      %3717 = vmatprep.subr.mxu0 0.0
      %3718 = vmatpush1.msra.mxu0 %v2527
      %3719 = vmatprep.subr.mxu0 0.0
      %3720 = vmatpush1.msra.mxu0 %v2526
      %3721 = vmatprep.subr.mxu0 0.0
      %3722 = vmatpush2.msra.mxu0 0.0
      %3723 = vmatprep.subr.mxu0 0.0
      %3724 = vmatpush2.msra.mxu0 0.0
      %3725 = vmatprep.subr.mxu0 0.0
      %3726 = vmatpush2.msra.mxu0 0.0
      %3727 = vmatprep.subr.mxu0 0.0
      %3728 = vmatpush2.msra.mxu0 0.0
      %3729 = vmatprep.subr.mxu0 0.0
      %3730 = vmatpush2.msra.mxu0 0.0
      %3731 = vmatprep.subr.mxu0 0.0
      %3732 = vmatpush2.msra.mxu0 0.0
      %3733 = vmatprep.subr.mxu0 0.0
      %3734 = vmatpush2.msra.mxu0 0.0
      %3735 = vmatprep.subr.mxu0 0.0
      %3736 = vmatpush2.msra.mxu0 0.0
      %3737 = vmatprep.subr.mxu0 0.0
      %3738 = vmatpush2.msra.mxu0 0.0
      %3739 = vmatprep.subr.mxu0 0.0
      %3740 = vmatpush2.msra.mxu0 0.0
      %3741 = vmatprep.subr.mxu0 0.0
      %3742 = vmatpush2.msra.mxu0 0.0
      %3743 = vmatprep.subr.mxu0 0.0
      %3744 = vmatpush2.msra.mxu0 0.0
      %3745 = vmatprep.subr.mxu0 0.0
      %3746 = vmatpush2.msra.mxu0 0.0
      %3747 = vmatprep.subr.mxu0 0.0
      %3748 = vmatpush2.msra.mxu0 0.0
      %3749 = vmatprep.subr.mxu0 0.0
      %3750 = vmatpush2.msra.mxu0 0.0
      %3751 = vmatprep.subr.mxu0 0.0
      %3752 = vmatpush2.msra.mxu0 0.0
      %3753 = vmatprep.mubr.f32.mxu0 0.0
      %3754 = vmatmul.mubr.f32.gmra.mxu0 %v3687
      %v3755 = vpop.f32.mrf.mxu0
      %v3756 = vadd.f32 %v2702, %v3755
      %v3757 = vpop.f32.mrf.mxu0
      %3758 = vdwg.mxu0
      %v3759 = vsel %vm487, %v3534, 0
      %3761 = vmatprep.subr.mxu0 0.0
      %3762 = vmatpush1.msra.mxu0 0.0
      %3763 = vmatprep.subr.mxu0 0.0
      %3764 = vmatpush1.msra.mxu0 0.0
      %3765 = vmatprep.subr.mxu0 0.0
      %3766 = vmatpush1.msra.mxu0 0.0
      %3767 = vmatprep.subr.mxu0 0.0
      %3768 = vmatpush1.msra.mxu0 0.0
      %3769 = vmatprep.subr.mxu0 0.0
      %3770 = vmatpush1.msra.mxu0 0.0
      %3771 = vmatprep.subr.mxu0 0.0
      %3772 = vmatpush1.msra.mxu0 0.0
      %3773 = vmatprep.subr.mxu0 0.0
      %3774 = vmatpush1.msra.mxu0 0.0
      %3775 = vmatprep.subr.mxu0 0.0
      %3776 = vmatpush1.msra.mxu0 0.0
      %3777 = vmatprep.subr.mxu0 0.0
      %3778 = vmatpush1.msra.mxu0 0.0
      %3779 = vmatprep.subr.mxu0 0.0
      %3780 = vmatpush1.msra.mxu0 0.0
      %3781 = vmatprep.subr.mxu0 0.0
      %3782 = vmatpush1.msra.mxu0 0.0
      %3783 = vmatprep.subr.mxu0 0.0
      %3784 = vmatpush1.msra.mxu0 0.0
      %3785 = vmatprep.subr.mxu0 0.0
      %3786 = vmatpush1.msra.mxu0 %v2533
      %3787 = vmatprep.subr.mxu0 0.0
      %3788 = vmatpush1.msra.mxu0 %v2532
      %3789 = vmatprep.subr.mxu0 0.0
      %3790 = vmatpush1.msra.mxu0 %v2531
      %3791 = vmatprep.subr.mxu0 0.0
      %3792 = vmatpush1.msra.mxu0 %v2530
      %3793 = vmatprep.subr.mxu0 0.0
      %3794 = vmatpush2.msra.mxu0 0.0
      %3795 = vmatprep.subr.mxu0 0.0
      %3796 = vmatpush2.msra.mxu0 0.0
      %3797 = vmatprep.subr.mxu0 0.0
      %3798 = vmatpush2.msra.mxu0 0.0
      %3799 = vmatprep.subr.mxu0 0.0
      %3800 = vmatpush2.msra.mxu0 0.0
      %3801 = vmatprep.subr.mxu0 0.0
      %3802 = vmatpush2.msra.mxu0 0.0
      %3803 = vmatprep.subr.mxu0 0.0
      %3804 = vmatpush2.msra.mxu0 0.0
      %3805 = vmatprep.subr.mxu0 0.0
      %3806 = vmatpush2.msra.mxu0 0.0
      %3807 = vmatprep.subr.mxu0 0.0
      %3808 = vmatpush2.msra.mxu0 0.0
      %3809 = vmatprep.subr.mxu0 0.0
      %3810 = vmatpush2.msra.mxu0 0.0
      %3811 = vmatprep.subr.mxu0 0.0
      %3812 = vmatpush2.msra.mxu0 0.0
      %3813 = vmatprep.subr.mxu0 0.0
      %3814 = vmatpush2.msra.mxu0 0.0
      %3815 = vmatprep.subr.mxu0 0.0
      %3816 = vmatpush2.msra.mxu0 0.0
      %3817 = vmatprep.subr.mxu0 0.0
      %3818 = vmatpush2.msra.mxu0 0.0
      %3819 = vmatprep.subr.mxu0 0.0
      %3820 = vmatpush2.msra.mxu0 0.0
      %3821 = vmatprep.subr.mxu0 0.0
      %3822 = vmatpush2.msra.mxu0 0.0
      %3823 = vmatprep.subr.mxu0 0.0
      %3824 = vmatpush2.msra.mxu0 0.0
      %3825 = vmatprep.mubr.f32.mxu0 0.0
      %3826 = vmatmul.mubr.f32.gmra.mxu0 %v3759
      %v3827 = vpop.f32.mrf.mxu0
      %v3828 = vadd.f32 %v2779, %v3827
      %v3829 = vpop.f32.mrf.mxu0
      %3830 = vdwg.mxu0
      %v3831 = vadd.f32 %v3756, %v3828
      %v3832 = vxor.u32 %v3831, 2147483648
      %v3833 = vmul.f32 %v3832, 1.442695
      %v3834 = vpow.pop %v3833
      %v3835 = vadd.f32 %v3834, 1.0
      %v3836 = vrcp.pop %v3835
      %v3837 = vmul.f32 1.0, %v3836
      %3839 = vrot.lane.b32.xlu0 %v3828, 64
      %v3840 = vpop.permute.xlu0 %3839
      %v3842 = vmul.f32 %v3837, %v3840
      %3844 = vrot.lane.b32.xlu0 %v3842, 64
      %v3845 = vpop.permute.xlu0 %3844
      %v3847 = vadd.f32 %v3756, %v3845
      %v3848 = vtanh.pop %v3847
      %v3849 = vsub.f32 1.0, %v3837
      %3851 = vrot.lane.b32.xlu0 %v3848, 96
      %v3852 = vpop.permute.xlu0 %3851
      %v3854 = vmul.f32 %v3849, %v3852
      %v3855 = vmul.f32 %v3837, %v3531
      %v3856 = vadd.f32 %v3854, %v3855
      %3858 = vrot.lane.b32.xlu0 %v3856, 96
      %v3859 = vpop.permute.xlu0 %3858
      %v3860 = vsel %vm487, %v3859, 0
      %3862 = vmatprep.subr.mxu0 0.0
      %3863 = vmatpush1.msra.mxu0 0.0
      %3864 = vmatprep.subr.mxu0 0.0
      %3865 = vmatpush1.msra.mxu0 0.0
      %3866 = vmatprep.subr.mxu0 0.0
      %3867 = vmatpush1.msra.mxu0 0.0
      %3868 = vmatprep.subr.mxu0 0.0
      %3869 = vmatpush1.msra.mxu0 0.0
      %3870 = vmatprep.subr.mxu0 0.0
      %3871 = vmatpush1.msra.mxu0 0.0
      %3872 = vmatprep.subr.mxu0 0.0
      %3873 = vmatpush1.msra.mxu0 0.0
      %3874 = vmatprep.subr.mxu0 0.0
      %3875 = vmatpush1.msra.mxu0 0.0
      %3876 = vmatprep.subr.mxu0 0.0
      %3877 = vmatpush1.msra.mxu0 0.0
      %3878 = vmatprep.subr.mxu0 0.0
      %3879 = vmatpush1.msra.mxu0 0.0
      %3880 = vmatprep.subr.mxu0 0.0
      %3881 = vmatpush1.msra.mxu0 0.0
      %3882 = vmatprep.subr.mxu0 0.0
      %3883 = vmatpush1.msra.mxu0 0.0
      %3884 = vmatprep.subr.mxu0 0.0
      %3885 = vmatpush1.msra.mxu0 0.0
      %3886 = vmatprep.subr.mxu0 0.0
      %3887 = vmatpush1.msra.mxu0 %v2541
      %3888 = vmatprep.subr.mxu0 0.0
      %3889 = vmatpush1.msra.mxu0 %v2540
      %3890 = vmatprep.subr.mxu0 0.0
      %3891 = vmatpush1.msra.mxu0 %v2539
      %3892 = vmatprep.subr.mxu0 0.0
      %3893 = vmatpush1.msra.mxu0 %v2538
      %3894 = vmatprep.subr.mxu0 0.0
      %3895 = vmatpush2.msra.mxu0 0.0
      %3896 = vmatprep.subr.mxu0 0.0
      %3897 = vmatpush2.msra.mxu0 0.0
      %3898 = vmatprep.subr.mxu0 0.0
      %3899 = vmatpush2.msra.mxu0 0.0
      %3900 = vmatprep.subr.mxu0 0.0
      %3901 = vmatpush2.msra.mxu0 0.0
      %3902 = vmatprep.subr.mxu0 0.0
      %3903 = vmatpush2.msra.mxu0 0.0
      %3904 = vmatprep.subr.mxu0 0.0
      %3905 = vmatpush2.msra.mxu0 0.0
      %3906 = vmatprep.subr.mxu0 0.0
      %3907 = vmatpush2.msra.mxu0 0.0
      %3908 = vmatprep.subr.mxu0 0.0
      %3909 = vmatpush2.msra.mxu0 0.0
      %3910 = vmatprep.subr.mxu0 0.0
      %3911 = vmatpush2.msra.mxu0 0.0
      %3912 = vmatprep.subr.mxu0 0.0
      %3913 = vmatpush2.msra.mxu0 0.0
      %3914 = vmatprep.subr.mxu0 0.0
      %3915 = vmatpush2.msra.mxu0 0.0
      %3916 = vmatprep.subr.mxu0 0.0
      %3917 = vmatpush2.msra.mxu0 0.0
      %3918 = vmatprep.subr.mxu0 0.0
      %3919 = vmatpush2.msra.mxu0 0.0
      %3920 = vmatprep.subr.mxu0 0.0
      %3921 = vmatpush2.msra.mxu0 0.0
      %3922 = vmatprep.subr.mxu0 0.0
      %3923 = vmatpush2.msra.mxu0 0.0
      %3924 = vmatprep.subr.mxu0 0.0
      %3925 = vmatpush2.msra.mxu0 0.0
      %3926 = vmatprep.mubr.f32.mxu0 0.0
      %3927 = vmatmul.mubr.f32.gmra.mxu0 %v3860
      %v3928 = vpop.f32.mrf.mxu0
      %v3929 = vadd.f32 0.0, %v3928
      %v3930 = vpop.f32.mrf.mxu0
      %3931 = vdwg.mxu0
      %3932 = vmatprep.subr.mxu0 0.0
      %3933 = vmatpush1.msra.mxu0 0.0
      %3934 = vmatprep.subr.mxu0 0.0
      %3935 = vmatpush1.msra.mxu0 0.0
      %3936 = vmatprep.subr.mxu0 0.0
      %3937 = vmatpush1.msra.mxu0 0.0
      %3938 = vmatprep.subr.mxu0 0.0
      %3939 = vmatpush1.msra.mxu0 0.0
      %3940 = vmatprep.subr.mxu0 0.0
      %3941 = vmatpush1.msra.mxu0 0.0
      %3942 = vmatprep.subr.mxu0 0.0
      %3943 = vmatpush1.msra.mxu0 0.0
      %3944 = vmatprep.subr.mxu0 0.0
      %3945 = vmatpush1.msra.mxu0 0.0
      %3946 = vmatprep.subr.mxu0 0.0
      %3947 = vmatpush1.msra.mxu0 0.0
      %3948 = vmatprep.subr.mxu0 0.0
      %3949 = vmatpush1.msra.mxu0 0.0
      %3950 = vmatprep.subr.mxu0 0.0
      %3951 = vmatpush1.msra.mxu0 0.0
      %3952 = vmatprep.subr.mxu0 0.0
      %3953 = vmatpush1.msra.mxu0 0.0
      %3954 = vmatprep.subr.mxu0 0.0
      %3955 = vmatpush1.msra.mxu0 0.0
      %3956 = vmatprep.subr.mxu0 0.0
      %3957 = vmatpush1.msra.mxu0 %v2537
      %3958 = vmatprep.subr.mxu0 0.0
      %3959 = vmatpush1.msra.mxu0 %v2536
      %3960 = vmatprep.subr.mxu0 0.0
      %3961 = vmatpush1.msra.mxu0 %v2535
      %3962 = vmatprep.subr.mxu0 0.0
      %3963 = vmatpush1.msra.mxu0 %v2534
      %3964 = vmatprep.subr.mxu0 0.0
      %3965 = vmatpush2.msra.mxu0 0.0
      %3966 = vmatprep.subr.mxu0 0.0
      %3967 = vmatpush2.msra.mxu0 0.0
      %3968 = vmatprep.subr.mxu0 0.0
      %3969 = vmatpush2.msra.mxu0 0.0
      %3970 = vmatprep.subr.mxu0 0.0
      %3971 = vmatpush2.msra.mxu0 0.0
      %3972 = vmatprep.subr.mxu0 0.0
      %3973 = vmatpush2.msra.mxu0 0.0
      %3974 = vmatprep.subr.mxu0 0.0
      %3975 = vmatpush2.msra.mxu0 0.0
      %3976 = vmatprep.subr.mxu0 0.0
      %3977 = vmatpush2.msra.mxu0 0.0
      %3978 = vmatprep.subr.mxu0 0.0
      %3979 = vmatpush2.msra.mxu0 0.0
      %3980 = vmatprep.subr.mxu0 0.0
      %3981 = vmatpush2.msra.mxu0 0.0
      %3982 = vmatprep.subr.mxu0 0.0
      %3983 = vmatpush2.msra.mxu0 0.0
      %3984 = vmatprep.subr.mxu0 0.0
      %3985 = vmatpush2.msra.mxu0 0.0
      %3986 = vmatprep.subr.mxu0 0.0
      %3987 = vmatpush2.msra.mxu0 0.0
      %3988 = vmatprep.subr.mxu0 0.0
      %3989 = vmatpush2.msra.mxu0 0.0
      %3990 = vmatprep.subr.mxu0 0.0
      %3991 = vmatpush2.msra.mxu0 0.0
      %3992 = vmatprep.subr.mxu0 0.0
      %3993 = vmatpush2.msra.mxu0 0.0
      %3994 = vmatprep.subr.mxu0 0.0
      %3995 = vmatpush2.msra.mxu0 0.0
      %3996 = vmatprep.mubr.f32.mxu0 0.0
      %3997 = vmatmul.mubr.f32.gmra.mxu0 %v2781
      %v3998 = vpop.f32.mrf.mxu0
      %v3999 = vadd.f32 %v3929, %v3998
      %v4000 = vpop.f32.mrf.mxu0
      %4001 = vdwg.mxu0
      %v4002 = vlaneseq
      %v4003 = vshrl.u32 %v4002, 7
      %v4004 = vsub.s32 1, %v4003
      %v4005 = vrot.slane %v574, %v4004
      %v4006 = vadd.f32 %v3999, %v4005
      %vm4007 = vcmp.ge.f32.partialorder %v4006, 0.0
      %v4008 = vmul.f32 %v4006, 0.01
      %v4009 = vsel %vm4007, %v4006, %v4008
      %v4010 = vlaneseq
      %v4011 = vshrl.u32 %v4010, 7
      %v4012 = vsub.s32 2, %v4011
      %v4013 = vrot.slane %v574, %v4012
      %v4015 = vsel %vm487, %v4009, 0
      %4017 = vmatprep.subr.mxu0 0.0
      %4018 = vmatpush1.msra.mxu0 0.0
      %4019 = vmatprep.subr.mxu0 0.0
      %4020 = vmatpush1.msra.mxu0 0.0
      %4021 = vmatprep.subr.mxu0 0.0
      %4022 = vmatpush1.msra.mxu0 0.0
      %4023 = vmatprep.subr.mxu0 0.0
      %4024 = vmatpush1.msra.mxu0 0.0
      %4025 = vmatprep.subr.mxu0 0.0
      %4026 = vmatpush1.msra.mxu0 0.0
      %4027 = vmatprep.subr.mxu0 0.0
      %4028 = vmatpush1.msra.mxu0 0.0
      %4029 = vmatprep.subr.mxu0 0.0
      %4030 = vmatpush1.msra.mxu0 0.0
      %4031 = vmatprep.subr.mxu0 0.0
      %4032 = vmatpush1.msra.mxu0 0.0
      %4033 = vmatprep.subr.mxu0 0.0
      %4034 = vmatpush1.msra.mxu0 0.0
      %4035 = vmatprep.subr.mxu0 0.0
      %4036 = vmatpush1.msra.mxu0 0.0
      %4037 = vmatprep.subr.mxu0 0.0
      %4038 = vmatpush1.msra.mxu0 0.0
      %4039 = vmatprep.subr.mxu0 0.0
      %4040 = vmatpush1.msra.mxu0 0.0
      %4041 = vmatprep.subr.mxu0 0.0
      %4042 = vmatpush1.msra.mxu0 %v2545
      %4043 = vmatprep.subr.mxu0 0.0
      %4044 = vmatpush1.msra.mxu0 %v2544
      %4045 = vmatprep.subr.mxu0 0.0
      %4046 = vmatpush1.msra.mxu0 %v2543
      %4047 = vmatprep.subr.mxu0 0.0
      %4048 = vmatpush1.msra.mxu0 %v2542
      %4049 = vmatprep.subr.mxu0 0.0
      %4050 = vmatpush2.msra.mxu0 0.0
      %4051 = vmatprep.subr.mxu0 0.0
      %4052 = vmatpush2.msra.mxu0 0.0
      %4053 = vmatprep.subr.mxu0 0.0
      %4054 = vmatpush2.msra.mxu0 0.0
      %4055 = vmatprep.subr.mxu0 0.0
      %4056 = vmatpush2.msra.mxu0 0.0
      %4057 = vmatprep.subr.mxu0 0.0
      %4058 = vmatpush2.msra.mxu0 0.0
      %4059 = vmatprep.subr.mxu0 0.0
      %4060 = vmatpush2.msra.mxu0 0.0
      %4061 = vmatprep.subr.mxu0 0.0
      %4062 = vmatpush2.msra.mxu0 0.0
      %4063 = vmatprep.subr.mxu0 0.0
      %4064 = vmatpush2.msra.mxu0 0.0
      %4065 = vmatprep.subr.mxu0 0.0
      %4066 = vmatpush2.msra.mxu0 0.0
      %4067 = vmatprep.subr.mxu0 0.0
      %4068 = vmatpush2.msra.mxu0 0.0
      %4069 = vmatprep.subr.mxu0 0.0
      %4070 = vmatpush2.msra.mxu0 0.0
      %4071 = vmatprep.subr.mxu0 0.0
      %4072 = vmatpush2.msra.mxu0 0.0
      %4073 = vmatprep.subr.mxu0 0.0
      %4074 = vmatpush2.msra.mxu0 0.0
      %4075 = vmatprep.subr.mxu0 0.0
      %4076 = vmatpush2.msra.mxu0 0.0
      %4077 = vmatprep.subr.mxu0 0.0
      %4078 = vmatpush2.msra.mxu0 0.0
      %4079 = vmatprep.subr.mxu0 0.0
      %4080 = vmatpush2.msra.mxu0 0.0
      %4081 = vmatprep.mubr.f32.mxu0 0.0
      %4082 = vmatmul.mubr.f32.gmra.mxu0 %v4015
      %v4083 = vpop.f32.mrf.mxu0
      %v4084 = vadd.f32 %v4013, %v4083
      %v4085 = vpop.f32.mrf.mxu0
      %4086 = vdwg.mxu0
      %v4087 = vmul.f32 %v4084, 0.5
      %v4088 = vmul.f32 %v4087, 1.442695
      %v4089 = vpow.pop %v4088
      %v4090 = vld [vmem:[%s384] sm:$0xff]
      %4092 = vrot.lane.b32.xlu0 %v4090, 32
      %v4093 = vpop.permute.xlu0 %4092
      %v4095 = vmul.f32 %v4089, %v4093
      %4097 = vrot.lane.b32.xlu0 %v4095, 96
      %v4098 = vpop.permute.xlu0 %4097
      %v4100 = vadd.f32 %v4084, %v4098
      %v4101 = vadd.f32 %v389, %v4100
      %v4102 = vld [vmem:[%s1585 + $0x30] sm:$0xff]
      %v4103 = vld [vmem:[%s1585 + $0x38] sm:$0xff]
      %v4104 = vld [vmem:[%s1585 + $0x40] sm:$0xff]
      %v4105 = vld [vmem:[%s1585 + $0x48] sm:$0xff]
      %v4106 = vld [vmem:[%s1585 + $0x50] sm:$0xff]
      %v4107 = vld [vmem:[%s1585 + $0x58] sm:$0xff]
      %v4108 = vld [vmem:[%s1585 + $0x60] sm:$0xff]
      %v4109 = vld [vmem:[%s1585 + $0x68] sm:$0xff]
      %v4110 = vld [vmem:[%s1585 + $0x70] sm:$0xff]
      %v4111 = vld [vmem:[%s1585 + $0x78] sm:$0xff]
      %v4112 = vld [vmem:[%s1585 + $0x80] sm:$0xff]
      %v4113 = vld [vmem:[%s1585 + $0x88] sm:$0xff]
      %v4114 = vld [vmem:[%s1585 + $0x90] sm:$0xff]
      %v4115 = vld [vmem:[%s1585 + $0x98] sm:$0xff]
      %v4116 = vld [vmem:[%s1585 + $0xa0] sm:$0xff]
      %v4117 = vld [vmem:[%s1585 + $0xa8] sm:$0xff]
      %v4118 = vld [vmem:[%s1585 + $0xb0] sm:$0xff]
      %v4119 = vld [vmem:[%s1585 + $0xb8] sm:$0xff]
      %v4120 = vld [vmem:[%s1585 + $0xc0] sm:$0xff]
      %v4121 = vld [vmem:[%s1585 + $0xc8] sm:$0xff]
      %v4122 = vld [vmem:[%s1585 + $0xd0] sm:$0xff]
      %v4123 = vld [vmem:[%s1585 + $0xd8] sm:$0xff]
      %v4124 = vld [vmem:[%s1585 + $0xe0] sm:$0xff]
      %v4125 = vld [vmem:[%s1585 + $0xe8] sm:$0xff]
      %v4126 = vld [vmem:[%s1585 + $0xf0] sm:$0xff]
      %v4127 = vld [vmem:[%s1585 + $0xf8] sm:$0xff]
      %v4128 = vld [vmem:[%s1585 + $0x100] sm:$0xff]
      %v4129 = vld [vmem:[%s1585 + $0x108] sm:$0xff]
      %v4130 = vld [vmem:[%s1585 + $0x110] sm:$0xff]
      %v4131 = vld [vmem:[%s1585 + $0x118] sm:$0xff]
      %v4132 = vld [vmem:[%s1585 + $0x120] sm:$0xff]
      %v4133 = vld [vmem:[%s1585 + $0x128] sm:$0xff]
      %v4134 = vld [vmem:[%s1585 + $0x130] sm:$0xff]
      %v4135 = vld [vmem:[%s1585 + $0x138] sm:$0xff]
      %v4136 = vld [vmem:[%s1585 + $0x140] sm:$0xff]
      %v4137 = vld [vmem:[%s1585 + $0x148] sm:$0xff]
      %v4139 = vsel %vm607, %v2509, 0
      %4141 = vmatprep.subr.mxu0 0.0
      %4142 = vmatpush1.msra.mxu0 0.0
      %4143 = vmatprep.subr.mxu0 0.0
      %4144 = vmatpush1.msra.mxu0 0.0
      %4145 = vmatprep.subr.mxu0 0.0
      %4146 = vmatpush1.msra.mxu0 0.0
      %4147 = vmatprep.subr.mxu0 0.0
      %4148 = vmatpush1.msra.mxu0 0.0
      %4149 = vmatprep.subr.mxu0 0.0
      %4150 = vmatpush1.msra.mxu0 0.0
      %4151 = vmatprep.subr.mxu0 0.0
      %4152 = vmatpush1.msra.mxu0 0.0
      %4153 = vmatprep.subr.mxu0 0.0
      %4154 = vmatpush1.msra.mxu0 0.0
      %4155 = vmatprep.subr.mxu0 0.0
      %4156 = vmatpush1.msra.mxu0 0.0
      %4157 = vmatprep.subr.mxu0 0.0
      %4158 = vmatpush1.msra.mxu0 0.0
      %4159 = vmatprep.subr.mxu0 0.0
      %4160 = vmatpush1.msra.mxu0 0.0
      %4161 = vmatprep.subr.mxu0 0.0
      %4162 = vmatpush1.msra.mxu0 0.0
      %4163 = vmatprep.subr.mxu0 0.0
      %4164 = vmatpush1.msra.mxu0 0.0
      %4165 = vmatprep.subr.mxu0 0.0
      %4166 = vmatpush1.msra.mxu0 0.0
      %4167 = vmatprep.subr.mxu0 0.0
      %4168 = vmatpush1.msra.mxu0 0.0
      %4169 = vmatprep.subr.mxu0 0.0
      %4170 = vmatpush1.msra.mxu0 0.0
      %4171 = vmatprep.subr.mxu0 0.0
      %4172 = vmatpush1.msra.mxu0 %v4101
      %4173 = vmatprep.subr.mxu0 0.0
      %4174 = vmatpush2.msra.mxu0 0.0
      %4175 = vmatprep.subr.mxu0 0.0
      %4176 = vmatpush2.msra.mxu0 0.0
      %4177 = vmatprep.subr.mxu0 0.0
      %4178 = vmatpush2.msra.mxu0 0.0
      %4179 = vmatprep.subr.mxu0 0.0
      %4180 = vmatpush2.msra.mxu0 0.0
      %4181 = vmatprep.subr.mxu0 0.0
      %4182 = vmatpush2.msra.mxu0 0.0
      %4183 = vmatprep.subr.mxu0 0.0
      %4184 = vmatpush2.msra.mxu0 0.0
      %4185 = vmatprep.subr.mxu0 0.0
      %4186 = vmatpush2.msra.mxu0 0.0
      %4187 = vmatprep.subr.mxu0 0.0
      %4188 = vmatpush2.msra.mxu0 0.0
      %4189 = vmatprep.subr.mxu0 0.0
      %4190 = vmatpush2.msra.mxu0 0.0
      %4191 = vmatprep.subr.mxu0 0.0
      %4192 = vmatpush2.msra.mxu0 0.0
      %4193 = vmatprep.subr.mxu0 0.0
      %4194 = vmatpush2.msra.mxu0 0.0
      %4195 = vmatprep.subr.mxu0 0.0
      %4196 = vmatpush2.msra.mxu0 0.0
      %4197 = vmatprep.subr.mxu0 0.0
      %4198 = vmatpush2.msra.mxu0 0.0
      %4199 = vmatprep.subr.mxu0 0.0
      %4200 = vmatpush2.msra.mxu0 0.0
      %4201 = vmatprep.subr.mxu0 0.0
      %4202 = vmatpush2.msra.mxu0 0.0
      %4203 = vmatprep.subr.mxu0 0.0
      %4204 = vmatpush2.msra.mxu0 0.0
      %4205 = vmatprep.mubr.f32.mxu0 0.0
      %4206 = vmatmul.mubr.f32.gmra.mxu0 %v4139
      %v4207 = vpop.f32.mrf.mxu0
      %v4208 = vadd.f32 0.0, %v4207
      %v4209 = vpop.f32.mrf.mxu0
      %4210 = vdwg.mxu0
      %v4211 = vlaneseq
      %v4212 = vshrl.u32 %v4211, 7
      %v4213 = vsub.s32 3, %v4212
      %v4214 = vrot.slane %v1592, %v4213
      %v4216 = vsel %vm487, %v4208, 0
      %4218 = vmatprep.subr.mxu0 0.0
      %4219 = vmatpush1.msra.mxu0 0.0
      %4220 = vmatprep.subr.mxu0 0.0
      %4221 = vmatpush1.msra.mxu0 0.0
      %4222 = vmatprep.subr.mxu0 0.0
      %4223 = vmatpush1.msra.mxu0 0.0
      %4224 = vmatprep.subr.mxu0 0.0
      %4225 = vmatpush1.msra.mxu0 0.0
      %4226 = vmatprep.subr.mxu0 0.0
      %4227 = vmatpush1.msra.mxu0 0.0
      %4228 = vmatprep.subr.mxu0 0.0
      %4229 = vmatpush1.msra.mxu0 0.0
      %4230 = vmatprep.subr.mxu0 0.0
      %4231 = vmatpush1.msra.mxu0 0.0
      %4232 = vmatprep.subr.mxu0 0.0
      %4233 = vmatpush1.msra.mxu0 0.0
      %4234 = vmatprep.subr.mxu0 0.0
      %4235 = vmatpush1.msra.mxu0 0.0
      %4236 = vmatprep.subr.mxu0 0.0
      %4237 = vmatpush1.msra.mxu0 0.0
      %4238 = vmatprep.subr.mxu0 0.0
      %4239 = vmatpush1.msra.mxu0 0.0
      %4240 = vmatprep.subr.mxu0 0.0
      %4241 = vmatpush1.msra.mxu0 0.0
      %4242 = vmatprep.subr.mxu0 0.0
      %4243 = vmatpush1.msra.mxu0 %v4105
      %4244 = vmatprep.subr.mxu0 0.0
      %4245 = vmatpush1.msra.mxu0 %v4104
      %4246 = vmatprep.subr.mxu0 0.0
      %4247 = vmatpush1.msra.mxu0 %v4103
      %4248 = vmatprep.subr.mxu0 0.0
      %4249 = vmatpush1.msra.mxu0 %v4102
      %4250 = vmatprep.subr.mxu0 0.0
      %4251 = vmatpush2.msra.mxu0 0.0
      %4252 = vmatprep.subr.mxu0 0.0
      %4253 = vmatpush2.msra.mxu0 0.0
      %4254 = vmatprep.subr.mxu0 0.0
      %4255 = vmatpush2.msra.mxu0 0.0
      %4256 = vmatprep.subr.mxu0 0.0
      %4257 = vmatpush2.msra.mxu0 0.0
      %4258 = vmatprep.subr.mxu0 0.0
      %4259 = vmatpush2.msra.mxu0 0.0
      %4260 = vmatprep.subr.mxu0 0.0
      %4261 = vmatpush2.msra.mxu0 0.0
      %4262 = vmatprep.subr.mxu0 0.0
      %4263 = vmatpush2.msra.mxu0 0.0
      %4264 = vmatprep.subr.mxu0 0.0
      %4265 = vmatpush2.msra.mxu0 0.0
      %4266 = vmatprep.subr.mxu0 0.0
      %4267 = vmatpush2.msra.mxu0 0.0
      %4268 = vmatprep.subr.mxu0 0.0
      %4269 = vmatpush2.msra.mxu0 0.0
      %4270 = vmatprep.subr.mxu0 0.0
      %4271 = vmatpush2.msra.mxu0 0.0
      %4272 = vmatprep.subr.mxu0 0.0
      %4273 = vmatpush2.msra.mxu0 0.0
      %4274 = vmatprep.subr.mxu0 0.0
      %4275 = vmatpush2.msra.mxu0 0.0
      %4276 = vmatprep.subr.mxu0 0.0
      %4277 = vmatpush2.msra.mxu0 0.0
      %4278 = vmatprep.subr.mxu0 0.0
      %4279 = vmatpush2.msra.mxu0 0.0
      %4280 = vmatprep.subr.mxu0 0.0
      %4281 = vmatpush2.msra.mxu0 0.0
      %4282 = vmatprep.mubr.f32.mxu0 0.0
      %4283 = vmatmul.mubr.f32.gmra.mxu0 %v4216
      %v4284 = vpop.f32.mrf.mxu0
      %v4285 = vadd.f32 %v4214, %v4284
      %v4286 = vpop.f32.mrf.mxu0
      %4287 = vdwg.mxu0
      %vm4288 = vcmp.ge.f32.partialorder %v4285, 0.0
      %v4289 = vmul.f32 %v4285, 0.01
      %v4290 = vsel %vm4288, %v4285, %v4289
      %v4291 = vlaneseq
      %v4292 = vshrl.u32 %v4291, 7
      %v4293 = vsub.s32 7, %v4292
      %v4294 = vrot.slane %v1592, %v4293
      %v4296 = vsel %vm487, %v4290, 0
      %4298 = vmatprep.subr.mxu0 0.0
      %4299 = vmatpush1.msra.mxu0 0.0
      %4300 = vmatprep.subr.mxu0 0.0
      %4301 = vmatpush1.msra.mxu0 0.0
      %4302 = vmatprep.subr.mxu0 0.0
      %4303 = vmatpush1.msra.mxu0 0.0
      %4304 = vmatprep.subr.mxu0 0.0
      %4305 = vmatpush1.msra.mxu0 0.0
      %4306 = vmatprep.subr.mxu0 0.0
      %4307 = vmatpush1.msra.mxu0 0.0
      %4308 = vmatprep.subr.mxu0 0.0
      %4309 = vmatpush1.msra.mxu0 0.0
      %4310 = vmatprep.subr.mxu0 0.0
      %4311 = vmatpush1.msra.mxu0 0.0
      %4312 = vmatprep.subr.mxu0 0.0
      %4313 = vmatpush1.msra.mxu0 0.0
      %4314 = vmatprep.subr.mxu0 0.0
      %4315 = vmatpush1.msra.mxu0 0.0
      %4316 = vmatprep.subr.mxu0 0.0
      %4317 = vmatpush1.msra.mxu0 0.0
      %4318 = vmatprep.subr.mxu0 0.0
      %4319 = vmatpush1.msra.mxu0 0.0
      %4320 = vmatprep.subr.mxu0 0.0
      %4321 = vmatpush1.msra.mxu0 0.0
      %4322 = vmatprep.subr.mxu0 0.0
      %4323 = vmatpush1.msra.mxu0 %v4121
      %4324 = vmatprep.subr.mxu0 0.0
      %4325 = vmatpush1.msra.mxu0 %v4120
      %4326 = vmatprep.subr.mxu0 0.0
      %4327 = vmatpush1.msra.mxu0 %v4119
      %4328 = vmatprep.subr.mxu0 0.0
      %4329 = vmatpush1.msra.mxu0 %v4118
      %4330 = vmatprep.subr.mxu0 0.0
      %4331 = vmatpush2.msra.mxu0 0.0
      %4332 = vmatprep.subr.mxu0 0.0
      %4333 = vmatpush2.msra.mxu0 0.0
      %4334 = vmatprep.subr.mxu0 0.0
      %4335 = vmatpush2.msra.mxu0 0.0
      %4336 = vmatprep.subr.mxu0 0.0
      %4337 = vmatpush2.msra.mxu0 0.0
      %4338 = vmatprep.subr.mxu0 0.0
      %4339 = vmatpush2.msra.mxu0 0.0
      %4340 = vmatprep.subr.mxu0 0.0
      %4341 = vmatpush2.msra.mxu0 0.0
      %4342 = vmatprep.subr.mxu0 0.0
      %4343 = vmatpush2.msra.mxu0 0.0
      %4344 = vmatprep.subr.mxu0 0.0
      %4345 = vmatpush2.msra.mxu0 0.0
      %4346 = vmatprep.subr.mxu0 0.0
      %4347 = vmatpush2.msra.mxu0 0.0
      %4348 = vmatprep.subr.mxu0 0.0
      %4349 = vmatpush2.msra.mxu0 0.0
      %4350 = vmatprep.subr.mxu0 0.0
      %4351 = vmatpush2.msra.mxu0 0.0
      %4352 = vmatprep.subr.mxu0 0.0
      %4353 = vmatpush2.msra.mxu0 0.0
      %4354 = vmatprep.subr.mxu0 0.0
      %4355 = vmatpush2.msra.mxu0 0.0
      %4356 = vmatprep.subr.mxu0 0.0
      %4357 = vmatpush2.msra.mxu0 0.0
      %4358 = vmatprep.subr.mxu0 0.0
      %4359 = vmatpush2.msra.mxu0 0.0
      %4360 = vmatprep.subr.mxu0 0.0
      %4361 = vmatpush2.msra.mxu0 0.0
      %4362 = vmatprep.mubr.f32.mxu0 0.0
      %4363 = vmatmul.mubr.f32.gmra.mxu0 %v4296
      %v4364 = vpop.f32.mrf.mxu0
      %v4365 = vadd.f32 %v4294, %v4364
      %v4366 = vpop.f32.mrf.mxu0
      %4367 = vdwg.mxu0
      %v4368 = vlaneseq
      %v4369 = vshrl.u32 %v4368, 7
      %v4370 = vsub.s32 0, %v4369
      %v4371 = vrot.slane %v1593, %v4370
      %v4373 = vsel %vm487, %v4101, 0
      %4375 = vmatprep.subr.mxu0 0.0
      %4376 = vmatpush1.msra.mxu0 0.0
      %4377 = vmatprep.subr.mxu0 0.0
      %4378 = vmatpush1.msra.mxu0 0.0
      %4379 = vmatprep.subr.mxu0 0.0
      %4380 = vmatpush1.msra.mxu0 0.0
      %4381 = vmatprep.subr.mxu0 0.0
      %4382 = vmatpush1.msra.mxu0 0.0
      %4383 = vmatprep.subr.mxu0 0.0
      %4384 = vmatpush1.msra.mxu0 0.0
      %4385 = vmatprep.subr.mxu0 0.0
      %4386 = vmatpush1.msra.mxu0 0.0
      %4387 = vmatprep.subr.mxu0 0.0
      %4388 = vmatpush1.msra.mxu0 0.0
      %4389 = vmatprep.subr.mxu0 0.0
      %4390 = vmatpush1.msra.mxu0 0.0
      %4391 = vmatprep.subr.mxu0 0.0
      %4392 = vmatpush1.msra.mxu0 0.0
      %4393 = vmatprep.subr.mxu0 0.0
      %4394 = vmatpush1.msra.mxu0 0.0
      %4395 = vmatprep.subr.mxu0 0.0
      %4396 = vmatpush1.msra.mxu0 0.0
      %4397 = vmatprep.subr.mxu0 0.0
      %4398 = vmatpush1.msra.mxu0 0.0
      %4399 = vmatprep.subr.mxu0 0.0
      %4400 = vmatpush1.msra.mxu0 %v4125
      %4401 = vmatprep.subr.mxu0 0.0
      %4402 = vmatpush1.msra.mxu0 %v4124
      %4403 = vmatprep.subr.mxu0 0.0
      %4404 = vmatpush1.msra.mxu0 %v4123
      %4405 = vmatprep.subr.mxu0 0.0
      %4406 = vmatpush1.msra.mxu0 %v4122
      %4407 = vmatprep.subr.mxu0 0.0
      %4408 = vmatpush2.msra.mxu0 0.0
      %4409 = vmatprep.subr.mxu0 0.0
      %4410 = vmatpush2.msra.mxu0 0.0
      %4411 = vmatprep.subr.mxu0 0.0
      %4412 = vmatpush2.msra.mxu0 0.0
      %4413 = vmatprep.subr.mxu0 0.0
      %4414 = vmatpush2.msra.mxu0 0.0
      %4415 = vmatprep.subr.mxu0 0.0
      %4416 = vmatpush2.msra.mxu0 0.0
      %4417 = vmatprep.subr.mxu0 0.0
      %4418 = vmatpush2.msra.mxu0 0.0
      %4419 = vmatprep.subr.mxu0 0.0
      %4420 = vmatpush2.msra.mxu0 0.0
      %4421 = vmatprep.subr.mxu0 0.0
      %4422 = vmatpush2.msra.mxu0 0.0
      %4423 = vmatprep.subr.mxu0 0.0
      %4424 = vmatpush2.msra.mxu0 0.0
      %4425 = vmatprep.subr.mxu0 0.0
      %4426 = vmatpush2.msra.mxu0 0.0
      %4427 = vmatprep.subr.mxu0 0.0
      %4428 = vmatpush2.msra.mxu0 0.0
      %4429 = vmatprep.subr.mxu0 0.0
      %4430 = vmatpush2.msra.mxu0 0.0
      %4431 = vmatprep.subr.mxu0 0.0
      %4432 = vmatpush2.msra.mxu0 0.0
      %4433 = vmatprep.subr.mxu0 0.0
      %4434 = vmatpush2.msra.mxu0 0.0
      %4435 = vmatprep.subr.mxu0 0.0
      %4436 = vmatpush2.msra.mxu0 0.0
      %4437 = vmatprep.subr.mxu0 0.0
      %4438 = vmatpush2.msra.mxu0 0.0
      %4439 = vmatprep.mubr.f32.mxu0 0.0
      %4440 = vmatmul.mubr.f32.gmra.mxu0 %v4373
      %v4441 = vpop.f32.mrf.mxu0
      %v4442 = vadd.f32 %v4371, %v4441
      %v4443 = vpop.f32.mrf.mxu0
      %4444 = vdwg.mxu0
      %v4445 = vadd.f32 %v4365, %v4442
      %v4446 = vxor.u32 %v4445, 2147483648
      %v4447 = vmul.f32 %v4446, 1.442695
      %v4448 = vpow.pop %v4447
      %v4449 = vadd.f32 %v4448, 1.0
      %v4450 = vrcp.pop %v4449
      %v4451 = vmul.f32 1.0, %v4450
      %4453 = vrot.lane.b32.xlu0 %v4442, 64
      %v4454 = vpop.permute.xlu0 %4453
      %v4456 = vmul.f32 %v4451, %v4454
      %4458 = vrot.lane.b32.xlu0 %v4456, 64
      %v4459 = vpop.permute.xlu0 %4458
      %v4461 = vadd.f32 %v4365, %v4459
      %v4462 = vtanh.pop %v4461
      %v4463 = vsub.f32 1.0, %v4451
      %4465 = vrot.lane.b32.xlu0 %v4462, 96
      %v4466 = vpop.permute.xlu0 %4465
      %v4468 = vmul.f32 %v4463, %v4466
      %4469 = vrot.lane.b32.xlu0 %v4101, 32
      %v4470 = vpop.permute.xlu0 %4469
      %v4472 = vmul.f32 %v4451, %v4470
      %v4473 = vadd.f32 %v4468, %v4472
      %4475 = vrot.lane.b32.xlu0 %v4473, 96
      %v4476 = vpop.permute.xlu0 %4475
      %4478 = vmatprep.subr.mxu0 0.0
      %4479 = vmatpush1.msra.mxu0 0.0
      %4480 = vmatprep.subr.mxu0 0.0
      %4481 = vmatpush1.msra.mxu0 0.0
      %4482 = vmatprep.subr.mxu0 0.0
      %4483 = vmatpush1.msra.mxu0 0.0
      %4484 = vmatprep.subr.mxu0 0.0
      %4485 = vmatpush1.msra.mxu0 0.0
      %4486 = vmatprep.subr.mxu0 0.0
      %4487 = vmatpush1.msra.mxu0 0.0
      %4488 = vmatprep.subr.mxu0 0.0
      %4489 = vmatpush1.msra.mxu0 0.0
      %4490 = vmatprep.subr.mxu0 0.0
      %4491 = vmatpush1.msra.mxu0 0.0
      %4492 = vmatprep.subr.mxu0 0.0
      %4493 = vmatpush1.msra.mxu0 0.0
      %4494 = vmatprep.subr.mxu0 0.0
      %4495 = vmatpush1.msra.mxu0 0.0
      %4496 = vmatprep.subr.mxu0 0.0
      %4497 = vmatpush1.msra.mxu0 0.0
      %4498 = vmatprep.subr.mxu0 0.0
      %4499 = vmatpush1.msra.mxu0 0.0
      %4500 = vmatprep.subr.mxu0 0.0
      %4501 = vmatpush1.msra.mxu0 0.0
      %4502 = vmatprep.subr.mxu0 0.0
      %4503 = vmatpush1.msra.mxu0 0.0
      %4504 = vmatprep.subr.mxu0 0.0
      %4505 = vmatpush1.msra.mxu0 0.0
      %4506 = vmatprep.subr.mxu0 0.0
      %4507 = vmatpush1.msra.mxu0 0.0
      %4508 = vmatprep.subr.mxu0 0.0
      %4509 = vmatpush1.msra.mxu0 %v4476
      %4510 = vmatprep.subr.mxu0 0.0
      %4511 = vmatpush2.msra.mxu0 0.0
      %4512 = vmatprep.subr.mxu0 0.0
      %4513 = vmatpush2.msra.mxu0 0.0
      %4514 = vmatprep.subr.mxu0 0.0
      %4515 = vmatpush2.msra.mxu0 0.0
      %4516 = vmatprep.subr.mxu0 0.0
      %4517 = vmatpush2.msra.mxu0 0.0
      %4518 = vmatprep.subr.mxu0 0.0
      %4519 = vmatpush2.msra.mxu0 0.0
      %4520 = vmatprep.subr.mxu0 0.0
      %4521 = vmatpush2.msra.mxu0 0.0
      %4522 = vmatprep.subr.mxu0 0.0
      %4523 = vmatpush2.msra.mxu0 0.0
      %4524 = vmatprep.subr.mxu0 0.0
      %4525 = vmatpush2.msra.mxu0 0.0
      %4526 = vmatprep.subr.mxu0 0.0
      %4527 = vmatpush2.msra.mxu0 0.0
      %4528 = vmatprep.subr.mxu0 0.0
      %4529 = vmatpush2.msra.mxu0 0.0
      %4530 = vmatprep.subr.mxu0 0.0
      %4531 = vmatpush2.msra.mxu0 0.0
      %4532 = vmatprep.subr.mxu0 0.0
      %4533 = vmatpush2.msra.mxu0 0.0
      %4534 = vmatprep.subr.mxu0 0.0
      %4535 = vmatpush2.msra.mxu0 0.0
      %4536 = vmatprep.subr.mxu0 0.0
      %4537 = vmatpush2.msra.mxu0 0.0
      %4538 = vmatprep.subr.mxu0 0.0
      %4539 = vmatpush2.msra.mxu0 0.0
      %4540 = vmatprep.subr.mxu0 0.0
      %4541 = vmatpush2.msra.mxu0 0.0
      %4542 = vmatprep.mubr.f32.mxu0 0.0
      %4543 = vmatmul.mubr.f32.gmra.mxu0 %v4139
      %v4544 = vpop.f32.mrf.mxu0
      %v4545 = vadd.f32 0.0, %v4544
      %v4546 = vpop.f32.mrf.mxu0
      %4547 = vdwg.mxu0
      %v4548 = vlaneseq
      %v4549 = vshrl.u32 %v4548, 7
      %v4550 = vsub.s32 4, %v4549
      %v4551 = vrot.slane %v1592, %v4550
      %v4553 = vsel %vm487, %v4545, 0
      %4555 = vmatprep.subr.mxu0 0.0
      %4556 = vmatpush1.msra.mxu0 0.0
      %4557 = vmatprep.subr.mxu0 0.0
      %4558 = vmatpush1.msra.mxu0 0.0
      %4559 = vmatprep.subr.mxu0 0.0
      %4560 = vmatpush1.msra.mxu0 0.0
      %4561 = vmatprep.subr.mxu0 0.0
      %4562 = vmatpush1.msra.mxu0 0.0
      %4563 = vmatprep.subr.mxu0 0.0
      %4564 = vmatpush1.msra.mxu0 0.0
      %4565 = vmatprep.subr.mxu0 0.0
      %4566 = vmatpush1.msra.mxu0 0.0
      %4567 = vmatprep.subr.mxu0 0.0
      %4568 = vmatpush1.msra.mxu0 0.0
      %4569 = vmatprep.subr.mxu0 0.0
      %4570 = vmatpush1.msra.mxu0 0.0
      %4571 = vmatprep.subr.mxu0 0.0
      %4572 = vmatpush1.msra.mxu0 0.0
      %4573 = vmatprep.subr.mxu0 0.0
      %4574 = vmatpush1.msra.mxu0 0.0
      %4575 = vmatprep.subr.mxu0 0.0
      %4576 = vmatpush1.msra.mxu0 0.0
      %4577 = vmatprep.subr.mxu0 0.0
      %4578 = vmatpush1.msra.mxu0 0.0
      %4579 = vmatprep.subr.mxu0 0.0
      %4580 = vmatpush1.msra.mxu0 %v4109
      %4581 = vmatprep.subr.mxu0 0.0
      %4582 = vmatpush1.msra.mxu0 %v4108
      %4583 = vmatprep.subr.mxu0 0.0
      %4584 = vmatpush1.msra.mxu0 %v4107
      %4585 = vmatprep.subr.mxu0 0.0
      %4586 = vmatpush1.msra.mxu0 %v4106
      %4587 = vmatprep.subr.mxu0 0.0
      %4588 = vmatpush2.msra.mxu0 0.0
      %4589 = vmatprep.subr.mxu0 0.0
      %4590 = vmatpush2.msra.mxu0 0.0
      %4591 = vmatprep.subr.mxu0 0.0
      %4592 = vmatpush2.msra.mxu0 0.0
      %4593 = vmatprep.subr.mxu0 0.0
      %4594 = vmatpush2.msra.mxu0 0.0
      %4595 = vmatprep.subr.mxu0 0.0
      %4596 = vmatpush2.msra.mxu0 0.0
      %4597 = vmatprep.subr.mxu0 0.0
      %4598 = vmatpush2.msra.mxu0 0.0
      %4599 = vmatprep.subr.mxu0 0.0
      %4600 = vmatpush2.msra.mxu0 0.0
      %4601 = vmatprep.subr.mxu0 0.0
      %4602 = vmatpush2.msra.mxu0 0.0
      %4603 = vmatprep.subr.mxu0 0.0
      %4604 = vmatpush2.msra.mxu0 0.0
      %4605 = vmatprep.subr.mxu0 0.0
      %4606 = vmatpush2.msra.mxu0 0.0
      %4607 = vmatprep.subr.mxu0 0.0
      %4608 = vmatpush2.msra.mxu0 0.0
      %4609 = vmatprep.subr.mxu0 0.0
      %4610 = vmatpush2.msra.mxu0 0.0
      %4611 = vmatprep.subr.mxu0 0.0
      %4612 = vmatpush2.msra.mxu0 0.0
      %4613 = vmatprep.subr.mxu0 0.0
      %4614 = vmatpush2.msra.mxu0 0.0
      %4615 = vmatprep.subr.mxu0 0.0
      %4616 = vmatpush2.msra.mxu0 0.0
      %4617 = vmatprep.subr.mxu0 0.0
      %4618 = vmatpush2.msra.mxu0 0.0
      %4619 = vmatprep.mubr.f32.mxu0 0.0
      %4620 = vmatmul.mubr.f32.gmra.mxu0 %v4553
      %v4621 = vpop.f32.mrf.mxu0
      %v4622 = vadd.f32 %v4551, %v4621
      %v4623 = vpop.f32.mrf.mxu0
      %4624 = vdwg.mxu0
      %vm4625 = vcmp.ge.f32.partialorder %v4622, 0.0
      %v4626 = vmul.f32 %v4622, 0.01
      %v4627 = vsel %vm4625, %v4622, %v4626
      %v4629 = vsel %vm487, %v4627, 0
      %4631 = vmatprep.subr.mxu0 0.0
      %4632 = vmatpush1.msra.mxu0 0.0
      %4633 = vmatprep.subr.mxu0 0.0
      %4634 = vmatpush1.msra.mxu0 0.0
      %4635 = vmatprep.subr.mxu0 0.0
      %4636 = vmatpush1.msra.mxu0 0.0
      %4637 = vmatprep.subr.mxu0 0.0
      %4638 = vmatpush1.msra.mxu0 0.0
      %4639 = vmatprep.subr.mxu0 0.0
      %4640 = vmatpush1.msra.mxu0 0.0
      %4641 = vmatprep.subr.mxu0 0.0
      %4642 = vmatpush1.msra.mxu0 0.0
      %4643 = vmatprep.subr.mxu0 0.0
      %4644 = vmatpush1.msra.mxu0 0.0
      %4645 = vmatprep.subr.mxu0 0.0
      %4646 = vmatpush1.msra.mxu0 0.0
      %4647 = vmatprep.subr.mxu0 0.0
      %4648 = vmatpush1.msra.mxu0 0.0
      %4649 = vmatprep.subr.mxu0 0.0
      %4650 = vmatpush1.msra.mxu0 0.0
      %4651 = vmatprep.subr.mxu0 0.0
      %4652 = vmatpush1.msra.mxu0 0.0
      %4653 = vmatprep.subr.mxu0 0.0
      %4654 = vmatpush1.msra.mxu0 0.0
      %4655 = vmatprep.subr.mxu0 0.0
      %4656 = vmatpush1.msra.mxu0 %v4121
      %4657 = vmatprep.subr.mxu0 0.0
      %4658 = vmatpush1.msra.mxu0 %v4120
      %4659 = vmatprep.subr.mxu0 0.0
      %4660 = vmatpush1.msra.mxu0 %v4119
      %4661 = vmatprep.subr.mxu0 0.0
      %4662 = vmatpush1.msra.mxu0 %v4118
      %4663 = vmatprep.subr.mxu0 0.0
      %4664 = vmatpush2.msra.mxu0 0.0
      %4665 = vmatprep.subr.mxu0 0.0
      %4666 = vmatpush2.msra.mxu0 0.0
      %4667 = vmatprep.subr.mxu0 0.0
      %4668 = vmatpush2.msra.mxu0 0.0
      %4669 = vmatprep.subr.mxu0 0.0
      %4670 = vmatpush2.msra.mxu0 0.0
      %4671 = vmatprep.subr.mxu0 0.0
      %4672 = vmatpush2.msra.mxu0 0.0
      %4673 = vmatprep.subr.mxu0 0.0
      %4674 = vmatpush2.msra.mxu0 0.0
      %4675 = vmatprep.subr.mxu0 0.0
      %4676 = vmatpush2.msra.mxu0 0.0
      %4677 = vmatprep.subr.mxu0 0.0
      %4678 = vmatpush2.msra.mxu0 0.0
      %4679 = vmatprep.subr.mxu0 0.0
      %4680 = vmatpush2.msra.mxu0 0.0
      %4681 = vmatprep.subr.mxu0 0.0
      %4682 = vmatpush2.msra.mxu0 0.0
      %4683 = vmatprep.subr.mxu0 0.0
      %4684 = vmatpush2.msra.mxu0 0.0
      %4685 = vmatprep.subr.mxu0 0.0
      %4686 = vmatpush2.msra.mxu0 0.0
      %4687 = vmatprep.subr.mxu0 0.0
      %4688 = vmatpush2.msra.mxu0 0.0
      %4689 = vmatprep.subr.mxu0 0.0
      %4690 = vmatpush2.msra.mxu0 0.0
      %4691 = vmatprep.subr.mxu0 0.0
      %4692 = vmatpush2.msra.mxu0 0.0
      %4693 = vmatprep.subr.mxu0 0.0
      %4694 = vmatpush2.msra.mxu0 0.0
      %4695 = vmatprep.mubr.f32.mxu0 0.0
      %4696 = vmatmul.mubr.f32.gmra.mxu0 %v4629
      %v4697 = vpop.f32.mrf.mxu0
      %v4698 = vadd.f32 %v4294, %v4697
      %v4699 = vpop.f32.mrf.mxu0
      %4700 = vdwg.mxu0
      %v4701 = vsel %vm487, %v4476, 0
      %4703 = vmatprep.subr.mxu0 0.0
      %4704 = vmatpush1.msra.mxu0 0.0
      %4705 = vmatprep.subr.mxu0 0.0
      %4706 = vmatpush1.msra.mxu0 0.0
      %4707 = vmatprep.subr.mxu0 0.0
      %4708 = vmatpush1.msra.mxu0 0.0
      %4709 = vmatprep.subr.mxu0 0.0
      %4710 = vmatpush1.msra.mxu0 0.0
      %4711 = vmatprep.subr.mxu0 0.0
      %4712 = vmatpush1.msra.mxu0 0.0
      %4713 = vmatprep.subr.mxu0 0.0
      %4714 = vmatpush1.msra.mxu0 0.0
      %4715 = vmatprep.subr.mxu0 0.0
      %4716 = vmatpush1.msra.mxu0 0.0
      %4717 = vmatprep.subr.mxu0 0.0
      %4718 = vmatpush1.msra.mxu0 0.0
      %4719 = vmatprep.subr.mxu0 0.0
      %4720 = vmatpush1.msra.mxu0 0.0
      %4721 = vmatprep.subr.mxu0 0.0
      %4722 = vmatpush1.msra.mxu0 0.0
      %4723 = vmatprep.subr.mxu0 0.0
      %4724 = vmatpush1.msra.mxu0 0.0
      %4725 = vmatprep.subr.mxu0 0.0
      %4726 = vmatpush1.msra.mxu0 0.0
      %4727 = vmatprep.subr.mxu0 0.0
      %4728 = vmatpush1.msra.mxu0 %v4125
      %4729 = vmatprep.subr.mxu0 0.0
      %4730 = vmatpush1.msra.mxu0 %v4124
      %4731 = vmatprep.subr.mxu0 0.0
      %4732 = vmatpush1.msra.mxu0 %v4123
      %4733 = vmatprep.subr.mxu0 0.0
      %4734 = vmatpush1.msra.mxu0 %v4122
      %4735 = vmatprep.subr.mxu0 0.0
      %4736 = vmatpush2.msra.mxu0 0.0
      %4737 = vmatprep.subr.mxu0 0.0
      %4738 = vmatpush2.msra.mxu0 0.0
      %4739 = vmatprep.subr.mxu0 0.0
      %4740 = vmatpush2.msra.mxu0 0.0
      %4741 = vmatprep.subr.mxu0 0.0
      %4742 = vmatpush2.msra.mxu0 0.0
      %4743 = vmatprep.subr.mxu0 0.0
      %4744 = vmatpush2.msra.mxu0 0.0
      %4745 = vmatprep.subr.mxu0 0.0
      %4746 = vmatpush2.msra.mxu0 0.0
      %4747 = vmatprep.subr.mxu0 0.0
      %4748 = vmatpush2.msra.mxu0 0.0
      %4749 = vmatprep.subr.mxu0 0.0
      %4750 = vmatpush2.msra.mxu0 0.0
      %4751 = vmatprep.subr.mxu0 0.0
      %4752 = vmatpush2.msra.mxu0 0.0
      %4753 = vmatprep.subr.mxu0 0.0
      %4754 = vmatpush2.msra.mxu0 0.0
      %4755 = vmatprep.subr.mxu0 0.0
      %4756 = vmatpush2.msra.mxu0 0.0
      %4757 = vmatprep.subr.mxu0 0.0
      %4758 = vmatpush2.msra.mxu0 0.0
      %4759 = vmatprep.subr.mxu0 0.0
      %4760 = vmatpush2.msra.mxu0 0.0
      %4761 = vmatprep.subr.mxu0 0.0
      %4762 = vmatpush2.msra.mxu0 0.0
      %4763 = vmatprep.subr.mxu0 0.0
      %4764 = vmatpush2.msra.mxu0 0.0
      %4765 = vmatprep.subr.mxu0 0.0
      %4766 = vmatpush2.msra.mxu0 0.0
      %4767 = vmatprep.mubr.f32.mxu0 0.0
      %4768 = vmatmul.mubr.f32.gmra.mxu0 %v4701
      %v4769 = vpop.f32.mrf.mxu0
      %v4770 = vadd.f32 %v4371, %v4769
      %v4771 = vpop.f32.mrf.mxu0
      %4772 = vdwg.mxu0
      %v4773 = vadd.f32 %v4698, %v4770
      %v4774 = vxor.u32 %v4773, 2147483648
      %v4775 = vmul.f32 %v4774, 1.442695
      %v4776 = vpow.pop %v4775
      %v4777 = vadd.f32 %v4776, 1.0
      %v4778 = vrcp.pop %v4777
      %v4779 = vmul.f32 1.0, %v4778
      %4781 = vrot.lane.b32.xlu0 %v4770, 64
      %v4782 = vpop.permute.xlu0 %4781
      %v4784 = vmul.f32 %v4779, %v4782
      %4786 = vrot.lane.b32.xlu0 %v4784, 64
      %v4787 = vpop.permute.xlu0 %4786
      %v4789 = vadd.f32 %v4698, %v4787
      %v4790 = vtanh.pop %v4789
      %v4791 = vsub.f32 1.0, %v4779
      %4793 = vrot.lane.b32.xlu0 %v4790, 96
      %v4794 = vpop.permute.xlu0 %4793
      %v4796 = vmul.f32 %v4791, %v4794
      %v4797 = vmul.f32 %v4779, %v4473
      %v4798 = vadd.f32 %v4796, %v4797
      %4800 = vrot.lane.b32.xlu0 %v4798, 96
      %v4801 = vpop.permute.xlu0 %4800
      %4803 = vmatprep.subr.mxu0 0.0
      %4804 = vmatpush1.msra.mxu0 0.0
      %4805 = vmatprep.subr.mxu0 0.0
      %4806 = vmatpush1.msra.mxu0 0.0
      %4807 = vmatprep.subr.mxu0 0.0
      %4808 = vmatpush1.msra.mxu0 0.0
      %4809 = vmatprep.subr.mxu0 0.0
      %4810 = vmatpush1.msra.mxu0 0.0
      %4811 = vmatprep.subr.mxu0 0.0
      %4812 = vmatpush1.msra.mxu0 0.0
      %4813 = vmatprep.subr.mxu0 0.0
      %4814 = vmatpush1.msra.mxu0 0.0
      %4815 = vmatprep.subr.mxu0 0.0
      %4816 = vmatpush1.msra.mxu0 0.0
      %4817 = vmatprep.subr.mxu0 0.0
      %4818 = vmatpush1.msra.mxu0 0.0
      %4819 = vmatprep.subr.mxu0 0.0
      %4820 = vmatpush1.msra.mxu0 0.0
      %4821 = vmatprep.subr.mxu0 0.0
      %4822 = vmatpush1.msra.mxu0 0.0
      %4823 = vmatprep.subr.mxu0 0.0
      %4824 = vmatpush1.msra.mxu0 0.0
      %4825 = vmatprep.subr.mxu0 0.0
      %4826 = vmatpush1.msra.mxu0 0.0
      %4827 = vmatprep.subr.mxu0 0.0
      %4828 = vmatpush1.msra.mxu0 0.0
      %4829 = vmatprep.subr.mxu0 0.0
      %4830 = vmatpush1.msra.mxu0 0.0
      %4831 = vmatprep.subr.mxu0 0.0
      %4832 = vmatpush1.msra.mxu0 0.0
      %4833 = vmatprep.subr.mxu0 0.0
      %4834 = vmatpush1.msra.mxu0 %v4801
      %4835 = vmatprep.subr.mxu0 0.0
      %4836 = vmatpush2.msra.mxu0 0.0
      %4837 = vmatprep.subr.mxu0 0.0
      %4838 = vmatpush2.msra.mxu0 0.0
      %4839 = vmatprep.subr.mxu0 0.0
      %4840 = vmatpush2.msra.mxu0 0.0
      %4841 = vmatprep.subr.mxu0 0.0
      %4842 = vmatpush2.msra.mxu0 0.0
      %4843 = vmatprep.subr.mxu0 0.0
      %4844 = vmatpush2.msra.mxu0 0.0
      %4845 = vmatprep.subr.mxu0 0.0
      %4846 = vmatpush2.msra.mxu0 0.0
      %4847 = vmatprep.subr.mxu0 0.0
      %4848 = vmatpush2.msra.mxu0 0.0
      %4849 = vmatprep.subr.mxu0 0.0
      %4850 = vmatpush2.msra.mxu0 0.0
      %4851 = vmatprep.subr.mxu0 0.0
      %4852 = vmatpush2.msra.mxu0 0.0
      %4853 = vmatprep.subr.mxu0 0.0
      %4854 = vmatpush2.msra.mxu0 0.0
      %4855 = vmatprep.subr.mxu0 0.0
      %4856 = vmatpush2.msra.mxu0 0.0
      %4857 = vmatprep.subr.mxu0 0.0
      %4858 = vmatpush2.msra.mxu0 0.0
      %4859 = vmatprep.subr.mxu0 0.0
      %4860 = vmatpush2.msra.mxu0 0.0
      %4861 = vmatprep.subr.mxu0 0.0
      %4862 = vmatpush2.msra.mxu0 0.0
      %4863 = vmatprep.subr.mxu0 0.0
      %4864 = vmatpush2.msra.mxu0 0.0
      %4865 = vmatprep.subr.mxu0 0.0
      %4866 = vmatpush2.msra.mxu0 0.0
      %4867 = vmatprep.mubr.f32.mxu0 0.0
      %4868 = vmatmul.mubr.f32.gmra.mxu0 %v4139
      %v4869 = vpop.f32.mrf.mxu0
      %v4870 = vadd.f32 0.0, %v4869
      %v4871 = vpop.f32.mrf.mxu0
      %4872 = vdwg.mxu0
      %v4873 = vlaneseq
      %v4874 = vshrl.u32 %v4873, 7
      %v4875 = vsub.s32 5, %v4874
      %v4876 = vrot.slane %v1592, %v4875
      %v4878 = vsel %vm487, %v4870, 0
      %4880 = vmatprep.subr.mxu0 0.0
      %4881 = vmatpush1.msra.mxu0 0.0
      %4882 = vmatprep.subr.mxu0 0.0
      %4883 = vmatpush1.msra.mxu0 0.0
      %4884 = vmatprep.subr.mxu0 0.0
      %4885 = vmatpush1.msra.mxu0 0.0
      %4886 = vmatprep.subr.mxu0 0.0
      %4887 = vmatpush1.msra.mxu0 0.0
      %4888 = vmatprep.subr.mxu0 0.0
      %4889 = vmatpush1.msra.mxu0 0.0
      %4890 = vmatprep.subr.mxu0 0.0
      %4891 = vmatpush1.msra.mxu0 0.0
      %4892 = vmatprep.subr.mxu0 0.0
      %4893 = vmatpush1.msra.mxu0 0.0
      %4894 = vmatprep.subr.mxu0 0.0
      %4895 = vmatpush1.msra.mxu0 0.0
      %4896 = vmatprep.subr.mxu0 0.0
      %4897 = vmatpush1.msra.mxu0 0.0
      %4898 = vmatprep.subr.mxu0 0.0
      %4899 = vmatpush1.msra.mxu0 0.0
      %4900 = vmatprep.subr.mxu0 0.0
      %4901 = vmatpush1.msra.mxu0 0.0
      %4902 = vmatprep.subr.mxu0 0.0
      %4903 = vmatpush1.msra.mxu0 0.0
      %4904 = vmatprep.subr.mxu0 0.0
      %4905 = vmatpush1.msra.mxu0 %v4113
      %4906 = vmatprep.subr.mxu0 0.0
      %4907 = vmatpush1.msra.mxu0 %v4112
      %4908 = vmatprep.subr.mxu0 0.0
      %4909 = vmatpush1.msra.mxu0 %v4111
      %4910 = vmatprep.subr.mxu0 0.0
      %4911 = vmatpush1.msra.mxu0 %v4110
      %4912 = vmatprep.subr.mxu0 0.0
      %4913 = vmatpush2.msra.mxu0 0.0
      %4914 = vmatprep.subr.mxu0 0.0
      %4915 = vmatpush2.msra.mxu0 0.0
      %4916 = vmatprep.subr.mxu0 0.0
      %4917 = vmatpush2.msra.mxu0 0.0
      %4918 = vmatprep.subr.mxu0 0.0
      %4919 = vmatpush2.msra.mxu0 0.0
      %4920 = vmatprep.subr.mxu0 0.0
      %4921 = vmatpush2.msra.mxu0 0.0
      %4922 = vmatprep.subr.mxu0 0.0
      %4923 = vmatpush2.msra.mxu0 0.0
      %4924 = vmatprep.subr.mxu0 0.0
      %4925 = vmatpush2.msra.mxu0 0.0
      %4926 = vmatprep.subr.mxu0 0.0
      %4927 = vmatpush2.msra.mxu0 0.0
      %4928 = vmatprep.subr.mxu0 0.0
      %4929 = vmatpush2.msra.mxu0 0.0
      %4930 = vmatprep.subr.mxu0 0.0
      %4931 = vmatpush2.msra.mxu0 0.0
      %4932 = vmatprep.subr.mxu0 0.0
      %4933 = vmatpush2.msra.mxu0 0.0
      %4934 = vmatprep.subr.mxu0 0.0
      %4935 = vmatpush2.msra.mxu0 0.0
      %4936 = vmatprep.subr.mxu0 0.0
      %4937 = vmatpush2.msra.mxu0 0.0
      %4938 = vmatprep.subr.mxu0 0.0
      %4939 = vmatpush2.msra.mxu0 0.0
      %4940 = vmatprep.subr.mxu0 0.0
      %4941 = vmatpush2.msra.mxu0 0.0
      %4942 = vmatprep.subr.mxu0 0.0
      %4943 = vmatpush2.msra.mxu0 0.0
      %4944 = vmatprep.mubr.f32.mxu0 0.0
      %4945 = vmatmul.mubr.f32.gmra.mxu0 %v4878
      %v4946 = vpop.f32.mrf.mxu0
      %v4947 = vadd.f32 %v4876, %v4946
      %v4948 = vpop.f32.mrf.mxu0
      %4949 = vdwg.mxu0
      %vm4950 = vcmp.ge.f32.partialorder %v4947, 0.0
      %v4951 = vmul.f32 %v4947, 0.01
      %v4952 = vsel %vm4950, %v4947, %v4951
      %v4954 = vsel %vm487, %v4952, 0
      %4956 = vmatprep.subr.mxu0 0.0
      %4957 = vmatpush1.msra.mxu0 0.0
      %4958 = vmatprep.subr.mxu0 0.0
      %4959 = vmatpush1.msra.mxu0 0.0
      %4960 = vmatprep.subr.mxu0 0.0
      %4961 = vmatpush1.msra.mxu0 0.0
      %4962 = vmatprep.subr.mxu0 0.0
      %4963 = vmatpush1.msra.mxu0 0.0
      %4964 = vmatprep.subr.mxu0 0.0
      %4965 = vmatpush1.msra.mxu0 0.0
      %4966 = vmatprep.subr.mxu0 0.0
      %4967 = vmatpush1.msra.mxu0 0.0
      %4968 = vmatprep.subr.mxu0 0.0
      %4969 = vmatpush1.msra.mxu0 0.0
      %4970 = vmatprep.subr.mxu0 0.0
      %4971 = vmatpush1.msra.mxu0 0.0
      %4972 = vmatprep.subr.mxu0 0.0
      %4973 = vmatpush1.msra.mxu0 0.0
      %4974 = vmatprep.subr.mxu0 0.0
      %4975 = vmatpush1.msra.mxu0 0.0
      %4976 = vmatprep.subr.mxu0 0.0
      %4977 = vmatpush1.msra.mxu0 0.0
      %4978 = vmatprep.subr.mxu0 0.0
      %4979 = vmatpush1.msra.mxu0 0.0
      %4980 = vmatprep.subr.mxu0 0.0
      %4981 = vmatpush1.msra.mxu0 %v4121
      %4982 = vmatprep.subr.mxu0 0.0
      %4983 = vmatpush1.msra.mxu0 %v4120
      %4984 = vmatprep.subr.mxu0 0.0
      %4985 = vmatpush1.msra.mxu0 %v4119
      %4986 = vmatprep.subr.mxu0 0.0
      %4987 = vmatpush1.msra.mxu0 %v4118
      %4988 = vmatprep.subr.mxu0 0.0
      %4989 = vmatpush2.msra.mxu0 0.0
      %4990 = vmatprep.subr.mxu0 0.0
      %4991 = vmatpush2.msra.mxu0 0.0
      %4992 = vmatprep.subr.mxu0 0.0
      %4993 = vmatpush2.msra.mxu0 0.0
      %4994 = vmatprep.subr.mxu0 0.0
      %4995 = vmatpush2.msra.mxu0 0.0
      %4996 = vmatprep.subr.mxu0 0.0
      %4997 = vmatpush2.msra.mxu0 0.0
      %4998 = vmatprep.subr.mxu0 0.0
      %4999 = vmatpush2.msra.mxu0 0.0
      %5000 = vmatprep.subr.mxu0 0.0
      %5001 = vmatpush2.msra.mxu0 0.0
      %5002 = vmatprep.subr.mxu0 0.0
      %5003 = vmatpush2.msra.mxu0 0.0
      %5004 = vmatprep.subr.mxu0 0.0
      %5005 = vmatpush2.msra.mxu0 0.0
      %5006 = vmatprep.subr.mxu0 0.0
      %5007 = vmatpush2.msra.mxu0 0.0
      %5008 = vmatprep.subr.mxu0 0.0
      %5009 = vmatpush2.msra.mxu0 0.0
      %5010 = vmatprep.subr.mxu0 0.0
      %5011 = vmatpush2.msra.mxu0 0.0
      %5012 = vmatprep.subr.mxu0 0.0
      %5013 = vmatpush2.msra.mxu0 0.0
      %5014 = vmatprep.subr.mxu0 0.0
      %5015 = vmatpush2.msra.mxu0 0.0
      %5016 = vmatprep.subr.mxu0 0.0
      %5017 = vmatpush2.msra.mxu0 0.0
      %5018 = vmatprep.subr.mxu0 0.0
      %5019 = vmatpush2.msra.mxu0 0.0
      %5020 = vmatprep.mubr.f32.mxu0 0.0
      %5021 = vmatmul.mubr.f32.gmra.mxu0 %v4954
      %v5022 = vpop.f32.mrf.mxu0
      %v5023 = vadd.f32 %v4294, %v5022
      %v5024 = vpop.f32.mrf.mxu0
      %5025 = vdwg.mxu0
      %v5026 = vsel %vm487, %v4801, 0
      %5028 = vmatprep.subr.mxu0 0.0
      %5029 = vmatpush1.msra.mxu0 0.0
      %5030 = vmatprep.subr.mxu0 0.0
      %5031 = vmatpush1.msra.mxu0 0.0
      %5032 = vmatprep.subr.mxu0 0.0
      %5033 = vmatpush1.msra.mxu0 0.0
      %5034 = vmatprep.subr.mxu0 0.0
      %5035 = vmatpush1.msra.mxu0 0.0
      %5036 = vmatprep.subr.mxu0 0.0
      %5037 = vmatpush1.msra.mxu0 0.0
      %5038 = vmatprep.subr.mxu0 0.0
      %5039 = vmatpush1.msra.mxu0 0.0
      %5040 = vmatprep.subr.mxu0 0.0
      %5041 = vmatpush1.msra.mxu0 0.0
      %5042 = vmatprep.subr.mxu0 0.0
      %5043 = vmatpush1.msra.mxu0 0.0
      %5044 = vmatprep.subr.mxu0 0.0
      %5045 = vmatpush1.msra.mxu0 0.0
      %5046 = vmatprep.subr.mxu0 0.0
      %5047 = vmatpush1.msra.mxu0 0.0
      %5048 = vmatprep.subr.mxu0 0.0
      %5049 = vmatpush1.msra.mxu0 0.0
      %5050 = vmatprep.subr.mxu0 0.0
      %5051 = vmatpush1.msra.mxu0 0.0
      %5052 = vmatprep.subr.mxu0 0.0
      %5053 = vmatpush1.msra.mxu0 %v4125
      %5054 = vmatprep.subr.mxu0 0.0
      %5055 = vmatpush1.msra.mxu0 %v4124
      %5056 = vmatprep.subr.mxu0 0.0
      %5057 = vmatpush1.msra.mxu0 %v4123
      %5058 = vmatprep.subr.mxu0 0.0
      %5059 = vmatpush1.msra.mxu0 %v4122
      %5060 = vmatprep.subr.mxu0 0.0
      %5061 = vmatpush2.msra.mxu0 0.0
      %5062 = vmatprep.subr.mxu0 0.0
      %5063 = vmatpush2.msra.mxu0 0.0
      %5064 = vmatprep.subr.mxu0 0.0
      %5065 = vmatpush2.msra.mxu0 0.0
      %5066 = vmatprep.subr.mxu0 0.0
      %5067 = vmatpush2.msra.mxu0 0.0
      %5068 = vmatprep.subr.mxu0 0.0
      %5069 = vmatpush2.msra.mxu0 0.0
      %5070 = vmatprep.subr.mxu0 0.0
      %5071 = vmatpush2.msra.mxu0 0.0
      %5072 = vmatprep.subr.mxu0 0.0
      %5073 = vmatpush2.msra.mxu0 0.0
      %5074 = vmatprep.subr.mxu0 0.0
      %5075 = vmatpush2.msra.mxu0 0.0
      %5076 = vmatprep.subr.mxu0 0.0
      %5077 = vmatpush2.msra.mxu0 0.0
      %5078 = vmatprep.subr.mxu0 0.0
      %5079 = vmatpush2.msra.mxu0 0.0
      %5080 = vmatprep.subr.mxu0 0.0
      %5081 = vmatpush2.msra.mxu0 0.0
      %5082 = vmatprep.subr.mxu0 0.0
      %5083 = vmatpush2.msra.mxu0 0.0
      %5084 = vmatprep.subr.mxu0 0.0
      %5085 = vmatpush2.msra.mxu0 0.0
      %5086 = vmatprep.subr.mxu0 0.0
      %5087 = vmatpush2.msra.mxu0 0.0
      %5088 = vmatprep.subr.mxu0 0.0
      %5089 = vmatpush2.msra.mxu0 0.0
      %5090 = vmatprep.subr.mxu0 0.0
      %5091 = vmatpush2.msra.mxu0 0.0
      %5092 = vmatprep.mubr.f32.mxu0 0.0
      %5093 = vmatmul.mubr.f32.gmra.mxu0 %v5026
      %v5094 = vpop.f32.mrf.mxu0
      %v5095 = vadd.f32 %v4371, %v5094
      %v5096 = vpop.f32.mrf.mxu0
      %5097 = vdwg.mxu0
      %v5098 = vadd.f32 %v5023, %v5095
      %v5099 = vxor.u32 %v5098, 2147483648
      %v5100 = vmul.f32 %v5099, 1.442695
      %v5101 = vpow.pop %v5100
      %v5102 = vadd.f32 %v5101, 1.0
      %v5103 = vrcp.pop %v5102
      %v5104 = vmul.f32 1.0, %v5103
      %5106 = vrot.lane.b32.xlu0 %v5095, 64
      %v5107 = vpop.permute.xlu0 %5106
      %v5109 = vmul.f32 %v5104, %v5107
      %5111 = vrot.lane.b32.xlu0 %v5109, 64
      %v5112 = vpop.permute.xlu0 %5111
      %v5114 = vadd.f32 %v5023, %v5112
      %v5115 = vtanh.pop %v5114
      %v5116 = vsub.f32 1.0, %v5104
      %5118 = vrot.lane.b32.xlu0 %v5115, 96
      %v5119 = vpop.permute.xlu0 %5118
      %v5121 = vmul.f32 %v5116, %v5119
      %v5122 = vmul.f32 %v5104, %v4798
      %v5123 = vadd.f32 %v5121, %v5122
      %5125 = vrot.lane.b32.xlu0 %v5123, 96
      %v5126 = vpop.permute.xlu0 %5125
      %5128 = vmatprep.subr.mxu0 0.0
      %5129 = vmatpush1.msra.mxu0 0.0
      %5130 = vmatprep.subr.mxu0 0.0
      %5131 = vmatpush1.msra.mxu0 0.0
      %5132 = vmatprep.subr.mxu0 0.0
      %5133 = vmatpush1.msra.mxu0 0.0
      %5134 = vmatprep.subr.mxu0 0.0
      %5135 = vmatpush1.msra.mxu0 0.0
      %5136 = vmatprep.subr.mxu0 0.0
      %5137 = vmatpush1.msra.mxu0 0.0
      %5138 = vmatprep.subr.mxu0 0.0
      %5139 = vmatpush1.msra.mxu0 0.0
      %5140 = vmatprep.subr.mxu0 0.0
      %5141 = vmatpush1.msra.mxu0 0.0
      %5142 = vmatprep.subr.mxu0 0.0
      %5143 = vmatpush1.msra.mxu0 0.0
      %5144 = vmatprep.subr.mxu0 0.0
      %5145 = vmatpush1.msra.mxu0 0.0
      %5146 = vmatprep.subr.mxu0 0.0
      %5147 = vmatpush1.msra.mxu0 0.0
      %5148 = vmatprep.subr.mxu0 0.0
      %5149 = vmatpush1.msra.mxu0 0.0
      %5150 = vmatprep.subr.mxu0 0.0
      %5151 = vmatpush1.msra.mxu0 0.0
      %5152 = vmatprep.subr.mxu0 0.0
      %5153 = vmatpush1.msra.mxu0 0.0
      %5154 = vmatprep.subr.mxu0 0.0
      %5155 = vmatpush1.msra.mxu0 0.0
      %5156 = vmatprep.subr.mxu0 0.0
      %5157 = vmatpush1.msra.mxu0 0.0
      %5158 = vmatprep.subr.mxu0 0.0
      %5159 = vmatpush1.msra.mxu0 %v5126
      %5160 = vmatprep.subr.mxu0 0.0
      %5161 = vmatpush2.msra.mxu0 0.0
      %5162 = vmatprep.subr.mxu0 0.0
      %5163 = vmatpush2.msra.mxu0 0.0
      %5164 = vmatprep.subr.mxu0 0.0
      %5165 = vmatpush2.msra.mxu0 0.0
      %5166 = vmatprep.subr.mxu0 0.0
      %5167 = vmatpush2.msra.mxu0 0.0
      %5168 = vmatprep.subr.mxu0 0.0
      %5169 = vmatpush2.msra.mxu0 0.0
      %5170 = vmatprep.subr.mxu0 0.0
      %5171 = vmatpush2.msra.mxu0 0.0
      %5172 = vmatprep.subr.mxu0 0.0
      %5173 = vmatpush2.msra.mxu0 0.0
      %5174 = vmatprep.subr.mxu0 0.0
      %5175 = vmatpush2.msra.mxu0 0.0
      %5176 = vmatprep.subr.mxu0 0.0
      %5177 = vmatpush2.msra.mxu0 0.0
      %5178 = vmatprep.subr.mxu0 0.0
      %5179 = vmatpush2.msra.mxu0 0.0
      %5180 = vmatprep.subr.mxu0 0.0
      %5181 = vmatpush2.msra.mxu0 0.0
      %5182 = vmatprep.subr.mxu0 0.0
      %5183 = vmatpush2.msra.mxu0 0.0
      %5184 = vmatprep.subr.mxu0 0.0
      %5185 = vmatpush2.msra.mxu0 0.0
      %5186 = vmatprep.subr.mxu0 0.0
      %5187 = vmatpush2.msra.mxu0 0.0
      %5188 = vmatprep.subr.mxu0 0.0
      %5189 = vmatpush2.msra.mxu0 0.0
      %5190 = vmatprep.subr.mxu0 0.0
      %5191 = vmatpush2.msra.mxu0 0.0
      %5192 = vmatprep.mubr.f32.mxu0 0.0
      %5193 = vmatmul.mubr.f32.gmra.mxu0 %v4139
      %v5194 = vpop.f32.mrf.mxu0
      %v5195 = vadd.f32 0.0, %v5194
      %v5196 = vpop.f32.mrf.mxu0
      %5197 = vdwg.mxu0
      %v5198 = vlaneseq
      %v5199 = vshrl.u32 %v5198, 7
      %v5200 = vsub.s32 6, %v5199
      %v5201 = vrot.slane %v1592, %v5200
      %v5203 = vsel %vm487, %v5195, 0
      %5205 = vmatprep.subr.mxu0 0.0
      %5206 = vmatpush1.msra.mxu0 0.0
      %5207 = vmatprep.subr.mxu0 0.0
      %5208 = vmatpush1.msra.mxu0 0.0
      %5209 = vmatprep.subr.mxu0 0.0
      %5210 = vmatpush1.msra.mxu0 0.0
      %5211 = vmatprep.subr.mxu0 0.0
      %5212 = vmatpush1.msra.mxu0 0.0
      %5213 = vmatprep.subr.mxu0 0.0
      %5214 = vmatpush1.msra.mxu0 0.0
      %5215 = vmatprep.subr.mxu0 0.0
      %5216 = vmatpush1.msra.mxu0 0.0
      %5217 = vmatprep.subr.mxu0 0.0
      %5218 = vmatpush1.msra.mxu0 0.0
      %5219 = vmatprep.subr.mxu0 0.0
      %5220 = vmatpush1.msra.mxu0 0.0
      %5221 = vmatprep.subr.mxu0 0.0
      %5222 = vmatpush1.msra.mxu0 0.0
      %5223 = vmatprep.subr.mxu0 0.0
      %5224 = vmatpush1.msra.mxu0 0.0
      %5225 = vmatprep.subr.mxu0 0.0
      %5226 = vmatpush1.msra.mxu0 0.0
      %5227 = vmatprep.subr.mxu0 0.0
      %5228 = vmatpush1.msra.mxu0 0.0
      %5229 = vmatprep.subr.mxu0 0.0
      %5230 = vmatpush1.msra.mxu0 %v4117
      %5231 = vmatprep.subr.mxu0 0.0
      %5232 = vmatpush1.msra.mxu0 %v4116
      %5233 = vmatprep.subr.mxu0 0.0
      %5234 = vmatpush1.msra.mxu0 %v4115
      %5235 = vmatprep.subr.mxu0 0.0
      %5236 = vmatpush1.msra.mxu0 %v4114
      %5237 = vmatprep.subr.mxu0 0.0
      %5238 = vmatpush2.msra.mxu0 0.0
      %5239 = vmatprep.subr.mxu0 0.0
      %5240 = vmatpush2.msra.mxu0 0.0
      %5241 = vmatprep.subr.mxu0 0.0
      %5242 = vmatpush2.msra.mxu0 0.0
      %5243 = vmatprep.subr.mxu0 0.0
      %5244 = vmatpush2.msra.mxu0 0.0
      %5245 = vmatprep.subr.mxu0 0.0
      %5246 = vmatpush2.msra.mxu0 0.0
      %5247 = vmatprep.subr.mxu0 0.0
      %5248 = vmatpush2.msra.mxu0 0.0
      %5249 = vmatprep.subr.mxu0 0.0
      %5250 = vmatpush2.msra.mxu0 0.0
      %5251 = vmatprep.subr.mxu0 0.0
      %5252 = vmatpush2.msra.mxu0 0.0
      %5253 = vmatprep.subr.mxu0 0.0
      %5254 = vmatpush2.msra.mxu0 0.0
      %5255 = vmatprep.subr.mxu0 0.0
      %5256 = vmatpush2.msra.mxu0 0.0
      %5257 = vmatprep.subr.mxu0 0.0
      %5258 = vmatpush2.msra.mxu0 0.0
      %5259 = vmatprep.subr.mxu0 0.0
      %5260 = vmatpush2.msra.mxu0 0.0
      %5261 = vmatprep.subr.mxu0 0.0
      %5262 = vmatpush2.msra.mxu0 0.0
      %5263 = vmatprep.subr.mxu0 0.0
      %5264 = vmatpush2.msra.mxu0 0.0
      %5265 = vmatprep.subr.mxu0 0.0
      %5266 = vmatpush2.msra.mxu0 0.0
      %5267 = vmatprep.subr.mxu0 0.0
      %5268 = vmatpush2.msra.mxu0 0.0
      %5269 = vmatprep.mubr.f32.mxu0 0.0
      %5270 = vmatmul.mubr.f32.gmra.mxu0 %v5203
      %v5271 = vpop.f32.mrf.mxu0
      %v5272 = vadd.f32 %v5201, %v5271
      %v5273 = vpop.f32.mrf.mxu0
      %5274 = vdwg.mxu0
      %vm5275 = vcmp.ge.f32.partialorder %v5272, 0.0
      %v5276 = vmul.f32 %v5272, 0.01
      %v5277 = vsel %vm5275, %v5272, %v5276
      %v5279 = vsel %vm487, %v5277, 0
      %5281 = vmatprep.subr.mxu0 0.0
      %5282 = vmatpush1.msra.mxu0 0.0
      %5283 = vmatprep.subr.mxu0 0.0
      %5284 = vmatpush1.msra.mxu0 0.0
      %5285 = vmatprep.subr.mxu0 0.0
      %5286 = vmatpush1.msra.mxu0 0.0
      %5287 = vmatprep.subr.mxu0 0.0
      %5288 = vmatpush1.msra.mxu0 0.0
      %5289 = vmatprep.subr.mxu0 0.0
      %5290 = vmatpush1.msra.mxu0 0.0
      %5291 = vmatprep.subr.mxu0 0.0
      %5292 = vmatpush1.msra.mxu0 0.0
      %5293 = vmatprep.subr.mxu0 0.0
      %5294 = vmatpush1.msra.mxu0 0.0
      %5295 = vmatprep.subr.mxu0 0.0
      %5296 = vmatpush1.msra.mxu0 0.0
      %5297 = vmatprep.subr.mxu0 0.0
      %5298 = vmatpush1.msra.mxu0 0.0
      %5299 = vmatprep.subr.mxu0 0.0
      %5300 = vmatpush1.msra.mxu0 0.0
      %5301 = vmatprep.subr.mxu0 0.0
      %5302 = vmatpush1.msra.mxu0 0.0
      %5303 = vmatprep.subr.mxu0 0.0
      %5304 = vmatpush1.msra.mxu0 0.0
      %5305 = vmatprep.subr.mxu0 0.0
      %5306 = vmatpush1.msra.mxu0 %v4121
      %5307 = vmatprep.subr.mxu0 0.0
      %5308 = vmatpush1.msra.mxu0 %v4120
      %5309 = vmatprep.subr.mxu0 0.0
      %5310 = vmatpush1.msra.mxu0 %v4119
      %5311 = vmatprep.subr.mxu0 0.0
      %5312 = vmatpush1.msra.mxu0 %v4118
      %5313 = vmatprep.subr.mxu0 0.0
      %5314 = vmatpush2.msra.mxu0 0.0
      %5315 = vmatprep.subr.mxu0 0.0
      %5316 = vmatpush2.msra.mxu0 0.0
      %5317 = vmatprep.subr.mxu0 0.0
      %5318 = vmatpush2.msra.mxu0 0.0
      %5319 = vmatprep.subr.mxu0 0.0
      %5320 = vmatpush2.msra.mxu0 0.0
      %5321 = vmatprep.subr.mxu0 0.0
      %5322 = vmatpush2.msra.mxu0 0.0
      %5323 = vmatprep.subr.mxu0 0.0
      %5324 = vmatpush2.msra.mxu0 0.0
      %5325 = vmatprep.subr.mxu0 0.0
      %5326 = vmatpush2.msra.mxu0 0.0
      %5327 = vmatprep.subr.mxu0 0.0
      %5328 = vmatpush2.msra.mxu0 0.0
      %5329 = vmatprep.subr.mxu0 0.0
      %5330 = vmatpush2.msra.mxu0 0.0
      %5331 = vmatprep.subr.mxu0 0.0
      %5332 = vmatpush2.msra.mxu0 0.0
      %5333 = vmatprep.subr.mxu0 0.0
      %5334 = vmatpush2.msra.mxu0 0.0
      %5335 = vmatprep.subr.mxu0 0.0
      %5336 = vmatpush2.msra.mxu0 0.0
      %5337 = vmatprep.subr.mxu0 0.0
      %5338 = vmatpush2.msra.mxu0 0.0
      %5339 = vmatprep.subr.mxu0 0.0
      %5340 = vmatpush2.msra.mxu0 0.0
      %5341 = vmatprep.subr.mxu0 0.0
      %5342 = vmatpush2.msra.mxu0 0.0
      %5343 = vmatprep.subr.mxu0 0.0
      %5344 = vmatpush2.msra.mxu0 0.0
      %5345 = vmatprep.mubr.f32.mxu0 0.0
      %5346 = vmatmul.mubr.f32.gmra.mxu0 %v5279
      %v5347 = vpop.f32.mrf.mxu0
      %v5348 = vadd.f32 %v4294, %v5347
      %v5349 = vpop.f32.mrf.mxu0
      %5350 = vdwg.mxu0
      %v5351 = vsel %vm487, %v5126, 0
      %5353 = vmatprep.subr.mxu0 0.0
      %5354 = vmatpush1.msra.mxu0 0.0
      %5355 = vmatprep.subr.mxu0 0.0
      %5356 = vmatpush1.msra.mxu0 0.0
      %5357 = vmatprep.subr.mxu0 0.0
      %5358 = vmatpush1.msra.mxu0 0.0
      %5359 = vmatprep.subr.mxu0 0.0
      %5360 = vmatpush1.msra.mxu0 0.0
      %5361 = vmatprep.subr.mxu0 0.0
      %5362 = vmatpush1.msra.mxu0 0.0
      %5363 = vmatprep.subr.mxu0 0.0
      %5364 = vmatpush1.msra.mxu0 0.0
      %5365 = vmatprep.subr.mxu0 0.0
      %5366 = vmatpush1.msra.mxu0 0.0
      %5367 = vmatprep.subr.mxu0 0.0
      %5368 = vmatpush1.msra.mxu0 0.0
      %5369 = vmatprep.subr.mxu0 0.0
      %5370 = vmatpush1.msra.mxu0 0.0
      %5371 = vmatprep.subr.mxu0 0.0
      %5372 = vmatpush1.msra.mxu0 0.0
      %5373 = vmatprep.subr.mxu0 0.0
      %5374 = vmatpush1.msra.mxu0 0.0
      %5375 = vmatprep.subr.mxu0 0.0
      %5376 = vmatpush1.msra.mxu0 0.0
      %5377 = vmatprep.subr.mxu0 0.0
      %5378 = vmatpush1.msra.mxu0 %v4125
      %5379 = vmatprep.subr.mxu0 0.0
      %5380 = vmatpush1.msra.mxu0 %v4124
      %5381 = vmatprep.subr.mxu0 0.0
      %5382 = vmatpush1.msra.mxu0 %v4123
      %5383 = vmatprep.subr.mxu0 0.0
      %5384 = vmatpush1.msra.mxu0 %v4122
      %5385 = vmatprep.subr.mxu0 0.0
      %5386 = vmatpush2.msra.mxu0 0.0
      %5387 = vmatprep.subr.mxu0 0.0
      %5388 = vmatpush2.msra.mxu0 0.0
      %5389 = vmatprep.subr.mxu0 0.0
      %5390 = vmatpush2.msra.mxu0 0.0
      %5391 = vmatprep.subr.mxu0 0.0
      %5392 = vmatpush2.msra.mxu0 0.0
      %5393 = vmatprep.subr.mxu0 0.0
      %5394 = vmatpush2.msra.mxu0 0.0
      %5395 = vmatprep.subr.mxu0 0.0
      %5396 = vmatpush2.msra.mxu0 0.0
      %5397 = vmatprep.subr.mxu0 0.0
      %5398 = vmatpush2.msra.mxu0 0.0
      %5399 = vmatprep.subr.mxu0 0.0
      %5400 = vmatpush2.msra.mxu0 0.0
      %5401 = vmatprep.subr.mxu0 0.0
      %5402 = vmatpush2.msra.mxu0 0.0
      %5403 = vmatprep.subr.mxu0 0.0
      %5404 = vmatpush2.msra.mxu0 0.0
      %5405 = vmatprep.subr.mxu0 0.0
      %5406 = vmatpush2.msra.mxu0 0.0
      %5407 = vmatprep.subr.mxu0 0.0
      %5408 = vmatpush2.msra.mxu0 0.0
      %5409 = vmatprep.subr.mxu0 0.0
      %5410 = vmatpush2.msra.mxu0 0.0
      %5411 = vmatprep.subr.mxu0 0.0
      %5412 = vmatpush2.msra.mxu0 0.0
      %5413 = vmatprep.subr.mxu0 0.0
      %5414 = vmatpush2.msra.mxu0 0.0
      %5415 = vmatprep.subr.mxu0 0.0
      %5416 = vmatpush2.msra.mxu0 0.0
      %5417 = vmatprep.mubr.f32.mxu0 0.0
      %5418 = vmatmul.mubr.f32.gmra.mxu0 %v5351
      %v5419 = vpop.f32.mrf.mxu0
      %v5420 = vadd.f32 %v4371, %v5419
      %v5421 = vpop.f32.mrf.mxu0
      %5422 = vdwg.mxu0
      %v5423 = vadd.f32 %v5348, %v5420
      %v5424 = vxor.u32 %v5423, 2147483648
      %v5425 = vmul.f32 %v5424, 1.442695
      %v5426 = vpow.pop %v5425
      %v5427 = vadd.f32 %v5426, 1.0
      %v5428 = vrcp.pop %v5427
      %v5429 = vmul.f32 1.0, %v5428
      %5431 = vrot.lane.b32.xlu0 %v5420, 64
      %v5432 = vpop.permute.xlu0 %5431
      %v5434 = vmul.f32 %v5429, %v5432
      %5436 = vrot.lane.b32.xlu0 %v5434, 64
      %v5437 = vpop.permute.xlu0 %5436
      %v5439 = vadd.f32 %v5348, %v5437
      %v5440 = vtanh.pop %v5439
      %v5441 = vsub.f32 1.0, %v5429
      %5443 = vrot.lane.b32.xlu0 %v5440, 96
      %v5444 = vpop.permute.xlu0 %5443
      %v5446 = vmul.f32 %v5441, %v5444
      %v5447 = vmul.f32 %v5429, %v5123
      %v5448 = vadd.f32 %v5446, %v5447
      %5450 = vrot.lane.b32.xlu0 %v5448, 96
      %v5451 = vpop.permute.xlu0 %5450
      %v5452 = vsel %vm487, %v5451, 0
      %5454 = vmatprep.subr.mxu0 0.0
      %5455 = vmatpush1.msra.mxu0 0.0
      %5456 = vmatprep.subr.mxu0 0.0
      %5457 = vmatpush1.msra.mxu0 0.0
      %5458 = vmatprep.subr.mxu0 0.0
      %5459 = vmatpush1.msra.mxu0 0.0
      %5460 = vmatprep.subr.mxu0 0.0
      %5461 = vmatpush1.msra.mxu0 0.0
      %5462 = vmatprep.subr.mxu0 0.0
      %5463 = vmatpush1.msra.mxu0 0.0
      %5464 = vmatprep.subr.mxu0 0.0
      %5465 = vmatpush1.msra.mxu0 0.0
      %5466 = vmatprep.subr.mxu0 0.0
      %5467 = vmatpush1.msra.mxu0 0.0
      %5468 = vmatprep.subr.mxu0 0.0
      %5469 = vmatpush1.msra.mxu0 0.0
      %5470 = vmatprep.subr.mxu0 0.0
      %5471 = vmatpush1.msra.mxu0 0.0
      %5472 = vmatprep.subr.mxu0 0.0
      %5473 = vmatpush1.msra.mxu0 0.0
      %5474 = vmatprep.subr.mxu0 0.0
      %5475 = vmatpush1.msra.mxu0 0.0
      %5476 = vmatprep.subr.mxu0 0.0
      %5477 = vmatpush1.msra.mxu0 0.0
      %5478 = vmatprep.subr.mxu0 0.0
      %5479 = vmatpush1.msra.mxu0 %v4133
      %5480 = vmatprep.subr.mxu0 0.0
      %5481 = vmatpush1.msra.mxu0 %v4132
      %5482 = vmatprep.subr.mxu0 0.0
      %5483 = vmatpush1.msra.mxu0 %v4131
      %5484 = vmatprep.subr.mxu0 0.0
      %5485 = vmatpush1.msra.mxu0 %v4130
      %5486 = vmatprep.subr.mxu0 0.0
      %5487 = vmatpush2.msra.mxu0 0.0
      %5488 = vmatprep.subr.mxu0 0.0
      %5489 = vmatpush2.msra.mxu0 0.0
      %5490 = vmatprep.subr.mxu0 0.0
      %5491 = vmatpush2.msra.mxu0 0.0
      %5492 = vmatprep.subr.mxu0 0.0
      %5493 = vmatpush2.msra.mxu0 0.0
      %5494 = vmatprep.subr.mxu0 0.0
      %5495 = vmatpush2.msra.mxu0 0.0
      %5496 = vmatprep.subr.mxu0 0.0
      %5497 = vmatpush2.msra.mxu0 0.0
      %5498 = vmatprep.subr.mxu0 0.0
      %5499 = vmatpush2.msra.mxu0 0.0
      %5500 = vmatprep.subr.mxu0 0.0
      %5501 = vmatpush2.msra.mxu0 0.0
      %5502 = vmatprep.subr.mxu0 0.0
      %5503 = vmatpush2.msra.mxu0 0.0
      %5504 = vmatprep.subr.mxu0 0.0
      %5505 = vmatpush2.msra.mxu0 0.0
      %5506 = vmatprep.subr.mxu0 0.0
      %5507 = vmatpush2.msra.mxu0 0.0
      %5508 = vmatprep.subr.mxu0 0.0
      %5509 = vmatpush2.msra.mxu0 0.0
      %5510 = vmatprep.subr.mxu0 0.0
      %5511 = vmatpush2.msra.mxu0 0.0
      %5512 = vmatprep.subr.mxu0 0.0
      %5513 = vmatpush2.msra.mxu0 0.0
      %5514 = vmatprep.subr.mxu0 0.0
      %5515 = vmatpush2.msra.mxu0 0.0
      %5516 = vmatprep.subr.mxu0 0.0
      %5517 = vmatpush2.msra.mxu0 0.0
      %5518 = vmatprep.mubr.f32.mxu0 0.0
      %5519 = vmatmul.mubr.f32.gmra.mxu0 %v5452
      %v5520 = vpop.f32.mrf.mxu0
      %v5521 = vadd.f32 0.0, %v5520
      %v5522 = vpop.f32.mrf.mxu0
      %5523 = vdwg.mxu0
      %5524 = vmatprep.subr.mxu0 0.0
      %5525 = vmatpush1.msra.mxu0 0.0
      %5526 = vmatprep.subr.mxu0 0.0
      %5527 = vmatpush1.msra.mxu0 0.0
      %5528 = vmatprep.subr.mxu0 0.0
      %5529 = vmatpush1.msra.mxu0 0.0
      %5530 = vmatprep.subr.mxu0 0.0
      %5531 = vmatpush1.msra.mxu0 0.0
      %5532 = vmatprep.subr.mxu0 0.0
      %5533 = vmatpush1.msra.mxu0 0.0
      %5534 = vmatprep.subr.mxu0 0.0
      %5535 = vmatpush1.msra.mxu0 0.0
      %5536 = vmatprep.subr.mxu0 0.0
      %5537 = vmatpush1.msra.mxu0 0.0
      %5538 = vmatprep.subr.mxu0 0.0
      %5539 = vmatpush1.msra.mxu0 0.0
      %5540 = vmatprep.subr.mxu0 0.0
      %5541 = vmatpush1.msra.mxu0 0.0
      %5542 = vmatprep.subr.mxu0 0.0
      %5543 = vmatpush1.msra.mxu0 0.0
      %5544 = vmatprep.subr.mxu0 0.0
      %5545 = vmatpush1.msra.mxu0 0.0
      %5546 = vmatprep.subr.mxu0 0.0
      %5547 = vmatpush1.msra.mxu0 0.0
      %5548 = vmatprep.subr.mxu0 0.0
      %5549 = vmatpush1.msra.mxu0 %v4129
      %5550 = vmatprep.subr.mxu0 0.0
      %5551 = vmatpush1.msra.mxu0 %v4128
      %5552 = vmatprep.subr.mxu0 0.0
      %5553 = vmatpush1.msra.mxu0 %v4127
      %5554 = vmatprep.subr.mxu0 0.0
      %5555 = vmatpush1.msra.mxu0 %v4126
      %5556 = vmatprep.subr.mxu0 0.0
      %5557 = vmatpush2.msra.mxu0 0.0
      %5558 = vmatprep.subr.mxu0 0.0
      %5559 = vmatpush2.msra.mxu0 0.0
      %5560 = vmatprep.subr.mxu0 0.0
      %5561 = vmatpush2.msra.mxu0 0.0
      %5562 = vmatprep.subr.mxu0 0.0
      %5563 = vmatpush2.msra.mxu0 0.0
      %5564 = vmatprep.subr.mxu0 0.0
      %5565 = vmatpush2.msra.mxu0 0.0
      %5566 = vmatprep.subr.mxu0 0.0
      %5567 = vmatpush2.msra.mxu0 0.0
      %5568 = vmatprep.subr.mxu0 0.0
      %5569 = vmatpush2.msra.mxu0 0.0
      %5570 = vmatprep.subr.mxu0 0.0
      %5571 = vmatpush2.msra.mxu0 0.0
      %5572 = vmatprep.subr.mxu0 0.0
      %5573 = vmatpush2.msra.mxu0 0.0
      %5574 = vmatprep.subr.mxu0 0.0
      %5575 = vmatpush2.msra.mxu0 0.0
      %5576 = vmatprep.subr.mxu0 0.0
      %5577 = vmatpush2.msra.mxu0 0.0
      %5578 = vmatprep.subr.mxu0 0.0
      %5579 = vmatpush2.msra.mxu0 0.0
      %5580 = vmatprep.subr.mxu0 0.0
      %5581 = vmatpush2.msra.mxu0 0.0
      %5582 = vmatprep.subr.mxu0 0.0
      %5583 = vmatpush2.msra.mxu0 0.0
      %5584 = vmatprep.subr.mxu0 0.0
      %5585 = vmatpush2.msra.mxu0 0.0
      %5586 = vmatprep.subr.mxu0 0.0
      %5587 = vmatpush2.msra.mxu0 0.0
      %5588 = vmatprep.mubr.f32.mxu0 0.0
      %5589 = vmatmul.mubr.f32.gmra.mxu0 %v489
      %v5590 = vpop.f32.mrf.mxu0
      %v5591 = vadd.f32 %v5521, %v5590
      %v5592 = vpop.f32.mrf.mxu0
      %5593 = vdwg.mxu0
      %v5594 = vlaneseq
      %v5595 = vshrl.u32 %v5594, 7
      %v5596 = vsub.s32 1, %v5595
      %v5597 = vrot.slane %v1593, %v5596
      %v5598 = vadd.f32 %v5591, %v5597
      %vm5599 = vcmp.ge.f32.partialorder %v5598, 0.0
      %v5600 = vmul.f32 %v5598, 0.01
      %v5601 = vsel %vm5599, %v5598, %v5600
      %v5602 = vlaneseq
      %v5603 = vshrl.u32 %v5602, 7
      %v5604 = vsub.s32 2, %v5603
      %v5605 = vrot.slane %v1593, %v5604
      %v5607 = vsel %vm487, %v5601, 0
      %5609 = vmatprep.subr.mxu0 0.0
      %5610 = vmatpush1.msra.mxu0 0.0
      %5611 = vmatprep.subr.mxu0 0.0
      %5612 = vmatpush1.msra.mxu0 0.0
      %5613 = vmatprep.subr.mxu0 0.0
      %5614 = vmatpush1.msra.mxu0 0.0
      %5615 = vmatprep.subr.mxu0 0.0
      %5616 = vmatpush1.msra.mxu0 0.0
      %5617 = vmatprep.subr.mxu0 0.0
      %5618 = vmatpush1.msra.mxu0 0.0
      %5619 = vmatprep.subr.mxu0 0.0
      %5620 = vmatpush1.msra.mxu0 0.0
      %5621 = vmatprep.subr.mxu0 0.0
      %5622 = vmatpush1.msra.mxu0 0.0
      %5623 = vmatprep.subr.mxu0 0.0
      %5624 = vmatpush1.msra.mxu0 0.0
      %5625 = vmatprep.subr.mxu0 0.0
      %5626 = vmatpush1.msra.mxu0 0.0
      %5627 = vmatprep.subr.mxu0 0.0
      %5628 = vmatpush1.msra.mxu0 0.0
      %5629 = vmatprep.subr.mxu0 0.0
      %5630 = vmatpush1.msra.mxu0 0.0
      %5631 = vmatprep.subr.mxu0 0.0
      %5632 = vmatpush1.msra.mxu0 0.0
      %5633 = vmatprep.subr.mxu0 0.0
      %5634 = vmatpush1.msra.mxu0 %v4137
      %5635 = vmatprep.subr.mxu0 0.0
      %5636 = vmatpush1.msra.mxu0 %v4136
      %5637 = vmatprep.subr.mxu0 0.0
      %5638 = vmatpush1.msra.mxu0 %v4135
      %5639 = vmatprep.subr.mxu0 0.0
      %5640 = vmatpush1.msra.mxu0 %v4134
      %5641 = vmatprep.subr.mxu0 0.0
      %5642 = vmatpush2.msra.mxu0 0.0
      %5643 = vmatprep.subr.mxu0 0.0
      %5644 = vmatpush2.msra.mxu0 0.0
      %5645 = vmatprep.subr.mxu0 0.0
      %5646 = vmatpush2.msra.mxu0 0.0
      %5647 = vmatprep.subr.mxu0 0.0
      %5648 = vmatpush2.msra.mxu0 0.0
      %5649 = vmatprep.subr.mxu0 0.0
      %5650 = vmatpush2.msra.mxu0 0.0
      %5651 = vmatprep.subr.mxu0 0.0
      %5652 = vmatpush2.msra.mxu0 0.0
      %5653 = vmatprep.subr.mxu0 0.0
      %5654 = vmatpush2.msra.mxu0 0.0
      %5655 = vmatprep.subr.mxu0 0.0
      %5656 = vmatpush2.msra.mxu0 0.0
      %5657 = vmatprep.subr.mxu0 0.0
      %5658 = vmatpush2.msra.mxu0 0.0
      %5659 = vmatprep.subr.mxu0 0.0
      %5660 = vmatpush2.msra.mxu0 0.0
      %5661 = vmatprep.subr.mxu0 0.0
      %5662 = vmatpush2.msra.mxu0 0.0
      %5663 = vmatprep.subr.mxu0 0.0
      %5664 = vmatpush2.msra.mxu0 0.0
      %5665 = vmatprep.subr.mxu0 0.0
      %5666 = vmatpush2.msra.mxu0 0.0
      %5667 = vmatprep.subr.mxu0 0.0
      %5668 = vmatpush2.msra.mxu0 0.0
      %5669 = vmatprep.subr.mxu0 0.0
      %5670 = vmatpush2.msra.mxu0 0.0
      %5671 = vmatprep.subr.mxu0 0.0
      %5672 = vmatpush2.msra.mxu0 0.0
      %5673 = vmatprep.mubr.f32.mxu0 0.0
      %5674 = vmatmul.mubr.f32.gmra.mxu0 %v5607
      %v5675 = vpop.f32.mrf.mxu0
      %v5676 = vadd.f32 %v5605, %v5675
      %v5677 = vpop.f32.mrf.mxu0
      %5678 = vdwg.mxu0
      %vm5679 = vcmask 523264
      %v5681 = vsel %vm5679, %v5676, 0
      %5683 = vmatprep.subr.mxu0 0.0
      %5684 = vmatpush1.msra.mxu0 0.0
      %5685 = vmatprep.subr.mxu0 0.0
      %5686 = vmatpush1.msra.mxu0 0.0
      %5687 = vmatprep.subr.mxu0 0.0
      %5688 = vmatpush1.msra.mxu0 0.0
      %5689 = vmatprep.subr.mxu0 0.0
      %5690 = vmatpush1.msra.mxu0 0.0
      %5691 = vmatprep.subr.mxu0 0.0
      %5692 = vmatpush1.msra.mxu0 0.0
      %5693 = vmatprep.subr.mxu0 0.0
      %5694 = vmatpush1.msra.mxu0 0.0
      %5695 = vmatprep.subr.mxu0 0.0
      %5696 = vmatpush1.msra.mxu0 0.0
      %5697 = vmatprep.subr.mxu0 0.0
      %5698 = vmatpush1.msra.mxu0 0.0
      %5699 = vmatprep.subr.mxu0 0.0
      %5700 = vmatpush1.msra.mxu0 %v407
      %5701 = vmatprep.subr.mxu0 0.0
      %5702 = vmatpush1.msra.mxu0 %v406
      %5703 = vmatprep.subr.mxu0 0.0
      %5704 = vmatpush1.msra.mxu0 %v405
      %5705 = vmatprep.subr.mxu0 0.0
      %5706 = vmatpush1.msra.mxu0 %v404
      %5707 = vmatprep.subr.mxu0 0.0
      %5708 = vmatpush1.msra.mxu0 %v403
      %5709 = vmatprep.subr.mxu0 0.0
      %5710 = vmatpush1.msra.mxu0 %v402
      %5711 = vmatprep.subr.mxu0 0.0
      %5712 = vmatpush1.msra.mxu0 %v401
      %5713 = vmatprep.subr.mxu0 0.0
      %5714 = vmatpush1.msra.mxu0 %v400
      %5715 = vmatprep.subr.mxu0 0.0
      %5716 = vmatpush2.msra.mxu0 0.0
      %5717 = vmatprep.subr.mxu0 0.0
      %5718 = vmatpush2.msra.mxu0 0.0
      %5719 = vmatprep.subr.mxu0 0.0
      %5720 = vmatpush2.msra.mxu0 0.0
      %5721 = vmatprep.subr.mxu0 0.0
      %5722 = vmatpush2.msra.mxu0 0.0
      %5723 = vmatprep.subr.mxu0 0.0
      %5724 = vmatpush2.msra.mxu0 0.0
      %5725 = vmatprep.subr.mxu0 0.0
      %5726 = vmatpush2.msra.mxu0 0.0
      %5727 = vmatprep.subr.mxu0 0.0
      %5728 = vmatpush2.msra.mxu0 0.0
      %5729 = vmatprep.subr.mxu0 0.0
      %5730 = vmatpush2.msra.mxu0 0.0
      %5731 = vmatprep.subr.mxu0 0.0
      %5732 = vmatpush2.msra.mxu0 0.0
      %5733 = vmatprep.subr.mxu0 0.0
      %5734 = vmatpush2.msra.mxu0 0.0
      %5735 = vmatprep.subr.mxu0 0.0
      %5736 = vmatpush2.msra.mxu0 0.0
      %5737 = vmatprep.subr.mxu0 0.0
      %5738 = vmatpush2.msra.mxu0 0.0
      %5739 = vmatprep.subr.mxu0 0.0
      %5740 = vmatpush2.msra.mxu0 0.0
      %5741 = vmatprep.subr.mxu0 0.0
      %5742 = vmatpush2.msra.mxu0 0.0
      %5743 = vmatprep.subr.mxu0 0.0
      %5744 = vmatpush2.msra.mxu0 0.0
      %5745 = vmatprep.subr.mxu0 0.0
      %5746 = vmatpush2.msra.mxu0 0.0
      %5747 = vmatprep.mubr.f32.mxu0 0.0
      %5748 = vmatmul.mubr.f32.gmra.mxu0 %v5681
      %v5749 = vpop.f32.mrf.mxu0
      %v5750 = vadd.f32 0.0, %v5749
      %v5751 = vpop.f32.mrf.mxu0
      %5752 = vdwg.mxu0
      %5753 = vst [vmem:[%s388] sm:$0xff] %v5750
      %p5754 = scmp.lt.s32.totalorder %s19, 3
      %s5755 = scalar_select %p5754, %s19, 3
      %s5756 = smul.addr %s5755, 8
      %s5757 = scalar_lea.vmem %s8, %s5756
      // Predicated region
      $region53: #{cvgae_forward.1} parent=51 // pred_check
        %p5758 = pneg %p235
      $region54: #{cvgae_forward.1} parent=51 // pred_check_branch
        %5760 = sbr.rel (%p5758) target = $region56
      $region55: #{cvgae_forward.1} parent=51 // pred_region
        _
      $region56: #{cvgae_forward.1} parent=51 // pred_fallthru
        _
    $region52: #{cvgae_forward.1} parent=5 // pred_fallthru
      _
    %p5761 = scmp.le.s32.totalorder 2, %s14
    // Predicated region
    $region57: #{cvgae_forward.1} parent=5 // pred_check
      %p5762 = pneg %p5761
    $region58: #{cvgae_forward.1} parent=5 // pred_check_branch
      %5764 = sbr.rel (%p5762) target = $region60
    $region59: #{cvgae_forward.1} parent=5 // pred_region
      %s5765 = ssub.s32 %s14, 2
      // Predicated region
      $region61: #{cvgae_forward.1} parent=59 // pred_check
        %p5766 = pneg %p241
      $region62: #{cvgae_forward.1} parent=59 // pred_check_branch
        %5768 = sbr.rel (%p5766) target = $region64
      $region63: #{cvgae_forward.1} parent=59 // pred_region
        %p5769 = scmp.lt.s32.totalorder %s20, 3
        %s5770 = scalar_select %p5769, %s20, 3
        %s5771 = smul.addr %s5770, 8
        %s5772 = scalar_lea.vmem %s8, %s5771
      $region64: #{cvgae_forward.1} parent=59 // pred_fallthru
        _
    $region60: #{cvgae_forward.1} parent=5 // pred_fallthru
      _
  $region6: #{cvgae_forward.1} parent=0 // loop_footer
    %s18 = sadd.s32 1, %s14
  $region7: #{cvgae_forward.1} parent=0 // loop_footer_branch
    %13 = sbr.rel target = $region3
  $region8: #{cvgae_forward.1} parent=0 // loop_exit
    _

</llo_original>
